<compile_context>
chip_gen: v7x
topology: tpu7x:2x2x1
jax: 0.10.0
libtpu: 0.0.40
codegen_flags: <defaults>
</compile_context>

<pallas_src>
import jax
import jax.numpy as jnp
from jax.experimental import pallas as pl
from jax.experimental.pallas import tpu as pltpu

# ---------------- model configuration (small shapes consistent with the module) ----------
FUNC_SLICES = ((0, 8), (8, 16))      # two functional covariates, seq_len = 8 each
SCALAR_SLICE = (16, 20)              # 4 scalar covariates
IN_TOTAL = 20
LSTM_H = 16                          # lstm_hidden = [16, 16]
NUM_FUNC = len(FUNC_SLICES)
NDIR = 2 * NUM_FUNC                  # bidirectional -> 2 directions per covariate
FC_HIDDEN = (24, 24)
NUM_CLASSES = 1
OUT_PAD = 128                        # lane-dense padded output width
SCALAR_D = SCALAR_SLICE[1] - SCALAR_SLICE[0]
FC_IN = NUM_FUNC * 2 * LSTM_H + SCALAR_D   # 68

BATCH = 8


def _sigmoid(z):
    # identical formulation in kernel and reference to keep numerics comparable
    return 1.0 / (1.0 + jnp.exp(-z))


# ------------------------------------ kernel ---------------------------------------------
def lstm_ff_kernel(x_ref, wih_ref, b_ref, whh_ref, h0_ref, c0_ref,
                   w1_ref, b1_ref, w2_ref, b2_ref, w3_ref, b3_ref, o_ref):
    f32 = jnp.float32
    x = x_ref[...].astype(f32)               # (TB, IN_TOTAL)
    wih = wih_ref[...]                       # (NDIR, 4, H)   gate order i, f, g, o
    bb = b_ref[...]                          # (NDIR, 4, H)   b_ih + b_hh pre-summed
    whh = whh_ref[...]                       # (NDIR, 4, H, H) already transposed (in, out)
    h0 = h0_ref[...]                         # (NDIR, TB, H)
    c0 = c0_ref[...]                         # (NDIR, TB, H)

    def cell(d, x_col, h, c):
        # x_col: (TB, 1); per-gate small matmuls keep everything 2-D and slice-free
        def pre(g):
            return (x_col * wih[d, g:g + 1]
                    + jnp.dot(h, whh[d, g], preferred_element_type=f32)
                    + bb[d, g:g + 1])
        gi = _sigmoid(pre(0))
        gf = _sigmoid(pre(1))
        gg = jnp.tanh(pre(2))
        go = _sigmoid(pre(3))
        c_new = gf * c + gi * gg
        h_new = go * jnp.tanh(c_new)
        return h_new, c_new

    feats = []
    for i, (lo, hi) in enumerate(FUNC_SLICES):
        seq_len = hi - lo
        # forward direction: full (unrolled) scan, keep last hidden
        d = 2 * i
        h, c = h0[d], c0[d]
        for t in range(seq_len):
            h, c = cell(d, x[:, lo + t:lo + t + 1], h, c)
        feats.append(h)
        # reverse direction: output[:, -1] of a bidirectional LSTM only needs the
        # reverse cell applied once to the last sequence element (x[:, hi-1]).
        d = 2 * i + 1
        h_rev, _ = cell(d, x[:, hi - 1:hi], h0[d], c0[d])
        feats.append(h_rev)
    feats.append(x[:, SCALAR_SLICE[0]:SCALAR_SLICE[1]])     # scalar covariates

    # FeedForward 'simple' head; torch.hstack folded into row-sliced partial matmuls
    w1 = w1_ref[...]                                        # (FC_IN, FC_HIDDEN[0])
    acc = jnp.zeros((x.shape[0], w1.shape[1]), f32) + b1_ref[...]
    off = 0
    for feat in feats:
        w_blk = w1[off:off + feat.shape[1], :]
        acc = acc + jnp.dot(feat, w_blk, preferred_element_type=f32)
        off += feat.shape[1]
    t = jnp.maximum(acc, 0.0)
    t = jnp.maximum(jnp.dot(t, w2_ref[...], preferred_element_type=f32) + b2_ref[...], 0.0)
    out = jnp.dot(t, w3_ref[...], preferred_element_type=f32) + b3_ref[...]   # (TB, OUT_PAD)
    o_ref[...] = out.astype(o_ref.dtype)


# ------------------------------------ wrapper ---------------------------------------------
def lstm_forward(x, kparams):
    batch = x.shape[0]
    tb = batch   # single grid step at this size; lower tb (parallel axis >= 2) on v7x at
                 # large batch to shard across the two TensorCores.
    (wih_all, b_all, whh_all, h0_all, c0_all, w1, b1, w2, b2, w3, b3) = kparams

    def rows_map(i):
        return (i, 0)

    def const_map_for(p):
        zeros = (0,) * p.ndim
        return lambda i, _z=zeros: _z

    def batch_mid_map(i):
        return (0, i, 0)

    in_specs = [pl.BlockSpec((tb, IN_TOTAL), rows_map)]
    for p in (wih_all, b_all, whh_all):
        in_specs.append(pl.BlockSpec(p.shape, const_map_for(p)))
    for p in (h0_all, c0_all):
        in_specs.append(pl.BlockSpec((NDIR, tb, LSTM_H), batch_mid_map))
    for p in (w1, b1, w2, b2, w3, b3):
        in_specs.append(pl.BlockSpec(p.shape, const_map_for(p)))

    out_spec = pl.BlockSpec((tb, OUT_PAD), rows_map)

    out_padded = pl.pallas_call(
        lstm_ff_kernel,
        out_shape=jax.ShapeDtypeStruct((batch, OUT_PAD), jnp.float32),
        grid_spec=pltpu.PrefetchScalarGridSpec(
            num_scalar_prefetch=0,
            grid=(batch // tb,),
            in_specs=in_specs,
            out_specs=out_spec,
        ),
        compiler_params=pltpu.CompilerParams(
            dimension_semantics=("parallel",)),
    )(x, wih_all, b_all, whh_all, h0_all, c0_all, w1, b1, w2, b2, w3, b3)

    return out_padded[:, :NUM_CLASSES]


# ------------------------------ parameter construction ------------------------------------
def init_raw_params(key):
    """Raw params in torch layout (weight_ih (4H,1), weight_hh (4H,H), Linear (out,in))."""
    keys = iter(jax.random.split(key, 64))
    scale = 1.0 / jnp.sqrt(jnp.float32(LSTM_H))
    lstm = []
    for _ in range(NUM_FUNC):
        dirs = []
        for _d in range(2):   # 0 = forward, 1 = reverse
            w_ih = jax.random.uniform(next(keys), (4 * LSTM_H, 1), jnp.float32, -scale, scale)
            w_hh = jax.random.uniform(next(keys), (4 * LSTM_H, LSTM_H), jnp.float32, -scale, scale)
            b_ih = jax.random.uniform(next(keys), (4 * LSTM_H,), jnp.float32, -scale, scale)
            b_hh = jax.random.uniform(next(keys), (4 * LSTM_H,), jnp.float32, -scale, scale)
            dirs.append((w_ih, w_hh, b_ih, b_hh))
        lstm.append(dirs)
    h0 = [jax.random.normal(next(keys), (2, BATCH, LSTM_H), jnp.float32) for _ in range(NUM_FUNC)]
    c0 = [jax.random.normal(next(keys), (2, BATCH, LSTM_H), jnp.float32) for _ in range(NUM_FUNC)]
    dims = [FC_IN] + list(FC_HIDDEN) + [NUM_CLASSES]
    fc = []
    for li in range(len(dims) - 1):
        w = jax.random.normal(next(keys), (dims[li + 1], dims[li]), jnp.float32) * 0.1
        b = jax.random.normal(next(keys), (dims[li + 1],), jnp.float32) * 0.1
        fc.append((w, b))
    return {"lstm": lstm, "h0": h0, "c0": c0, "fc": fc}


def pack_params(raw):
    """Pack raw torch-layout params into the kernel's slab layout."""
    wih_all = jnp.zeros((NDIR, 4, LSTM_H), jnp.float32)
    b_all = jnp.zeros((NDIR, 4, LSTM_H), jnp.float32)
    whh_all = jnp.zeros((NDIR, 4, LSTM_H, LSTM_H), jnp.float32)
    h0_all = jnp.zeros((NDIR, BATCH, LSTM_H), jnp.float32)
    c0_all = jnp.zeros((NDIR, BATCH, LSTM_H), jnp.float32)
    for i in range(NUM_FUNC):
        for j in range(2):
            d = 2 * i + j
            w_ih, w_hh, b_ih, b_hh = raw["lstm"][i][j]
            wih_all = wih_all.at[d].set(w_ih[:, 0].reshape(4, LSTM_H))
            b_all = b_all.at[d].set((b_ih + b_hh).reshape(4, LSTM_H))
            whh_all = whh_all.at[d].set(
                jnp.transpose(w_hh.reshape(4, LSTM_H, LSTM_H), (0, 2, 1)))
            h0_all = h0_all.at[d].set(raw["h0"][i][j])
            c0_all = c0_all.at[d].set(raw["c0"][i][j])
    (w1_t, b1_t), (w2_t, b2_t), (w3_t, b3_t) = raw["fc"]
    w1 = w1_t.T                                   # (FC_IN, FC_HIDDEN[0])
    b1 = b1_t.reshape(1, -1)
    w2 = w2_t.T
    b2 = b2_t.reshape(1, -1)
    # zero-padded final layer -> lane-dense (TB, 128) output block, sliced in wrapper
    w3 = jnp.zeros((FC_HIDDEN[1], OUT_PAD), jnp.float32).at[:, :NUM_CLASSES].set(w3_t.T)
    b3 = jnp.zeros((1, OUT_PAD), jnp.float32).at[:, :NUM_CLASSES].set(b3_t.reshape(1, -1))
    return (wih_all, b_all, whh_all, h0_all, c0_all, w1, b1, w2, b2, w3, b3)


# --------------------------------- pure-JAX reference -------------------------------------
def lstm_ref(x, raw):
    def cell(x_t, h, c, w_ih, w_hh, b_ih, b_hh):
        gates = x_t @ w_ih.T + h @ w_hh.T + b_ih + b_hh       # (B, 4H), order i, f, g, o
        hdim = h.shape[-1]
        gi = _sigmoid(gates[:, 0:hdim])
        gf = _sigmoid(gates[:, hdim:2 * hdim])
        gg = jnp.tanh(gates[:, 2 * hdim:3 * hdim])
        go = _sigmoid(gates[:, 3 * hdim:4 * hdim])
        c = gf * c + gi * gg
        h = go * jnp.tanh(c)
        return h, c

    feats = []
    for i, (lo, hi) in enumerate(FUNC_SLICES):
        seq = x[:, lo:hi]
        seq_len = hi - lo
        # forward direction
        w_ih, w_hh, b_ih, b_hh = raw["lstm"][i][0]
        h, c = raw["h0"][i][0], raw["c0"][i][0]
        for t in range(seq_len):
            h, c = cell(seq[:, t:t + 1], h, c, w_ih, w_hh, b_ih, b_hh)
        h_fwd_last = h
        # reverse direction: full backward scan, keep output at sequence position T-1
        w_ih, w_hh, b_ih, b_hh = raw["lstm"][i][1]
        h, c = raw["h0"][i][1], raw["c0"][i][1]
        rev_out = {}
        for t in range(seq_len - 1, -1, -1):
            h, c = cell(seq[:, t:t + 1], h, c, w_ih, w_hh, b_ih, b_hh)
            rev_out[t] = h
        feats += [h_fwd_last, rev_out[seq_len - 1]]
    feats.append(x[:, SCALAR_SLICE[0]:SCALAR_SLICE[1]])
    t = jnp.concatenate(feats, axis=-1)
    (w1, b1), (w2, b2), (w3, b3) = raw["fc"]
    t = jnp.maximum(t @ w1.T + b1, 0.0)
    t = jnp.maximum(t @ w2.T + b2, 0.0)
    return t @ w3.T + b3


if __name__ == "__main__":
    key = jax.random.PRNGKey(0)
    k_x, k_p = jax.random.split(key)
    x = jax.random.normal(k_x, (BATCH, IN_TOTAL), jnp.float32)
    raw = init_raw_params(k_p)
    kparams = pack_params(raw)

    out = lstm_forward(x, kparams)
    out = jax.block_until_ready(out)

    ref = lstm_ref(x, raw)
    assert out.shape == (BATCH, NUM_CLASSES)
    assert jnp.allclose(out, ref, atol=2e-4, rtol=2e-4), (
        "mismatch vs reference, max abs err = %s" % jnp.max(jnp.abs(out - ref)))

    print("KERNEL_OK")
</pallas_src>

<mosaic_0001>
module attributes {stable_mosaic.version = 11 : i64} {
  func.func @lstm_ff_kernel(%arg0: i32, %arg1: memref<8x20xf32, #tpu.memory_space<vmem>>, %arg2: memref<4x4x16xf32, #tpu.memory_space<vmem>>, %arg3: memref<4x4x16xf32, #tpu.memory_space<vmem>>, %arg4: memref<4x4x16x16xf32, #tpu.memory_space<vmem>>, %arg5: memref<4x8x16xf32, #tpu.memory_space<vmem>>, %arg6: memref<4x8x16xf32, #tpu.memory_space<vmem>>, %arg7: memref<68x24xf32, #tpu.memory_space<vmem>>, %arg8: memref<1x24xf32, #tpu.memory_space<vmem>>, %arg9: memref<24x24xf32, #tpu.memory_space<vmem>>, %arg10: memref<1x24xf32, #tpu.memory_space<vmem>>, %arg11: memref<24x128xf32, #tpu.memory_space<vmem>>, %arg12: memref<1x128xf32, #tpu.memory_space<vmem>>, %arg13: memref<8x128xf32, #tpu.memory_space<vmem>>) attributes {dimension_semantics = [#tpu.dimension_semantics<parallel>], iteration_bounds = array<i64: 1>, scalar_prefetch = 0 : i64, scratch_operands = 0 : i64, tpu.core_type = #tpu.core_type<tc>, window_params = [{transform_indices = @transform_0, window_bounds = array<i64: 8, 20>}, {pipeline_mode = #tpu.pipeline_mode<synchronous>, transform_indices = @transform_1, window_bounds = array<i64: 4, 4, 16>}, {pipeline_mode = #tpu.pipeline_mode<synchronous>, transform_indices = @transform_2, window_bounds = array<i64: 4, 4, 16>}, {pipeline_mode = #tpu.pipeline_mode<synchronous>, transform_indices = @transform_3, window_bounds = array<i64: 4, 4, 16, 16>}, {transform_indices = @transform_4, window_bounds = array<i64: 4, 8, 16>}, {transform_indices = @transform_5, window_bounds = array<i64: 4, 8, 16>}, {pipeline_mode = #tpu.pipeline_mode<synchronous>, transform_indices = @transform_6, window_bounds = array<i64: 68, 24>}, {pipeline_mode = #tpu.pipeline_mode<synchronous>, transform_indices = @transform_7, window_bounds = array<i64: 1, 24>}, {pipeline_mode = #tpu.pipeline_mode<synchronous>, transform_indices = @transform_8, window_bounds = array<i64: 24, 24>}, {pipeline_mode = #tpu.pipeline_mode<synchronous>, transform_indices = @transform_9, window_bounds = array<i64: 1, 24>}, {pipeline_mode = #tpu.pipeline_mode<synchronous>, transform_indices = @transform_10, window_bounds = array<i64: 24, 128>}, {pipeline_mode = #tpu.pipeline_mode<synchronous>, transform_indices = @transform_11, window_bounds = array<i64: 1, 128>}, {transform_indices = @transform_12, window_bounds = array<i64: 8, 128>}]} {
    %c0 = arith.constant 0 : index
    %c0_0 = arith.constant 0 : index
    %0 = vector.load %arg1[%c0, %c0_0] : memref<8x20xf32, #tpu.memory_space<vmem>>, vector<8x20xf32>
    %c0_1 = arith.constant 0 : index
    %c0_2 = arith.constant 0 : index
    %c0_3 = arith.constant 0 : index
    %1 = vector.load %arg2[%c0_1, %c0_2, %c0_3] : memref<4x4x16xf32, #tpu.memory_space<vmem>>, vector<4x4x16xf32>
    %c0_4 = arith.constant 0 : index
    %c0_5 = arith.constant 0 : index
    %c0_6 = arith.constant 0 : index
    %2 = vector.load %arg3[%c0_4, %c0_5, %c0_6] : memref<4x4x16xf32, #tpu.memory_space<vmem>>, vector<4x4x16xf32>
    %c0_7 = arith.constant 0 : index
    %c0_8 = arith.constant 0 : index
    %c0_9 = arith.constant 0 : index
    %c0_10 = arith.constant 0 : index
    %3 = vector.load %arg4[%c0_7, %c0_8, %c0_9, %c0_10] : memref<4x4x16x16xf32, #tpu.memory_space<vmem>>, vector<4x4x16x16xf32>
    %c0_11 = arith.constant 0 : index
    %c0_12 = arith.constant 0 : index
    %c0_13 = arith.constant 0 : index
    %4 = vector.load %arg5[%c0_11, %c0_12, %c0_13] : memref<4x8x16xf32, #tpu.memory_space<vmem>>, vector<4x8x16xf32>
    %c0_14 = arith.constant 0 : index
    %c0_15 = arith.constant 0 : index
    %c0_16 = arith.constant 0 : index
    %5 = vector.load %arg6[%c0_14, %c0_15, %c0_16] : memref<4x8x16xf32, #tpu.memory_space<vmem>>, vector<4x8x16xf32>
    %6 = vector.extract_strided_slice %4 {offsets = [0, 0, 0], sizes = [1, 8, 16], strides = [1, 1, 1]} : vector<4x8x16xf32> to vector<1x8x16xf32>
    %7 = vector.shape_cast %6 : vector<1x8x16xf32> to vector<8x16xf32>
    %8 = vector.extract_strided_slice %5 {offsets = [0, 0, 0], sizes = [1, 8, 16], strides = [1, 1, 1]} : vector<4x8x16xf32> to vector<1x8x16xf32>
    %9 = vector.shape_cast %8 : vector<1x8x16xf32> to vector<8x16xf32>
    %10 = vector.extract_strided_slice %0 {offsets = [0, 0], sizes = [8, 1], strides = [1, 1]} : vector<8x20xf32> to vector<8x1xf32>
    %11 = vector.extract_strided_slice %1 {offsets = [0, 0, 0], sizes = [1, 1, 16], strides = [1, 1, 1]} : vector<4x4x16xf32> to vector<1x1x16xf32>
    %12 = vector.shape_cast %11 : vector<1x1x16xf32> to vector<1x16xf32>
    %13 = vector.broadcast %10 : vector<8x1xf32> to vector<8x16xf32>
    %14 = vector.broadcast %12 : vector<1x16xf32> to vector<8x16xf32>
    %15 = arith.mulf %13, %14 : vector<8x16xf32>
    %16 = vector.extract_strided_slice %3 {offsets = [0, 0, 0, 0], sizes = [1, 1, 16, 16], strides = [1, 1, 1, 1]} : vector<4x4x16x16xf32> to vector<1x1x16x16xf32>
    %17 = vector.shape_cast %16 : vector<1x1x16x16xf32> to vector<16x16xf32>
    %cst = arith.constant dense<0.000000e+00> : vector<8x16xf32>
    %18 = tpu.matmul %7, %17, %cst {dimension_numbers = #tpu.dot_dimension_numbers<[1], [0], [0], [1], [0, 0, 1, 1], [], []>} : vector<8x16xf32>, vector<16x16xf32>, vector<8x16xf32> -> vector<8x16xf32>
    %19 = arith.addf %15, %18 : vector<8x16xf32>
    %20 = vector.extract_strided_slice %2 {offsets = [0, 0, 0], sizes = [1, 1, 16], strides = [1, 1, 1]} : vector<4x4x16xf32> to vector<1x1x16xf32>
    %21 = vector.shape_cast %20 : vector<1x1x16xf32> to vector<1x16xf32>
    %22 = vector.broadcast %21 : vector<1x16xf32> to vector<8x16xf32>
    %23 = arith.addf %19, %22 : vector<8x16xf32>
    %cst_17 = arith.constant 0.000000e+00 : f32
    %24 = vector.broadcast %cst_17 : f32 to vector<8x16xf32>
    %25 = arith.subf %24, %23 : vector<8x16xf32>
    %26 = math.exp %25 : vector<8x16xf32>
    %cst_18 = arith.constant 1.000000e+00 : f32
    %27 = vector.broadcast %cst_18 : f32 to vector<8x16xf32>
    %28 = arith.addf %27, %26 : vector<8x16xf32>
    %cst_19 = arith.constant 1.000000e+00 : f32
    %29 = vector.broadcast %cst_19 : f32 to vector<8x16xf32>
    %30 = arith.divf %29, %28 : vector<8x16xf32>
    %31 = vector.extract_strided_slice %1 {offsets = [0, 1, 0], sizes = [1, 1, 16], strides = [1, 1, 1]} : vector<4x4x16xf32> to vector<1x1x16xf32>
    %32 = vector.shape_cast %31 : vector<1x1x16xf32> to vector<1x16xf32>
    %33 = vector.broadcast %10 : vector<8x1xf32> to vector<8x16xf32>
    %34 = vector.broadcast %32 : vector<1x16xf32> to vector<8x16xf32>
    %35 = arith.mulf %33, %34 : vector<8x16xf32>
    %36 = vector.extract_strided_slice %3 {offsets = [0, 1, 0, 0], sizes = [1, 1, 16, 16], strides = [1, 1, 1, 1]} : vector<4x4x16x16xf32> to vector<1x1x16x16xf32>
    %37 = vector.shape_cast %36 : vector<1x1x16x16xf32> to vector<16x16xf32>
    %cst_20 = arith.constant dense<0.000000e+00> : vector<8x16xf32>
    %38 = tpu.matmul %7, %37, %cst_20 {dimension_numbers = #tpu.dot_dimension_numbers<[1], [0], [0], [1], [0, 0, 1, 1], [], []>} : vector<8x16xf32>, vector<16x16xf32>, vector<8x16xf32> -> vector<8x16xf32>
    %39 = arith.addf %35, %38 : vector<8x16xf32>
    %40 = vector.extract_strided_slice %2 {offsets = [0, 1, 0], sizes = [1, 1, 16], strides = [1, 1, 1]} : vector<4x4x16xf32> to vector<1x1x16xf32>
    %41 = vector.shape_cast %40 : vector<1x1x16xf32> to vector<1x16xf32>
    %42 = vector.broadcast %41 : vector<1x16xf32> to vector<8x16xf32>
    %43 = arith.addf %39, %42 : vector<8x16xf32>
    %cst_21 = arith.constant 0.000000e+00 : f32
    %44 = vector.broadcast %cst_21 : f32 to vector<8x16xf32>
    %45 = arith.subf %44, %43 : vector<8x16xf32>
    %46 = math.exp %45 : vector<8x16xf32>
    %cst_22 = arith.constant 1.000000e+00 : f32
    %47 = vector.broadcast %cst_22 : f32 to vector<8x16xf32>
    %48 = arith.addf %47, %46 : vector<8x16xf32>
    %cst_23 = arith.constant 1.000000e+00 : f32
    %49 = vector.broadcast %cst_23 : f32 to vector<8x16xf32>
    %50 = arith.divf %49, %48 : vector<8x16xf32>
    %51 = vector.extract_strided_slice %1 {offsets = [0, 2, 0], sizes = [1, 1, 16], strides = [1, 1, 1]} : vector<4x4x16xf32> to vector<1x1x16xf32>
    %52 = vector.shape_cast %51 : vector<1x1x16xf32> to vector<1x16xf32>
    %53 = vector.broadcast %10 : vector<8x1xf32> to vector<8x16xf32>
    %54 = vector.broadcast %52 : vector<1x16xf32> to vector<8x16xf32>
    %55 = arith.mulf %53, %54 : vector<8x16xf32>
    %56 = vector.extract_strided_slice %3 {offsets = [0, 2, 0, 0], sizes = [1, 1, 16, 16], strides = [1, 1, 1, 1]} : vector<4x4x16x16xf32> to vector<1x1x16x16xf32>
    %57 = vector.shape_cast %56 : vector<1x1x16x16xf32> to vector<16x16xf32>
    %cst_24 = arith.constant dense<0.000000e+00> : vector<8x16xf32>
    %58 = tpu.matmul %7, %57, %cst_24 {dimension_numbers = #tpu.dot_dimension_numbers<[1], [0], [0], [1], [0, 0, 1, 1], [], []>} : vector<8x16xf32>, vector<16x16xf32>, vector<8x16xf32> -> vector<8x16xf32>
    %59 = arith.addf %55, %58 : vector<8x16xf32>
    %60 = vector.extract_strided_slice %2 {offsets = [0, 2, 0], sizes = [1, 1, 16], strides = [1, 1, 1]} : vector<4x4x16xf32> to vector<1x1x16xf32>
    %61 = vector.shape_cast %60 : vector<1x1x16xf32> to vector<1x16xf32>
    %62 = vector.broadcast %61 : vector<1x16xf32> to vector<8x16xf32>
    %63 = arith.addf %59, %62 : vector<8x16xf32>
    %64 = math.tanh %63 : vector<8x16xf32>
    %65 = vector.extract_strided_slice %1 {offsets = [0, 3, 0], sizes = [1, 1, 16], strides = [1, 1, 1]} : vector<4x4x16xf32> to vector<1x1x16xf32>
    %66 = vector.shape_cast %65 : vector<1x1x16xf32> to vector<1x16xf32>
    %67 = vector.broadcast %10 : vector<8x1xf32> to vector<8x16xf32>
    %68 = vector.broadcast %66 : vector<1x16xf32> to vector<8x16xf32>
    %69 = arith.mulf %67, %68 : vector<8x16xf32>
    %70 = vector.extract_strided_slice %3 {offsets = [0, 3, 0, 0], sizes = [1, 1, 16, 16], strides = [1, 1, 1, 1]} : vector<4x4x16x16xf32> to vector<1x1x16x16xf32>
    %71 = vector.shape_cast %70 : vector<1x1x16x16xf32> to vector<16x16xf32>
    %cst_25 = arith.constant dense<0.000000e+00> : vector<8x16xf32>
    %72 = tpu.matmul %7, %71, %cst_25 {dimension_numbers = #tpu.dot_dimension_numbers<[1], [0], [0], [1], [0, 0, 1, 1], [], []>} : vector<8x16xf32>, vector<16x16xf32>, vector<8x16xf32> -> vector<8x16xf32>
    %73 = arith.addf %69, %72 : vector<8x16xf32>
    %74 = vector.extract_strided_slice %2 {offsets = [0, 3, 0], sizes = [1, 1, 16], strides = [1, 1, 1]} : vector<4x4x16xf32> to vector<1x1x16xf32>
    %75 = vector.shape_cast %74 : vector<1x1x16xf32> to vector<1x16xf32>
    %76 = vector.broadcast %75 : vector<1x16xf32> to vector<8x16xf32>
    %77 = arith.addf %73, %76 : vector<8x16xf32>
    %cst_26 = arith.constant 0.000000e+00 : f32
    %78 = vector.broadcast %cst_26 : f32 to vector<8x16xf32>
    %79 = arith.subf %78, %77 : vector<8x16xf32>
    %80 = math.exp %79 : vector<8x16xf32>
    %cst_27 = arith.constant 1.000000e+00 : f32
    %81 = vector.broadcast %cst_27 : f32 to vector<8x16xf32>
    %82 = arith.addf %81, %80 : vector<8x16xf32>
    %cst_28 = arith.constant 1.000000e+00 : f32
    %83 = vector.broadcast %cst_28 : f32 to vector<8x16xf32>
    %84 = arith.divf %83, %82 : vector<8x16xf32>
    %85 = arith.mulf %50, %9 : vector<8x16xf32>
    %86 = arith.mulf %30, %64 : vector<8x16xf32>
    %87 = arith.addf %85, %86 : vector<8x16xf32>
    %88 = math.tanh %87 : vector<8x16xf32>
    %89 = arith.mulf %84, %88 : vector<8x16xf32>
    %90 = vector.extract_strided_slice %0 {offsets = [0, 1], sizes = [8, 1], strides = [1, 1]} : vector<8x20xf32> to vector<8x1xf32>
    %91 = vector.extract_strided_slice %1 {offsets = [0, 0, 0], sizes = [1, 1, 16], strides = [1, 1, 1]} : vector<4x4x16xf32> to vector<1x1x16xf32>
    %92 = vector.shape_cast %91 : vector<1x1x16xf32> to vector<1x16xf32>
    %93 = vector.broadcast %90 : vector<8x1xf32> to vector<8x16xf32>
    %94 = vector.broadcast %92 : vector<1x16xf32> to vector<8x16xf32>
    %95 = arith.mulf %93, %94 : vector<8x16xf32>
    %96 = vector.extract_strided_slice %3 {offsets = [0, 0, 0, 0], sizes = [1, 1, 16, 16], strides = [1, 1, 1, 1]} : vector<4x4x16x16xf32> to vector<1x1x16x16xf32>
    %97 = vector.shape_cast %96 : vector<1x1x16x16xf32> to vector<16x16xf32>
    %cst_29 = arith.constant dense<0.000000e+00> : vector<8x16xf32>
    %98 = tpu.matmul %89, %97, %cst_29 {dimension_numbers = #tpu.dot_dimension_numbers<[1], [0], [0], [1], [0, 0, 1, 1], [], []>} : vector<8x16xf32>, vector<16x16xf32>, vector<8x16xf32> -> vector<8x16xf32>
    %99 = arith.addf %95, %98 : vector<8x16xf32>
    %100 = vector.extract_strided_slice %2 {offsets = [0, 0, 0], sizes = [1, 1, 16], strides = [1, 1, 1]} : vector<4x4x16xf32> to vector<1x1x16xf32>
    %101 = vector.shape_cast %100 : vector<1x1x16xf32> to vector<1x16xf32>
    %102 = vector.broadcast %101 : vector<1x16xf32> to vector<8x16xf32>
    %103 = arith.addf %99, %102 : vector<8x16xf32>
    %cst_30 = arith.constant 0.000000e+00 : f32
    %104 = vector.broadcast %cst_30 : f32 to vector<8x16xf32>
    %105 = arith.subf %104, %103 : vector<8x16xf32>
    %106 = math.exp %105 : vector<8x16xf32>
    %cst_31 = arith.constant 1.000000e+00 : f32
    %107 = vector.broadcast %cst_31 : f32 to vector<8x16xf32>
    %108 = arith.addf %107, %106 : vector<8x16xf32>
    %cst_32 = arith.constant 1.000000e+00 : f32
    %109 = vector.broadcast %cst_32 : f32 to vector<8x16xf32>
    %110 = arith.divf %109, %108 : vector<8x16xf32>
    %111 = vector.extract_strided_slice %1 {offsets = [0, 1, 0], sizes = [1, 1, 16], strides = [1, 1, 1]} : vector<4x4x16xf32> to vector<1x1x16xf32>
    %112 = vector.shape_cast %111 : vector<1x1x16xf32> to vector<1x16xf32>
    %113 = vector.broadcast %90 : vector<8x1xf32> to vector<8x16xf32>
    %114 = vector.broadcast %112 : vector<1x16xf32> to vector<8x16xf32>
    %115 = arith.mulf %113, %114 : vector<8x16xf32>
    %116 = vector.extract_strided_slice %3 {offsets = [0, 1, 0, 0], sizes = [1, 1, 16, 16], strides = [1, 1, 1, 1]} : vector<4x4x16x16xf32> to vector<1x1x16x16xf32>
    %117 = vector.shape_cast %116 : vector<1x1x16x16xf32> to vector<16x16xf32>
    %cst_33 = arith.constant dense<0.000000e+00> : vector<8x16xf32>
    %118 = tpu.matmul %89, %117, %cst_33 {dimension_numbers = #tpu.dot_dimension_numbers<[1], [0], [0], [1], [0, 0, 1, 1], [], []>} : vector<8x16xf32>, vector<16x16xf32>, vector<8x16xf32> -> vector<8x16xf32>
    %119 = arith.addf %115, %118 : vector<8x16xf32>
    %120 = vector.extract_strided_slice %2 {offsets = [0, 1, 0], sizes = [1, 1, 16], strides = [1, 1, 1]} : vector<4x4x16xf32> to vector<1x1x16xf32>
    %121 = vector.shape_cast %120 : vector<1x1x16xf32> to vector<1x16xf32>
    %122 = vector.broadcast %121 : vector<1x16xf32> to vector<8x16xf32>
    %123 = arith.addf %119, %122 : vector<8x16xf32>
    %cst_34 = arith.constant 0.000000e+00 : f32
    %124 = vector.broadcast %cst_34 : f32 to vector<8x16xf32>
    %125 = arith.subf %124, %123 : vector<8x16xf32>
    %126 = math.exp %125 : vector<8x16xf32>
    %cst_35 = arith.constant 1.000000e+00 : f32
    %127 = vector.broadcast %cst_35 : f32 to vector<8x16xf32>
    %128 = arith.addf %127, %126 : vector<8x16xf32>
    %cst_36 = arith.constant 1.000000e+00 : f32
    %129 = vector.broadcast %cst_36 : f32 to vector<8x16xf32>
    %130 = arith.divf %129, %128 : vector<8x16xf32>
    %131 = vector.extract_strided_slice %1 {offsets = [0, 2, 0], sizes = [1, 1, 16], strides = [1, 1, 1]} : vector<4x4x16xf32> to vector<1x1x16xf32>
    %132 = vector.shape_cast %131 : vector<1x1x16xf32> to vector<1x16xf32>
    %133 = vector.broadcast %90 : vector<8x1xf32> to vector<8x16xf32>
    %134 = vector.broadcast %132 : vector<1x16xf32> to vector<8x16xf32>
    %135 = arith.mulf %133, %134 : vector<8x16xf32>
    %136 = vector.extract_strided_slice %3 {offsets = [0, 2, 0, 0], sizes = [1, 1, 16, 16], strides = [1, 1, 1, 1]} : vector<4x4x16x16xf32> to vector<1x1x16x16xf32>
    %137 = vector.shape_cast %136 : vector<1x1x16x16xf32> to vector<16x16xf32>
    %cst_37 = arith.constant dense<0.000000e+00> : vector<8x16xf32>
    %138 = tpu.matmul %89, %137, %cst_37 {dimension_numbers = #tpu.dot_dimension_numbers<[1], [0], [0], [1], [0, 0, 1, 1], [], []>} : vector<8x16xf32>, vector<16x16xf32>, vector<8x16xf32> -> vector<8x16xf32>
    %139 = arith.addf %135, %138 : vector<8x16xf32>
    %140 = vector.extract_strided_slice %2 {offsets = [0, 2, 0], sizes = [1, 1, 16], strides = [1, 1, 1]} : vector<4x4x16xf32> to vector<1x1x16xf32>
    %141 = vector.shape_cast %140 : vector<1x1x16xf32> to vector<1x16xf32>
    %142 = vector.broadcast %141 : vector<1x16xf32> to vector<8x16xf32>
    %143 = arith.addf %139, %142 : vector<8x16xf32>
    %144 = math.tanh %143 : vector<8x16xf32>
    %145 = vector.extract_strided_slice %1 {offsets = [0, 3, 0], sizes = [1, 1, 16], strides = [1, 1, 1]} : vector<4x4x16xf32> to vector<1x1x16xf32>
    %146 = vector.shape_cast %145 : vector<1x1x16xf32> to vector<1x16xf32>
    %147 = vector.broadcast %90 : vector<8x1xf32> to vector<8x16xf32>
    %148 = vector.broadcast %146 : vector<1x16xf32> to vector<8x16xf32>
    %149 = arith.mulf %147, %148 : vector<8x16xf32>
    %150 = vector.extract_strided_slice %3 {offsets = [0, 3, 0, 0], sizes = [1, 1, 16, 16], strides = [1, 1, 1, 1]} : vector<4x4x16x16xf32> to vector<1x1x16x16xf32>
    %151 = vector.shape_cast %150 : vector<1x1x16x16xf32> to vector<16x16xf32>
    %cst_38 = arith.constant dense<0.000000e+00> : vector<8x16xf32>
    %152 = tpu.matmul %89, %151, %cst_38 {dimension_numbers = #tpu.dot_dimension_numbers<[1], [0], [0], [1], [0, 0, 1, 1], [], []>} : vector<8x16xf32>, vector<16x16xf32>, vector<8x16xf32> -> vector<8x16xf32>
    %153 = arith.addf %149, %152 : vector<8x16xf32>
    %154 = vector.extract_strided_slice %2 {offsets = [0, 3, 0], sizes = [1, 1, 16], strides = [1, 1, 1]} : vector<4x4x16xf32> to vector<1x1x16xf32>
    %155 = vector.shape_cast %154 : vector<1x1x16xf32> to vector<1x16xf32>
    %156 = vector.broadcast %155 : vector<1x16xf32> to vector<8x16xf32>
    %157 = arith.addf %153, %156 : vector<8x16xf32>
    %cst_39 = arith.constant 0.000000e+00 : f32
    %158 = vector.broadcast %cst_39 : f32 to vector<8x16xf32>
    %159 = arith.subf %158, %157 : vector<8x16xf32>
    %160 = math.exp %159 : vector<8x16xf32>
    %cst_40 = arith.constant 1.000000e+00 : f32
    %161 = vector.broadcast %cst_40 : f32 to vector<8x16xf32>
    %162 = arith.addf %161, %160 : vector<8x16xf32>
    %cst_41 = arith.constant 1.000000e+00 : f32
    %163 = vector.broadcast %cst_41 : f32 to vector<8x16xf32>
    %164 = arith.divf %163, %162 : vector<8x16xf32>
    %165 = arith.mulf %130, %87 : vector<8x16xf32>
    %166 = arith.mulf %110, %144 : vector<8x16xf32>
    %167 = arith.addf %165, %166 : vector<8x16xf32>
    %168 = math.tanh %167 : vector<8x16xf32>
    %169 = arith.mulf %164, %168 : vector<8x16xf32>
    %170 = vector.extract_strided_slice %0 {offsets = [0, 2], sizes = [8, 1], strides = [1, 1]} : vector<8x20xf32> to vector<8x1xf32>
    %171 = vector.extract_strided_slice %1 {offsets = [0, 0, 0], sizes = [1, 1, 16], strides = [1, 1, 1]} : vector<4x4x16xf32> to vector<1x1x16xf32>
    %172 = vector.shape_cast %171 : vector<1x1x16xf32> to vector<1x16xf32>
    %173 = vector.broadcast %170 : vector<8x1xf32> to vector<8x16xf32>
    %174 = vector.broadcast %172 : vector<1x16xf32> to vector<8x16xf32>
    %175 = arith.mulf %173, %174 : vector<8x16xf32>
    %176 = vector.extract_strided_slice %3 {offsets = [0, 0, 0, 0], sizes = [1, 1, 16, 16], strides = [1, 1, 1, 1]} : vector<4x4x16x16xf32> to vector<1x1x16x16xf32>
    %177 = vector.shape_cast %176 : vector<1x1x16x16xf32> to vector<16x16xf32>
    %cst_42 = arith.constant dense<0.000000e+00> : vector<8x16xf32>
    %178 = tpu.matmul %169, %177, %cst_42 {dimension_numbers = #tpu.dot_dimension_numbers<[1], [0], [0], [1], [0, 0, 1, 1], [], []>} : vector<8x16xf32>, vector<16x16xf32>, vector<8x16xf32> -> vector<8x16xf32>
    %179 = arith.addf %175, %178 : vector<8x16xf32>
    %180 = vector.extract_strided_slice %2 {offsets = [0, 0, 0], sizes = [1, 1, 16], strides = [1, 1, 1]} : vector<4x4x16xf32> to vector<1x1x16xf32>
    %181 = vector.shape_cast %180 : vector<1x1x16xf32> to vector<1x16xf32>
    %182 = vector.broadcast %181 : vector<1x16xf32> to vector<8x16xf32>
    %183 = arith.addf %179, %182 : vector<8x16xf32>
    %cst_43 = arith.constant 0.000000e+00 : f32
    %184 = vector.broadcast %cst_43 : f32 to vector<8x16xf32>
    %185 = arith.subf %184, %183 : vector<8x16xf32>
    %186 = math.exp %185 : vector<8x16xf32>
    %cst_44 = arith.constant 1.000000e+00 : f32
    %187 = vector.broadcast %cst_44 : f32 to vector<8x16xf32>
    %188 = arith.addf %187, %186 : vector<8x16xf32>
    %cst_45 = arith.constant 1.000000e+00 : f32
    %189 = vector.broadcast %cst_45 : f32 to vector<8x16xf32>
    %190 = arith.divf %189, %188 : vector<8x16xf32>
    %191 = vector.extract_strided_slice %1 {offsets = [0, 1, 0], sizes = [1, 1, 16], strides = [1, 1, 1]} : vector<4x4x16xf32> to vector<1x1x16xf32>
    %192 = vector.shape_cast %191 : vector<1x1x16xf32> to vector<1x16xf32>
    %193 = vector.broadcast %170 : vector<8x1xf32> to vector<8x16xf32>
    %194 = vector.broadcast %192 : vector<1x16xf32> to vector<8x16xf32>
    %195 = arith.mulf %193, %194 : vector<8x16xf32>
    %196 = vector.extract_strided_slice %3 {offsets = [0, 1, 0, 0], sizes = [1, 1, 16, 16], strides = [1, 1, 1, 1]} : vector<4x4x16x16xf32> to vector<1x1x16x16xf32>
    %197 = vector.shape_cast %196 : vector<1x1x16x16xf32> to vector<16x16xf32>
    %cst_46 = arith.constant dense<0.000000e+00> : vector<8x16xf32>
    %198 = tpu.matmul %169, %197, %cst_46 {dimension_numbers = #tpu.dot_dimension_numbers<[1], [0], [0], [1], [0, 0, 1, 1], [], []>} : vector<8x16xf32>, vector<16x16xf32>, vector<8x16xf32> -> vector<8x16xf32>
    %199 = arith.addf %195, %198 : vector<8x16xf32>
    %200 = vector.extract_strided_slice %2 {offsets = [0, 1, 0], sizes = [1, 1, 16], strides = [1, 1, 1]} : vector<4x4x16xf32> to vector<1x1x16xf32>
    %201 = vector.shape_cast %200 : vector<1x1x16xf32> to vector<1x16xf32>
    %202 = vector.broadcast %201 : vector<1x16xf32> to vector<8x16xf32>
    %203 = arith.addf %199, %202 : vector<8x16xf32>
    %cst_47 = arith.constant 0.000000e+00 : f32
    %204 = vector.broadcast %cst_47 : f32 to vector<8x16xf32>
    %205 = arith.subf %204, %203 : vector<8x16xf32>
    %206 = math.exp %205 : vector<8x16xf32>
    %cst_48 = arith.constant 1.000000e+00 : f32
    %207 = vector.broadcast %cst_48 : f32 to vector<8x16xf32>
    %208 = arith.addf %207, %206 : vector<8x16xf32>
    %cst_49 = arith.constant 1.000000e+00 : f32
    %209 = vector.broadcast %cst_49 : f32 to vector<8x16xf32>
    %210 = arith.divf %209, %208 : vector<8x16xf32>
    %211 = vector.extract_strided_slice %1 {offsets = [0, 2, 0], sizes = [1, 1, 16], strides = [1, 1, 1]} : vector<4x4x16xf32> to vector<1x1x16xf32>
    %212 = vector.shape_cast %211 : vector<1x1x16xf32> to vector<1x16xf32>
    %213 = vector.broadcast %170 : vector<8x1xf32> to vector<8x16xf32>
    %214 = vector.broadcast %212 : vector<1x16xf32> to vector<8x16xf32>
    %215 = arith.mulf %213, %214 : vector<8x16xf32>
    %216 = vector.extract_strided_slice %3 {offsets = [0, 2, 0, 0], sizes = [1, 1, 16, 16], strides = [1, 1, 1, 1]} : vector<4x4x16x16xf32> to vector<1x1x16x16xf32>
    %217 = vector.shape_cast %216 : vector<1x1x16x16xf32> to vector<16x16xf32>
    %cst_50 = arith.constant dense<0.000000e+00> : vector<8x16xf32>
    %218 = tpu.matmul %169, %217, %cst_50 {dimension_numbers = #tpu.dot_dimension_numbers<[1], [0], [0], [1], [0, 0, 1, 1], [], []>} : vector<8x16xf32>, vector<16x16xf32>, vector<8x16xf32> -> vector<8x16xf32>
    %219 = arith.addf %215, %218 : vector<8x16xf32>
    %220 = vector.extract_strided_slice %2 {offsets = [0, 2, 0], sizes = [1, 1, 16], strides = [1, 1, 1]} : vector<4x4x16xf32> to vector<1x1x16xf32>
    %221 = vector.shape_cast %220 : vector<1x1x16xf32> to vector<1x16xf32>
    %222 = vector.broadcast %221 : vector<1x16xf32> to vector<8x16xf32>
    %223 = arith.addf %219, %222 : vector<8x16xf32>
    %224 = math.tanh %223 : vector<8x16xf32>
    %225 = vector.extract_strided_slice %1 {offsets = [0, 3, 0], sizes = [1, 1, 16], strides = [1, 1, 1]} : vector<4x4x16xf32> to vector<1x1x16xf32>
    %226 = vector.shape_cast %225 : vector<1x1x16xf32> to vector<1x16xf32>
    %227 = vector.broadcast %170 : vector<8x1xf32> to vector<8x16xf32>
    %228 = vector.broadcast %226 : vector<1x16xf32> to vector<8x16xf32>
    %229 = arith.mulf %227, %228 : vector<8x16xf32>
    %230 = vector.extract_strided_slice %3 {offsets = [0, 3, 0, 0], sizes = [1, 1, 16, 16], strides = [1, 1, 1, 1]} : vector<4x4x16x16xf32> to vector<1x1x16x16xf32>
    %231 = vector.shape_cast %230 : vector<1x1x16x16xf32> to vector<16x16xf32>
    %cst_51 = arith.constant dense<0.000000e+00> : vector<8x16xf32>
    %232 = tpu.matmul %169, %231, %cst_51 {dimension_numbers = #tpu.dot_dimension_numbers<[1], [0], [0], [1], [0, 0, 1, 1], [], []>} : vector<8x16xf32>, vector<16x16xf32>, vector<8x16xf32> -> vector<8x16xf32>
    %233 = arith.addf %229, %232 : vector<8x16xf32>
    %234 = vector.extract_strided_slice %2 {offsets = [0, 3, 0], sizes = [1, 1, 16], strides = [1, 1, 1]} : vector<4x4x16xf32> to vector<1x1x16xf32>
    %235 = vector.shape_cast %234 : vector<1x1x16xf32> to vector<1x16xf32>
    %236 = vector.broadcast %235 : vector<1x16xf32> to vector<8x16xf32>
    %237 = arith.addf %233, %236 : vector<8x16xf32>
    %cst_52 = arith.constant 0.000000e+00 : f32
    %238 = vector.broadcast %cst_52 : f32 to vector<8x16xf32>
    %239 = arith.subf %238, %237 : vector<8x16xf32>
    %240 = math.exp %239 : vector<8x16xf32>
    %cst_53 = arith.constant 1.000000e+00 : f32
    %241 = vector.broadcast %cst_53 : f32 to vector<8x16xf32>
    %242 = arith.addf %241, %240 : vector<8x16xf32>
    %cst_54 = arith.constant 1.000000e+00 : f32
    %243 = vector.broadcast %cst_54 : f32 to vector<8x16xf32>
    %244 = arith.divf %243, %242 : vector<8x16xf32>
    %245 = arith.mulf %210, %167 : vector<8x16xf32>
    %246 = arith.mulf %190, %224 : vector<8x16xf32>
    %247 = arith.addf %245, %246 : vector<8x16xf32>
    %248 = math.tanh %247 : vector<8x16xf32>
    %249 = arith.mulf %244, %248 : vector<8x16xf32>
    %250 = vector.extract_strided_slice %0 {offsets = [0, 3], sizes = [8, 1], strides = [1, 1]} : vector<8x20xf32> to vector<8x1xf32>
    %251 = vector.extract_strided_slice %1 {offsets = [0, 0, 0], sizes = [1, 1, 16], strides = [1, 1, 1]} : vector<4x4x16xf32> to vector<1x1x16xf32>
    %252 = vector.shape_cast %251 : vector<1x1x16xf32> to vector<1x16xf32>
    %253 = vector.broadcast %250 : vector<8x1xf32> to vector<8x16xf32>
    %254 = vector.broadcast %252 : vector<1x16xf32> to vector<8x16xf32>
    %255 = arith.mulf %253, %254 : vector<8x16xf32>
    %256 = vector.extract_strided_slice %3 {offsets = [0, 0, 0, 0], sizes = [1, 1, 16, 16], strides = [1, 1, 1, 1]} : vector<4x4x16x16xf32> to vector<1x1x16x16xf32>
    %257 = vector.shape_cast %256 : vector<1x1x16x16xf32> to vector<16x16xf32>
    %cst_55 = arith.constant dense<0.000000e+00> : vector<8x16xf32>
    %258 = tpu.matmul %249, %257, %cst_55 {dimension_numbers = #tpu.dot_dimension_numbers<[1], [0], [0], [1], [0, 0, 1, 1], [], []>} : vector<8x16xf32>, vector<16x16xf32>, vector<8x16xf32> -> vector<8x16xf32>
    %259 = arith.addf %255, %258 : vector<8x16xf32>
    %260 = vector.extract_strided_slice %2 {offsets = [0, 0, 0], sizes = [1, 1, 16], strides = [1, 1, 1]} : vector<4x4x16xf32> to vector<1x1x16xf32>
    %261 = vector.shape_cast %260 : vector<1x1x16xf32> to vector<1x16xf32>
    %262 = vector.broadcast %261 : vector<1x16xf32> to vector<8x16xf32>
    %263 = arith.addf %259, %262 : vector<8x16xf32>
    %cst_56 = arith.constant 0.000000e+00 : f32
    %264 = vector.broadcast %cst_56 : f32 to vector<8x16xf32>
    %265 = arith.subf %264, %263 : vector<8x16xf32>
    %266 = math.exp %265 : vector<8x16xf32>
    %cst_57 = arith.constant 1.000000e+00 : f32
    %267 = vector.broadcast %cst_57 : f32 to vector<8x16xf32>
    %268 = arith.addf %267, %266 : vector<8x16xf32>
    %cst_58 = arith.constant 1.000000e+00 : f32
    %269 = vector.broadcast %cst_58 : f32 to vector<8x16xf32>
    %270 = arith.divf %269, %268 : vector<8x16xf32>
    %271 = vector.extract_strided_slice %1 {offsets = [0, 1, 0], sizes = [1, 1, 16], strides = [1, 1, 1]} : vector<4x4x16xf32> to vector<1x1x16xf32>
    %272 = vector.shape_cast %271 : vector<1x1x16xf32> to vector<1x16xf32>
    %273 = vector.broadcast %250 : vector<8x1xf32> to vector<8x16xf32>
    %274 = vector.broadcast %272 : vector<1x16xf32> to vector<8x16xf32>
    %275 = arith.mulf %273, %274 : vector<8x16xf32>
    %276 = vector.extract_strided_slice %3 {offsets = [0, 1, 0, 0], sizes = [1, 1, 16, 16], strides = [1, 1, 1, 1]} : vector<4x4x16x16xf32> to vector<1x1x16x16xf32>
    %277 = vector.shape_cast %276 : vector<1x1x16x16xf32> to vector<16x16xf32>
    %cst_59 = arith.constant dense<0.000000e+00> : vector<8x16xf32>
    %278 = tpu.matmul %249, %277, %cst_59 {dimension_numbers = #tpu.dot_dimension_numbers<[1], [0], [0], [1], [0, 0, 1, 1], [], []>} : vector<8x16xf32>, vector<16x16xf32>, vector<8x16xf32> -> vector<8x16xf32>
    %279 = arith.addf %275, %278 : vector<8x16xf32>
    %280 = vector.extract_strided_slice %2 {offsets = [0, 1, 0], sizes = [1, 1, 16], strides = [1, 1, 1]} : vector<4x4x16xf32> to vector<1x1x16xf32>
    %281 = vector.shape_cast %280 : vector<1x1x16xf32> to vector<1x16xf32>
    %282 = vector.broadcast %281 : vector<1x16xf32> to vector<8x16xf32>
    %283 = arith.addf %279, %282 : vector<8x16xf32>
    %cst_60 = arith.constant 0.000000e+00 : f32
    %284 = vector.broadcast %cst_60 : f32 to vector<8x16xf32>
    %285 = arith.subf %284, %283 : vector<8x16xf32>
    %286 = math.exp %285 : vector<8x16xf32>
    %cst_61 = arith.constant 1.000000e+00 : f32
    %287 = vector.broadcast %cst_61 : f32 to vector<8x16xf32>
    %288 = arith.addf %287, %286 : vector<8x16xf32>
    %cst_62 = arith.constant 1.000000e+00 : f32
    %289 = vector.broadcast %cst_62 : f32 to vector<8x16xf32>
    %290 = arith.divf %289, %288 : vector<8x16xf32>
    %291 = vector.extract_strided_slice %1 {offsets = [0, 2, 0], sizes = [1, 1, 16], strides = [1, 1, 1]} : vector<4x4x16xf32> to vector<1x1x16xf32>
    %292 = vector.shape_cast %291 : vector<1x1x16xf32> to vector<1x16xf32>
    %293 = vector.broadcast %250 : vector<8x1xf32> to vector<8x16xf32>
    %294 = vector.broadcast %292 : vector<1x16xf32> to vector<8x16xf32>
    %295 = arith.mulf %293, %294 : vector<8x16xf32>
    %296 = vector.extract_strided_slice %3 {offsets = [0, 2, 0, 0], sizes = [1, 1, 16, 16], strides = [1, 1, 1, 1]} : vector<4x4x16x16xf32> to vector<1x1x16x16xf32>
    %297 = vector.shape_cast %296 : vector<1x1x16x16xf32> to vector<16x16xf32>
    %cst_63 = arith.constant dense<0.000000e+00> : vector<8x16xf32>
    %298 = tpu.matmul %249, %297, %cst_63 {dimension_numbers = #tpu.dot_dimension_numbers<[1], [0], [0], [1], [0, 0, 1, 1], [], []>} : vector<8x16xf32>, vector<16x16xf32>, vector<8x16xf32> -> vector<8x16xf32>
    %299 = arith.addf %295, %298 : vector<8x16xf32>
    %300 = vector.extract_strided_slice %2 {offsets = [0, 2, 0], sizes = [1, 1, 16], strides = [1, 1, 1]} : vector<4x4x16xf32> to vector<1x1x16xf32>
    %301 = vector.shape_cast %300 : vector<1x1x16xf32> to vector<1x16xf32>
    %302 = vector.broadcast %301 : vector<1x16xf32> to vector<8x16xf32>
    %303 = arith.addf %299, %302 : vector<8x16xf32>
    %304 = math.tanh %303 : vector<8x16xf32>
    %305 = vector.extract_strided_slice %1 {offsets = [0, 3, 0], sizes = [1, 1, 16], strides = [1, 1, 1]} : vector<4x4x16xf32> to vector<1x1x16xf32>
    %306 = vector.shape_cast %305 : vector<1x1x16xf32> to vector<1x16xf32>
    %307 = vector.broadcast %250 : vector<8x1xf32> to vector<8x16xf32>
    %308 = vector.broadcast %306 : vector<1x16xf32> to vector<8x16xf32>
    %309 = arith.mulf %307, %308 : vector<8x16xf32>
    %310 = vector.extract_strided_slice %3 {offsets = [0, 3, 0, 0], sizes = [1, 1, 16, 16], strides = [1, 1, 1, 1]} : vector<4x4x16x16xf32> to vector<1x1x16x16xf32>
    %311 = vector.shape_cast %310 : vector<1x1x16x16xf32> to vector<16x16xf32>
    %cst_64 = arith.constant dense<0.000000e+00> : vector<8x16xf32>
    %312 = tpu.matmul %249, %311, %cst_64 {dimension_numbers = #tpu.dot_dimension_numbers<[1], [0], [0], [1], [0, 0, 1, 1], [], []>} : vector<8x16xf32>, vector<16x16xf32>, vector<8x16xf32> -> vector<8x16xf32>
    %313 = arith.addf %309, %312 : vector<8x16xf32>
    %314 = vector.extract_strided_slice %2 {offsets = [0, 3, 0], sizes = [1, 1, 16], strides = [1, 1, 1]} : vector<4x4x16xf32> to vector<1x1x16xf32>
    %315 = vector.shape_cast %314 : vector<1x1x16xf32> to vector<1x16xf32>
    %316 = vector.broadcast %315 : vector<1x16xf32> to vector<8x16xf32>
    %317 = arith.addf %313, %316 : vector<8x16xf32>
    %cst_65 = arith.constant 0.000000e+00 : f32
    %318 = vector.broadcast %cst_65 : f32 to vector<8x16xf32>
    %319 = arith.subf %318, %317 : vector<8x16xf32>
    %320 = math.exp %319 : vector<8x16xf32>
    %cst_66 = arith.constant 1.000000e+00 : f32
    %321 = vector.broadcast %cst_66 : f32 to vector<8x16xf32>
    %322 = arith.addf %321, %320 : vector<8x16xf32>
    %cst_67 = arith.constant 1.000000e+00 : f32
    %323 = vector.broadcast %cst_67 : f32 to vector<8x16xf32>
    %324 = arith.divf %323, %322 : vector<8x16xf32>
    %325 = arith.mulf %290, %247 : vector<8x16xf32>
    %326 = arith.mulf %270, %304 : vector<8x16xf32>
    %327 = arith.addf %325, %326 : vector<8x16xf32>
    %328 = math.tanh %327 : vector<8x16xf32>
    %329 = arith.mulf %324, %328 : vector<8x16xf32>
    %330 = vector.extract_strided_slice %0 {offsets = [0, 4], sizes = [8, 1], strides = [1, 1]} : vector<8x20xf32> to vector<8x1xf32>
    %331 = vector.extract_strided_slice %1 {offsets = [0, 0, 0], sizes = [1, 1, 16], strides = [1, 1, 1]} : vector<4x4x16xf32> to vector<1x1x16xf32>
    %332 = vector.shape_cast %331 : vector<1x1x16xf32> to vector<1x16xf32>
    %333 = vector.broadcast %330 : vector<8x1xf32> to vector<8x16xf32>
    %334 = vector.broadcast %332 : vector<1x16xf32> to vector<8x16xf32>
    %335 = arith.mulf %333, %334 : vector<8x16xf32>
    %336 = vector.extract_strided_slice %3 {offsets = [0, 0, 0, 0], sizes = [1, 1, 16, 16], strides = [1, 1, 1, 1]} : vector<4x4x16x16xf32> to vector<1x1x16x16xf32>
    %337 = vector.shape_cast %336 : vector<1x1x16x16xf32> to vector<16x16xf32>
    %cst_68 = arith.constant dense<0.000000e+00> : vector<8x16xf32>
    %338 = tpu.matmul %329, %337, %cst_68 {dimension_numbers = #tpu.dot_dimension_numbers<[1], [0], [0], [1], [0, 0, 1, 1], [], []>} : vector<8x16xf32>, vector<16x16xf32>, vector<8x16xf32> -> vector<8x16xf32>
    %339 = arith.addf %335, %338 : vector<8x16xf32>
    %340 = vector.extract_strided_slice %2 {offsets = [0, 0, 0], sizes = [1, 1, 16], strides = [1, 1, 1]} : vector<4x4x16xf32> to vector<1x1x16xf32>
    %341 = vector.shape_cast %340 : vector<1x1x16xf32> to vector<1x16xf32>
    %342 = vector.broadcast %341 : vector<1x16xf32> to vector<8x16xf32>
    %343 = arith.addf %339, %342 : vector<8x16xf32>
    %cst_69 = arith.constant 0.000000e+00 : f32
    %344 = vector.broadcast %cst_69 : f32 to vector<8x16xf32>
    %345 = arith.subf %344, %343 : vector<8x16xf32>
    %346 = math.exp %345 : vector<8x16xf32>
    %cst_70 = arith.constant 1.000000e+00 : f32
    %347 = vector.broadcast %cst_70 : f32 to vector<8x16xf32>
    %348 = arith.addf %347, %346 : vector<8x16xf32>
    %cst_71 = arith.constant 1.000000e+00 : f32
    %349 = vector.broadcast %cst_71 : f32 to vector<8x16xf32>
    %350 = arith.divf %349, %348 : vector<8x16xf32>
    %351 = vector.extract_strided_slice %1 {offsets = [0, 1, 0], sizes = [1, 1, 16], strides = [1, 1, 1]} : vector<4x4x16xf32> to vector<1x1x16xf32>
    %352 = vector.shape_cast %351 : vector<1x1x16xf32> to vector<1x16xf32>
    %353 = vector.broadcast %330 : vector<8x1xf32> to vector<8x16xf32>
    %354 = vector.broadcast %352 : vector<1x16xf32> to vector<8x16xf32>
    %355 = arith.mulf %353, %354 : vector<8x16xf32>
    %356 = vector.extract_strided_slice %3 {offsets = [0, 1, 0, 0], sizes = [1, 1, 16, 16], strides = [1, 1, 1, 1]} : vector<4x4x16x16xf32> to vector<1x1x16x16xf32>
    %357 = vector.shape_cast %356 : vector<1x1x16x16xf32> to vector<16x16xf32>
    %cst_72 = arith.constant dense<0.000000e+00> : vector<8x16xf32>
    %358 = tpu.matmul %329, %357, %cst_72 {dimension_numbers = #tpu.dot_dimension_numbers<[1], [0], [0], [1], [0, 0, 1, 1], [], []>} : vector<8x16xf32>, vector<16x16xf32>, vector<8x16xf32> -> vector<8x16xf32>
    %359 = arith.addf %355, %358 : vector<8x16xf32>
    %360 = vector.extract_strided_slice %2 {offsets = [0, 1, 0], sizes = [1, 1, 16], strides = [1, 1, 1]} : vector<4x4x16xf32> to vector<1x1x16xf32>
    %361 = vector.shape_cast %360 : vector<1x1x16xf32> to vector<1x16xf32>
    %362 = vector.broadcast %361 : vector<1x16xf32> to vector<8x16xf32>
    %363 = arith.addf %359, %362 : vector<8x16xf32>
    %cst_73 = arith.constant 0.000000e+00 : f32
    %364 = vector.broadcast %cst_73 : f32 to vector<8x16xf32>
    %365 = arith.subf %364, %363 : vector<8x16xf32>
    %366 = math.exp %365 : vector<8x16xf32>
    %cst_74 = arith.constant 1.000000e+00 : f32
    %367 = vector.broadcast %cst_74 : f32 to vector<8x16xf32>
    %368 = arith.addf %367, %366 : vector<8x16xf32>
    %cst_75 = arith.constant 1.000000e+00 : f32
    %369 = vector.broadcast %cst_75 : f32 to vector<8x16xf32>
    %370 = arith.divf %369, %368 : vector<8x16xf32>
    %371 = vector.extract_strided_slice %1 {offsets = [0, 2, 0], sizes = [1, 1, 16], strides = [1, 1, 1]} : vector<4x4x16xf32> to vector<1x1x16xf32>
    %372 = vector.shape_cast %371 : vector<1x1x16xf32> to vector<1x16xf32>
    %373 = vector.broadcast %330 : vector<8x1xf32> to vector<8x16xf32>
    %374 = vector.broadcast %372 : vector<1x16xf32> to vector<8x16xf32>
    %375 = arith.mulf %373, %374 : vector<8x16xf32>
    %376 = vector.extract_strided_slice %3 {offsets = [0, 2, 0, 0], sizes = [1, 1, 16, 16], strides = [1, 1, 1, 1]} : vector<4x4x16x16xf32> to vector<1x1x16x16xf32>
    %377 = vector.shape_cast %376 : vector<1x1x16x16xf32> to vector<16x16xf32>
    %cst_76 = arith.constant dense<0.000000e+00> : vector<8x16xf32>
    %378 = tpu.matmul %329, %377, %cst_76 {dimension_numbers = #tpu.dot_dimension_numbers<[1], [0], [0], [1], [0, 0, 1, 1], [], []>} : vector<8x16xf32>, vector<16x16xf32>, vector<8x16xf32> -> vector<8x16xf32>
    %379 = arith.addf %375, %378 : vector<8x16xf32>
    %380 = vector.extract_strided_slice %2 {offsets = [0, 2, 0], sizes = [1, 1, 16], strides = [1, 1, 1]} : vector<4x4x16xf32> to vector<1x1x16xf32>
    %381 = vector.shape_cast %380 : vector<1x1x16xf32> to vector<1x16xf32>
    %382 = vector.broadcast %381 : vector<1x16xf32> to vector<8x16xf32>
    %383 = arith.addf %379, %382 : vector<8x16xf32>
    %384 = math.tanh %383 : vector<8x16xf32>
    %385 = vector.extract_strided_slice %1 {offsets = [0, 3, 0], sizes = [1, 1, 16], strides = [1, 1, 1]} : vector<4x4x16xf32> to vector<1x1x16xf32>
    %386 = vector.shape_cast %385 : vector<1x1x16xf32> to vector<1x16xf32>
    %387 = vector.broadcast %330 : vector<8x1xf32> to vector<8x16xf32>
    %388 = vector.broadcast %386 : vector<1x16xf32> to vector<8x16xf32>
    %389 = arith.mulf %387, %388 : vector<8x16xf32>
    %390 = vector.extract_strided_slice %3 {offsets = [0, 3, 0, 0], sizes = [1, 1, 16, 16], strides = [1, 1, 1, 1]} : vector<4x4x16x16xf32> to vector<1x1x16x16xf32>
    %391 = vector.shape_cast %390 : vector<1x1x16x16xf32> to vector<16x16xf32>
    %cst_77 = arith.constant dense<0.000000e+00> : vector<8x16xf32>
    %392 = tpu.matmul %329, %391, %cst_77 {dimension_numbers = #tpu.dot_dimension_numbers<[1], [0], [0], [1], [0, 0, 1, 1], [], []>} : vector<8x16xf32>, vector<16x16xf32>, vector<8x16xf32> -> vector<8x16xf32>
    %393 = arith.addf %389, %392 : vector<8x16xf32>
    %394 = vector.extract_strided_slice %2 {offsets = [0, 3, 0], sizes = [1, 1, 16], strides = [1, 1, 1]} : vector<4x4x16xf32> to vector<1x1x16xf32>
    %395 = vector.shape_cast %394 : vector<1x1x16xf32> to vector<1x16xf32>
    %396 = vector.broadcast %395 : vector<1x16xf32> to vector<8x16xf32>
    %397 = arith.addf %393, %396 : vector<8x16xf32>
    %cst_78 = arith.constant 0.000000e+00 : f32
    %398 = vector.broadcast %cst_78 : f32 to vector<8x16xf32>
    %399 = arith.subf %398, %397 : vector<8x16xf32>
    %400 = math.exp %399 : vector<8x16xf32>
    %cst_79 = arith.constant 1.000000e+00 : f32
    %401 = vector.broadcast %cst_79 : f32 to vector<8x16xf32>
    %402 = arith.addf %401, %400 : vector<8x16xf32>
    %cst_80 = arith.constant 1.000000e+00 : f32
    %403 = vector.broadcast %cst_80 : f32 to vector<8x16xf32>
    %404 = arith.divf %403, %402 : vector<8x16xf32>
    %405 = arith.mulf %370, %327 : vector<8x16xf32>
    %406 = arith.mulf %350, %384 : vector<8x16xf32>
    %407 = arith.addf %405, %406 : vector<8x16xf32>
    %408 = math.tanh %407 : vector<8x16xf32>
    %409 = arith.mulf %404, %408 : vector<8x16xf32>
    %410 = vector.extract_strided_slice %0 {offsets = [0, 5], sizes = [8, 1], strides = [1, 1]} : vector<8x20xf32> to vector<8x1xf32>
    %411 = vector.extract_strided_slice %1 {offsets = [0, 0, 0], sizes = [1, 1, 16], strides = [1, 1, 1]} : vector<4x4x16xf32> to vector<1x1x16xf32>
    %412 = vector.shape_cast %411 : vector<1x1x16xf32> to vector<1x16xf32>
    %413 = vector.broadcast %410 : vector<8x1xf32> to vector<8x16xf32>
    %414 = vector.broadcast %412 : vector<1x16xf32> to vector<8x16xf32>
    %415 = arith.mulf %413, %414 : vector<8x16xf32>
    %416 = vector.extract_strided_slice %3 {offsets = [0, 0, 0, 0], sizes = [1, 1, 16, 16], strides = [1, 1, 1, 1]} : vector<4x4x16x16xf32> to vector<1x1x16x16xf32>
    %417 = vector.shape_cast %416 : vector<1x1x16x16xf32> to vector<16x16xf32>
    %cst_81 = arith.constant dense<0.000000e+00> : vector<8x16xf32>
    %418 = tpu.matmul %409, %417, %cst_81 {dimension_numbers = #tpu.dot_dimension_numbers<[1], [0], [0], [1], [0, 0, 1, 1], [], []>} : vector<8x16xf32>, vector<16x16xf32>, vector<8x16xf32> -> vector<8x16xf32>
    %419 = arith.addf %415, %418 : vector<8x16xf32>
    %420 = vector.extract_strided_slice %2 {offsets = [0, 0, 0], sizes = [1, 1, 16], strides = [1, 1, 1]} : vector<4x4x16xf32> to vector<1x1x16xf32>
    %421 = vector.shape_cast %420 : vector<1x1x16xf32> to vector<1x16xf32>
    %422 = vector.broadcast %421 : vector<1x16xf32> to vector<8x16xf32>
    %423 = arith.addf %419, %422 : vector<8x16xf32>
    %cst_82 = arith.constant 0.000000e+00 : f32
    %424 = vector.broadcast %cst_82 : f32 to vector<8x16xf32>
    %425 = arith.subf %424, %423 : vector<8x16xf32>
    %426 = math.exp %425 : vector<8x16xf32>
    %cst_83 = arith.constant 1.000000e+00 : f32
    %427 = vector.broadcast %cst_83 : f32 to vector<8x16xf32>
    %428 = arith.addf %427, %426 : vector<8x16xf32>
    %cst_84 = arith.constant 1.000000e+00 : f32
    %429 = vector.broadcast %cst_84 : f32 to vector<8x16xf32>
    %430 = arith.divf %429, %428 : vector<8x16xf32>
    %431 = vector.extract_strided_slice %1 {offsets = [0, 1, 0], sizes = [1, 1, 16], strides = [1, 1, 1]} : vector<4x4x16xf32> to vector<1x1x16xf32>
    %432 = vector.shape_cast %431 : vector<1x1x16xf32> to vector<1x16xf32>
    %433 = vector.broadcast %410 : vector<8x1xf32> to vector<8x16xf32>
    %434 = vector.broadcast %432 : vector<1x16xf32> to vector<8x16xf32>
    %435 = arith.mulf %433, %434 : vector<8x16xf32>
    %436 = vector.extract_strided_slice %3 {offsets = [0, 1, 0, 0], sizes = [1, 1, 16, 16], strides = [1, 1, 1, 1]} : vector<4x4x16x16xf32> to vector<1x1x16x16xf32>
    %437 = vector.shape_cast %436 : vector<1x1x16x16xf32> to vector<16x16xf32>
    %cst_85 = arith.constant dense<0.000000e+00> : vector<8x16xf32>
    %438 = tpu.matmul %409, %437, %cst_85 {dimension_numbers = #tpu.dot_dimension_numbers<[1], [0], [0], [1], [0, 0, 1, 1], [], []>} : vector<8x16xf32>, vector<16x16xf32>, vector<8x16xf32> -> vector<8x16xf32>
    %439 = arith.addf %435, %438 : vector<8x16xf32>
    %440 = vector.extract_strided_slice %2 {offsets = [0, 1, 0], sizes = [1, 1, 16], strides = [1, 1, 1]} : vector<4x4x16xf32> to vector<1x1x16xf32>
    %441 = vector.shape_cast %440 : vector<1x1x16xf32> to vector<1x16xf32>
    %442 = vector.broadcast %441 : vector<1x16xf32> to vector<8x16xf32>
    %443 = arith.addf %439, %442 : vector<8x16xf32>
    %cst_86 = arith.constant 0.000000e+00 : f32
    %444 = vector.broadcast %cst_86 : f32 to vector<8x16xf32>
    %445 = arith.subf %444, %443 : vector<8x16xf32>
    %446 = math.exp %445 : vector<8x16xf32>
    %cst_87 = arith.constant 1.000000e+00 : f32
    %447 = vector.broadcast %cst_87 : f32 to vector<8x16xf32>
    %448 = arith.addf %447, %446 : vector<8x16xf32>
    %cst_88 = arith.constant 1.000000e+00 : f32
    %449 = vector.broadcast %cst_88 : f32 to vector<8x16xf32>
    %450 = arith.divf %449, %448 : vector<8x16xf32>
    %451 = vector.extract_strided_slice %1 {offsets = [0, 2, 0], sizes = [1, 1, 16], strides = [1, 1, 1]} : vector<4x4x16xf32> to vector<1x1x16xf32>
    %452 = vector.shape_cast %451 : vector<1x1x16xf32> to vector<1x16xf32>
    %453 = vector.broadcast %410 : vector<8x1xf32> to vector<8x16xf32>
    %454 = vector.broadcast %452 : vector<1x16xf32> to vector<8x16xf32>
    %455 = arith.mulf %453, %454 : vector<8x16xf32>
    %456 = vector.extract_strided_slice %3 {offsets = [0, 2, 0, 0], sizes = [1, 1, 16, 16], strides = [1, 1, 1, 1]} : vector<4x4x16x16xf32> to vector<1x1x16x16xf32>
    %457 = vector.shape_cast %456 : vector<1x1x16x16xf32> to vector<16x16xf32>
    %cst_89 = arith.constant dense<0.000000e+00> : vector<8x16xf32>
    %458 = tpu.matmul %409, %457, %cst_89 {dimension_numbers = #tpu.dot_dimension_numbers<[1], [0], [0], [1], [0, 0, 1, 1], [], []>} : vector<8x16xf32>, vector<16x16xf32>, vector<8x16xf32> -> vector<8x16xf32>
    %459 = arith.addf %455, %458 : vector<8x16xf32>
    %460 = vector.extract_strided_slice %2 {offsets = [0, 2, 0], sizes = [1, 1, 16], strides = [1, 1, 1]} : vector<4x4x16xf32> to vector<1x1x16xf32>
    %461 = vector.shape_cast %460 : vector<1x1x16xf32> to vector<1x16xf32>
    %462 = vector.broadcast %461 : vector<1x16xf32> to vector<8x16xf32>
    %463 = arith.addf %459, %462 : vector<8x16xf32>
    %464 = math.tanh %463 : vector<8x16xf32>
    %465 = vector.extract_strided_slice %1 {offsets = [0, 3, 0], sizes = [1, 1, 16], strides = [1, 1, 1]} : vector<4x4x16xf32> to vector<1x1x16xf32>
    %466 = vector.shape_cast %465 : vector<1x1x16xf32> to vector<1x16xf32>
    %467 = vector.broadcast %410 : vector<8x1xf32> to vector<8x16xf32>
    %468 = vector.broadcast %466 : vector<1x16xf32> to vector<8x16xf32>
    %469 = arith.mulf %467, %468 : vector<8x16xf32>
    %470 = vector.extract_strided_slice %3 {offsets = [0, 3, 0, 0], sizes = [1, 1, 16, 16], strides = [1, 1, 1, 1]} : vector<4x4x16x16xf32> to vector<1x1x16x16xf32>
    %471 = vector.shape_cast %470 : vector<1x1x16x16xf32> to vector<16x16xf32>
    %cst_90 = arith.constant dense<0.000000e+00> : vector<8x16xf32>
    %472 = tpu.matmul %409, %471, %cst_90 {dimension_numbers = #tpu.dot_dimension_numbers<[1], [0], [0], [1], [0, 0, 1, 1], [], []>} : vector<8x16xf32>, vector<16x16xf32>, vector<8x16xf32> -> vector<8x16xf32>
    %473 = arith.addf %469, %472 : vector<8x16xf32>
    %474 = vector.extract_strided_slice %2 {offsets = [0, 3, 0], sizes = [1, 1, 16], strides = [1, 1, 1]} : vector<4x4x16xf32> to vector<1x1x16xf32>
    %475 = vector.shape_cast %474 : vector<1x1x16xf32> to vector<1x16xf32>
    %476 = vector.broadcast %475 : vector<1x16xf32> to vector<8x16xf32>
    %477 = arith.addf %473, %476 : vector<8x16xf32>
    %cst_91 = arith.constant 0.000000e+00 : f32
    %478 = vector.broadcast %cst_91 : f32 to vector<8x16xf32>
    %479 = arith.subf %478, %477 : vector<8x16xf32>
    %480 = math.exp %479 : vector<8x16xf32>
    %cst_92 = arith.constant 1.000000e+00 : f32
    %481 = vector.broadcast %cst_92 : f32 to vector<8x16xf32>
    %482 = arith.addf %481, %480 : vector<8x16xf32>
    %cst_93 = arith.constant 1.000000e+00 : f32
    %483 = vector.broadcast %cst_93 : f32 to vector<8x16xf32>
    %484 = arith.divf %483, %482 : vector<8x16xf32>
    %485 = arith.mulf %450, %407 : vector<8x16xf32>
    %486 = arith.mulf %430, %464 : vector<8x16xf32>
    %487 = arith.addf %485, %486 : vector<8x16xf32>
    %488 = math.tanh %487 : vector<8x16xf32>
    %489 = arith.mulf %484, %488 : vector<8x16xf32>
    %490 = vector.extract_strided_slice %0 {offsets = [0, 6], sizes = [8, 1], strides = [1, 1]} : vector<8x20xf32> to vector<8x1xf32>
    %491 = vector.extract_strided_slice %1 {offsets = [0, 0, 0], sizes = [1, 1, 16], strides = [1, 1, 1]} : vector<4x4x16xf32> to vector<1x1x16xf32>
    %492 = vector.shape_cast %491 : vector<1x1x16xf32> to vector<1x16xf32>
    %493 = vector.broadcast %490 : vector<8x1xf32> to vector<8x16xf32>
    %494 = vector.broadcast %492 : vector<1x16xf32> to vector<8x16xf32>
    %495 = arith.mulf %493, %494 : vector<8x16xf32>
    %496 = vector.extract_strided_slice %3 {offsets = [0, 0, 0, 0], sizes = [1, 1, 16, 16], strides = [1, 1, 1, 1]} : vector<4x4x16x16xf32> to vector<1x1x16x16xf32>
    %497 = vector.shape_cast %496 : vector<1x1x16x16xf32> to vector<16x16xf32>
    %cst_94 = arith.constant dense<0.000000e+00> : vector<8x16xf32>
    %498 = tpu.matmul %489, %497, %cst_94 {dimension_numbers = #tpu.dot_dimension_numbers<[1], [0], [0], [1], [0, 0, 1, 1], [], []>} : vector<8x16xf32>, vector<16x16xf32>, vector<8x16xf32> -> vector<8x16xf32>
    %499 = arith.addf %495, %498 : vector<8x16xf32>
    %500 = vector.extract_strided_slice %2 {offsets = [0, 0, 0], sizes = [1, 1, 16], strides = [1, 1, 1]} : vector<4x4x16xf32> to vector<1x1x16xf32>
    %501 = vector.shape_cast %500 : vector<1x1x16xf32> to vector<1x16xf32>
    %502 = vector.broadcast %501 : vector<1x16xf32> to vector<8x16xf32>
    %503 = arith.addf %499, %502 : vector<8x16xf32>
    %cst_95 = arith.constant 0.000000e+00 : f32
    %504 = vector.broadcast %cst_95 : f32 to vector<8x16xf32>
    %505 = arith.subf %504, %503 : vector<8x16xf32>
    %506 = math.exp %505 : vector<8x16xf32>
    %cst_96 = arith.constant 1.000000e+00 : f32
    %507 = vector.broadcast %cst_96 : f32 to vector<8x16xf32>
    %508 = arith.addf %507, %506 : vector<8x16xf32>
    %cst_97 = arith.constant 1.000000e+00 : f32
    %509 = vector.broadcast %cst_97 : f32 to vector<8x16xf32>
    %510 = arith.divf %509, %508 : vector<8x16xf32>
    %511 = vector.extract_strided_slice %1 {offsets = [0, 1, 0], sizes = [1, 1, 16], strides = [1, 1, 1]} : vector<4x4x16xf32> to vector<1x1x16xf32>
    %512 = vector.shape_cast %511 : vector<1x1x16xf32> to vector<1x16xf32>
    %513 = vector.broadcast %490 : vector<8x1xf32> to vector<8x16xf32>
    %514 = vector.broadcast %512 : vector<1x16xf32> to vector<8x16xf32>
    %515 = arith.mulf %513, %514 : vector<8x16xf32>
    %516 = vector.extract_strided_slice %3 {offsets = [0, 1, 0, 0], sizes = [1, 1, 16, 16], strides = [1, 1, 1, 1]} : vector<4x4x16x16xf32> to vector<1x1x16x16xf32>
    %517 = vector.shape_cast %516 : vector<1x1x16x16xf32> to vector<16x16xf32>
    %cst_98 = arith.constant dense<0.000000e+00> : vector<8x16xf32>
    %518 = tpu.matmul %489, %517, %cst_98 {dimension_numbers = #tpu.dot_dimension_numbers<[1], [0], [0], [1], [0, 0, 1, 1], [], []>} : vector<8x16xf32>, vector<16x16xf32>, vector<8x16xf32> -> vector<8x16xf32>
    %519 = arith.addf %515, %518 : vector<8x16xf32>
    %520 = vector.extract_strided_slice %2 {offsets = [0, 1, 0], sizes = [1, 1, 16], strides = [1, 1, 1]} : vector<4x4x16xf32> to vector<1x1x16xf32>
    %521 = vector.shape_cast %520 : vector<1x1x16xf32> to vector<1x16xf32>
    %522 = vector.broadcast %521 : vector<1x16xf32> to vector<8x16xf32>
    %523 = arith.addf %519, %522 : vector<8x16xf32>
    %cst_99 = arith.constant 0.000000e+00 : f32
    %524 = vector.broadcast %cst_99 : f32 to vector<8x16xf32>
    %525 = arith.subf %524, %523 : vector<8x16xf32>
    %526 = math.exp %525 : vector<8x16xf32>
    %cst_100 = arith.constant 1.000000e+00 : f32
    %527 = vector.broadcast %cst_100 : f32 to vector<8x16xf32>
    %528 = arith.addf %527, %526 : vector<8x16xf32>
    %cst_101 = arith.constant 1.000000e+00 : f32
    %529 = vector.broadcast %cst_101 : f32 to vector<8x16xf32>
    %530 = arith.divf %529, %528 : vector<8x16xf32>
    %531 = vector.extract_strided_slice %1 {offsets = [0, 2, 0], sizes = [1, 1, 16], strides = [1, 1, 1]} : vector<4x4x16xf32> to vector<1x1x16xf32>
    %532 = vector.shape_cast %531 : vector<1x1x16xf32> to vector<1x16xf32>
    %533 = vector.broadcast %490 : vector<8x1xf32> to vector<8x16xf32>
    %534 = vector.broadcast %532 : vector<1x16xf32> to vector<8x16xf32>
    %535 = arith.mulf %533, %534 : vector<8x16xf32>
    %536 = vector.extract_strided_slice %3 {offsets = [0, 2, 0, 0], sizes = [1, 1, 16, 16], strides = [1, 1, 1, 1]} : vector<4x4x16x16xf32> to vector<1x1x16x16xf32>
    %537 = vector.shape_cast %536 : vector<1x1x16x16xf32> to vector<16x16xf32>
    %cst_102 = arith.constant dense<0.000000e+00> : vector<8x16xf32>
    %538 = tpu.matmul %489, %537, %cst_102 {dimension_numbers = #tpu.dot_dimension_numbers<[1], [0], [0], [1], [0, 0, 1, 1], [], []>} : vector<8x16xf32>, vector<16x16xf32>, vector<8x16xf32> -> vector<8x16xf32>
    %539 = arith.addf %535, %538 : vector<8x16xf32>
    %540 = vector.extract_strided_slice %2 {offsets = [0, 2, 0], sizes = [1, 1, 16], strides = [1, 1, 1]} : vector<4x4x16xf32> to vector<1x1x16xf32>
    %541 = vector.shape_cast %540 : vector<1x1x16xf32> to vector<1x16xf32>
    %542 = vector.broadcast %541 : vector<1x16xf32> to vector<8x16xf32>
    %543 = arith.addf %539, %542 : vector<8x16xf32>
    %544 = math.tanh %543 : vector<8x16xf32>
    %545 = vector.extract_strided_slice %1 {offsets = [0, 3, 0], sizes = [1, 1, 16], strides = [1, 1, 1]} : vector<4x4x16xf32> to vector<1x1x16xf32>
    %546 = vector.shape_cast %545 : vector<1x1x16xf32> to vector<1x16xf32>
    %547 = vector.broadcast %490 : vector<8x1xf32> to vector<8x16xf32>
    %548 = vector.broadcast %546 : vector<1x16xf32> to vector<8x16xf32>
    %549 = arith.mulf %547, %548 : vector<8x16xf32>
    %550 = vector.extract_strided_slice %3 {offsets = [0, 3, 0, 0], sizes = [1, 1, 16, 16], strides = [1, 1, 1, 1]} : vector<4x4x16x16xf32> to vector<1x1x16x16xf32>
    %551 = vector.shape_cast %550 : vector<1x1x16x16xf32> to vector<16x16xf32>
    %cst_103 = arith.constant dense<0.000000e+00> : vector<8x16xf32>
    %552 = tpu.matmul %489, %551, %cst_103 {dimension_numbers = #tpu.dot_dimension_numbers<[1], [0], [0], [1], [0, 0, 1, 1], [], []>} : vector<8x16xf32>, vector<16x16xf32>, vector<8x16xf32> -> vector<8x16xf32>
    %553 = arith.addf %549, %552 : vector<8x16xf32>
    %554 = vector.extract_strided_slice %2 {offsets = [0, 3, 0], sizes = [1, 1, 16], strides = [1, 1, 1]} : vector<4x4x16xf32> to vector<1x1x16xf32>
    %555 = vector.shape_cast %554 : vector<1x1x16xf32> to vector<1x16xf32>
    %556 = vector.broadcast %555 : vector<1x16xf32> to vector<8x16xf32>
    %557 = arith.addf %553, %556 : vector<8x16xf32>
    %cst_104 = arith.constant 0.000000e+00 : f32
    %558 = vector.broadcast %cst_104 : f32 to vector<8x16xf32>
    %559 = arith.subf %558, %557 : vector<8x16xf32>
    %560 = math.exp %559 : vector<8x16xf32>
    %cst_105 = arith.constant 1.000000e+00 : f32
    %561 = vector.broadcast %cst_105 : f32 to vector<8x16xf32>
    %562 = arith.addf %561, %560 : vector<8x16xf32>
    %cst_106 = arith.constant 1.000000e+00 : f32
    %563 = vector.broadcast %cst_106 : f32 to vector<8x16xf32>
    %564 = arith.divf %563, %562 : vector<8x16xf32>
    %565 = arith.mulf %530, %487 : vector<8x16xf32>
    %566 = arith.mulf %510, %544 : vector<8x16xf32>
    %567 = arith.addf %565, %566 : vector<8x16xf32>
    %568 = math.tanh %567 : vector<8x16xf32>
    %569 = arith.mulf %564, %568 : vector<8x16xf32>
    %570 = vector.extract_strided_slice %0 {offsets = [0, 7], sizes = [8, 1], strides = [1, 1]} : vector<8x20xf32> to vector<8x1xf32>
    %571 = vector.extract_strided_slice %1 {offsets = [0, 0, 0], sizes = [1, 1, 16], strides = [1, 1, 1]} : vector<4x4x16xf32> to vector<1x1x16xf32>
    %572 = vector.shape_cast %571 : vector<1x1x16xf32> to vector<1x16xf32>
    %573 = vector.broadcast %570 : vector<8x1xf32> to vector<8x16xf32>
    %574 = vector.broadcast %572 : vector<1x16xf32> to vector<8x16xf32>
    %575 = arith.mulf %573, %574 : vector<8x16xf32>
    %576 = vector.extract_strided_slice %3 {offsets = [0, 0, 0, 0], sizes = [1, 1, 16, 16], strides = [1, 1, 1, 1]} : vector<4x4x16x16xf32> to vector<1x1x16x16xf32>
    %577 = vector.shape_cast %576 : vector<1x1x16x16xf32> to vector<16x16xf32>
    %cst_107 = arith.constant dense<0.000000e+00> : vector<8x16xf32>
    %578 = tpu.matmul %569, %577, %cst_107 {dimension_numbers = #tpu.dot_dimension_numbers<[1], [0], [0], [1], [0, 0, 1, 1], [], []>} : vector<8x16xf32>, vector<16x16xf32>, vector<8x16xf32> -> vector<8x16xf32>
    %579 = arith.addf %575, %578 : vector<8x16xf32>
    %580 = vector.extract_strided_slice %2 {offsets = [0, 0, 0], sizes = [1, 1, 16], strides = [1, 1, 1]} : vector<4x4x16xf32> to vector<1x1x16xf32>
    %581 = vector.shape_cast %580 : vector<1x1x16xf32> to vector<1x16xf32>
    %582 = vector.broadcast %581 : vector<1x16xf32> to vector<8x16xf32>
    %583 = arith.addf %579, %582 : vector<8x16xf32>
    %cst_108 = arith.constant 0.000000e+00 : f32
    %584 = vector.broadcast %cst_108 : f32 to vector<8x16xf32>
    %585 = arith.subf %584, %583 : vector<8x16xf32>
    %586 = math.exp %585 : vector<8x16xf32>
    %cst_109 = arith.constant 1.000000e+00 : f32
    %587 = vector.broadcast %cst_109 : f32 to vector<8x16xf32>
    %588 = arith.addf %587, %586 : vector<8x16xf32>
    %cst_110 = arith.constant 1.000000e+00 : f32
    %589 = vector.broadcast %cst_110 : f32 to vector<8x16xf32>
    %590 = arith.divf %589, %588 : vector<8x16xf32>
    %591 = vector.extract_strided_slice %1 {offsets = [0, 1, 0], sizes = [1, 1, 16], strides = [1, 1, 1]} : vector<4x4x16xf32> to vector<1x1x16xf32>
    %592 = vector.shape_cast %591 : vector<1x1x16xf32> to vector<1x16xf32>
    %593 = vector.broadcast %570 : vector<8x1xf32> to vector<8x16xf32>
    %594 = vector.broadcast %592 : vector<1x16xf32> to vector<8x16xf32>
    %595 = arith.mulf %593, %594 : vector<8x16xf32>
    %596 = vector.extract_strided_slice %3 {offsets = [0, 1, 0, 0], sizes = [1, 1, 16, 16], strides = [1, 1, 1, 1]} : vector<4x4x16x16xf32> to vector<1x1x16x16xf32>
    %597 = vector.shape_cast %596 : vector<1x1x16x16xf32> to vector<16x16xf32>
    %cst_111 = arith.constant dense<0.000000e+00> : vector<8x16xf32>
    %598 = tpu.matmul %569, %597, %cst_111 {dimension_numbers = #tpu.dot_dimension_numbers<[1], [0], [0], [1], [0, 0, 1, 1], [], []>} : vector<8x16xf32>, vector<16x16xf32>, vector<8x16xf32> -> vector<8x16xf32>
    %599 = arith.addf %595, %598 : vector<8x16xf32>
    %600 = vector.extract_strided_slice %2 {offsets = [0, 1, 0], sizes = [1, 1, 16], strides = [1, 1, 1]} : vector<4x4x16xf32> to vector<1x1x16xf32>
    %601 = vector.shape_cast %600 : vector<1x1x16xf32> to vector<1x16xf32>
    %602 = vector.broadcast %601 : vector<1x16xf32> to vector<8x16xf32>
    %603 = arith.addf %599, %602 : vector<8x16xf32>
    %cst_112 = arith.constant 0.000000e+00 : f32
    %604 = vector.broadcast %cst_112 : f32 to vector<8x16xf32>
    %605 = arith.subf %604, %603 : vector<8x16xf32>
    %606 = math.exp %605 : vector<8x16xf32>
    %cst_113 = arith.constant 1.000000e+00 : f32
    %607 = vector.broadcast %cst_113 : f32 to vector<8x16xf32>
    %608 = arith.addf %607, %606 : vector<8x16xf32>
    %cst_114 = arith.constant 1.000000e+00 : f32
    %609 = vector.broadcast %cst_114 : f32 to vector<8x16xf32>
    %610 = arith.divf %609, %608 : vector<8x16xf32>
    %611 = vector.extract_strided_slice %1 {offsets = [0, 2, 0], sizes = [1, 1, 16], strides = [1, 1, 1]} : vector<4x4x16xf32> to vector<1x1x16xf32>
    %612 = vector.shape_cast %611 : vector<1x1x16xf32> to vector<1x16xf32>
    %613 = vector.broadcast %570 : vector<8x1xf32> to vector<8x16xf32>
    %614 = vector.broadcast %612 : vector<1x16xf32> to vector<8x16xf32>
    %615 = arith.mulf %613, %614 : vector<8x16xf32>
    %616 = vector.extract_strided_slice %3 {offsets = [0, 2, 0, 0], sizes = [1, 1, 16, 16], strides = [1, 1, 1, 1]} : vector<4x4x16x16xf32> to vector<1x1x16x16xf32>
    %617 = vector.shape_cast %616 : vector<1x1x16x16xf32> to vector<16x16xf32>
    %cst_115 = arith.constant dense<0.000000e+00> : vector<8x16xf32>
    %618 = tpu.matmul %569, %617, %cst_115 {dimension_numbers = #tpu.dot_dimension_numbers<[1], [0], [0], [1], [0, 0, 1, 1], [], []>} : vector<8x16xf32>, vector<16x16xf32>, vector<8x16xf32> -> vector<8x16xf32>
    %619 = arith.addf %615, %618 : vector<8x16xf32>
    %620 = vector.extract_strided_slice %2 {offsets = [0, 2, 0], sizes = [1, 1, 16], strides = [1, 1, 1]} : vector<4x4x16xf32> to vector<1x1x16xf32>
    %621 = vector.shape_cast %620 : vector<1x1x16xf32> to vector<1x16xf32>
    %622 = vector.broadcast %621 : vector<1x16xf32> to vector<8x16xf32>
    %623 = arith.addf %619, %622 : vector<8x16xf32>
    %624 = math.tanh %623 : vector<8x16xf32>
    %625 = vector.extract_strided_slice %1 {offsets = [0, 3, 0], sizes = [1, 1, 16], strides = [1, 1, 1]} : vector<4x4x16xf32> to vector<1x1x16xf32>
    %626 = vector.shape_cast %625 : vector<1x1x16xf32> to vector<1x16xf32>
    %627 = vector.broadcast %570 : vector<8x1xf32> to vector<8x16xf32>
    %628 = vector.broadcast %626 : vector<1x16xf32> to vector<8x16xf32>
    %629 = arith.mulf %627, %628 : vector<8x16xf32>
    %630 = vector.extract_strided_slice %3 {offsets = [0, 3, 0, 0], sizes = [1, 1, 16, 16], strides = [1, 1, 1, 1]} : vector<4x4x16x16xf32> to vector<1x1x16x16xf32>
    %631 = vector.shape_cast %630 : vector<1x1x16x16xf32> to vector<16x16xf32>
    %cst_116 = arith.constant dense<0.000000e+00> : vector<8x16xf32>
    %632 = tpu.matmul %569, %631, %cst_116 {dimension_numbers = #tpu.dot_dimension_numbers<[1], [0], [0], [1], [0, 0, 1, 1], [], []>} : vector<8x16xf32>, vector<16x16xf32>, vector<8x16xf32> -> vector<8x16xf32>
    %633 = arith.addf %629, %632 : vector<8x16xf32>
    %634 = vector.extract_strided_slice %2 {offsets = [0, 3, 0], sizes = [1, 1, 16], strides = [1, 1, 1]} : vector<4x4x16xf32> to vector<1x1x16xf32>
    %635 = vector.shape_cast %634 : vector<1x1x16xf32> to vector<1x16xf32>
    %636 = vector.broadcast %635 : vector<1x16xf32> to vector<8x16xf32>
    %637 = arith.addf %633, %636 : vector<8x16xf32>
    %cst_117 = arith.constant 0.000000e+00 : f32
    %638 = vector.broadcast %cst_117 : f32 to vector<8x16xf32>
    %639 = arith.subf %638, %637 : vector<8x16xf32>
    %640 = math.exp %639 : vector<8x16xf32>
    %cst_118 = arith.constant 1.000000e+00 : f32
    %641 = vector.broadcast %cst_118 : f32 to vector<8x16xf32>
    %642 = arith.addf %641, %640 : vector<8x16xf32>
    %cst_119 = arith.constant 1.000000e+00 : f32
    %643 = vector.broadcast %cst_119 : f32 to vector<8x16xf32>
    %644 = arith.divf %643, %642 : vector<8x16xf32>
    %645 = arith.mulf %610, %567 : vector<8x16xf32>
    %646 = arith.mulf %590, %624 : vector<8x16xf32>
    %647 = arith.addf %645, %646 : vector<8x16xf32>
    %648 = math.tanh %647 : vector<8x16xf32>
    %649 = arith.mulf %644, %648 : vector<8x16xf32>
    %650 = vector.extract_strided_slice %0 {offsets = [0, 7], sizes = [8, 1], strides = [1, 1]} : vector<8x20xf32> to vector<8x1xf32>
    %651 = vector.extract_strided_slice %4 {offsets = [1, 0, 0], sizes = [1, 8, 16], strides = [1, 1, 1]} : vector<4x8x16xf32> to vector<1x8x16xf32>
    %652 = vector.shape_cast %651 : vector<1x8x16xf32> to vector<8x16xf32>
    %653 = vector.extract_strided_slice %5 {offsets = [1, 0, 0], sizes = [1, 8, 16], strides = [1, 1, 1]} : vector<4x8x16xf32> to vector<1x8x16xf32>
    %654 = vector.shape_cast %653 : vector<1x8x16xf32> to vector<8x16xf32>
    %655 = vector.extract_strided_slice %1 {offsets = [1, 0, 0], sizes = [1, 1, 16], strides = [1, 1, 1]} : vector<4x4x16xf32> to vector<1x1x16xf32>
    %656 = vector.shape_cast %655 : vector<1x1x16xf32> to vector<1x16xf32>
    %657 = vector.broadcast %650 : vector<8x1xf32> to vector<8x16xf32>
    %658 = vector.broadcast %656 : vector<1x16xf32> to vector<8x16xf32>
    %659 = arith.mulf %657, %658 : vector<8x16xf32>
    %660 = vector.extract_strided_slice %3 {offsets = [1, 0, 0, 0], sizes = [1, 1, 16, 16], strides = [1, 1, 1, 1]} : vector<4x4x16x16xf32> to vector<1x1x16x16xf32>
    %661 = vector.shape_cast %660 : vector<1x1x16x16xf32> to vector<16x16xf32>
    %cst_120 = arith.constant dense<0.000000e+00> : vector<8x16xf32>
    %662 = tpu.matmul %652, %661, %cst_120 {dimension_numbers = #tpu.dot_dimension_numbers<[1], [0], [0], [1], [0, 0, 1, 1], [], []>} : vector<8x16xf32>, vector<16x16xf32>, vector<8x16xf32> -> vector<8x16xf32>
    %663 = arith.addf %659, %662 : vector<8x16xf32>
    %664 = vector.extract_strided_slice %2 {offsets = [1, 0, 0], sizes = [1, 1, 16], strides = [1, 1, 1]} : vector<4x4x16xf32> to vector<1x1x16xf32>
    %665 = vector.shape_cast %664 : vector<1x1x16xf32> to vector<1x16xf32>
    %666 = vector.broadcast %665 : vector<1x16xf32> to vector<8x16xf32>
    %667 = arith.addf %663, %666 : vector<8x16xf32>
    %cst_121 = arith.constant 0.000000e+00 : f32
    %668 = vector.broadcast %cst_121 : f32 to vector<8x16xf32>
    %669 = arith.subf %668, %667 : vector<8x16xf32>
    %670 = math.exp %669 : vector<8x16xf32>
    %cst_122 = arith.constant 1.000000e+00 : f32
    %671 = vector.broadcast %cst_122 : f32 to vector<8x16xf32>
    %672 = arith.addf %671, %670 : vector<8x16xf32>
    %cst_123 = arith.constant 1.000000e+00 : f32
    %673 = vector.broadcast %cst_123 : f32 to vector<8x16xf32>
    %674 = arith.divf %673, %672 : vector<8x16xf32>
    %675 = vector.extract_strided_slice %1 {offsets = [1, 1, 0], sizes = [1, 1, 16], strides = [1, 1, 1]} : vector<4x4x16xf32> to vector<1x1x16xf32>
    %676 = vector.shape_cast %675 : vector<1x1x16xf32> to vector<1x16xf32>
    %677 = vector.broadcast %650 : vector<8x1xf32> to vector<8x16xf32>
    %678 = vector.broadcast %676 : vector<1x16xf32> to vector<8x16xf32>
    %679 = arith.mulf %677, %678 : vector<8x16xf32>
    %680 = vector.extract_strided_slice %3 {offsets = [1, 1, 0, 0], sizes = [1, 1, 16, 16], strides = [1, 1, 1, 1]} : vector<4x4x16x16xf32> to vector<1x1x16x16xf32>
    %681 = vector.shape_cast %680 : vector<1x1x16x16xf32> to vector<16x16xf32>
    %cst_124 = arith.constant dense<0.000000e+00> : vector<8x16xf32>
    %682 = tpu.matmul %652, %681, %cst_124 {dimension_numbers = #tpu.dot_dimension_numbers<[1], [0], [0], [1], [0, 0, 1, 1], [], []>} : vector<8x16xf32>, vector<16x16xf32>, vector<8x16xf32> -> vector<8x16xf32>
    %683 = arith.addf %679, %682 : vector<8x16xf32>
    %684 = vector.extract_strided_slice %2 {offsets = [1, 1, 0], sizes = [1, 1, 16], strides = [1, 1, 1]} : vector<4x4x16xf32> to vector<1x1x16xf32>
    %685 = vector.shape_cast %684 : vector<1x1x16xf32> to vector<1x16xf32>
    %686 = vector.broadcast %685 : vector<1x16xf32> to vector<8x16xf32>
    %687 = arith.addf %683, %686 : vector<8x16xf32>
    %cst_125 = arith.constant 0.000000e+00 : f32
    %688 = vector.broadcast %cst_125 : f32 to vector<8x16xf32>
    %689 = arith.subf %688, %687 : vector<8x16xf32>
    %690 = math.exp %689 : vector<8x16xf32>
    %cst_126 = arith.constant 1.000000e+00 : f32
    %691 = vector.broadcast %cst_126 : f32 to vector<8x16xf32>
    %692 = arith.addf %691, %690 : vector<8x16xf32>
    %cst_127 = arith.constant 1.000000e+00 : f32
    %693 = vector.broadcast %cst_127 : f32 to vector<8x16xf32>
    %694 = arith.divf %693, %692 : vector<8x16xf32>
    %695 = vector.extract_strided_slice %1 {offsets = [1, 2, 0], sizes = [1, 1, 16], strides = [1, 1, 1]} : vector<4x4x16xf32> to vector<1x1x16xf32>
    %696 = vector.shape_cast %695 : vector<1x1x16xf32> to vector<1x16xf32>
    %697 = vector.broadcast %650 : vector<8x1xf32> to vector<8x16xf32>
    %698 = vector.broadcast %696 : vector<1x16xf32> to vector<8x16xf32>
    %699 = arith.mulf %697, %698 : vector<8x16xf32>
    %700 = vector.extract_strided_slice %3 {offsets = [1, 2, 0, 0], sizes = [1, 1, 16, 16], strides = [1, 1, 1, 1]} : vector<4x4x16x16xf32> to vector<1x1x16x16xf32>
    %701 = vector.shape_cast %700 : vector<1x1x16x16xf32> to vector<16x16xf32>
    %cst_128 = arith.constant dense<0.000000e+00> : vector<8x16xf32>
    %702 = tpu.matmul %652, %701, %cst_128 {dimension_numbers = #tpu.dot_dimension_numbers<[1], [0], [0], [1], [0, 0, 1, 1], [], []>} : vector<8x16xf32>, vector<16x16xf32>, vector<8x16xf32> -> vector<8x16xf32>
    %703 = arith.addf %699, %702 : vector<8x16xf32>
    %704 = vector.extract_strided_slice %2 {offsets = [1, 2, 0], sizes = [1, 1, 16], strides = [1, 1, 1]} : vector<4x4x16xf32> to vector<1x1x16xf32>
    %705 = vector.shape_cast %704 : vector<1x1x16xf32> to vector<1x16xf32>
    %706 = vector.broadcast %705 : vector<1x16xf32> to vector<8x16xf32>
    %707 = arith.addf %703, %706 : vector<8x16xf32>
    %708 = math.tanh %707 : vector<8x16xf32>
    %709 = vector.extract_strided_slice %1 {offsets = [1, 3, 0], sizes = [1, 1, 16], strides = [1, 1, 1]} : vector<4x4x16xf32> to vector<1x1x16xf32>
    %710 = vector.shape_cast %709 : vector<1x1x16xf32> to vector<1x16xf32>
    %711 = vector.broadcast %650 : vector<8x1xf32> to vector<8x16xf32>
    %712 = vector.broadcast %710 : vector<1x16xf32> to vector<8x16xf32>
    %713 = arith.mulf %711, %712 : vector<8x16xf32>
    %714 = vector.extract_strided_slice %3 {offsets = [1, 3, 0, 0], sizes = [1, 1, 16, 16], strides = [1, 1, 1, 1]} : vector<4x4x16x16xf32> to vector<1x1x16x16xf32>
    %715 = vector.shape_cast %714 : vector<1x1x16x16xf32> to vector<16x16xf32>
    %cst_129 = arith.constant dense<0.000000e+00> : vector<8x16xf32>
    %716 = tpu.matmul %652, %715, %cst_129 {dimension_numbers = #tpu.dot_dimension_numbers<[1], [0], [0], [1], [0, 0, 1, 1], [], []>} : vector<8x16xf32>, vector<16x16xf32>, vector<8x16xf32> -> vector<8x16xf32>
    %717 = arith.addf %713, %716 : vector<8x16xf32>
    %718 = vector.extract_strided_slice %2 {offsets = [1, 3, 0], sizes = [1, 1, 16], strides = [1, 1, 1]} : vector<4x4x16xf32> to vector<1x1x16xf32>
    %719 = vector.shape_cast %718 : vector<1x1x16xf32> to vector<1x16xf32>
    %720 = vector.broadcast %719 : vector<1x16xf32> to vector<8x16xf32>
    %721 = arith.addf %717, %720 : vector<8x16xf32>
    %cst_130 = arith.constant 0.000000e+00 : f32
    %722 = vector.broadcast %cst_130 : f32 to vector<8x16xf32>
    %723 = arith.subf %722, %721 : vector<8x16xf32>
    %724 = math.exp %723 : vector<8x16xf32>
    %cst_131 = arith.constant 1.000000e+00 : f32
    %725 = vector.broadcast %cst_131 : f32 to vector<8x16xf32>
    %726 = arith.addf %725, %724 : vector<8x16xf32>
    %cst_132 = arith.constant 1.000000e+00 : f32
    %727 = vector.broadcast %cst_132 : f32 to vector<8x16xf32>
    %728 = arith.divf %727, %726 : vector<8x16xf32>
    %729 = arith.mulf %694, %654 : vector<8x16xf32>
    %730 = arith.mulf %674, %708 : vector<8x16xf32>
    %731 = arith.addf %729, %730 : vector<8x16xf32>
    %732 = math.tanh %731 : vector<8x16xf32>
    %733 = arith.mulf %728, %732 : vector<8x16xf32>
    %734 = vector.extract_strided_slice %4 {offsets = [2, 0, 0], sizes = [1, 8, 16], strides = [1, 1, 1]} : vector<4x8x16xf32> to vector<1x8x16xf32>
    %735 = vector.shape_cast %734 : vector<1x8x16xf32> to vector<8x16xf32>
    %736 = vector.extract_strided_slice %5 {offsets = [2, 0, 0], sizes = [1, 8, 16], strides = [1, 1, 1]} : vector<4x8x16xf32> to vector<1x8x16xf32>
    %737 = vector.shape_cast %736 : vector<1x8x16xf32> to vector<8x16xf32>
    %738 = vector.extract_strided_slice %0 {offsets = [0, 8], sizes = [8, 1], strides = [1, 1]} : vector<8x20xf32> to vector<8x1xf32>
    %739 = vector.extract_strided_slice %1 {offsets = [2, 0, 0], sizes = [1, 1, 16], strides = [1, 1, 1]} : vector<4x4x16xf32> to vector<1x1x16xf32>
    %740 = vector.shape_cast %739 : vector<1x1x16xf32> to vector<1x16xf32>
    %741 = vector.broadcast %738 : vector<8x1xf32> to vector<8x16xf32>
    %742 = vector.broadcast %740 : vector<1x16xf32> to vector<8x16xf32>
    %743 = arith.mulf %741, %742 : vector<8x16xf32>
    %744 = vector.extract_strided_slice %3 {offsets = [2, 0, 0, 0], sizes = [1, 1, 16, 16], strides = [1, 1, 1, 1]} : vector<4x4x16x16xf32> to vector<1x1x16x16xf32>
    %745 = vector.shape_cast %744 : vector<1x1x16x16xf32> to vector<16x16xf32>
    %cst_133 = arith.constant dense<0.000000e+00> : vector<8x16xf32>
    %746 = tpu.matmul %735, %745, %cst_133 {dimension_numbers = #tpu.dot_dimension_numbers<[1], [0], [0], [1], [0, 0, 1, 1], [], []>} : vector<8x16xf32>, vector<16x16xf32>, vector<8x16xf32> -> vector<8x16xf32>
    %747 = arith.addf %743, %746 : vector<8x16xf32>
    %748 = vector.extract_strided_slice %2 {offsets = [2, 0, 0], sizes = [1, 1, 16], strides = [1, 1, 1]} : vector<4x4x16xf32> to vector<1x1x16xf32>
    %749 = vector.shape_cast %748 : vector<1x1x16xf32> to vector<1x16xf32>
    %750 = vector.broadcast %749 : vector<1x16xf32> to vector<8x16xf32>
    %751 = arith.addf %747, %750 : vector<8x16xf32>
    %cst_134 = arith.constant 0.000000e+00 : f32
    %752 = vector.broadcast %cst_134 : f32 to vector<8x16xf32>
    %753 = arith.subf %752, %751 : vector<8x16xf32>
    %754 = math.exp %753 : vector<8x16xf32>
    %cst_135 = arith.constant 1.000000e+00 : f32
    %755 = vector.broadcast %cst_135 : f32 to vector<8x16xf32>
    %756 = arith.addf %755, %754 : vector<8x16xf32>
    %cst_136 = arith.constant 1.000000e+00 : f32
    %757 = vector.broadcast %cst_136 : f32 to vector<8x16xf32>
    %758 = arith.divf %757, %756 : vector<8x16xf32>
    %759 = vector.extract_strided_slice %1 {offsets = [2, 1, 0], sizes = [1, 1, 16], strides = [1, 1, 1]} : vector<4x4x16xf32> to vector<1x1x16xf32>
    %760 = vector.shape_cast %759 : vector<1x1x16xf32> to vector<1x16xf32>
    %761 = vector.broadcast %738 : vector<8x1xf32> to vector<8x16xf32>
    %762 = vector.broadcast %760 : vector<1x16xf32> to vector<8x16xf32>
    %763 = arith.mulf %761, %762 : vector<8x16xf32>
    %764 = vector.extract_strided_slice %3 {offsets = [2, 1, 0, 0], sizes = [1, 1, 16, 16], strides = [1, 1, 1, 1]} : vector<4x4x16x16xf32> to vector<1x1x16x16xf32>
    %765 = vector.shape_cast %764 : vector<1x1x16x16xf32> to vector<16x16xf32>
    %cst_137 = arith.constant dense<0.000000e+00> : vector<8x16xf32>
    %766 = tpu.matmul %735, %765, %cst_137 {dimension_numbers = #tpu.dot_dimension_numbers<[1], [0], [0], [1], [0, 0, 1, 1], [], []>} : vector<8x16xf32>, vector<16x16xf32>, vector<8x16xf32> -> vector<8x16xf32>
    %767 = arith.addf %763, %766 : vector<8x16xf32>
    %768 = vector.extract_strided_slice %2 {offsets = [2, 1, 0], sizes = [1, 1, 16], strides = [1, 1, 1]} : vector<4x4x16xf32> to vector<1x1x16xf32>
    %769 = vector.shape_cast %768 : vector<1x1x16xf32> to vector<1x16xf32>
    %770 = vector.broadcast %769 : vector<1x16xf32> to vector<8x16xf32>
    %771 = arith.addf %767, %770 : vector<8x16xf32>
    %cst_138 = arith.constant 0.000000e+00 : f32
    %772 = vector.broadcast %cst_138 : f32 to vector<8x16xf32>
    %773 = arith.subf %772, %771 : vector<8x16xf32>
    %774 = math.exp %773 : vector<8x16xf32>
    %cst_139 = arith.constant 1.000000e+00 : f32
    %775 = vector.broadcast %cst_139 : f32 to vector<8x16xf32>
    %776 = arith.addf %775, %774 : vector<8x16xf32>
    %cst_140 = arith.constant 1.000000e+00 : f32
    %777 = vector.broadcast %cst_140 : f32 to vector<8x16xf32>
    %778 = arith.divf %777, %776 : vector<8x16xf32>
    %779 = vector.extract_strided_slice %1 {offsets = [2, 2, 0], sizes = [1, 1, 16], strides = [1, 1, 1]} : vector<4x4x16xf32> to vector<1x1x16xf32>
    %780 = vector.shape_cast %779 : vector<1x1x16xf32> to vector<1x16xf32>
    %781 = vector.broadcast %738 : vector<8x1xf32> to vector<8x16xf32>
    %782 = vector.broadcast %780 : vector<1x16xf32> to vector<8x16xf32>
    %783 = arith.mulf %781, %782 : vector<8x16xf32>
    %784 = vector.extract_strided_slice %3 {offsets = [2, 2, 0, 0], sizes = [1, 1, 16, 16], strides = [1, 1, 1, 1]} : vector<4x4x16x16xf32> to vector<1x1x16x16xf32>
    %785 = vector.shape_cast %784 : vector<1x1x16x16xf32> to vector<16x16xf32>
    %cst_141 = arith.constant dense<0.000000e+00> : vector<8x16xf32>
    %786 = tpu.matmul %735, %785, %cst_141 {dimension_numbers = #tpu.dot_dimension_numbers<[1], [0], [0], [1], [0, 0, 1, 1], [], []>} : vector<8x16xf32>, vector<16x16xf32>, vector<8x16xf32> -> vector<8x16xf32>
    %787 = arith.addf %783, %786 : vector<8x16xf32>
    %788 = vector.extract_strided_slice %2 {offsets = [2, 2, 0], sizes = [1, 1, 16], strides = [1, 1, 1]} : vector<4x4x16xf32> to vector<1x1x16xf32>
    %789 = vector.shape_cast %788 : vector<1x1x16xf32> to vector<1x16xf32>
    %790 = vector.broadcast %789 : vector<1x16xf32> to vector<8x16xf32>
    %791 = arith.addf %787, %790 : vector<8x16xf32>
    %792 = math.tanh %791 : vector<8x16xf32>
    %793 = vector.extract_strided_slice %1 {offsets = [2, 3, 0], sizes = [1, 1, 16], strides = [1, 1, 1]} : vector<4x4x16xf32> to vector<1x1x16xf32>
    %794 = vector.shape_cast %793 : vector<1x1x16xf32> to vector<1x16xf32>
    %795 = vector.broadcast %738 : vector<8x1xf32> to vector<8x16xf32>
    %796 = vector.broadcast %794 : vector<1x16xf32> to vector<8x16xf32>
    %797 = arith.mulf %795, %796 : vector<8x16xf32>
    %798 = vector.extract_strided_slice %3 {offsets = [2, 3, 0, 0], sizes = [1, 1, 16, 16], strides = [1, 1, 1, 1]} : vector<4x4x16x16xf32> to vector<1x1x16x16xf32>
    %799 = vector.shape_cast %798 : vector<1x1x16x16xf32> to vector<16x16xf32>
    %cst_142 = arith.constant dense<0.000000e+00> : vector<8x16xf32>
    %800 = tpu.matmul %735, %799, %cst_142 {dimension_numbers = #tpu.dot_dimension_numbers<[1], [0], [0], [1], [0, 0, 1, 1], [], []>} : vector<8x16xf32>, vector<16x16xf32>, vector<8x16xf32> -> vector<8x16xf32>
    %801 = arith.addf %797, %800 : vector<8x16xf32>
    %802 = vector.extract_strided_slice %2 {offsets = [2, 3, 0], sizes = [1, 1, 16], strides = [1, 1, 1]} : vector<4x4x16xf32> to vector<1x1x16xf32>
    %803 = vector.shape_cast %802 : vector<1x1x16xf32> to vector<1x16xf32>
    %804 = vector.broadcast %803 : vector<1x16xf32> to vector<8x16xf32>
    %805 = arith.addf %801, %804 : vector<8x16xf32>
    %cst_143 = arith.constant 0.000000e+00 : f32
    %806 = vector.broadcast %cst_143 : f32 to vector<8x16xf32>
    %807 = arith.subf %806, %805 : vector<8x16xf32>
    %808 = math.exp %807 : vector<8x16xf32>
    %cst_144 = arith.constant 1.000000e+00 : f32
    %809 = vector.broadcast %cst_144 : f32 to vector<8x16xf32>
    %810 = arith.addf %809, %808 : vector<8x16xf32>
    %cst_145 = arith.constant 1.000000e+00 : f32
    %811 = vector.broadcast %cst_145 : f32 to vector<8x16xf32>
    %812 = arith.divf %811, %810 : vector<8x16xf32>
    %813 = arith.mulf %778, %737 : vector<8x16xf32>
    %814 = arith.mulf %758, %792 : vector<8x16xf32>
    %815 = arith.addf %813, %814 : vector<8x16xf32>
    %816 = math.tanh %815 : vector<8x16xf32>
    %817 = arith.mulf %812, %816 : vector<8x16xf32>
    %818 = vector.extract_strided_slice %0 {offsets = [0, 9], sizes = [8, 1], strides = [1, 1]} : vector<8x20xf32> to vector<8x1xf32>
    %819 = vector.extract_strided_slice %1 {offsets = [2, 0, 0], sizes = [1, 1, 16], strides = [1, 1, 1]} : vector<4x4x16xf32> to vector<1x1x16xf32>
    %820 = vector.shape_cast %819 : vector<1x1x16xf32> to vector<1x16xf32>
    %821 = vector.broadcast %818 : vector<8x1xf32> to vector<8x16xf32>
    %822 = vector.broadcast %820 : vector<1x16xf32> to vector<8x16xf32>
    %823 = arith.mulf %821, %822 : vector<8x16xf32>
    %824 = vector.extract_strided_slice %3 {offsets = [2, 0, 0, 0], sizes = [1, 1, 16, 16], strides = [1, 1, 1, 1]} : vector<4x4x16x16xf32> to vector<1x1x16x16xf32>
    %825 = vector.shape_cast %824 : vector<1x1x16x16xf32> to vector<16x16xf32>
    %cst_146 = arith.constant dense<0.000000e+00> : vector<8x16xf32>
    %826 = tpu.matmul %817, %825, %cst_146 {dimension_numbers = #tpu.dot_dimension_numbers<[1], [0], [0], [1], [0, 0, 1, 1], [], []>} : vector<8x16xf32>, vector<16x16xf32>, vector<8x16xf32> -> vector<8x16xf32>
    %827 = arith.addf %823, %826 : vector<8x16xf32>
    %828 = vector.extract_strided_slice %2 {offsets = [2, 0, 0], sizes = [1, 1, 16], strides = [1, 1, 1]} : vector<4x4x16xf32> to vector<1x1x16xf32>
    %829 = vector.shape_cast %828 : vector<1x1x16xf32> to vector<1x16xf32>
    %830 = vector.broadcast %829 : vector<1x16xf32> to vector<8x16xf32>
    %831 = arith.addf %827, %830 : vector<8x16xf32>
    %cst_147 = arith.constant 0.000000e+00 : f32
    %832 = vector.broadcast %cst_147 : f32 to vector<8x16xf32>
    %833 = arith.subf %832, %831 : vector<8x16xf32>
    %834 = math.exp %833 : vector<8x16xf32>
    %cst_148 = arith.constant 1.000000e+00 : f32
    %835 = vector.broadcast %cst_148 : f32 to vector<8x16xf32>
    %836 = arith.addf %835, %834 : vector<8x16xf32>
    %cst_149 = arith.constant 1.000000e+00 : f32
    %837 = vector.broadcast %cst_149 : f32 to vector<8x16xf32>
    %838 = arith.divf %837, %836 : vector<8x16xf32>
    %839 = vector.extract_strided_slice %1 {offsets = [2, 1, 0], sizes = [1, 1, 16], strides = [1, 1, 1]} : vector<4x4x16xf32> to vector<1x1x16xf32>
    %840 = vector.shape_cast %839 : vector<1x1x16xf32> to vector<1x16xf32>
    %841 = vector.broadcast %818 : vector<8x1xf32> to vector<8x16xf32>
    %842 = vector.broadcast %840 : vector<1x16xf32> to vector<8x16xf32>
    %843 = arith.mulf %841, %842 : vector<8x16xf32>
    %844 = vector.extract_strided_slice %3 {offsets = [2, 1, 0, 0], sizes = [1, 1, 16, 16], strides = [1, 1, 1, 1]} : vector<4x4x16x16xf32> to vector<1x1x16x16xf32>
    %845 = vector.shape_cast %844 : vector<1x1x16x16xf32> to vector<16x16xf32>
    %cst_150 = arith.constant dense<0.000000e+00> : vector<8x16xf32>
    %846 = tpu.matmul %817, %845, %cst_150 {dimension_numbers = #tpu.dot_dimension_numbers<[1], [0], [0], [1], [0, 0, 1, 1], [], []>} : vector<8x16xf32>, vector<16x16xf32>, vector<8x16xf32> -> vector<8x16xf32>
    %847 = arith.addf %843, %846 : vector<8x16xf32>
    %848 = vector.extract_strided_slice %2 {offsets = [2, 1, 0], sizes = [1, 1, 16], strides = [1, 1, 1]} : vector<4x4x16xf32> to vector<1x1x16xf32>
    %849 = vector.shape_cast %848 : vector<1x1x16xf32> to vector<1x16xf32>
    %850 = vector.broadcast %849 : vector<1x16xf32> to vector<8x16xf32>
    %851 = arith.addf %847, %850 : vector<8x16xf32>
    %cst_151 = arith.constant 0.000000e+00 : f32
    %852 = vector.broadcast %cst_151 : f32 to vector<8x16xf32>
    %853 = arith.subf %852, %851 : vector<8x16xf32>
    %854 = math.exp %853 : vector<8x16xf32>
    %cst_152 = arith.constant 1.000000e+00 : f32
    %855 = vector.broadcast %cst_152 : f32 to vector<8x16xf32>
    %856 = arith.addf %855, %854 : vector<8x16xf32>
    %cst_153 = arith.constant 1.000000e+00 : f32
    %857 = vector.broadcast %cst_153 : f32 to vector<8x16xf32>
    %858 = arith.divf %857, %856 : vector<8x16xf32>
    %859 = vector.extract_strided_slice %1 {offsets = [2, 2, 0], sizes = [1, 1, 16], strides = [1, 1, 1]} : vector<4x4x16xf32> to vector<1x1x16xf32>
    %860 = vector.shape_cast %859 : vector<1x1x16xf32> to vector<1x16xf32>
    %861 = vector.broadcast %818 : vector<8x1xf32> to vector<8x16xf32>
    %862 = vector.broadcast %860 : vector<1x16xf32> to vector<8x16xf32>
    %863 = arith.mulf %861, %862 : vector<8x16xf32>
    %864 = vector.extract_strided_slice %3 {offsets = [2, 2, 0, 0], sizes = [1, 1, 16, 16], strides = [1, 1, 1, 1]} : vector<4x4x16x16xf32> to vector<1x1x16x16xf32>
    %865 = vector.shape_cast %864 : vector<1x1x16x16xf32> to vector<16x16xf32>
    %cst_154 = arith.constant dense<0.000000e+00> : vector<8x16xf32>
    %866 = tpu.matmul %817, %865, %cst_154 {dimension_numbers = #tpu.dot_dimension_numbers<[1], [0], [0], [1], [0, 0, 1, 1], [], []>} : vector<8x16xf32>, vector<16x16xf32>, vector<8x16xf32> -> vector<8x16xf32>
    %867 = arith.addf %863, %866 : vector<8x16xf32>
    %868 = vector.extract_strided_slice %2 {offsets = [2, 2, 0], sizes = [1, 1, 16], strides = [1, 1, 1]} : vector<4x4x16xf32> to vector<1x1x16xf32>
    %869 = vector.shape_cast %868 : vector<1x1x16xf32> to vector<1x16xf32>
    %870 = vector.broadcast %869 : vector<1x16xf32> to vector<8x16xf32>
    %871 = arith.addf %867, %870 : vector<8x16xf32>
    %872 = math.tanh %871 : vector<8x16xf32>
    %873 = vector.extract_strided_slice %1 {offsets = [2, 3, 0], sizes = [1, 1, 16], strides = [1, 1, 1]} : vector<4x4x16xf32> to vector<1x1x16xf32>
    %874 = vector.shape_cast %873 : vector<1x1x16xf32> to vector<1x16xf32>
    %875 = vector.broadcast %818 : vector<8x1xf32> to vector<8x16xf32>
    %876 = vector.broadcast %874 : vector<1x16xf32> to vector<8x16xf32>
    %877 = arith.mulf %875, %876 : vector<8x16xf32>
    %878 = vector.extract_strided_slice %3 {offsets = [2, 3, 0, 0], sizes = [1, 1, 16, 16], strides = [1, 1, 1, 1]} : vector<4x4x16x16xf32> to vector<1x1x16x16xf32>
    %879 = vector.shape_cast %878 : vector<1x1x16x16xf32> to vector<16x16xf32>
    %cst_155 = arith.constant dense<0.000000e+00> : vector<8x16xf32>
    %880 = tpu.matmul %817, %879, %cst_155 {dimension_numbers = #tpu.dot_dimension_numbers<[1], [0], [0], [1], [0, 0, 1, 1], [], []>} : vector<8x16xf32>, vector<16x16xf32>, vector<8x16xf32> -> vector<8x16xf32>
    %881 = arith.addf %877, %880 : vector<8x16xf32>
    %882 = vector.extract_strided_slice %2 {offsets = [2, 3, 0], sizes = [1, 1, 16], strides = [1, 1, 1]} : vector<4x4x16xf32> to vector<1x1x16xf32>
    %883 = vector.shape_cast %882 : vector<1x1x16xf32> to vector<1x16xf32>
    %884 = vector.broadcast %883 : vector<1x16xf32> to vector<8x16xf32>
    %885 = arith.addf %881, %884 : vector<8x16xf32>
    %cst_156 = arith.constant 0.000000e+00 : f32
    %886 = vector.broadcast %cst_156 : f32 to vector<8x16xf32>
    %887 = arith.subf %886, %885 : vector<8x16xf32>
    %888 = math.exp %887 : vector<8x16xf32>
    %cst_157 = arith.constant 1.000000e+00 : f32
    %889 = vector.broadcast %cst_157 : f32 to vector<8x16xf32>
    %890 = arith.addf %889, %888 : vector<8x16xf32>
    %cst_158 = arith.constant 1.000000e+00 : f32
    %891 = vector.broadcast %cst_158 : f32 to vector<8x16xf32>
    %892 = arith.divf %891, %890 : vector<8x16xf32>
    %893 = arith.mulf %858, %815 : vector<8x16xf32>
    %894 = arith.mulf %838, %872 : vector<8x16xf32>
    %895 = arith.addf %893, %894 : vector<8x16xf32>
    %896 = math.tanh %895 : vector<8x16xf32>
    %897 = arith.mulf %892, %896 : vector<8x16xf32>
    %898 = vector.extract_strided_slice %0 {offsets = [0, 10], sizes = [8, 1], strides = [1, 1]} : vector<8x20xf32> to vector<8x1xf32>
    %899 = vector.extract_strided_slice %1 {offsets = [2, 0, 0], sizes = [1, 1, 16], strides = [1, 1, 1]} : vector<4x4x16xf32> to vector<1x1x16xf32>
    %900 = vector.shape_cast %899 : vector<1x1x16xf32> to vector<1x16xf32>
    %901 = vector.broadcast %898 : vector<8x1xf32> to vector<8x16xf32>
    %902 = vector.broadcast %900 : vector<1x16xf32> to vector<8x16xf32>
    %903 = arith.mulf %901, %902 : vector<8x16xf32>
    %904 = vector.extract_strided_slice %3 {offsets = [2, 0, 0, 0], sizes = [1, 1, 16, 16], strides = [1, 1, 1, 1]} : vector<4x4x16x16xf32> to vector<1x1x16x16xf32>
    %905 = vector.shape_cast %904 : vector<1x1x16x16xf32> to vector<16x16xf32>
    %cst_159 = arith.constant dense<0.000000e+00> : vector<8x16xf32>
    %906 = tpu.matmul %897, %905, %cst_159 {dimension_numbers = #tpu.dot_dimension_numbers<[1], [0], [0], [1], [0, 0, 1, 1], [], []>} : vector<8x16xf32>, vector<16x16xf32>, vector<8x16xf32> -> vector<8x16xf32>
    %907 = arith.addf %903, %906 : vector<8x16xf32>
    %908 = vector.extract_strided_slice %2 {offsets = [2, 0, 0], sizes = [1, 1, 16], strides = [1, 1, 1]} : vector<4x4x16xf32> to vector<1x1x16xf32>
    %909 = vector.shape_cast %908 : vector<1x1x16xf32> to vector<1x16xf32>
    %910 = vector.broadcast %909 : vector<1x16xf32> to vector<8x16xf32>
    %911 = arith.addf %907, %910 : vector<8x16xf32>
    %cst_160 = arith.constant 0.000000e+00 : f32
    %912 = vector.broadcast %cst_160 : f32 to vector<8x16xf32>
    %913 = arith.subf %912, %911 : vector<8x16xf32>
    %914 = math.exp %913 : vector<8x16xf32>
    %cst_161 = arith.constant 1.000000e+00 : f32
    %915 = vector.broadcast %cst_161 : f32 to vector<8x16xf32>
    %916 = arith.addf %915, %914 : vector<8x16xf32>
    %cst_162 = arith.constant 1.000000e+00 : f32
    %917 = vector.broadcast %cst_162 : f32 to vector<8x16xf32>
    %918 = arith.divf %917, %916 : vector<8x16xf32>
    %919 = vector.extract_strided_slice %1 {offsets = [2, 1, 0], sizes = [1, 1, 16], strides = [1, 1, 1]} : vector<4x4x16xf32> to vector<1x1x16xf32>
    %920 = vector.shape_cast %919 : vector<1x1x16xf32> to vector<1x16xf32>
    %921 = vector.broadcast %898 : vector<8x1xf32> to vector<8x16xf32>
    %922 = vector.broadcast %920 : vector<1x16xf32> to vector<8x16xf32>
    %923 = arith.mulf %921, %922 : vector<8x16xf32>
    %924 = vector.extract_strided_slice %3 {offsets = [2, 1, 0, 0], sizes = [1, 1, 16, 16], strides = [1, 1, 1, 1]} : vector<4x4x16x16xf32> to vector<1x1x16x16xf32>
    %925 = vector.shape_cast %924 : vector<1x1x16x16xf32> to vector<16x16xf32>
    %cst_163 = arith.constant dense<0.000000e+00> : vector<8x16xf32>
    %926 = tpu.matmul %897, %925, %cst_163 {dimension_numbers = #tpu.dot_dimension_numbers<[1], [0], [0], [1], [0, 0, 1, 1], [], []>} : vector<8x16xf32>, vector<16x16xf32>, vector<8x16xf32> -> vector<8x16xf32>
    %927 = arith.addf %923, %926 : vector<8x16xf32>
    %928 = vector.extract_strided_slice %2 {offsets = [2, 1, 0], sizes = [1, 1, 16], strides = [1, 1, 1]} : vector<4x4x16xf32> to vector<1x1x16xf32>
    %929 = vector.shape_cast %928 : vector<1x1x16xf32> to vector<1x16xf32>
    %930 = vector.broadcast %929 : vector<1x16xf32> to vector<8x16xf32>
    %931 = arith.addf %927, %930 : vector<8x16xf32>
    %cst_164 = arith.constant 0.000000e+00 : f32
    %932 = vector.broadcast %cst_164 : f32 to vector<8x16xf32>
    %933 = arith.subf %932, %931 : vector<8x16xf32>
    %934 = math.exp %933 : vector<8x16xf32>
    %cst_165 = arith.constant 1.000000e+00 : f32
    %935 = vector.broadcast %cst_165 : f32 to vector<8x16xf32>
    %936 = arith.addf %935, %934 : vector<8x16xf32>
    %cst_166 = arith.constant 1.000000e+00 : f32
    %937 = vector.broadcast %cst_166 : f32 to vector<8x16xf32>
    %938 = arith.divf %937, %936 : vector<8x16xf32>
    %939 = vector.extract_strided_slice %1 {offsets = [2, 2, 0], sizes = [1, 1, 16], strides = [1, 1, 1]} : vector<4x4x16xf32> to vector<1x1x16xf32>
    %940 = vector.shape_cast %939 : vector<1x1x16xf32> to vector<1x16xf32>
    %941 = vector.broadcast %898 : vector<8x1xf32> to vector<8x16xf32>
    %942 = vector.broadcast %940 : vector<1x16xf32> to vector<8x16xf32>
    %943 = arith.mulf %941, %942 : vector<8x16xf32>
    %944 = vector.extract_strided_slice %3 {offsets = [2, 2, 0, 0], sizes = [1, 1, 16, 16], strides = [1, 1, 1, 1]} : vector<4x4x16x16xf32> to vector<1x1x16x16xf32>
    %945 = vector.shape_cast %944 : vector<1x1x16x16xf32> to vector<16x16xf32>
    %cst_167 = arith.constant dense<0.000000e+00> : vector<8x16xf32>
    %946 = tpu.matmul %897, %945, %cst_167 {dimension_numbers = #tpu.dot_dimension_numbers<[1], [0], [0], [1], [0, 0, 1, 1], [], []>} : vector<8x16xf32>, vector<16x16xf32>, vector<8x16xf32> -> vector<8x16xf32>
    %947 = arith.addf %943, %946 : vector<8x16xf32>
    %948 = vector.extract_strided_slice %2 {offsets = [2, 2, 0], sizes = [1, 1, 16], strides = [1, 1, 1]} : vector<4x4x16xf32> to vector<1x1x16xf32>
    %949 = vector.shape_cast %948 : vector<1x1x16xf32> to vector<1x16xf32>
    %950 = vector.broadcast %949 : vector<1x16xf32> to vector<8x16xf32>
    %951 = arith.addf %947, %950 : vector<8x16xf32>
    %952 = math.tanh %951 : vector<8x16xf32>
    %953 = vector.extract_strided_slice %1 {offsets = [2, 3, 0], sizes = [1, 1, 16], strides = [1, 1, 1]} : vector<4x4x16xf32> to vector<1x1x16xf32>
    %954 = vector.shape_cast %953 : vector<1x1x16xf32> to vector<1x16xf32>
    %955 = vector.broadcast %898 : vector<8x1xf32> to vector<8x16xf32>
    %956 = vector.broadcast %954 : vector<1x16xf32> to vector<8x16xf32>
    %957 = arith.mulf %955, %956 : vector<8x16xf32>
    %958 = vector.extract_strided_slice %3 {offsets = [2, 3, 0, 0], sizes = [1, 1, 16, 16], strides = [1, 1, 1, 1]} : vector<4x4x16x16xf32> to vector<1x1x16x16xf32>
    %959 = vector.shape_cast %958 : vector<1x1x16x16xf32> to vector<16x16xf32>
    %cst_168 = arith.constant dense<0.000000e+00> : vector<8x16xf32>
    %960 = tpu.matmul %897, %959, %cst_168 {dimension_numbers = #tpu.dot_dimension_numbers<[1], [0], [0], [1], [0, 0, 1, 1], [], []>} : vector<8x16xf32>, vector<16x16xf32>, vector<8x16xf32> -> vector<8x16xf32>
    %961 = arith.addf %957, %960 : vector<8x16xf32>
    %962 = vector.extract_strided_slice %2 {offsets = [2, 3, 0], sizes = [1, 1, 16], strides = [1, 1, 1]} : vector<4x4x16xf32> to vector<1x1x16xf32>
    %963 = vector.shape_cast %962 : vector<1x1x16xf32> to vector<1x16xf32>
    %964 = vector.broadcast %963 : vector<1x16xf32> to vector<8x16xf32>
    %965 = arith.addf %961, %964 : vector<8x16xf32>
    %cst_169 = arith.constant 0.000000e+00 : f32
    %966 = vector.broadcast %cst_169 : f32 to vector<8x16xf32>
    %967 = arith.subf %966, %965 : vector<8x16xf32>
    %968 = math.exp %967 : vector<8x16xf32>
    %cst_170 = arith.constant 1.000000e+00 : f32
    %969 = vector.broadcast %cst_170 : f32 to vector<8x16xf32>
    %970 = arith.addf %969, %968 : vector<8x16xf32>
    %cst_171 = arith.constant 1.000000e+00 : f32
    %971 = vector.broadcast %cst_171 : f32 to vector<8x16xf32>
    %972 = arith.divf %971, %970 : vector<8x16xf32>
    %973 = arith.mulf %938, %895 : vector<8x16xf32>
    %974 = arith.mulf %918, %952 : vector<8x16xf32>
    %975 = arith.addf %973, %974 : vector<8x16xf32>
    %976 = math.tanh %975 : vector<8x16xf32>
    %977 = arith.mulf %972, %976 : vector<8x16xf32>
    %978 = vector.extract_strided_slice %0 {offsets = [0, 11], sizes = [8, 1], strides = [1, 1]} : vector<8x20xf32> to vector<8x1xf32>
    %979 = vector.extract_strided_slice %1 {offsets = [2, 0, 0], sizes = [1, 1, 16], strides = [1, 1, 1]} : vector<4x4x16xf32> to vector<1x1x16xf32>
    %980 = vector.shape_cast %979 : vector<1x1x16xf32> to vector<1x16xf32>
    %981 = vector.broadcast %978 : vector<8x1xf32> to vector<8x16xf32>
    %982 = vector.broadcast %980 : vector<1x16xf32> to vector<8x16xf32>
    %983 = arith.mulf %981, %982 : vector<8x16xf32>
    %984 = vector.extract_strided_slice %3 {offsets = [2, 0, 0, 0], sizes = [1, 1, 16, 16], strides = [1, 1, 1, 1]} : vector<4x4x16x16xf32> to vector<1x1x16x16xf32>
    %985 = vector.shape_cast %984 : vector<1x1x16x16xf32> to vector<16x16xf32>
    %cst_172 = arith.constant dense<0.000000e+00> : vector<8x16xf32>
    %986 = tpu.matmul %977, %985, %cst_172 {dimension_numbers = #tpu.dot_dimension_numbers<[1], [0], [0], [1], [0, 0, 1, 1], [], []>} : vector<8x16xf32>, vector<16x16xf32>, vector<8x16xf32> -> vector<8x16xf32>
    %987 = arith.addf %983, %986 : vector<8x16xf32>
    %988 = vector.extract_strided_slice %2 {offsets = [2, 0, 0], sizes = [1, 1, 16], strides = [1, 1, 1]} : vector<4x4x16xf32> to vector<1x1x16xf32>
    %989 = vector.shape_cast %988 : vector<1x1x16xf32> to vector<1x16xf32>
    %990 = vector.broadcast %989 : vector<1x16xf32> to vector<8x16xf32>
    %991 = arith.addf %987, %990 : vector<8x16xf32>
    %cst_173 = arith.constant 0.000000e+00 : f32
    %992 = vector.broadcast %cst_173 : f32 to vector<8x16xf32>
    %993 = arith.subf %992, %991 : vector<8x16xf32>
    %994 = math.exp %993 : vector<8x16xf32>
    %cst_174 = arith.constant 1.000000e+00 : f32
    %995 = vector.broadcast %cst_174 : f32 to vector<8x16xf32>
    %996 = arith.addf %995, %994 : vector<8x16xf32>
    %cst_175 = arith.constant 1.000000e+00 : f32
    %997 = vector.broadcast %cst_175 : f32 to vector<8x16xf32>
    %998 = arith.divf %997, %996 : vector<8x16xf32>
    %999 = vector.extract_strided_slice %1 {offsets = [2, 1, 0], sizes = [1, 1, 16], strides = [1, 1, 1]} : vector<4x4x16xf32> to vector<1x1x16xf32>
    %1000 = vector.shape_cast %999 : vector<1x1x16xf32> to vector<1x16xf32>
    %1001 = vector.broadcast %978 : vector<8x1xf32> to vector<8x16xf32>
    %1002 = vector.broadcast %1000 : vector<1x16xf32> to vector<8x16xf32>
    %1003 = arith.mulf %1001, %1002 : vector<8x16xf32>
    %1004 = vector.extract_strided_slice %3 {offsets = [2, 1, 0, 0], sizes = [1, 1, 16, 16], strides = [1, 1, 1, 1]} : vector<4x4x16x16xf32> to vector<1x1x16x16xf32>
    %1005 = vector.shape_cast %1004 : vector<1x1x16x16xf32> to vector<16x16xf32>
    %cst_176 = arith.constant dense<0.000000e+00> : vector<8x16xf32>
    %1006 = tpu.matmul %977, %1005, %cst_176 {dimension_numbers = #tpu.dot_dimension_numbers<[1], [0], [0], [1], [0, 0, 1, 1], [], []>} : vector<8x16xf32>, vector<16x16xf32>, vector<8x16xf32> -> vector<8x16xf32>
    %1007 = arith.addf %1003, %1006 : vector<8x16xf32>
    %1008 = vector.extract_strided_slice %2 {offsets = [2, 1, 0], sizes = [1, 1, 16], strides = [1, 1, 1]} : vector<4x4x16xf32> to vector<1x1x16xf32>
    %1009 = vector.shape_cast %1008 : vector<1x1x16xf32> to vector<1x16xf32>
    %1010 = vector.broadcast %1009 : vector<1x16xf32> to vector<8x16xf32>
    %1011 = arith.addf %1007, %1010 : vector<8x16xf32>
    %cst_177 = arith.constant 0.000000e+00 : f32
    %1012 = vector.broadcast %cst_177 : f32 to vector<8x16xf32>
    %1013 = arith.subf %1012, %1011 : vector<8x16xf32>
    %1014 = math.exp %1013 : vector<8x16xf32>
    %cst_178 = arith.constant 1.000000e+00 : f32
    %1015 = vector.broadcast %cst_178 : f32 to vector<8x16xf32>
    %1016 = arith.addf %1015, %1014 : vector<8x16xf32>
    %cst_179 = arith.constant 1.000000e+00 : f32
    %1017 = vector.broadcast %cst_179 : f32 to vector<8x16xf32>
    %1018 = arith.divf %1017, %1016 : vector<8x16xf32>
    %1019 = vector.extract_strided_slice %1 {offsets = [2, 2, 0], sizes = [1, 1, 16], strides = [1, 1, 1]} : vector<4x4x16xf32> to vector<1x1x16xf32>
    %1020 = vector.shape_cast %1019 : vector<1x1x16xf32> to vector<1x16xf32>
    %1021 = vector.broadcast %978 : vector<8x1xf32> to vector<8x16xf32>
    %1022 = vector.broadcast %1020 : vector<1x16xf32> to vector<8x16xf32>
    %1023 = arith.mulf %1021, %1022 : vector<8x16xf32>
    %1024 = vector.extract_strided_slice %3 {offsets = [2, 2, 0, 0], sizes = [1, 1, 16, 16], strides = [1, 1, 1, 1]} : vector<4x4x16x16xf32> to vector<1x1x16x16xf32>
    %1025 = vector.shape_cast %1024 : vector<1x1x16x16xf32> to vector<16x16xf32>
    %cst_180 = arith.constant dense<0.000000e+00> : vector<8x16xf32>
    %1026 = tpu.matmul %977, %1025, %cst_180 {dimension_numbers = #tpu.dot_dimension_numbers<[1], [0], [0], [1], [0, 0, 1, 1], [], []>} : vector<8x16xf32>, vector<16x16xf32>, vector<8x16xf32> -> vector<8x16xf32>
    %1027 = arith.addf %1023, %1026 : vector<8x16xf32>
    %1028 = vector.extract_strided_slice %2 {offsets = [2, 2, 0], sizes = [1, 1, 16], strides = [1, 1, 1]} : vector<4x4x16xf32> to vector<1x1x16xf32>
    %1029 = vector.shape_cast %1028 : vector<1x1x16xf32> to vector<1x16xf32>
    %1030 = vector.broadcast %1029 : vector<1x16xf32> to vector<8x16xf32>
    %1031 = arith.addf %1027, %1030 : vector<8x16xf32>
    %1032 = math.tanh %1031 : vector<8x16xf32>
    %1033 = vector.extract_strided_slice %1 {offsets = [2, 3, 0], sizes = [1, 1, 16], strides = [1, 1, 1]} : vector<4x4x16xf32> to vector<1x1x16xf32>
    %1034 = vector.shape_cast %1033 : vector<1x1x16xf32> to vector<1x16xf32>
    %1035 = vector.broadcast %978 : vector<8x1xf32> to vector<8x16xf32>
    %1036 = vector.broadcast %1034 : vector<1x16xf32> to vector<8x16xf32>
    %1037 = arith.mulf %1035, %1036 : vector<8x16xf32>
    %1038 = vector.extract_strided_slice %3 {offsets = [2, 3, 0, 0], sizes = [1, 1, 16, 16], strides = [1, 1, 1, 1]} : vector<4x4x16x16xf32> to vector<1x1x16x16xf32>
    %1039 = vector.shape_cast %1038 : vector<1x1x16x16xf32> to vector<16x16xf32>
    %cst_181 = arith.constant dense<0.000000e+00> : vector<8x16xf32>
    %1040 = tpu.matmul %977, %1039, %cst_181 {dimension_numbers = #tpu.dot_dimension_numbers<[1], [0], [0], [1], [0, 0, 1, 1], [], []>} : vector<8x16xf32>, vector<16x16xf32>, vector<8x16xf32> -> vector<8x16xf32>
    %1041 = arith.addf %1037, %1040 : vector<8x16xf32>
    %1042 = vector.extract_strided_slice %2 {offsets = [2, 3, 0], sizes = [1, 1, 16], strides = [1, 1, 1]} : vector<4x4x16xf32> to vector<1x1x16xf32>
    %1043 = vector.shape_cast %1042 : vector<1x1x16xf32> to vector<1x16xf32>
    %1044 = vector.broadcast %1043 : vector<1x16xf32> to vector<8x16xf32>
    %1045 = arith.addf %1041, %1044 : vector<8x16xf32>
    %cst_182 = arith.constant 0.000000e+00 : f32
    %1046 = vector.broadcast %cst_182 : f32 to vector<8x16xf32>
    %1047 = arith.subf %1046, %1045 : vector<8x16xf32>
    %1048 = math.exp %1047 : vector<8x16xf32>
    %cst_183 = arith.constant 1.000000e+00 : f32
    %1049 = vector.broadcast %cst_183 : f32 to vector<8x16xf32>
    %1050 = arith.addf %1049, %1048 : vector<8x16xf32>
    %cst_184 = arith.constant 1.000000e+00 : f32
    %1051 = vector.broadcast %cst_184 : f32 to vector<8x16xf32>
    %1052 = arith.divf %1051, %1050 : vector<8x16xf32>
    %1053 = arith.mulf %1018, %975 : vector<8x16xf32>
    %1054 = arith.mulf %998, %1032 : vector<8x16xf32>
    %1055 = arith.addf %1053, %1054 : vector<8x16xf32>
    %1056 = math.tanh %1055 : vector<8x16xf32>
    %1057 = arith.mulf %1052, %1056 : vector<8x16xf32>
    %1058 = vector.extract_strided_slice %0 {offsets = [0, 12], sizes = [8, 1], strides = [1, 1]} : vector<8x20xf32> to vector<8x1xf32>
    %1059 = vector.extract_strided_slice %1 {offsets = [2, 0, 0], sizes = [1, 1, 16], strides = [1, 1, 1]} : vector<4x4x16xf32> to vector<1x1x16xf32>
    %1060 = vector.shape_cast %1059 : vector<1x1x16xf32> to vector<1x16xf32>
    %1061 = vector.broadcast %1058 : vector<8x1xf32> to vector<8x16xf32>
    %1062 = vector.broadcast %1060 : vector<1x16xf32> to vector<8x16xf32>
    %1063 = arith.mulf %1061, %1062 : vector<8x16xf32>
    %1064 = vector.extract_strided_slice %3 {offsets = [2, 0, 0, 0], sizes = [1, 1, 16, 16], strides = [1, 1, 1, 1]} : vector<4x4x16x16xf32> to vector<1x1x16x16xf32>
    %1065 = vector.shape_cast %1064 : vector<1x1x16x16xf32> to vector<16x16xf32>
    %cst_185 = arith.constant dense<0.000000e+00> : vector<8x16xf32>
    %1066 = tpu.matmul %1057, %1065, %cst_185 {dimension_numbers = #tpu.dot_dimension_numbers<[1], [0], [0], [1], [0, 0, 1, 1], [], []>} : vector<8x16xf32>, vector<16x16xf32>, vector<8x16xf32> -> vector<8x16xf32>
    %1067 = arith.addf %1063, %1066 : vector<8x16xf32>
    %1068 = vector.extract_strided_slice %2 {offsets = [2, 0, 0], sizes = [1, 1, 16], strides = [1, 1, 1]} : vector<4x4x16xf32> to vector<1x1x16xf32>
    %1069 = vector.shape_cast %1068 : vector<1x1x16xf32> to vector<1x16xf32>
    %1070 = vector.broadcast %1069 : vector<1x16xf32> to vector<8x16xf32>
    %1071 = arith.addf %1067, %1070 : vector<8x16xf32>
    %cst_186 = arith.constant 0.000000e+00 : f32
    %1072 = vector.broadcast %cst_186 : f32 to vector<8x16xf32>
    %1073 = arith.subf %1072, %1071 : vector<8x16xf32>
    %1074 = math.exp %1073 : vector<8x16xf32>
    %cst_187 = arith.constant 1.000000e+00 : f32
    %1075 = vector.broadcast %cst_187 : f32 to vector<8x16xf32>
    %1076 = arith.addf %1075, %1074 : vector<8x16xf32>
    %cst_188 = arith.constant 1.000000e+00 : f32
    %1077 = vector.broadcast %cst_188 : f32 to vector<8x16xf32>
    %1078 = arith.divf %1077, %1076 : vector<8x16xf32>
    %1079 = vector.extract_strided_slice %1 {offsets = [2, 1, 0], sizes = [1, 1, 16], strides = [1, 1, 1]} : vector<4x4x16xf32> to vector<1x1x16xf32>
    %1080 = vector.shape_cast %1079 : vector<1x1x16xf32> to vector<1x16xf32>
    %1081 = vector.broadcast %1058 : vector<8x1xf32> to vector<8x16xf32>
    %1082 = vector.broadcast %1080 : vector<1x16xf32> to vector<8x16xf32>
    %1083 = arith.mulf %1081, %1082 : vector<8x16xf32>
    %1084 = vector.extract_strided_slice %3 {offsets = [2, 1, 0, 0], sizes = [1, 1, 16, 16], strides = [1, 1, 1, 1]} : vector<4x4x16x16xf32> to vector<1x1x16x16xf32>
    %1085 = vector.shape_cast %1084 : vector<1x1x16x16xf32> to vector<16x16xf32>
    %cst_189 = arith.constant dense<0.000000e+00> : vector<8x16xf32>
    %1086 = tpu.matmul %1057, %1085, %cst_189 {dimension_numbers = #tpu.dot_dimension_numbers<[1], [0], [0], [1], [0, 0, 1, 1], [], []>} : vector<8x16xf32>, vector<16x16xf32>, vector<8x16xf32> -> vector<8x16xf32>
    %1087 = arith.addf %1083, %1086 : vector<8x16xf32>
    %1088 = vector.extract_strided_slice %2 {offsets = [2, 1, 0], sizes = [1, 1, 16], strides = [1, 1, 1]} : vector<4x4x16xf32> to vector<1x1x16xf32>
    %1089 = vector.shape_cast %1088 : vector<1x1x16xf32> to vector<1x16xf32>
    %1090 = vector.broadcast %1089 : vector<1x16xf32> to vector<8x16xf32>
    %1091 = arith.addf %1087, %1090 : vector<8x16xf32>
    %cst_190 = arith.constant 0.000000e+00 : f32
    %1092 = vector.broadcast %cst_190 : f32 to vector<8x16xf32>
    %1093 = arith.subf %1092, %1091 : vector<8x16xf32>
    %1094 = math.exp %1093 : vector<8x16xf32>
    %cst_191 = arith.constant 1.000000e+00 : f32
    %1095 = vector.broadcast %cst_191 : f32 to vector<8x16xf32>
    %1096 = arith.addf %1095, %1094 : vector<8x16xf32>
    %cst_192 = arith.constant 1.000000e+00 : f32
    %1097 = vector.broadcast %cst_192 : f32 to vector<8x16xf32>
    %1098 = arith.divf %1097, %1096 : vector<8x16xf32>
    %1099 = vector.extract_strided_slice %1 {offsets = [2, 2, 0], sizes = [1, 1, 16], strides = [1, 1, 1]} : vector<4x4x16xf32> to vector<1x1x16xf32>
    %1100 = vector.shape_cast %1099 : vector<1x1x16xf32> to vector<1x16xf32>
    %1101 = vector.broadcast %1058 : vector<8x1xf32> to vector<8x16xf32>
    %1102 = vector.broadcast %1100 : vector<1x16xf32> to vector<8x16xf32>
    %1103 = arith.mulf %1101, %1102 : vector<8x16xf32>
    %1104 = vector.extract_strided_slice %3 {offsets = [2, 2, 0, 0], sizes = [1, 1, 16, 16], strides = [1, 1, 1, 1]} : vector<4x4x16x16xf32> to vector<1x1x16x16xf32>
    %1105 = vector.shape_cast %1104 : vector<1x1x16x16xf32> to vector<16x16xf32>
    %cst_193 = arith.constant dense<0.000000e+00> : vector<8x16xf32>
    %1106 = tpu.matmul %1057, %1105, %cst_193 {dimension_numbers = #tpu.dot_dimension_numbers<[1], [0], [0], [1], [0, 0, 1, 1], [], []>} : vector<8x16xf32>, vector<16x16xf32>, vector<8x16xf32> -> vector<8x16xf32>
    %1107 = arith.addf %1103, %1106 : vector<8x16xf32>
    %1108 = vector.extract_strided_slice %2 {offsets = [2, 2, 0], sizes = [1, 1, 16], strides = [1, 1, 1]} : vector<4x4x16xf32> to vector<1x1x16xf32>
    %1109 = vector.shape_cast %1108 : vector<1x1x16xf32> to vector<1x16xf32>
    %1110 = vector.broadcast %1109 : vector<1x16xf32> to vector<8x16xf32>
    %1111 = arith.addf %1107, %1110 : vector<8x16xf32>
    %1112 = math.tanh %1111 : vector<8x16xf32>
    %1113 = vector.extract_strided_slice %1 {offsets = [2, 3, 0], sizes = [1, 1, 16], strides = [1, 1, 1]} : vector<4x4x16xf32> to vector<1x1x16xf32>
    %1114 = vector.shape_cast %1113 : vector<1x1x16xf32> to vector<1x16xf32>
    %1115 = vector.broadcast %1058 : vector<8x1xf32> to vector<8x16xf32>
    %1116 = vector.broadcast %1114 : vector<1x16xf32> to vector<8x16xf32>
    %1117 = arith.mulf %1115, %1116 : vector<8x16xf32>
    %1118 = vector.extract_strided_slice %3 {offsets = [2, 3, 0, 0], sizes = [1, 1, 16, 16], strides = [1, 1, 1, 1]} : vector<4x4x16x16xf32> to vector<1x1x16x16xf32>
    %1119 = vector.shape_cast %1118 : vector<1x1x16x16xf32> to vector<16x16xf32>
    %cst_194 = arith.constant dense<0.000000e+00> : vector<8x16xf32>
    %1120 = tpu.matmul %1057, %1119, %cst_194 {dimension_numbers = #tpu.dot_dimension_numbers<[1], [0], [0], [1], [0, 0, 1, 1], [], []>} : vector<8x16xf32>, vector<16x16xf32>, vector<8x16xf32> -> vector<8x16xf32>
    %1121 = arith.addf %1117, %1120 : vector<8x16xf32>
    %1122 = vector.extract_strided_slice %2 {offsets = [2, 3, 0], sizes = [1, 1, 16], strides = [1, 1, 1]} : vector<4x4x16xf32> to vector<1x1x16xf32>
    %1123 = vector.shape_cast %1122 : vector<1x1x16xf32> to vector<1x16xf32>
    %1124 = vector.broadcast %1123 : vector<1x16xf32> to vector<8x16xf32>
    %1125 = arith.addf %1121, %1124 : vector<8x16xf32>
    %cst_195 = arith.constant 0.000000e+00 : f32
    %1126 = vector.broadcast %cst_195 : f32 to vector<8x16xf32>
    %1127 = arith.subf %1126, %1125 : vector<8x16xf32>
    %1128 = math.exp %1127 : vector<8x16xf32>
    %cst_196 = arith.constant 1.000000e+00 : f32
    %1129 = vector.broadcast %cst_196 : f32 to vector<8x16xf32>
    %1130 = arith.addf %1129, %1128 : vector<8x16xf32>
    %cst_197 = arith.constant 1.000000e+00 : f32
    %1131 = vector.broadcast %cst_197 : f32 to vector<8x16xf32>
    %1132 = arith.divf %1131, %1130 : vector<8x16xf32>
    %1133 = arith.mulf %1098, %1055 : vector<8x16xf32>
    %1134 = arith.mulf %1078, %1112 : vector<8x16xf32>
    %1135 = arith.addf %1133, %1134 : vector<8x16xf32>
    %1136 = math.tanh %1135 : vector<8x16xf32>
    %1137 = arith.mulf %1132, %1136 : vector<8x16xf32>
    %1138 = vector.extract_strided_slice %0 {offsets = [0, 13], sizes = [8, 1], strides = [1, 1]} : vector<8x20xf32> to vector<8x1xf32>
    %1139 = vector.extract_strided_slice %1 {offsets = [2, 0, 0], sizes = [1, 1, 16], strides = [1, 1, 1]} : vector<4x4x16xf32> to vector<1x1x16xf32>
    %1140 = vector.shape_cast %1139 : vector<1x1x16xf32> to vector<1x16xf32>
    %1141 = vector.broadcast %1138 : vector<8x1xf32> to vector<8x16xf32>
    %1142 = vector.broadcast %1140 : vector<1x16xf32> to vector<8x16xf32>
    %1143 = arith.mulf %1141, %1142 : vector<8x16xf32>
    %1144 = vector.extract_strided_slice %3 {offsets = [2, 0, 0, 0], sizes = [1, 1, 16, 16], strides = [1, 1, 1, 1]} : vector<4x4x16x16xf32> to vector<1x1x16x16xf32>
    %1145 = vector.shape_cast %1144 : vector<1x1x16x16xf32> to vector<16x16xf32>
    %cst_198 = arith.constant dense<0.000000e+00> : vector<8x16xf32>
    %1146 = tpu.matmul %1137, %1145, %cst_198 {dimension_numbers = #tpu.dot_dimension_numbers<[1], [0], [0], [1], [0, 0, 1, 1], [], []>} : vector<8x16xf32>, vector<16x16xf32>, vector<8x16xf32> -> vector<8x16xf32>
    %1147 = arith.addf %1143, %1146 : vector<8x16xf32>
    %1148 = vector.extract_strided_slice %2 {offsets = [2, 0, 0], sizes = [1, 1, 16], strides = [1, 1, 1]} : vector<4x4x16xf32> to vector<1x1x16xf32>
    %1149 = vector.shape_cast %1148 : vector<1x1x16xf32> to vector<1x16xf32>
    %1150 = vector.broadcast %1149 : vector<1x16xf32> to vector<8x16xf32>
    %1151 = arith.addf %1147, %1150 : vector<8x16xf32>
    %cst_199 = arith.constant 0.000000e+00 : f32
    %1152 = vector.broadcast %cst_199 : f32 to vector<8x16xf32>
    %1153 = arith.subf %1152, %1151 : vector<8x16xf32>
    %1154 = math.exp %1153 : vector<8x16xf32>
    %cst_200 = arith.constant 1.000000e+00 : f32
    %1155 = vector.broadcast %cst_200 : f32 to vector<8x16xf32>
    %1156 = arith.addf %1155, %1154 : vector<8x16xf32>
    %cst_201 = arith.constant 1.000000e+00 : f32
    %1157 = vector.broadcast %cst_201 : f32 to vector<8x16xf32>
    %1158 = arith.divf %1157, %1156 : vector<8x16xf32>
    %1159 = vector.extract_strided_slice %1 {offsets = [2, 1, 0], sizes = [1, 1, 16], strides = [1, 1, 1]} : vector<4x4x16xf32> to vector<1x1x16xf32>
    %1160 = vector.shape_cast %1159 : vector<1x1x16xf32> to vector<1x16xf32>
    %1161 = vector.broadcast %1138 : vector<8x1xf32> to vector<8x16xf32>
    %1162 = vector.broadcast %1160 : vector<1x16xf32> to vector<8x16xf32>
    %1163 = arith.mulf %1161, %1162 : vector<8x16xf32>
    %1164 = vector.extract_strided_slice %3 {offsets = [2, 1, 0, 0], sizes = [1, 1, 16, 16], strides = [1, 1, 1, 1]} : vector<4x4x16x16xf32> to vector<1x1x16x16xf32>
    %1165 = vector.shape_cast %1164 : vector<1x1x16x16xf32> to vector<16x16xf32>
    %cst_202 = arith.constant dense<0.000000e+00> : vector<8x16xf32>
    %1166 = tpu.matmul %1137, %1165, %cst_202 {dimension_numbers = #tpu.dot_dimension_numbers<[1], [0], [0], [1], [0, 0, 1, 1], [], []>} : vector<8x16xf32>, vector<16x16xf32>, vector<8x16xf32> -> vector<8x16xf32>
    %1167 = arith.addf %1163, %1166 : vector<8x16xf32>
    %1168 = vector.extract_strided_slice %2 {offsets = [2, 1, 0], sizes = [1, 1, 16], strides = [1, 1, 1]} : vector<4x4x16xf32> to vector<1x1x16xf32>
    %1169 = vector.shape_cast %1168 : vector<1x1x16xf32> to vector<1x16xf32>
    %1170 = vector.broadcast %1169 : vector<1x16xf32> to vector<8x16xf32>
    %1171 = arith.addf %1167, %1170 : vector<8x16xf32>
    %cst_203 = arith.constant 0.000000e+00 : f32
    %1172 = vector.broadcast %cst_203 : f32 to vector<8x16xf32>
    %1173 = arith.subf %1172, %1171 : vector<8x16xf32>
    %1174 = math.exp %1173 : vector<8x16xf32>
    %cst_204 = arith.constant 1.000000e+00 : f32
    %1175 = vector.broadcast %cst_204 : f32 to vector<8x16xf32>
    %1176 = arith.addf %1175, %1174 : vector<8x16xf32>
    %cst_205 = arith.constant 1.000000e+00 : f32
    %1177 = vector.broadcast %cst_205 : f32 to vector<8x16xf32>
    %1178 = arith.divf %1177, %1176 : vector<8x16xf32>
    %1179 = vector.extract_strided_slice %1 {offsets = [2, 2, 0], sizes = [1, 1, 16], strides = [1, 1, 1]} : vector<4x4x16xf32> to vector<1x1x16xf32>
    %1180 = vector.shape_cast %1179 : vector<1x1x16xf32> to vector<1x16xf32>
    %1181 = vector.broadcast %1138 : vector<8x1xf32> to vector<8x16xf32>
    %1182 = vector.broadcast %1180 : vector<1x16xf32> to vector<8x16xf32>
    %1183 = arith.mulf %1181, %1182 : vector<8x16xf32>
    %1184 = vector.extract_strided_slice %3 {offsets = [2, 2, 0, 0], sizes = [1, 1, 16, 16], strides = [1, 1, 1, 1]} : vector<4x4x16x16xf32> to vector<1x1x16x16xf32>
    %1185 = vector.shape_cast %1184 : vector<1x1x16x16xf32> to vector<16x16xf32>
    %cst_206 = arith.constant dense<0.000000e+00> : vector<8x16xf32>
    %1186 = tpu.matmul %1137, %1185, %cst_206 {dimension_numbers = #tpu.dot_dimension_numbers<[1], [0], [0], [1], [0, 0, 1, 1], [], []>} : vector<8x16xf32>, vector<16x16xf32>, vector<8x16xf32> -> vector<8x16xf32>
    %1187 = arith.addf %1183, %1186 : vector<8x16xf32>
    %1188 = vector.extract_strided_slice %2 {offsets = [2, 2, 0], sizes = [1, 1, 16], strides = [1, 1, 1]} : vector<4x4x16xf32> to vector<1x1x16xf32>
    %1189 = vector.shape_cast %1188 : vector<1x1x16xf32> to vector<1x16xf32>
    %1190 = vector.broadcast %1189 : vector<1x16xf32> to vector<8x16xf32>
    %1191 = arith.addf %1187, %1190 : vector<8x16xf32>
    %1192 = math.tanh %1191 : vector<8x16xf32>
    %1193 = vector.extract_strided_slice %1 {offsets = [2, 3, 0], sizes = [1, 1, 16], strides = [1, 1, 1]} : vector<4x4x16xf32> to vector<1x1x16xf32>
    %1194 = vector.shape_cast %1193 : vector<1x1x16xf32> to vector<1x16xf32>
    %1195 = vector.broadcast %1138 : vector<8x1xf32> to vector<8x16xf32>
    %1196 = vector.broadcast %1194 : vector<1x16xf32> to vector<8x16xf32>
    %1197 = arith.mulf %1195, %1196 : vector<8x16xf32>
    %1198 = vector.extract_strided_slice %3 {offsets = [2, 3, 0, 0], sizes = [1, 1, 16, 16], strides = [1, 1, 1, 1]} : vector<4x4x16x16xf32> to vector<1x1x16x16xf32>
    %1199 = vector.shape_cast %1198 : vector<1x1x16x16xf32> to vector<16x16xf32>
    %cst_207 = arith.constant dense<0.000000e+00> : vector<8x16xf32>
    %1200 = tpu.matmul %1137, %1199, %cst_207 {dimension_numbers = #tpu.dot_dimension_numbers<[1], [0], [0], [1], [0, 0, 1, 1], [], []>} : vector<8x16xf32>, vector<16x16xf32>, vector<8x16xf32> -> vector<8x16xf32>
    %1201 = arith.addf %1197, %1200 : vector<8x16xf32>
    %1202 = vector.extract_strided_slice %2 {offsets = [2, 3, 0], sizes = [1, 1, 16], strides = [1, 1, 1]} : vector<4x4x16xf32> to vector<1x1x16xf32>
    %1203 = vector.shape_cast %1202 : vector<1x1x16xf32> to vector<1x16xf32>
    %1204 = vector.broadcast %1203 : vector<1x16xf32> to vector<8x16xf32>
    %1205 = arith.addf %1201, %1204 : vector<8x16xf32>
    %cst_208 = arith.constant 0.000000e+00 : f32
    %1206 = vector.broadcast %cst_208 : f32 to vector<8x16xf32>
    %1207 = arith.subf %1206, %1205 : vector<8x16xf32>
    %1208 = math.exp %1207 : vector<8x16xf32>
    %cst_209 = arith.constant 1.000000e+00 : f32
    %1209 = vector.broadcast %cst_209 : f32 to vector<8x16xf32>
    %1210 = arith.addf %1209, %1208 : vector<8x16xf32>
    %cst_210 = arith.constant 1.000000e+00 : f32
    %1211 = vector.broadcast %cst_210 : f32 to vector<8x16xf32>
    %1212 = arith.divf %1211, %1210 : vector<8x16xf32>
    %1213 = arith.mulf %1178, %1135 : vector<8x16xf32>
    %1214 = arith.mulf %1158, %1192 : vector<8x16xf32>
    %1215 = arith.addf %1213, %1214 : vector<8x16xf32>
    %1216 = math.tanh %1215 : vector<8x16xf32>
    %1217 = arith.mulf %1212, %1216 : vector<8x16xf32>
    %1218 = vector.extract_strided_slice %0 {offsets = [0, 14], sizes = [8, 1], strides = [1, 1]} : vector<8x20xf32> to vector<8x1xf32>
    %1219 = vector.extract_strided_slice %1 {offsets = [2, 0, 0], sizes = [1, 1, 16], strides = [1, 1, 1]} : vector<4x4x16xf32> to vector<1x1x16xf32>
    %1220 = vector.shape_cast %1219 : vector<1x1x16xf32> to vector<1x16xf32>
    %1221 = vector.broadcast %1218 : vector<8x1xf32> to vector<8x16xf32>
    %1222 = vector.broadcast %1220 : vector<1x16xf32> to vector<8x16xf32>
    %1223 = arith.mulf %1221, %1222 : vector<8x16xf32>
    %1224 = vector.extract_strided_slice %3 {offsets = [2, 0, 0, 0], sizes = [1, 1, 16, 16], strides = [1, 1, 1, 1]} : vector<4x4x16x16xf32> to vector<1x1x16x16xf32>
    %1225 = vector.shape_cast %1224 : vector<1x1x16x16xf32> to vector<16x16xf32>
    %cst_211 = arith.constant dense<0.000000e+00> : vector<8x16xf32>
    %1226 = tpu.matmul %1217, %1225, %cst_211 {dimension_numbers = #tpu.dot_dimension_numbers<[1], [0], [0], [1], [0, 0, 1, 1], [], []>} : vector<8x16xf32>, vector<16x16xf32>, vector<8x16xf32> -> vector<8x16xf32>
    %1227 = arith.addf %1223, %1226 : vector<8x16xf32>
    %1228 = vector.extract_strided_slice %2 {offsets = [2, 0, 0], sizes = [1, 1, 16], strides = [1, 1, 1]} : vector<4x4x16xf32> to vector<1x1x16xf32>
    %1229 = vector.shape_cast %1228 : vector<1x1x16xf32> to vector<1x16xf32>
    %1230 = vector.broadcast %1229 : vector<1x16xf32> to vector<8x16xf32>
    %1231 = arith.addf %1227, %1230 : vector<8x16xf32>
    %cst_212 = arith.constant 0.000000e+00 : f32
    %1232 = vector.broadcast %cst_212 : f32 to vector<8x16xf32>
    %1233 = arith.subf %1232, %1231 : vector<8x16xf32>
    %1234 = math.exp %1233 : vector<8x16xf32>
    %cst_213 = arith.constant 1.000000e+00 : f32
    %1235 = vector.broadcast %cst_213 : f32 to vector<8x16xf32>
    %1236 = arith.addf %1235, %1234 : vector<8x16xf32>
    %cst_214 = arith.constant 1.000000e+00 : f32
    %1237 = vector.broadcast %cst_214 : f32 to vector<8x16xf32>
    %1238 = arith.divf %1237, %1236 : vector<8x16xf32>
    %1239 = vector.extract_strided_slice %1 {offsets = [2, 1, 0], sizes = [1, 1, 16], strides = [1, 1, 1]} : vector<4x4x16xf32> to vector<1x1x16xf32>
    %1240 = vector.shape_cast %1239 : vector<1x1x16xf32> to vector<1x16xf32>
    %1241 = vector.broadcast %1218 : vector<8x1xf32> to vector<8x16xf32>
    %1242 = vector.broadcast %1240 : vector<1x16xf32> to vector<8x16xf32>
    %1243 = arith.mulf %1241, %1242 : vector<8x16xf32>
    %1244 = vector.extract_strided_slice %3 {offsets = [2, 1, 0, 0], sizes = [1, 1, 16, 16], strides = [1, 1, 1, 1]} : vector<4x4x16x16xf32> to vector<1x1x16x16xf32>
    %1245 = vector.shape_cast %1244 : vector<1x1x16x16xf32> to vector<16x16xf32>
    %cst_215 = arith.constant dense<0.000000e+00> : vector<8x16xf32>
    %1246 = tpu.matmul %1217, %1245, %cst_215 {dimension_numbers = #tpu.dot_dimension_numbers<[1], [0], [0], [1], [0, 0, 1, 1], [], []>} : vector<8x16xf32>, vector<16x16xf32>, vector<8x16xf32> -> vector<8x16xf32>
    %1247 = arith.addf %1243, %1246 : vector<8x16xf32>
    %1248 = vector.extract_strided_slice %2 {offsets = [2, 1, 0], sizes = [1, 1, 16], strides = [1, 1, 1]} : vector<4x4x16xf32> to vector<1x1x16xf32>
    %1249 = vector.shape_cast %1248 : vector<1x1x16xf32> to vector<1x16xf32>
    %1250 = vector.broadcast %1249 : vector<1x16xf32> to vector<8x16xf32>
    %1251 = arith.addf %1247, %1250 : vector<8x16xf32>
    %cst_216 = arith.constant 0.000000e+00 : f32
    %1252 = vector.broadcast %cst_216 : f32 to vector<8x16xf32>
    %1253 = arith.subf %1252, %1251 : vector<8x16xf32>
    %1254 = math.exp %1253 : vector<8x16xf32>
    %cst_217 = arith.constant 1.000000e+00 : f32
    %1255 = vector.broadcast %cst_217 : f32 to vector<8x16xf32>
    %1256 = arith.addf %1255, %1254 : vector<8x16xf32>
    %cst_218 = arith.constant 1.000000e+00 : f32
    %1257 = vector.broadcast %cst_218 : f32 to vector<8x16xf32>
    %1258 = arith.divf %1257, %1256 : vector<8x16xf32>
    %1259 = vector.extract_strided_slice %1 {offsets = [2, 2, 0], sizes = [1, 1, 16], strides = [1, 1, 1]} : vector<4x4x16xf32> to vector<1x1x16xf32>
    %1260 = vector.shape_cast %1259 : vector<1x1x16xf32> to vector<1x16xf32>
    %1261 = vector.broadcast %1218 : vector<8x1xf32> to vector<8x16xf32>
    %1262 = vector.broadcast %1260 : vector<1x16xf32> to vector<8x16xf32>
    %1263 = arith.mulf %1261, %1262 : vector<8x16xf32>
    %1264 = vector.extract_strided_slice %3 {offsets = [2, 2, 0, 0], sizes = [1, 1, 16, 16], strides = [1, 1, 1, 1]} : vector<4x4x16x16xf32> to vector<1x1x16x16xf32>
    %1265 = vector.shape_cast %1264 : vector<1x1x16x16xf32> to vector<16x16xf32>
    %cst_219 = arith.constant dense<0.000000e+00> : vector<8x16xf32>
    %1266 = tpu.matmul %1217, %1265, %cst_219 {dimension_numbers = #tpu.dot_dimension_numbers<[1], [0], [0], [1], [0, 0, 1, 1], [], []>} : vector<8x16xf32>, vector<16x16xf32>, vector<8x16xf32> -> vector<8x16xf32>
    %1267 = arith.addf %1263, %1266 : vector<8x16xf32>
    %1268 = vector.extract_strided_slice %2 {offsets = [2, 2, 0], sizes = [1, 1, 16], strides = [1, 1, 1]} : vector<4x4x16xf32> to vector<1x1x16xf32>
    %1269 = vector.shape_cast %1268 : vector<1x1x16xf32> to vector<1x16xf32>
    %1270 = vector.broadcast %1269 : vector<1x16xf32> to vector<8x16xf32>
    %1271 = arith.addf %1267, %1270 : vector<8x16xf32>
    %1272 = math.tanh %1271 : vector<8x16xf32>
    %1273 = vector.extract_strided_slice %1 {offsets = [2, 3, 0], sizes = [1, 1, 16], strides = [1, 1, 1]} : vector<4x4x16xf32> to vector<1x1x16xf32>
    %1274 = vector.shape_cast %1273 : vector<1x1x16xf32> to vector<1x16xf32>
    %1275 = vector.broadcast %1218 : vector<8x1xf32> to vector<8x16xf32>
    %1276 = vector.broadcast %1274 : vector<1x16xf32> to vector<8x16xf32>
    %1277 = arith.mulf %1275, %1276 : vector<8x16xf32>
    %1278 = vector.extract_strided_slice %3 {offsets = [2, 3, 0, 0], sizes = [1, 1, 16, 16], strides = [1, 1, 1, 1]} : vector<4x4x16x16xf32> to vector<1x1x16x16xf32>
    %1279 = vector.shape_cast %1278 : vector<1x1x16x16xf32> to vector<16x16xf32>
    %cst_220 = arith.constant dense<0.000000e+00> : vector<8x16xf32>
    %1280 = tpu.matmul %1217, %1279, %cst_220 {dimension_numbers = #tpu.dot_dimension_numbers<[1], [0], [0], [1], [0, 0, 1, 1], [], []>} : vector<8x16xf32>, vector<16x16xf32>, vector<8x16xf32> -> vector<8x16xf32>
    %1281 = arith.addf %1277, %1280 : vector<8x16xf32>
    %1282 = vector.extract_strided_slice %2 {offsets = [2, 3, 0], sizes = [1, 1, 16], strides = [1, 1, 1]} : vector<4x4x16xf32> to vector<1x1x16xf32>
    %1283 = vector.shape_cast %1282 : vector<1x1x16xf32> to vector<1x16xf32>
    %1284 = vector.broadcast %1283 : vector<1x16xf32> to vector<8x16xf32>
    %1285 = arith.addf %1281, %1284 : vector<8x16xf32>
    %cst_221 = arith.constant 0.000000e+00 : f32
    %1286 = vector.broadcast %cst_221 : f32 to vector<8x16xf32>
    %1287 = arith.subf %1286, %1285 : vector<8x16xf32>
    %1288 = math.exp %1287 : vector<8x16xf32>
    %cst_222 = arith.constant 1.000000e+00 : f32
    %1289 = vector.broadcast %cst_222 : f32 to vector<8x16xf32>
    %1290 = arith.addf %1289, %1288 : vector<8x16xf32>
    %cst_223 = arith.constant 1.000000e+00 : f32
    %1291 = vector.broadcast %cst_223 : f32 to vector<8x16xf32>
    %1292 = arith.divf %1291, %1290 : vector<8x16xf32>
    %1293 = arith.mulf %1258, %1215 : vector<8x16xf32>
    %1294 = arith.mulf %1238, %1272 : vector<8x16xf32>
    %1295 = arith.addf %1293, %1294 : vector<8x16xf32>
    %1296 = math.tanh %1295 : vector<8x16xf32>
    %1297 = arith.mulf %1292, %1296 : vector<8x16xf32>
    %1298 = vector.extract_strided_slice %0 {offsets = [0, 15], sizes = [8, 1], strides = [1, 1]} : vector<8x20xf32> to vector<8x1xf32>
    %1299 = vector.extract_strided_slice %1 {offsets = [2, 0, 0], sizes = [1, 1, 16], strides = [1, 1, 1]} : vector<4x4x16xf32> to vector<1x1x16xf32>
    %1300 = vector.shape_cast %1299 : vector<1x1x16xf32> to vector<1x16xf32>
    %1301 = vector.broadcast %1298 : vector<8x1xf32> to vector<8x16xf32>
    %1302 = vector.broadcast %1300 : vector<1x16xf32> to vector<8x16xf32>
    %1303 = arith.mulf %1301, %1302 : vector<8x16xf32>
    %1304 = vector.extract_strided_slice %3 {offsets = [2, 0, 0, 0], sizes = [1, 1, 16, 16], strides = [1, 1, 1, 1]} : vector<4x4x16x16xf32> to vector<1x1x16x16xf32>
    %1305 = vector.shape_cast %1304 : vector<1x1x16x16xf32> to vector<16x16xf32>
    %cst_224 = arith.constant dense<0.000000e+00> : vector<8x16xf32>
    %1306 = tpu.matmul %1297, %1305, %cst_224 {dimension_numbers = #tpu.dot_dimension_numbers<[1], [0], [0], [1], [0, 0, 1, 1], [], []>} : vector<8x16xf32>, vector<16x16xf32>, vector<8x16xf32> -> vector<8x16xf32>
    %1307 = arith.addf %1303, %1306 : vector<8x16xf32>
    %1308 = vector.extract_strided_slice %2 {offsets = [2, 0, 0], sizes = [1, 1, 16], strides = [1, 1, 1]} : vector<4x4x16xf32> to vector<1x1x16xf32>
    %1309 = vector.shape_cast %1308 : vector<1x1x16xf32> to vector<1x16xf32>
    %1310 = vector.broadcast %1309 : vector<1x16xf32> to vector<8x16xf32>
    %1311 = arith.addf %1307, %1310 : vector<8x16xf32>
    %cst_225 = arith.constant 0.000000e+00 : f32
    %1312 = vector.broadcast %cst_225 : f32 to vector<8x16xf32>
    %1313 = arith.subf %1312, %1311 : vector<8x16xf32>
    %1314 = math.exp %1313 : vector<8x16xf32>
    %cst_226 = arith.constant 1.000000e+00 : f32
    %1315 = vector.broadcast %cst_226 : f32 to vector<8x16xf32>
    %1316 = arith.addf %1315, %1314 : vector<8x16xf32>
    %cst_227 = arith.constant 1.000000e+00 : f32
    %1317 = vector.broadcast %cst_227 : f32 to vector<8x16xf32>
    %1318 = arith.divf %1317, %1316 : vector<8x16xf32>
    %1319 = vector.extract_strided_slice %1 {offsets = [2, 1, 0], sizes = [1, 1, 16], strides = [1, 1, 1]} : vector<4x4x16xf32> to vector<1x1x16xf32>
    %1320 = vector.shape_cast %1319 : vector<1x1x16xf32> to vector<1x16xf32>
    %1321 = vector.broadcast %1298 : vector<8x1xf32> to vector<8x16xf32>
    %1322 = vector.broadcast %1320 : vector<1x16xf32> to vector<8x16xf32>
    %1323 = arith.mulf %1321, %1322 : vector<8x16xf32>
    %1324 = vector.extract_strided_slice %3 {offsets = [2, 1, 0, 0], sizes = [1, 1, 16, 16], strides = [1, 1, 1, 1]} : vector<4x4x16x16xf32> to vector<1x1x16x16xf32>
    %1325 = vector.shape_cast %1324 : vector<1x1x16x16xf32> to vector<16x16xf32>
    %cst_228 = arith.constant dense<0.000000e+00> : vector<8x16xf32>
    %1326 = tpu.matmul %1297, %1325, %cst_228 {dimension_numbers = #tpu.dot_dimension_numbers<[1], [0], [0], [1], [0, 0, 1, 1], [], []>} : vector<8x16xf32>, vector<16x16xf32>, vector<8x16xf32> -> vector<8x16xf32>
    %1327 = arith.addf %1323, %1326 : vector<8x16xf32>
    %1328 = vector.extract_strided_slice %2 {offsets = [2, 1, 0], sizes = [1, 1, 16], strides = [1, 1, 1]} : vector<4x4x16xf32> to vector<1x1x16xf32>
    %1329 = vector.shape_cast %1328 : vector<1x1x16xf32> to vector<1x16xf32>
    %1330 = vector.broadcast %1329 : vector<1x16xf32> to vector<8x16xf32>
    %1331 = arith.addf %1327, %1330 : vector<8x16xf32>
    %cst_229 = arith.constant 0.000000e+00 : f32
    %1332 = vector.broadcast %cst_229 : f32 to vector<8x16xf32>
    %1333 = arith.subf %1332, %1331 : vector<8x16xf32>
    %1334 = math.exp %1333 : vector<8x16xf32>
    %cst_230 = arith.constant 1.000000e+00 : f32
    %1335 = vector.broadcast %cst_230 : f32 to vector<8x16xf32>
    %1336 = arith.addf %1335, %1334 : vector<8x16xf32>
    %cst_231 = arith.constant 1.000000e+00 : f32
    %1337 = vector.broadcast %cst_231 : f32 to vector<8x16xf32>
    %1338 = arith.divf %1337, %1336 : vector<8x16xf32>
    %1339 = vector.extract_strided_slice %1 {offsets = [2, 2, 0], sizes = [1, 1, 16], strides = [1, 1, 1]} : vector<4x4x16xf32> to vector<1x1x16xf32>
    %1340 = vector.shape_cast %1339 : vector<1x1x16xf32> to vector<1x16xf32>
    %1341 = vector.broadcast %1298 : vector<8x1xf32> to vector<8x16xf32>
    %1342 = vector.broadcast %1340 : vector<1x16xf32> to vector<8x16xf32>
    %1343 = arith.mulf %1341, %1342 : vector<8x16xf32>
    %1344 = vector.extract_strided_slice %3 {offsets = [2, 2, 0, 0], sizes = [1, 1, 16, 16], strides = [1, 1, 1, 1]} : vector<4x4x16x16xf32> to vector<1x1x16x16xf32>
    %1345 = vector.shape_cast %1344 : vector<1x1x16x16xf32> to vector<16x16xf32>
    %cst_232 = arith.constant dense<0.000000e+00> : vector<8x16xf32>
    %1346 = tpu.matmul %1297, %1345, %cst_232 {dimension_numbers = #tpu.dot_dimension_numbers<[1], [0], [0], [1], [0, 0, 1, 1], [], []>} : vector<8x16xf32>, vector<16x16xf32>, vector<8x16xf32> -> vector<8x16xf32>
    %1347 = arith.addf %1343, %1346 : vector<8x16xf32>
    %1348 = vector.extract_strided_slice %2 {offsets = [2, 2, 0], sizes = [1, 1, 16], strides = [1, 1, 1]} : vector<4x4x16xf32> to vector<1x1x16xf32>
    %1349 = vector.shape_cast %1348 : vector<1x1x16xf32> to vector<1x16xf32>
    %1350 = vector.broadcast %1349 : vector<1x16xf32> to vector<8x16xf32>
    %1351 = arith.addf %1347, %1350 : vector<8x16xf32>
    %1352 = math.tanh %1351 : vector<8x16xf32>
    %1353 = vector.extract_strided_slice %1 {offsets = [2, 3, 0], sizes = [1, 1, 16], strides = [1, 1, 1]} : vector<4x4x16xf32> to vector<1x1x16xf32>
    %1354 = vector.shape_cast %1353 : vector<1x1x16xf32> to vector<1x16xf32>
    %1355 = vector.broadcast %1298 : vector<8x1xf32> to vector<8x16xf32>
    %1356 = vector.broadcast %1354 : vector<1x16xf32> to vector<8x16xf32>
    %1357 = arith.mulf %1355, %1356 : vector<8x16xf32>
    %1358 = vector.extract_strided_slice %3 {offsets = [2, 3, 0, 0], sizes = [1, 1, 16, 16], strides = [1, 1, 1, 1]} : vector<4x4x16x16xf32> to vector<1x1x16x16xf32>
    %1359 = vector.shape_cast %1358 : vector<1x1x16x16xf32> to vector<16x16xf32>
    %cst_233 = arith.constant dense<0.000000e+00> : vector<8x16xf32>
    %1360 = tpu.matmul %1297, %1359, %cst_233 {dimension_numbers = #tpu.dot_dimension_numbers<[1], [0], [0], [1], [0, 0, 1, 1], [], []>} : vector<8x16xf32>, vector<16x16xf32>, vector<8x16xf32> -> vector<8x16xf32>
    %1361 = arith.addf %1357, %1360 : vector<8x16xf32>
    %1362 = vector.extract_strided_slice %2 {offsets = [2, 3, 0], sizes = [1, 1, 16], strides = [1, 1, 1]} : vector<4x4x16xf32> to vector<1x1x16xf32>
    %1363 = vector.shape_cast %1362 : vector<1x1x16xf32> to vector<1x16xf32>
    %1364 = vector.broadcast %1363 : vector<1x16xf32> to vector<8x16xf32>
    %1365 = arith.addf %1361, %1364 : vector<8x16xf32>
    %cst_234 = arith.constant 0.000000e+00 : f32
    %1366 = vector.broadcast %cst_234 : f32 to vector<8x16xf32>
    %1367 = arith.subf %1366, %1365 : vector<8x16xf32>
    %1368 = math.exp %1367 : vector<8x16xf32>
    %cst_235 = arith.constant 1.000000e+00 : f32
    %1369 = vector.broadcast %cst_235 : f32 to vector<8x16xf32>
    %1370 = arith.addf %1369, %1368 : vector<8x16xf32>
    %cst_236 = arith.constant 1.000000e+00 : f32
    %1371 = vector.broadcast %cst_236 : f32 to vector<8x16xf32>
    %1372 = arith.divf %1371, %1370 : vector<8x16xf32>
    %1373 = arith.mulf %1338, %1295 : vector<8x16xf32>
    %1374 = arith.mulf %1318, %1352 : vector<8x16xf32>
    %1375 = arith.addf %1373, %1374 : vector<8x16xf32>
    %1376 = math.tanh %1375 : vector<8x16xf32>
    %1377 = arith.mulf %1372, %1376 : vector<8x16xf32>
    %1378 = vector.extract_strided_slice %0 {offsets = [0, 15], sizes = [8, 1], strides = [1, 1]} : vector<8x20xf32> to vector<8x1xf32>
    %1379 = vector.extract_strided_slice %4 {offsets = [3, 0, 0], sizes = [1, 8, 16], strides = [1, 1, 1]} : vector<4x8x16xf32> to vector<1x8x16xf32>
    %1380 = vector.shape_cast %1379 : vector<1x8x16xf32> to vector<8x16xf32>
    %1381 = vector.extract_strided_slice %5 {offsets = [3, 0, 0], sizes = [1, 8, 16], strides = [1, 1, 1]} : vector<4x8x16xf32> to vector<1x8x16xf32>
    %1382 = vector.shape_cast %1381 : vector<1x8x16xf32> to vector<8x16xf32>
    %1383 = vector.extract_strided_slice %1 {offsets = [3, 0, 0], sizes = [1, 1, 16], strides = [1, 1, 1]} : vector<4x4x16xf32> to vector<1x1x16xf32>
    %1384 = vector.shape_cast %1383 : vector<1x1x16xf32> to vector<1x16xf32>
    %1385 = vector.broadcast %1378 : vector<8x1xf32> to vector<8x16xf32>
    %1386 = vector.broadcast %1384 : vector<1x16xf32> to vector<8x16xf32>
    %1387 = arith.mulf %1385, %1386 : vector<8x16xf32>
    %1388 = vector.extract_strided_slice %3 {offsets = [3, 0, 0, 0], sizes = [1, 1, 16, 16], strides = [1, 1, 1, 1]} : vector<4x4x16x16xf32> to vector<1x1x16x16xf32>
    %1389 = vector.shape_cast %1388 : vector<1x1x16x16xf32> to vector<16x16xf32>
    %cst_237 = arith.constant dense<0.000000e+00> : vector<8x16xf32>
    %1390 = tpu.matmul %1380, %1389, %cst_237 {dimension_numbers = #tpu.dot_dimension_numbers<[1], [0], [0], [1], [0, 0, 1, 1], [], []>} : vector<8x16xf32>, vector<16x16xf32>, vector<8x16xf32> -> vector<8x16xf32>
    %1391 = arith.addf %1387, %1390 : vector<8x16xf32>
    %1392 = vector.extract_strided_slice %2 {offsets = [3, 0, 0], sizes = [1, 1, 16], strides = [1, 1, 1]} : vector<4x4x16xf32> to vector<1x1x16xf32>
    %1393 = vector.shape_cast %1392 : vector<1x1x16xf32> to vector<1x16xf32>
    %1394 = vector.broadcast %1393 : vector<1x16xf32> to vector<8x16xf32>
    %1395 = arith.addf %1391, %1394 : vector<8x16xf32>
    %cst_238 = arith.constant 0.000000e+00 : f32
    %1396 = vector.broadcast %cst_238 : f32 to vector<8x16xf32>
    %1397 = arith.subf %1396, %1395 : vector<8x16xf32>
    %1398 = math.exp %1397 : vector<8x16xf32>
    %cst_239 = arith.constant 1.000000e+00 : f32
    %1399 = vector.broadcast %cst_239 : f32 to vector<8x16xf32>
    %1400 = arith.addf %1399, %1398 : vector<8x16xf32>
    %cst_240 = arith.constant 1.000000e+00 : f32
    %1401 = vector.broadcast %cst_240 : f32 to vector<8x16xf32>
    %1402 = arith.divf %1401, %1400 : vector<8x16xf32>
    %1403 = vector.extract_strided_slice %1 {offsets = [3, 1, 0], sizes = [1, 1, 16], strides = [1, 1, 1]} : vector<4x4x16xf32> to vector<1x1x16xf32>
    %1404 = vector.shape_cast %1403 : vector<1x1x16xf32> to vector<1x16xf32>
    %1405 = vector.broadcast %1378 : vector<8x1xf32> to vector<8x16xf32>
    %1406 = vector.broadcast %1404 : vector<1x16xf32> to vector<8x16xf32>
    %1407 = arith.mulf %1405, %1406 : vector<8x16xf32>
    %1408 = vector.extract_strided_slice %3 {offsets = [3, 1, 0, 0], sizes = [1, 1, 16, 16], strides = [1, 1, 1, 1]} : vector<4x4x16x16xf32> to vector<1x1x16x16xf32>
    %1409 = vector.shape_cast %1408 : vector<1x1x16x16xf32> to vector<16x16xf32>
    %cst_241 = arith.constant dense<0.000000e+00> : vector<8x16xf32>
    %1410 = tpu.matmul %1380, %1409, %cst_241 {dimension_numbers = #tpu.dot_dimension_numbers<[1], [0], [0], [1], [0, 0, 1, 1], [], []>} : vector<8x16xf32>, vector<16x16xf32>, vector<8x16xf32> -> vector<8x16xf32>
    %1411 = arith.addf %1407, %1410 : vector<8x16xf32>
    %1412 = vector.extract_strided_slice %2 {offsets = [3, 1, 0], sizes = [1, 1, 16], strides = [1, 1, 1]} : vector<4x4x16xf32> to vector<1x1x16xf32>
    %1413 = vector.shape_cast %1412 : vector<1x1x16xf32> to vector<1x16xf32>
    %1414 = vector.broadcast %1413 : vector<1x16xf32> to vector<8x16xf32>
    %1415 = arith.addf %1411, %1414 : vector<8x16xf32>
    %cst_242 = arith.constant 0.000000e+00 : f32
    %1416 = vector.broadcast %cst_242 : f32 to vector<8x16xf32>
    %1417 = arith.subf %1416, %1415 : vector<8x16xf32>
    %1418 = math.exp %1417 : vector<8x16xf32>
    %cst_243 = arith.constant 1.000000e+00 : f32
    %1419 = vector.broadcast %cst_243 : f32 to vector<8x16xf32>
    %1420 = arith.addf %1419, %1418 : vector<8x16xf32>
    %cst_244 = arith.constant 1.000000e+00 : f32
    %1421 = vector.broadcast %cst_244 : f32 to vector<8x16xf32>
    %1422 = arith.divf %1421, %1420 : vector<8x16xf32>
    %1423 = vector.extract_strided_slice %1 {offsets = [3, 2, 0], sizes = [1, 1, 16], strides = [1, 1, 1]} : vector<4x4x16xf32> to vector<1x1x16xf32>
    %1424 = vector.shape_cast %1423 : vector<1x1x16xf32> to vector<1x16xf32>
    %1425 = vector.broadcast %1378 : vector<8x1xf32> to vector<8x16xf32>
    %1426 = vector.broadcast %1424 : vector<1x16xf32> to vector<8x16xf32>
    %1427 = arith.mulf %1425, %1426 : vector<8x16xf32>
    %1428 = vector.extract_strided_slice %3 {offsets = [3, 2, 0, 0], sizes = [1, 1, 16, 16], strides = [1, 1, 1, 1]} : vector<4x4x16x16xf32> to vector<1x1x16x16xf32>
    %1429 = vector.shape_cast %1428 : vector<1x1x16x16xf32> to vector<16x16xf32>
    %cst_245 = arith.constant dense<0.000000e+00> : vector<8x16xf32>
    %1430 = tpu.matmul %1380, %1429, %cst_245 {dimension_numbers = #tpu.dot_dimension_numbers<[1], [0], [0], [1], [0, 0, 1, 1], [], []>} : vector<8x16xf32>, vector<16x16xf32>, vector<8x16xf32> -> vector<8x16xf32>
    %1431 = arith.addf %1427, %1430 : vector<8x16xf32>
    %1432 = vector.extract_strided_slice %2 {offsets = [3, 2, 0], sizes = [1, 1, 16], strides = [1, 1, 1]} : vector<4x4x16xf32> to vector<1x1x16xf32>
    %1433 = vector.shape_cast %1432 : vector<1x1x16xf32> to vector<1x16xf32>
    %1434 = vector.broadcast %1433 : vector<1x16xf32> to vector<8x16xf32>
    %1435 = arith.addf %1431, %1434 : vector<8x16xf32>
    %1436 = math.tanh %1435 : vector<8x16xf32>
    %1437 = vector.extract_strided_slice %1 {offsets = [3, 3, 0], sizes = [1, 1, 16], strides = [1, 1, 1]} : vector<4x4x16xf32> to vector<1x1x16xf32>
    %1438 = vector.shape_cast %1437 : vector<1x1x16xf32> to vector<1x16xf32>
    %1439 = vector.broadcast %1378 : vector<8x1xf32> to vector<8x16xf32>
    %1440 = vector.broadcast %1438 : vector<1x16xf32> to vector<8x16xf32>
    %1441 = arith.mulf %1439, %1440 : vector<8x16xf32>
    %1442 = vector.extract_strided_slice %3 {offsets = [3, 3, 0, 0], sizes = [1, 1, 16, 16], strides = [1, 1, 1, 1]} : vector<4x4x16x16xf32> to vector<1x1x16x16xf32>
    %1443 = vector.shape_cast %1442 : vector<1x1x16x16xf32> to vector<16x16xf32>
    %cst_246 = arith.constant dense<0.000000e+00> : vector<8x16xf32>
    %1444 = tpu.matmul %1380, %1443, %cst_246 {dimension_numbers = #tpu.dot_dimension_numbers<[1], [0], [0], [1], [0, 0, 1, 1], [], []>} : vector<8x16xf32>, vector<16x16xf32>, vector<8x16xf32> -> vector<8x16xf32>
    %1445 = arith.addf %1441, %1444 : vector<8x16xf32>
    %1446 = vector.extract_strided_slice %2 {offsets = [3, 3, 0], sizes = [1, 1, 16], strides = [1, 1, 1]} : vector<4x4x16xf32> to vector<1x1x16xf32>
    %1447 = vector.shape_cast %1446 : vector<1x1x16xf32> to vector<1x16xf32>
    %1448 = vector.broadcast %1447 : vector<1x16xf32> to vector<8x16xf32>
    %1449 = arith.addf %1445, %1448 : vector<8x16xf32>
    %cst_247 = arith.constant 0.000000e+00 : f32
    %1450 = vector.broadcast %cst_247 : f32 to vector<8x16xf32>
    %1451 = arith.subf %1450, %1449 : vector<8x16xf32>
    %1452 = math.exp %1451 : vector<8x16xf32>
    %cst_248 = arith.constant 1.000000e+00 : f32
    %1453 = vector.broadcast %cst_248 : f32 to vector<8x16xf32>
    %1454 = arith.addf %1453, %1452 : vector<8x16xf32>
    %cst_249 = arith.constant 1.000000e+00 : f32
    %1455 = vector.broadcast %cst_249 : f32 to vector<8x16xf32>
    %1456 = arith.divf %1455, %1454 : vector<8x16xf32>
    %1457 = arith.mulf %1422, %1382 : vector<8x16xf32>
    %1458 = arith.mulf %1402, %1436 : vector<8x16xf32>
    %1459 = arith.addf %1457, %1458 : vector<8x16xf32>
    %1460 = math.tanh %1459 : vector<8x16xf32>
    %1461 = arith.mulf %1456, %1460 : vector<8x16xf32>
    %1462 = vector.extract_strided_slice %0 {offsets = [0, 16], sizes = [8, 4], strides = [1, 1]} : vector<8x20xf32> to vector<8x4xf32>
    %c0_250 = arith.constant 0 : index
    %c0_251 = arith.constant 0 : index
    %1463 = vector.load %arg7[%c0_250, %c0_251] : memref<68x24xf32, #tpu.memory_space<vmem>>, vector<68x24xf32>
    %cst_252 = arith.constant 0.000000e+00 : f32
    %1464 = vector.broadcast %cst_252 : f32 to vector<8x24xf32>
    %c0_253 = arith.constant 0 : index
    %c0_254 = arith.constant 0 : index
    %1465 = vector.load %arg8[%c0_253, %c0_254] : memref<1x24xf32, #tpu.memory_space<vmem>>, vector<1x24xf32>
    %1466 = vector.broadcast %1465 : vector<1x24xf32> to vector<8x24xf32>
    %1467 = arith.addf %1464, %1466 : vector<8x24xf32>
    %1468 = vector.extract_strided_slice %1463 {offsets = [0, 0], sizes = [16, 24], strides = [1, 1]} : vector<68x24xf32> to vector<16x24xf32>
    %cst_255 = arith.constant dense<0.000000e+00> : vector<8x24xf32>
    %1469 = tpu.matmul %649, %1468, %cst_255 {dimension_numbers = #tpu.dot_dimension_numbers<[1], [0], [0], [1], [0, 0, 1, 1], [], []>} : vector<8x16xf32>, vector<16x24xf32>, vector<8x24xf32> -> vector<8x24xf32>
    %1470 = arith.addf %1467, %1469 : vector<8x24xf32>
    %1471 = vector.extract_strided_slice %1463 {offsets = [16, 0], sizes = [16, 24], strides = [1, 1]} : vector<68x24xf32> to vector<16x24xf32>
    %cst_256 = arith.constant dense<0.000000e+00> : vector<8x24xf32>
    %1472 = tpu.matmul %733, %1471, %cst_256 {dimension_numbers = #tpu.dot_dimension_numbers<[1], [0], [0], [1], [0, 0, 1, 1], [], []>} : vector<8x16xf32>, vector<16x24xf32>, vector<8x24xf32> -> vector<8x24xf32>
    %1473 = arith.addf %1470, %1472 : vector<8x24xf32>
    %1474 = vector.extract_strided_slice %1463 {offsets = [32, 0], sizes = [16, 24], strides = [1, 1]} : vector<68x24xf32> to vector<16x24xf32>
    %cst_257 = arith.constant dense<0.000000e+00> : vector<8x24xf32>
    %1475 = tpu.matmul %1377, %1474, %cst_257 {dimension_numbers = #tpu.dot_dimension_numbers<[1], [0], [0], [1], [0, 0, 1, 1], [], []>} : vector<8x16xf32>, vector<16x24xf32>, vector<8x24xf32> -> vector<8x24xf32>
    %1476 = arith.addf %1473, %1475 : vector<8x24xf32>
    %1477 = vector.extract_strided_slice %1463 {offsets = [48, 0], sizes = [16, 24], strides = [1, 1]} : vector<68x24xf32> to vector<16x24xf32>
    %cst_258 = arith.constant dense<0.000000e+00> : vector<8x24xf32>
    %1478 = tpu.matmul %1461, %1477, %cst_258 {dimension_numbers = #tpu.dot_dimension_numbers<[1], [0], [0], [1], [0, 0, 1, 1], [], []>} : vector<8x16xf32>, vector<16x24xf32>, vector<8x24xf32> -> vector<8x24xf32>
    %1479 = arith.addf %1476, %1478 : vector<8x24xf32>
    %1480 = vector.extract_strided_slice %1463 {offsets = [64, 0], sizes = [4, 24], strides = [1, 1]} : vector<68x24xf32> to vector<4x24xf32>
    %cst_259 = arith.constant dense<0.000000e+00> : vector<8x24xf32>
    %1481 = tpu.matmul %1462, %1480, %cst_259 {dimension_numbers = #tpu.dot_dimension_numbers<[1], [0], [0], [1], [0, 0, 1, 1], [], []>} : vector<8x4xf32>, vector<4x24xf32>, vector<8x24xf32> -> vector<8x24xf32>
    %1482 = arith.addf %1479, %1481 : vector<8x24xf32>
    %cst_260 = arith.constant 0.000000e+00 : f32
    %1483 = vector.broadcast %cst_260 : f32 to vector<8x24xf32>
    %1484 = arith.maximumf %1482, %1483 : vector<8x24xf32>
    %c0_261 = arith.constant 0 : index
    %c0_262 = arith.constant 0 : index
    %1485 = vector.load %arg9[%c0_261, %c0_262] : memref<24x24xf32, #tpu.memory_space<vmem>>, vector<24x24xf32>
    %cst_263 = arith.constant dense<0.000000e+00> : vector<8x24xf32>
    %1486 = tpu.matmul %1484, %1485, %cst_263 {dimension_numbers = #tpu.dot_dimension_numbers<[1], [0], [0], [1], [0, 0, 1, 1], [], []>} : vector<8x24xf32>, vector<24x24xf32>, vector<8x24xf32> -> vector<8x24xf32>
    %c0_264 = arith.constant 0 : index
    %c0_265 = arith.constant 0 : index
    %1487 = vector.load %arg10[%c0_264, %c0_265] : memref<1x24xf32, #tpu.memory_space<vmem>>, vector<1x24xf32>
    %1488 = vector.broadcast %1487 : vector<1x24xf32> to vector<8x24xf32>
    %1489 = arith.addf %1486, %1488 : vector<8x24xf32>
    %cst_266 = arith.constant 0.000000e+00 : f32
    %1490 = vector.broadcast %cst_266 : f32 to vector<8x24xf32>
    %1491 = arith.maximumf %1489, %1490 : vector<8x24xf32>
    %c0_267 = arith.constant 0 : index
    %c0_268 = arith.constant 0 : index
    %1492 = vector.load %arg11[%c0_267, %c0_268] : memref<24x128xf32, #tpu.memory_space<vmem>>, vector<24x128xf32>
    %cst_269 = arith.constant dense<0.000000e+00> : vector<8x128xf32>
    %1493 = tpu.matmul %1491, %1492, %cst_269 {dimension_numbers = #tpu.dot_dimension_numbers<[1], [0], [0], [1], [0, 0, 1, 1], [], []>} : vector<8x24xf32>, vector<24x128xf32>, vector<8x128xf32> -> vector<8x128xf32>
    %c0_270 = arith.constant 0 : index
    %c0_271 = arith.constant 0 : index
    %1494 = vector.load %arg12[%c0_270, %c0_271] : memref<1x128xf32, #tpu.memory_space<vmem>>, vector<1x128xf32>
    %1495 = vector.broadcast %1494 : vector<1x128xf32> to vector<8x128xf32>
    %1496 = arith.addf %1493, %1495 : vector<8x128xf32>
    %c0_272 = arith.constant 0 : index
    %c0_273 = arith.constant 0 : index
    %1497 = vector.load %arg13[%c0_272, %c0_273] : memref<8x128xf32, #tpu.memory_space<vmem>>, vector<8x128xf32>
    tpu.vector_store %arg13[%c0_272, %c0_273], %1496 {strides = array<i32>} : memref<8x128xf32, #tpu.memory_space<vmem>>, vector<8x128xf32>,
    return
  }
  func.func @transform_0(%arg0: i32) -> (i32, i32) {
    %c0_i32 = arith.constant 0 : i32
    %c0_i32_0 = arith.constant 0 : i32
    return %arg0, %c0_i32 : i32, i32
  }
  func.func @transform_1(%arg0: i32) -> (i32, i32, i32) {
    %c0_i32 = arith.constant 0 : i32
    %c0_i32_0 = arith.constant 0 : i32
    %c0_i32_1 = arith.constant 0 : i32
    %c0_i32_2 = arith.constant 0 : i32
    return %c0_i32, %c0_i32_0, %c0_i32_1 : i32, i32, i32
  }
  func.func @transform_2(%arg0: i32) -> (i32, i32, i32) {
    %c0_i32 = arith.constant 0 : i32
    %c0_i32_0 = arith.constant 0 : i32
    %c0_i32_1 = arith.constant 0 : i32
    %c0_i32_2 = arith.constant 0 : i32
    return %c0_i32, %c0_i32_0, %c0_i32_1 : i32, i32, i32
  }
  func.func @transform_3(%arg0: i32) -> (i32, i32, i32, i32) {
    %c0_i32 = arith.constant 0 : i32
    %c0_i32_0 = arith.constant 0 : i32
    %c0_i32_1 = arith.constant 0 : i32
    %c0_i32_2 = arith.constant 0 : i32
    %c0_i32_3 = arith.constant 0 : i32
    return %c0_i32, %c0_i32_0, %c0_i32_1, %c0_i32_2 : i32, i32, i32, i32
  }
  func.func @transform_4(%arg0: i32) -> (i32, i32, i32) {
    %c0_i32 = arith.constant 0 : i32
    %c0_i32_0 = arith.constant 0 : i32
    %c0_i32_1 = arith.constant 0 : i32
    return %c0_i32, %arg0, %c0_i32_0 : i32, i32, i32
  }
  func.func @transform_5(%arg0: i32) -> (i32, i32, i32) {
    %c0_i32 = arith.constant 0 : i32
    %c0_i32_0 = arith.constant 0 : i32
    %c0_i32_1 = arith.constant 0 : i32
    return %c0_i32, %arg0, %c0_i32_0 : i32, i32, i32
  }
  func.func @transform_6(%arg0: i32) -> (i32, i32) {
    %c0_i32 = arith.constant 0 : i32
    %c0_i32_0 = arith.constant 0 : i32
    %c0_i32_1 = arith.constant 0 : i32
    return %c0_i32, %c0_i32_0 : i32, i32
  }
  func.func @transform_7(%arg0: i32) -> (i32, i32) {
    %c0_i32 = arith.constant 0 : i32
    %c0_i32_0 = arith.constant 0 : i32
    %c0_i32_1 = arith.constant 0 : i32
    return %c0_i32, %c0_i32_0 : i32, i32
  }
  func.func @transform_8(%arg0: i32) -> (i32, i32) {
    %c0_i32 = arith.constant 0 : i32
    %c0_i32_0 = arith.constant 0 : i32
    %c0_i32_1 = arith.constant 0 : i32
    return %c0_i32, %c0_i32_0 : i32, i32
  }
  func.func @transform_9(%arg0: i32) -> (i32, i32) {
    %c0_i32 = arith.constant 0 : i32
    %c0_i32_0 = arith.constant 0 : i32
    %c0_i32_1 = arith.constant 0 : i32
    return %c0_i32, %c0_i32_0 : i32, i32
  }
  func.func @transform_10(%arg0: i32) -> (i32, i32) {
    %c0_i32 = arith.constant 0 : i32
    %c0_i32_0 = arith.constant 0 : i32
    %c0_i32_1 = arith.constant 0 : i32
    return %c0_i32, %c0_i32_0 : i32, i32
  }
  func.func @transform_11(%arg0: i32) -> (i32, i32) {
    %c0_i32 = arith.constant 0 : i32
    %c0_i32_0 = arith.constant 0 : i32
    %c0_i32_1 = arith.constant 0 : i32
    return %c0_i32, %c0_i32_0 : i32, i32
  }
  func.func @transform_12(%arg0: i32) -> (i32, i32) {
    %c0_i32 = arith.constant 0 : i32
    %c0_i32_0 = arith.constant 0 : i32
    return %arg0, %c0_i32 : i32, i32
  }
}

</mosaic_0001>

<llo_original>
// kernel: tpu_custom_call.1
$region0: #{tpu_custom_call.1}
  #allocation0 [shape = 'u32[]', space=smem, size = 0x4, offset = 0x4, fixed_abs, tag = 'smem constant byte address 0x4 - core index']
  #allocation1 [shape = 'u32[144,128]{1,0:T(1,128)}', space=vmem, size = 0x12000, scoped, tag = 'internal scratch']
  %s0 = inlined_call_operand.hbm [shape: f32[8,20], index: 0, kind: input, shape index: {}]
  %s1 = inlined_call_operand.hbm [shape: f32[4,4,16], index: 1, kind: input, shape index: {}]
  %s2 = inlined_call_operand.hbm [shape: f32[4,4,16], index: 2, kind: input, shape index: {}]
  %s3 = inlined_call_operand.hbm [shape: f32[4,4,16,16], index: 3, kind: input, shape index: {}]
  %s4 = inlined_call_operand.vmem [shape: f32[4,8,16], index: 4, kind: input, shape index: {}]
  %s5 = inlined_call_operand.vmem [shape: f32[4,8,16], index: 5, kind: input, shape index: {}]
  %s6 = inlined_call_operand.vmem [shape: f32[68,24], index: 6, kind: input, shape index: {}]
  %s7 = inlined_call_operand.vmem [shape: f32[1,24], index: 7, kind: input, shape index: {}]
  %s8 = inlined_call_operand.vmem [shape: f32[24,24], index: 8, kind: input, shape index: {}]
  %s9 = inlined_call_operand.vmem [shape: f32[1,24], index: 9, kind: input, shape index: {}]
  %s10 = inlined_call_operand.vmem [shape: f32[24,128], index: 10, kind: input, shape index: {}]
  %s11 = inlined_call_operand.vmem [shape: f32[1,128], index: 11, kind: input, shape index: {}]
  %s12 = inlined_call_operand.hbm [shape: f32[8,128], index: 12, kind: output, shape index: {}]
  %s13 = sld [smem:[#allocation0]]
  $region74: #{tpu_custom_call.1} parent=0
    _
  %s15 = ssub.s32 1, %s13
  %s16 = scalar_select 0, %s15, %s13
  $region1: #{tpu_custom_call.1} parent=0
    #allocation2 [shape = 'u8[4096]{0}', space=vmem, size = 0x1000, scoped, tag = 'input window, operand 0, single buffered']
    #allocation3 [shape = 's32[1]{0}', space=sflag, size = 0x4, scoped, tag = 'scoped memory for tpu_custom_call.1']
    #allocation4 [shape = 's32[1]{0}', space=sflag, size = 0x4, scoped, tag = 'scoped memory for tpu_custom_call.1']
    #allocation5 [shape = 'u8[8192]{0}', space=vmem, size = 0x2000, scoped, tag = 'input window, operand 1, single buffered']
    #allocation6 [shape = 's32[1]{0}', space=sflag, size = 0x4, scoped, tag = 'scoped memory for tpu_custom_call.1']
    #allocation7 [shape = 'u8[8192]{0}', space=vmem, size = 0x2000, scoped, tag = 'input window, operand 2, single buffered']
    #allocation8 [shape = 'u8[131072]{0}', space=vmem, size = 0x20000, scoped, tag = 'input window, operand 3, single buffered']
    #allocation9 [shape = 's32[1]{0}', space=sflag, size = 0x4, scoped, tag = 'scoped memory for tpu_custom_call.1']
    #allocation10 [shape = 'u8[4096]{0}', space=vmem, size = 0x1000, scoped, tag = 'output window, operand 0, single buffered']
    %17 = vsyncpa [#allocation3], 0
    %18 = vsyncpa [#allocation6], 0
    %19 = vsyncpa [#allocation9], 0
    %20 = vsyncpa [#allocation4], 0
    // Predicated region
    $region2: #{tpu_custom_call.1} parent=1 // pred_check
      _
    $region3: #{tpu_custom_call.1} parent=1 // pred_check_branch
      %22 = sbr.rel (0) target = $region5
    $region4: #{tpu_custom_call.1} parent=1 // pred_region
      %s24 = ssub.s32 128, 128
      %25 = vsyncadd [#allocation3], %s24
      %s27 = sshll.u32 [#allocation2], 4
      %s28 = int_to_ptr.vmem [resolvable:$true] %s27
      %30 = dma.hbm_to_vmem [thread:$0]  %s0, 128, %s28, [#allocation3]
    $region5: #{tpu_custom_call.1} parent=1 // pred_fallthru
      _
    // Predicated region
    $region6: #{tpu_custom_call.1} parent=1 // pred_check
      _
    $region7: #{tpu_custom_call.1} parent=1 // pred_check_branch
      %32 = sbr.rel (0) target = $region9
    $region8: #{tpu_custom_call.1} parent=1 // pred_region
      %s34 = ssub.s32 256, 256
      %35 = vsyncadd [#allocation6], %s34
      %s36 = sshll.u32 [#allocation5], 4
      %s37 = int_to_ptr.vmem [resolvable:$true] %s36
      %42 = dma.hbm_to_vmem [thread:$0]  %s1, 256, %s37, [#allocation6], 64, 64, 4
    $region9: #{tpu_custom_call.1} parent=1 // pred_fallthru
      _
    // Predicated region
    $region10: #{tpu_custom_call.1} parent=1 // pred_check
      _
    $region11: #{tpu_custom_call.1} parent=1 // pred_check_branch
      %44 = sbr.rel (0) target = $region13
    $region12: #{tpu_custom_call.1} parent=1 // pred_region
      %s46 = ssub.s32 256, 256
      %47 = vsyncadd [#allocation6], %s46
      %s48 = sshll.u32 [#allocation7], 4
      %s49 = int_to_ptr.vmem [resolvable:$true] %s48
      %54 = dma.hbm_to_vmem [thread:$0]  %s2, 256, %s49, [#allocation6], 64, 64, 4
    $region13: #{tpu_custom_call.1} parent=1 // pred_fallthru
      _
    // Predicated region
    $region14: #{tpu_custom_call.1} parent=1 // pred_check
      _
    $region15: #{tpu_custom_call.1} parent=1 // pred_check_branch
      %56 = sbr.rel (0) target = $region17
    $region16: #{tpu_custom_call.1} parent=1 // pred_region
      %s58 = ssub.s32 4096, 4096
      %59 = vsyncadd [#allocation9], %s58
      %s60 = sshll.u32 [#allocation8], 4
      %s61 = int_to_ptr.vmem [resolvable:$true] %s60
      %66 = dma.hbm_to_vmem [thread:$0]  %s3, 4096, %s61, [#allocation9], 128, 128, 8
    $region17: #{tpu_custom_call.1} parent=1 // pred_fallthru
      _
    // Predicated region
    $region18: #{tpu_custom_call.1} parent=1 // pred_check
      _
    $region19: #{tpu_custom_call.1} parent=1 // pred_check_branch
      %68 = sbr.rel (0) target = $region21
    $region20: #{tpu_custom_call.1} parent=1 // pred_region
      _
    $region21: #{tpu_custom_call.1} parent=1 // pred_fallthru
      _
    // Predicated region
    $region22: #{tpu_custom_call.1} parent=1 // pred_check
      _
    $region23: #{tpu_custom_call.1} parent=1 // pred_check_branch
      %70 = sbr.rel (0) target = $region25
    $region24: #{tpu_custom_call.1} parent=1 // pred_region
      _
    $region25: #{tpu_custom_call.1} parent=1 // pred_fallthru
      _
    // Predicated region
    $region26: #{tpu_custom_call.1} parent=1 // pred_check
      _
    $region27: #{tpu_custom_call.1} parent=1 // pred_check_branch
      %72 = sbr.rel (0) target = $region29
    $region28: #{tpu_custom_call.1} parent=1 // pred_region
      _
    $region29: #{tpu_custom_call.1} parent=1 // pred_fallthru
      _
    // Predicated region
    $region30: #{tpu_custom_call.1} parent=1 // pred_check
      _
    $region31: #{tpu_custom_call.1} parent=1 // pred_check_branch
      %74 = sbr.rel (0) target = $region33
    $region32: #{tpu_custom_call.1} parent=1 // pred_region
      _
    $region33: #{tpu_custom_call.1} parent=1 // pred_fallthru
      _
    // Predicated region
    $region34: #{tpu_custom_call.1} parent=1 // pred_check
      _
    $region35: #{tpu_custom_call.1} parent=1 // pred_check_branch
      %76 = sbr.rel (0) target = $region37
    $region36: #{tpu_custom_call.1} parent=1 // pred_region
      _
    $region37: #{tpu_custom_call.1} parent=1 // pred_fallthru
      _
    // Predicated region
    $region38: #{tpu_custom_call.1} parent=1 // pred_check
      _
    $region39: #{tpu_custom_call.1} parent=1 // pred_check_branch
      %78 = sbr.rel (0) target = $region41
    $region40: #{tpu_custom_call.1} parent=1 // pred_region
      _
    $region41: #{tpu_custom_call.1} parent=1 // pred_fallthru
      _
    // Predicated region
    $region42: #{tpu_custom_call.1} parent=1 // pred_check
      _
    $region43: #{tpu_custom_call.1} parent=1 // pred_check_branch
      %80 = sbr.rel (0) target = $region45
    $region44: #{tpu_custom_call.1} parent=1 // pred_region
      _
    $region45: #{tpu_custom_call.1} parent=1 // pred_fallthru
      _
    // Predicated region
    $region46: #{tpu_custom_call.1} parent=1 // pred_check
      _
    $region47: #{tpu_custom_call.1} parent=1 // pred_check_branch
      %82 = sbr.rel (0) target = $region49
    $region48: #{tpu_custom_call.1} parent=1 // pred_region
      _
    $region49: #{tpu_custom_call.1} parent=1 // pred_fallthru
      _
    // Predicated region
    $region50: #{tpu_custom_call.1} parent=1 // pred_check
      _
    $region51: #{tpu_custom_call.1} parent=1 // pred_check_branch
      %84 = sbr.rel (0) target = $region53
    $region52: #{tpu_custom_call.1} parent=1 // pred_region
      %85 = dma.done [#allocation3], 128
    $region53: #{tpu_custom_call.1} parent=1 // pred_fallthru
      _
    // Predicated region
    $region54: #{tpu_custom_call.1} parent=1 // pred_check
      _
    $region55: #{tpu_custom_call.1} parent=1 // pred_check_branch
      %87 = sbr.rel (0) target = $region57
    $region56: #{tpu_custom_call.1} parent=1 // pred_region
      %88 = dma.done [#allocation6], 256
    $region57: #{tpu_custom_call.1} parent=1 // pred_fallthru
      _
    // Predicated region
    $region58: #{tpu_custom_call.1} parent=1 // pred_check
      _
    $region59: #{tpu_custom_call.1} parent=1 // pred_check_branch
      %90 = sbr.rel (0) target = $region61
    $region60: #{tpu_custom_call.1} parent=1 // pred_region
      %91 = dma.done [#allocation6], 256
    $region61: #{tpu_custom_call.1} parent=1 // pred_fallthru
      _
    // Predicated region
    $region62: #{tpu_custom_call.1} parent=1 // pred_check
      _
    $region63: #{tpu_custom_call.1} parent=1 // pred_check_branch
      %93 = sbr.rel (0) target = $region65
    $region64: #{tpu_custom_call.1} parent=1 // pred_region
      %94 = dma.done [#allocation9], 4096
    $region65: #{tpu_custom_call.1} parent=1 // pred_fallthru
      _
    %v95 = vld [vmem:[#allocation2] sm:$0xff]
    %v96 = vld [vmem:[#allocation5] sm:$0xf]
    %v97 = vld [vmem:[#allocation5 + $0x4] sm:$0xf]
    %v98 = vld [vmem:[#allocation5 + $0x8] sm:$0xf]
    %v99 = vld [vmem:[#allocation5 + $0xc] sm:$0xf]
    %v100 = vld [vmem:[#allocation7] sm:$0xf]
    %v101 = vld [vmem:[#allocation7 + $0x4] sm:$0xf]
    %v102 = vld [vmem:[#allocation7 + $0x8] sm:$0xf]
    %v103 = vld [vmem:[#allocation7 + $0xc] sm:$0xf]
    %v104 = vld [vmem:[#allocation8] sm:$0xff]
    %v105 = vld [vmem:[#allocation8 + $0x8] sm:$0xff]
    %v106 = vld [vmem:[#allocation8 + $0x10] sm:$0xff]
    %v107 = vld [vmem:[#allocation8 + $0x18] sm:$0xff]
    %v108 = vld [vmem:[#allocation8 + $0x20] sm:$0xff]
    %v109 = vld [vmem:[#allocation8 + $0x28] sm:$0xff]
    %v110 = vld [vmem:[#allocation8 + $0x30] sm:$0xff]
    %v111 = vld [vmem:[#allocation8 + $0x38] sm:$0xff]
    %v112 = vld [vmem:[#allocation8 + $0x40] sm:$0xff]
    %v113 = vld [vmem:[#allocation8 + $0x48] sm:$0xff]
    %v114 = vld [vmem:[#allocation8 + $0x50] sm:$0xff]
    %v115 = vld [vmem:[#allocation8 + $0x58] sm:$0xff]
    %v116 = vld [vmem:[#allocation8 + $0x60] sm:$0xff]
    %v117 = vld [vmem:[#allocation8 + $0x68] sm:$0xff]
    %v118 = vld [vmem:[#allocation8 + $0x70] sm:$0xff]
    %v119 = vld [vmem:[#allocation8 + $0x78] sm:$0xff]
    %v120 = vld [vmem:[#allocation8 + $0x80] sm:$0xff]
    %v121 = vld [vmem:[#allocation8 + $0x88] sm:$0xff]
    %v122 = vld [vmem:[#allocation8 + $0x90] sm:$0xff]
    %v123 = vld [vmem:[#allocation8 + $0x98] sm:$0xff]
    %v124 = vld [vmem:[#allocation8 + $0xa0] sm:$0xff]
    %v125 = vld [vmem:[#allocation8 + $0xa8] sm:$0xff]
    %v126 = vld [vmem:[#allocation8 + $0xb0] sm:$0xff]
    %v127 = vld [vmem:[#allocation8 + $0xb8] sm:$0xff]
    %v128 = vld [vmem:[#allocation8 + $0xc0] sm:$0xff]
    %v129 = vld [vmem:[#allocation8 + $0xc8] sm:$0xff]
    %v130 = vld [vmem:[#allocation8 + $0xd0] sm:$0xff]
    %v131 = vld [vmem:[#allocation8 + $0xd8] sm:$0xff]
    %v132 = vld [vmem:[#allocation8 + $0xe0] sm:$0xff]
    %v133 = vld [vmem:[#allocation8 + $0xe8] sm:$0xff]
    %v134 = vld [vmem:[#allocation8 + $0xf0] sm:$0xff]
    %v135 = vld [vmem:[#allocation8 + $0xf8] sm:$0xff]
    %v136 = vld [vmem:[%s4] sm:$0xff]
    %v137 = vld [vmem:[%s4 + $0x8] sm:$0xff]
    %v138 = vld [vmem:[%s4 + $0x10] sm:$0xff]
    %v139 = vld [vmem:[%s4 + $0x18] sm:$0xff]
    %v140 = vld [vmem:[%s5] sm:$0xff]
    %v141 = vld [vmem:[%s5 + $0x8] sm:$0xff]
    %v142 = vld [vmem:[%s5 + $0x10] sm:$0xff]
    %v143 = vld [vmem:[%s5 + $0x18] sm:$0xff]
    %145 = vset.pattern.permute.xlu0 0
    %146 = vperm.xlu0 %145, %v95
    %v147 = vpop.permute.xlu0 %146
    %v149 = vlaneseq
    %v150 = vshrl.u32 %v149, 7
    %v151 = vsub.s32 0, %v150
    %v152 = vrot.slane %v96, %v151
    %v153 = vmul.f32 %v147, %v152
    %vm154 = vcmask 130048
    %v156 = vsel %vm154, %v136, 0
    %158 = vmatprep.subr.mxu0 0.0
    %159 = vmatpush1.msra.mxu0 %v104
    %160 = vmatprep.subr.mxu0 0.0
    %161 = vmatpush1.msra.mxu0 %v105
    %162 = vmatprep.subr.mxu0 0.0
    %163 = vmatpush1.msra.mxu0 0.0
    %164 = vmatprep.subr.mxu0 0.0
    %165 = vmatpush1.msra.mxu0 0.0
    %166 = vmatprep.subr.mxu0 0.0
    %167 = vmatpush1.msra.mxu0 0.0
    %168 = vmatprep.subr.mxu0 0.0
    %169 = vmatpush1.msra.mxu0 0.0
    %170 = vmatprep.subr.mxu0 0.0
    %171 = vmatpush1.msra.mxu0 0.0
    %172 = vmatprep.subr.mxu0 0.0
    %173 = vmatpush1.msra.mxu0 0.0
    %174 = vmatprep.subr.mxu0 0.0
    %175 = vmatpush1.msra.mxu0 0.0
    %176 = vmatprep.subr.mxu0 0.0
    %177 = vmatpush1.msra.mxu0 0.0
    %178 = vmatprep.subr.mxu0 0.0
    %179 = vmatpush1.msra.mxu0 0.0
    %180 = vmatprep.subr.mxu0 0.0
    %181 = vmatpush1.msra.mxu0 0.0
    %182 = vmatprep.subr.mxu0 0.0
    %183 = vmatpush1.msra.mxu0 0.0
    %184 = vmatprep.subr.mxu0 0.0
    %185 = vmatpush1.msra.mxu0 0.0
    %186 = vmatprep.subr.mxu0 0.0
    %187 = vmatpush1.msra.mxu0 0.0
    %188 = vmatprep.subr.mxu0 0.0
    %189 = vmatpush1.msra.mxu0 0.0
    %190 = vmatprep.subr.mxu0 0.0
    %191 = vmatpush1.msra.mxu0 0.0
    %192 = vmatprep.subr.mxu0 0.0
    %193 = vmatpush1.msra.mxu0 0.0
    %194 = vmatprep.subr.mxu0 0.0
    %195 = vmatpush1.msra.mxu0 0.0
    %196 = vmatprep.subr.mxu0 0.0
    %197 = vmatpush1.msra.mxu0 0.0
    %198 = vmatprep.subr.mxu0 0.0
    %199 = vmatpush1.msra.mxu0 0.0
    %200 = vmatprep.subr.mxu0 0.0
    %201 = vmatpush1.msra.mxu0 0.0
    %202 = vmatprep.subr.mxu0 0.0
    %203 = vmatpush1.msra.mxu0 0.0
    %204 = vmatprep.subr.mxu0 0.0
    %205 = vmatpush1.msra.mxu0 0.0
    %206 = vmatprep.subr.mxu0 0.0
    %207 = vmatpush1.msra.mxu0 0.0
    %208 = vmatprep.subr.mxu0 0.0
    %209 = vmatpush1.msra.mxu0 0.0
    %210 = vmatprep.subr.mxu0 0.0
    %211 = vmatpush1.msra.mxu0 0.0
    %212 = vmatprep.subr.mxu0 0.0
    %213 = vmatpush1.msra.mxu0 0.0
    %214 = vmatprep.subr.mxu0 0.0
    %215 = vmatpush1.msra.mxu0 0.0
    %216 = vmatprep.subr.mxu0 0.0
    %217 = vmatpush1.msra.mxu0 0.0
    %218 = vmatprep.subr.mxu0 0.0
    %219 = vmatpush1.msra.mxu0 0.0
    %220 = vmatprep.subr.mxu0 0.0
    %221 = vmatpush1.msra.mxu0 0.0
    %222 = vmatprep.mubr.f32.mxu0 0.0
    %223 = vmatmul.mubr.f32.gmra.mrb[0].mxu0 %v156
    %v224 = vpop.f32.mrb[0].mxu0
    %v225 = vadd.f32 0.0, %v224
    %v226 = vpop.f32.mrb[0].mxu0
    %227 = vdwg.mxu0
    %v228 = vadd.f32 %v153, %v225
    %v229 = vlaneseq
    %v230 = vshrl.u32 %v229, 7
    %v231 = vsub.s32 0, %v230
    %v232 = vrot.slane %v100, %v231
    %v233 = vadd.f32 %v228, %v232
    %v234 = vsub.f32 0.0, %v233
    %v235 = vmul.f32 %v234, 1.442695
    %v236 = vpow.pop %v235
    %v237 = vadd.f32 %v236, 1.0
    %v238 = vrcp.pop %v237
    %v239 = vmul.f32 1.0, %v238
    %v240 = vlaneseq
    %v241 = vshrl.u32 %v240, 7
    %v242 = vsub.s32 1, %v241
    %v243 = vrot.slane %v96, %v242
    %v244 = vmul.f32 %v147, %v243
    %245 = vmatprep.subr.mxu0 0.0
    %246 = vmatpush1.msra.mxu0 %v106
    %247 = vmatprep.subr.mxu0 0.0
    %248 = vmatpush1.msra.mxu0 %v107
    %249 = vmatprep.subr.mxu0 0.0
    %250 = vmatpush1.msra.mxu0 0.0
    %251 = vmatprep.subr.mxu0 0.0
    %252 = vmatpush1.msra.mxu0 0.0
    %253 = vmatprep.subr.mxu0 0.0
    %254 = vmatpush1.msra.mxu0 0.0
    %255 = vmatprep.subr.mxu0 0.0
    %256 = vmatpush1.msra.mxu0 0.0
    %257 = vmatprep.subr.mxu0 0.0
    %258 = vmatpush1.msra.mxu0 0.0
    %259 = vmatprep.subr.mxu0 0.0
    %260 = vmatpush1.msra.mxu0 0.0
    %261 = vmatprep.subr.mxu0 0.0
    %262 = vmatpush1.msra.mxu0 0.0
    %263 = vmatprep.subr.mxu0 0.0
    %264 = vmatpush1.msra.mxu0 0.0
    %265 = vmatprep.subr.mxu0 0.0
    %266 = vmatpush1.msra.mxu0 0.0
    %267 = vmatprep.subr.mxu0 0.0
    %268 = vmatpush1.msra.mxu0 0.0
    %269 = vmatprep.subr.mxu0 0.0
    %270 = vmatpush1.msra.mxu0 0.0
    %271 = vmatprep.subr.mxu0 0.0
    %272 = vmatpush1.msra.mxu0 0.0
    %273 = vmatprep.subr.mxu0 0.0
    %274 = vmatpush1.msra.mxu0 0.0
    %275 = vmatprep.subr.mxu0 0.0
    %276 = vmatpush1.msra.mxu0 0.0
    %277 = vmatprep.subr.mxu0 0.0
    %278 = vmatpush1.msra.mxu0 0.0
    %279 = vmatprep.subr.mxu0 0.0
    %280 = vmatpush1.msra.mxu0 0.0
    %281 = vmatprep.subr.mxu0 0.0
    %282 = vmatpush1.msra.mxu0 0.0
    %283 = vmatprep.subr.mxu0 0.0
    %284 = vmatpush1.msra.mxu0 0.0
    %285 = vmatprep.subr.mxu0 0.0
    %286 = vmatpush1.msra.mxu0 0.0
    %287 = vmatprep.subr.mxu0 0.0
    %288 = vmatpush1.msra.mxu0 0.0
    %289 = vmatprep.subr.mxu0 0.0
    %290 = vmatpush1.msra.mxu0 0.0
    %291 = vmatprep.subr.mxu0 0.0
    %292 = vmatpush1.msra.mxu0 0.0
    %293 = vmatprep.subr.mxu0 0.0
    %294 = vmatpush1.msra.mxu0 0.0
    %295 = vmatprep.subr.mxu0 0.0
    %296 = vmatpush1.msra.mxu0 0.0
    %297 = vmatprep.subr.mxu0 0.0
    %298 = vmatpush1.msra.mxu0 0.0
    %299 = vmatprep.subr.mxu0 0.0
    %300 = vmatpush1.msra.mxu0 0.0
    %301 = vmatprep.subr.mxu0 0.0
    %302 = vmatpush1.msra.mxu0 0.0
    %303 = vmatprep.subr.mxu0 0.0
    %304 = vmatpush1.msra.mxu0 0.0
    %305 = vmatprep.subr.mxu0 0.0
    %306 = vmatpush1.msra.mxu0 0.0
    %307 = vmatprep.subr.mxu0 0.0
    %308 = vmatpush1.msra.mxu0 0.0
    %309 = vmatprep.mubr.f32.mxu0 0.0
    %310 = vmatmul.mubr.f32.gmra.mrb[0].mxu0 %v156
    %v311 = vpop.f32.mrb[0].mxu0
    %v312 = vadd.f32 0.0, %v311
    %v313 = vpop.f32.mrb[0].mxu0
    %314 = vdwg.mxu0
    %v315 = vadd.f32 %v244, %v312
    %v316 = vlaneseq
    %v317 = vshrl.u32 %v316, 7
    %v318 = vsub.s32 1, %v317
    %v319 = vrot.slane %v100, %v318
    %v320 = vadd.f32 %v315, %v319
    %v321 = vsub.f32 0.0, %v320
    %v322 = vmul.f32 %v321, 1.442695
    %v323 = vpow.pop %v322
    %v324 = vadd.f32 %v323, 1.0
    %v325 = vrcp.pop %v324
    %v326 = vmul.f32 1.0, %v325
    %v327 = vlaneseq
    %v328 = vshrl.u32 %v327, 7
    %v329 = vsub.s32 2, %v328
    %v330 = vrot.slane %v96, %v329
    %v331 = vmul.f32 %v147, %v330
    %332 = vmatprep.subr.mxu0 0.0
    %333 = vmatpush1.msra.mxu0 %v108
    %334 = vmatprep.subr.mxu0 0.0
    %335 = vmatpush1.msra.mxu0 %v109
    %336 = vmatprep.subr.mxu0 0.0
    %337 = vmatpush1.msra.mxu0 0.0
    %338 = vmatprep.subr.mxu0 0.0
    %339 = vmatpush1.msra.mxu0 0.0
    %340 = vmatprep.subr.mxu0 0.0
    %341 = vmatpush1.msra.mxu0 0.0
    %342 = vmatprep.subr.mxu0 0.0
    %343 = vmatpush1.msra.mxu0 0.0
    %344 = vmatprep.subr.mxu0 0.0
    %345 = vmatpush1.msra.mxu0 0.0
    %346 = vmatprep.subr.mxu0 0.0
    %347 = vmatpush1.msra.mxu0 0.0
    %348 = vmatprep.subr.mxu0 0.0
    %349 = vmatpush1.msra.mxu0 0.0
    %350 = vmatprep.subr.mxu0 0.0
    %351 = vmatpush1.msra.mxu0 0.0
    %352 = vmatprep.subr.mxu0 0.0
    %353 = vmatpush1.msra.mxu0 0.0
    %354 = vmatprep.subr.mxu0 0.0
    %355 = vmatpush1.msra.mxu0 0.0
    %356 = vmatprep.subr.mxu0 0.0
    %357 = vmatpush1.msra.mxu0 0.0
    %358 = vmatprep.subr.mxu0 0.0
    %359 = vmatpush1.msra.mxu0 0.0
    %360 = vmatprep.subr.mxu0 0.0
    %361 = vmatpush1.msra.mxu0 0.0
    %362 = vmatprep.subr.mxu0 0.0
    %363 = vmatpush1.msra.mxu0 0.0
    %364 = vmatprep.subr.mxu0 0.0
    %365 = vmatpush1.msra.mxu0 0.0
    %366 = vmatprep.subr.mxu0 0.0
    %367 = vmatpush1.msra.mxu0 0.0
    %368 = vmatprep.subr.mxu0 0.0
    %369 = vmatpush1.msra.mxu0 0.0
    %370 = vmatprep.subr.mxu0 0.0
    %371 = vmatpush1.msra.mxu0 0.0
    %372 = vmatprep.subr.mxu0 0.0
    %373 = vmatpush1.msra.mxu0 0.0
    %374 = vmatprep.subr.mxu0 0.0
    %375 = vmatpush1.msra.mxu0 0.0
    %376 = vmatprep.subr.mxu0 0.0
    %377 = vmatpush1.msra.mxu0 0.0
    %378 = vmatprep.subr.mxu0 0.0
    %379 = vmatpush1.msra.mxu0 0.0
    %380 = vmatprep.subr.mxu0 0.0
    %381 = vmatpush1.msra.mxu0 0.0
    %382 = vmatprep.subr.mxu0 0.0
    %383 = vmatpush1.msra.mxu0 0.0
    %384 = vmatprep.subr.mxu0 0.0
    %385 = vmatpush1.msra.mxu0 0.0
    %386 = vmatprep.subr.mxu0 0.0
    %387 = vmatpush1.msra.mxu0 0.0
    %388 = vmatprep.subr.mxu0 0.0
    %389 = vmatpush1.msra.mxu0 0.0
    %390 = vmatprep.subr.mxu0 0.0
    %391 = vmatpush1.msra.mxu0 0.0
    %392 = vmatprep.subr.mxu0 0.0
    %393 = vmatpush1.msra.mxu0 0.0
    %394 = vmatprep.subr.mxu0 0.0
    %395 = vmatpush1.msra.mxu0 0.0
    %396 = vmatprep.mubr.f32.mxu0 0.0
    %397 = vmatmul.mubr.f32.gmra.mrb[0].mxu0 %v156
    %v398 = vpop.f32.mrb[0].mxu0
    %v399 = vadd.f32 0.0, %v398
    %v400 = vpop.f32.mrb[0].mxu0
    %401 = vdwg.mxu0
    %v402 = vadd.f32 %v331, %v399
    %v403 = vlaneseq
    %v404 = vshrl.u32 %v403, 7
    %v405 = vsub.s32 2, %v404
    %v406 = vrot.slane %v100, %v405
    %v407 = vadd.f32 %v402, %v406
    %v408 = vtanh.pop %v407
    %v409 = vlaneseq
    %v410 = vshrl.u32 %v409, 7
    %v411 = vsub.s32 3, %v410
    %v412 = vrot.slane %v96, %v411
    %v413 = vmul.f32 %v147, %v412
    %414 = vmatprep.subr.mxu0 0.0
    %415 = vmatpush1.msra.mxu0 %v110
    %416 = vmatprep.subr.mxu0 0.0
    %417 = vmatpush1.msra.mxu0 %v111
    %418 = vmatprep.subr.mxu0 0.0
    %419 = vmatpush1.msra.mxu0 0.0
    %420 = vmatprep.subr.mxu0 0.0
    %421 = vmatpush1.msra.mxu0 0.0
    %422 = vmatprep.subr.mxu0 0.0
    %423 = vmatpush1.msra.mxu0 0.0
    %424 = vmatprep.subr.mxu0 0.0
    %425 = vmatpush1.msra.mxu0 0.0
    %426 = vmatprep.subr.mxu0 0.0
    %427 = vmatpush1.msra.mxu0 0.0
    %428 = vmatprep.subr.mxu0 0.0
    %429 = vmatpush1.msra.mxu0 0.0
    %430 = vmatprep.subr.mxu0 0.0
    %431 = vmatpush1.msra.mxu0 0.0
    %432 = vmatprep.subr.mxu0 0.0
    %433 = vmatpush1.msra.mxu0 0.0
    %434 = vmatprep.subr.mxu0 0.0
    %435 = vmatpush1.msra.mxu0 0.0
    %436 = vmatprep.subr.mxu0 0.0
    %437 = vmatpush1.msra.mxu0 0.0
    %438 = vmatprep.subr.mxu0 0.0
    %439 = vmatpush1.msra.mxu0 0.0
    %440 = vmatprep.subr.mxu0 0.0
    %441 = vmatpush1.msra.mxu0 0.0
    %442 = vmatprep.subr.mxu0 0.0
    %443 = vmatpush1.msra.mxu0 0.0
    %444 = vmatprep.subr.mxu0 0.0
    %445 = vmatpush1.msra.mxu0 0.0
    %446 = vmatprep.subr.mxu0 0.0
    %447 = vmatpush1.msra.mxu0 0.0
    %448 = vmatprep.subr.mxu0 0.0
    %449 = vmatpush1.msra.mxu0 0.0
    %450 = vmatprep.subr.mxu0 0.0
    %451 = vmatpush1.msra.mxu0 0.0
    %452 = vmatprep.subr.mxu0 0.0
    %453 = vmatpush1.msra.mxu0 0.0
    %454 = vmatprep.subr.mxu0 0.0
    %455 = vmatpush1.msra.mxu0 0.0
    %456 = vmatprep.subr.mxu0 0.0
    %457 = vmatpush1.msra.mxu0 0.0
    %458 = vmatprep.subr.mxu0 0.0
    %459 = vmatpush1.msra.mxu0 0.0
    %460 = vmatprep.subr.mxu0 0.0
    %461 = vmatpush1.msra.mxu0 0.0
    %462 = vmatprep.subr.mxu0 0.0
    %463 = vmatpush1.msra.mxu0 0.0
    %464 = vmatprep.subr.mxu0 0.0
    %465 = vmatpush1.msra.mxu0 0.0
    %466 = vmatprep.subr.mxu0 0.0
    %467 = vmatpush1.msra.mxu0 0.0
    %468 = vmatprep.subr.mxu0 0.0
    %469 = vmatpush1.msra.mxu0 0.0
    %470 = vmatprep.subr.mxu0 0.0
    %471 = vmatpush1.msra.mxu0 0.0
    %472 = vmatprep.subr.mxu0 0.0
    %473 = vmatpush1.msra.mxu0 0.0
    %474 = vmatprep.subr.mxu0 0.0
    %475 = vmatpush1.msra.mxu0 0.0
    %476 = vmatprep.subr.mxu0 0.0
    %477 = vmatpush1.msra.mxu0 0.0
    %478 = vmatprep.mubr.f32.mxu0 0.0
    %479 = vmatmul.mubr.f32.gmra.mrb[0].mxu0 %v156
    %v480 = vpop.f32.mrb[0].mxu0
    %v481 = vadd.f32 0.0, %v480
    %v482 = vpop.f32.mrb[0].mxu0
    %483 = vdwg.mxu0
    %v484 = vadd.f32 %v413, %v481
    %v485 = vlaneseq
    %v486 = vshrl.u32 %v485, 7
    %v487 = vsub.s32 3, %v486
    %v488 = vrot.slane %v100, %v487
    %v489 = vadd.f32 %v484, %v488
    %v490 = vsub.f32 0.0, %v489
    %v491 = vmul.f32 %v490, 1.442695
    %v492 = vpow.pop %v491
    %v493 = vadd.f32 %v492, 1.0
    %v494 = vrcp.pop %v493
    %v495 = vmul.f32 1.0, %v494
    %v496 = vmul.f32 %v326, %v140
    %v497 = vmul.f32 %v239, %v408
    %v498 = vadd.f32 %v496, %v497
    %v499 = vtanh.pop %v498
    %v500 = vmul.f32 %v495, %v499
    %501 = vset.pattern.permute.xlu0 1
    %502 = vperm.xlu0 %501, %v95
    %v503 = vpop.permute.xlu0 %502
    %v505 = vmul.f32 %v503, %v152
    %v507 = vsel %vm154, %v500, 0
    %509 = vmatprep.subr.mxu0 0.0
    %510 = vmatpush1.msra.mxu0 %v104
    %511 = vmatprep.subr.mxu0 0.0
    %512 = vmatpush1.msra.mxu0 %v105
    %513 = vmatprep.subr.mxu0 0.0
    %514 = vmatpush1.msra.mxu0 0.0
    %515 = vmatprep.subr.mxu0 0.0
    %516 = vmatpush1.msra.mxu0 0.0
    %517 = vmatprep.subr.mxu0 0.0
    %518 = vmatpush1.msra.mxu0 0.0
    %519 = vmatprep.subr.mxu0 0.0
    %520 = vmatpush1.msra.mxu0 0.0
    %521 = vmatprep.subr.mxu0 0.0
    %522 = vmatpush1.msra.mxu0 0.0
    %523 = vmatprep.subr.mxu0 0.0
    %524 = vmatpush1.msra.mxu0 0.0
    %525 = vmatprep.subr.mxu0 0.0
    %526 = vmatpush1.msra.mxu0 0.0
    %527 = vmatprep.subr.mxu0 0.0
    %528 = vmatpush1.msra.mxu0 0.0
    %529 = vmatprep.subr.mxu0 0.0
    %530 = vmatpush1.msra.mxu0 0.0
    %531 = vmatprep.subr.mxu0 0.0
    %532 = vmatpush1.msra.mxu0 0.0
    %533 = vmatprep.subr.mxu0 0.0
    %534 = vmatpush1.msra.mxu0 0.0
    %535 = vmatprep.subr.mxu0 0.0
    %536 = vmatpush1.msra.mxu0 0.0
    %537 = vmatprep.subr.mxu0 0.0
    %538 = vmatpush1.msra.mxu0 0.0
    %539 = vmatprep.subr.mxu0 0.0
    %540 = vmatpush1.msra.mxu0 0.0
    %541 = vmatprep.subr.mxu0 0.0
    %542 = vmatpush1.msra.mxu0 0.0
    %543 = vmatprep.subr.mxu0 0.0
    %544 = vmatpush1.msra.mxu0 0.0
    %545 = vmatprep.subr.mxu0 0.0
    %546 = vmatpush1.msra.mxu0 0.0
    %547 = vmatprep.subr.mxu0 0.0
    %548 = vmatpush1.msra.mxu0 0.0
    %549 = vmatprep.subr.mxu0 0.0
    %550 = vmatpush1.msra.mxu0 0.0
    %551 = vmatprep.subr.mxu0 0.0
    %552 = vmatpush1.msra.mxu0 0.0
    %553 = vmatprep.subr.mxu0 0.0
    %554 = vmatpush1.msra.mxu0 0.0
    %555 = vmatprep.subr.mxu0 0.0
    %556 = vmatpush1.msra.mxu0 0.0
    %557 = vmatprep.subr.mxu0 0.0
    %558 = vmatpush1.msra.mxu0 0.0
    %559 = vmatprep.subr.mxu0 0.0
    %560 = vmatpush1.msra.mxu0 0.0
    %561 = vmatprep.subr.mxu0 0.0
    %562 = vmatpush1.msra.mxu0 0.0
    %563 = vmatprep.subr.mxu0 0.0
    %564 = vmatpush1.msra.mxu0 0.0
    %565 = vmatprep.subr.mxu0 0.0
    %566 = vmatpush1.msra.mxu0 0.0
    %567 = vmatprep.subr.mxu0 0.0
    %568 = vmatpush1.msra.mxu0 0.0
    %569 = vmatprep.subr.mxu0 0.0
    %570 = vmatpush1.msra.mxu0 0.0
    %571 = vmatprep.subr.mxu0 0.0
    %572 = vmatpush1.msra.mxu0 0.0
    %573 = vmatprep.mubr.f32.mxu0 0.0
    %574 = vmatmul.mubr.f32.gmra.mrb[0].mxu0 %v507
    %v575 = vpop.f32.mrb[0].mxu0
    %v576 = vadd.f32 0.0, %v575
    %v577 = vpop.f32.mrb[0].mxu0
    %578 = vdwg.mxu0
    %v579 = vadd.f32 %v505, %v576
    %v580 = vadd.f32 %v579, %v232
    %v581 = vsub.f32 0.0, %v580
    %v582 = vmul.f32 %v581, 1.442695
    %v583 = vpow.pop %v582
    %v584 = vadd.f32 %v583, 1.0
    %v585 = vrcp.pop %v584
    %v586 = vmul.f32 1.0, %v585
    %v587 = vmul.f32 %v503, %v243
    %588 = vmatprep.subr.mxu0 0.0
    %589 = vmatpush1.msra.mxu0 %v106
    %590 = vmatprep.subr.mxu0 0.0
    %591 = vmatpush1.msra.mxu0 %v107
    %592 = vmatprep.subr.mxu0 0.0
    %593 = vmatpush1.msra.mxu0 0.0
    %594 = vmatprep.subr.mxu0 0.0
    %595 = vmatpush1.msra.mxu0 0.0
    %596 = vmatprep.subr.mxu0 0.0
    %597 = vmatpush1.msra.mxu0 0.0
    %598 = vmatprep.subr.mxu0 0.0
    %599 = vmatpush1.msra.mxu0 0.0
    %600 = vmatprep.subr.mxu0 0.0
    %601 = vmatpush1.msra.mxu0 0.0
    %602 = vmatprep.subr.mxu0 0.0
    %603 = vmatpush1.msra.mxu0 0.0
    %604 = vmatprep.subr.mxu0 0.0
    %605 = vmatpush1.msra.mxu0 0.0
    %606 = vmatprep.subr.mxu0 0.0
    %607 = vmatpush1.msra.mxu0 0.0
    %608 = vmatprep.subr.mxu0 0.0
    %609 = vmatpush1.msra.mxu0 0.0
    %610 = vmatprep.subr.mxu0 0.0
    %611 = vmatpush1.msra.mxu0 0.0
    %612 = vmatprep.subr.mxu0 0.0
    %613 = vmatpush1.msra.mxu0 0.0
    %614 = vmatprep.subr.mxu0 0.0
    %615 = vmatpush1.msra.mxu0 0.0
    %616 = vmatprep.subr.mxu0 0.0
    %617 = vmatpush1.msra.mxu0 0.0
    %618 = vmatprep.subr.mxu0 0.0
    %619 = vmatpush1.msra.mxu0 0.0
    %620 = vmatprep.subr.mxu0 0.0
    %621 = vmatpush1.msra.mxu0 0.0
    %622 = vmatprep.subr.mxu0 0.0
    %623 = vmatpush1.msra.mxu0 0.0
    %624 = vmatprep.subr.mxu0 0.0
    %625 = vmatpush1.msra.mxu0 0.0
    %626 = vmatprep.subr.mxu0 0.0
    %627 = vmatpush1.msra.mxu0 0.0
    %628 = vmatprep.subr.mxu0 0.0
    %629 = vmatpush1.msra.mxu0 0.0
    %630 = vmatprep.subr.mxu0 0.0
    %631 = vmatpush1.msra.mxu0 0.0
    %632 = vmatprep.subr.mxu0 0.0
    %633 = vmatpush1.msra.mxu0 0.0
    %634 = vmatprep.subr.mxu0 0.0
    %635 = vmatpush1.msra.mxu0 0.0
    %636 = vmatprep.subr.mxu0 0.0
    %637 = vmatpush1.msra.mxu0 0.0
    %638 = vmatprep.subr.mxu0 0.0
    %639 = vmatpush1.msra.mxu0 0.0
    %640 = vmatprep.subr.mxu0 0.0
    %641 = vmatpush1.msra.mxu0 0.0
    %642 = vmatprep.subr.mxu0 0.0
    %643 = vmatpush1.msra.mxu0 0.0
    %644 = vmatprep.subr.mxu0 0.0
    %645 = vmatpush1.msra.mxu0 0.0
    %646 = vmatprep.subr.mxu0 0.0
    %647 = vmatpush1.msra.mxu0 0.0
    %648 = vmatprep.subr.mxu0 0.0
    %649 = vmatpush1.msra.mxu0 0.0
    %650 = vmatprep.subr.mxu0 0.0
    %651 = vmatpush1.msra.mxu0 0.0
    %652 = vmatprep.mubr.f32.mxu0 0.0
    %653 = vmatmul.mubr.f32.gmra.mrb[0].mxu0 %v507
    %v654 = vpop.f32.mrb[0].mxu0
    %v655 = vadd.f32 0.0, %v654
    %v656 = vpop.f32.mrb[0].mxu0
    %657 = vdwg.mxu0
    %v658 = vadd.f32 %v587, %v655
    %v659 = vadd.f32 %v658, %v319
    %v660 = vsub.f32 0.0, %v659
    %v661 = vmul.f32 %v660, 1.442695
    %v662 = vpow.pop %v661
    %v663 = vadd.f32 %v662, 1.0
    %v664 = vrcp.pop %v663
    %v665 = vmul.f32 1.0, %v664
    %v666 = vmul.f32 %v503, %v330
    %667 = vmatprep.subr.mxu0 0.0
    %668 = vmatpush1.msra.mxu0 %v108
    %669 = vmatprep.subr.mxu0 0.0
    %670 = vmatpush1.msra.mxu0 %v109
    %671 = vmatprep.subr.mxu0 0.0
    %672 = vmatpush1.msra.mxu0 0.0
    %673 = vmatprep.subr.mxu0 0.0
    %674 = vmatpush1.msra.mxu0 0.0
    %675 = vmatprep.subr.mxu0 0.0
    %676 = vmatpush1.msra.mxu0 0.0
    %677 = vmatprep.subr.mxu0 0.0
    %678 = vmatpush1.msra.mxu0 0.0
    %679 = vmatprep.subr.mxu0 0.0
    %680 = vmatpush1.msra.mxu0 0.0
    %681 = vmatprep.subr.mxu0 0.0
    %682 = vmatpush1.msra.mxu0 0.0
    %683 = vmatprep.subr.mxu0 0.0
    %684 = vmatpush1.msra.mxu0 0.0
    %685 = vmatprep.subr.mxu0 0.0
    %686 = vmatpush1.msra.mxu0 0.0
    %687 = vmatprep.subr.mxu0 0.0
    %688 = vmatpush1.msra.mxu0 0.0
    %689 = vmatprep.subr.mxu0 0.0
    %690 = vmatpush1.msra.mxu0 0.0
    %691 = vmatprep.subr.mxu0 0.0
    %692 = vmatpush1.msra.mxu0 0.0
    %693 = vmatprep.subr.mxu0 0.0
    %694 = vmatpush1.msra.mxu0 0.0
    %695 = vmatprep.subr.mxu0 0.0
    %696 = vmatpush1.msra.mxu0 0.0
    %697 = vmatprep.subr.mxu0 0.0
    %698 = vmatpush1.msra.mxu0 0.0
    %699 = vmatprep.subr.mxu0 0.0
    %700 = vmatpush1.msra.mxu0 0.0
    %701 = vmatprep.subr.mxu0 0.0
    %702 = vmatpush1.msra.mxu0 0.0
    %703 = vmatprep.subr.mxu0 0.0
    %704 = vmatpush1.msra.mxu0 0.0
    %705 = vmatprep.subr.mxu0 0.0
    %706 = vmatpush1.msra.mxu0 0.0
    %707 = vmatprep.subr.mxu0 0.0
    %708 = vmatpush1.msra.mxu0 0.0
    %709 = vmatprep.subr.mxu0 0.0
    %710 = vmatpush1.msra.mxu0 0.0
    %711 = vmatprep.subr.mxu0 0.0
    %712 = vmatpush1.msra.mxu0 0.0
    %713 = vmatprep.subr.mxu0 0.0
    %714 = vmatpush1.msra.mxu0 0.0
    %715 = vmatprep.subr.mxu0 0.0
    %716 = vmatpush1.msra.mxu0 0.0
    %717 = vmatprep.subr.mxu0 0.0
    %718 = vmatpush1.msra.mxu0 0.0
    %719 = vmatprep.subr.mxu0 0.0
    %720 = vmatpush1.msra.mxu0 0.0
    %721 = vmatprep.subr.mxu0 0.0
    %722 = vmatpush1.msra.mxu0 0.0
    %723 = vmatprep.subr.mxu0 0.0
    %724 = vmatpush1.msra.mxu0 0.0
    %725 = vmatprep.subr.mxu0 0.0
    %726 = vmatpush1.msra.mxu0 0.0
    %727 = vmatprep.subr.mxu0 0.0
    %728 = vmatpush1.msra.mxu0 0.0
    %729 = vmatprep.subr.mxu0 0.0
    %730 = vmatpush1.msra.mxu0 0.0
    %731 = vmatprep.mubr.f32.mxu0 0.0
    %732 = vmatmul.mubr.f32.gmra.mrb[0].mxu0 %v507
    %v733 = vpop.f32.mrb[0].mxu0
    %v734 = vadd.f32 0.0, %v733
    %v735 = vpop.f32.mrb[0].mxu0
    %736 = vdwg.mxu0
    %v737 = vadd.f32 %v666, %v734
    %v738 = vadd.f32 %v737, %v406
    %v739 = vtanh.pop %v738
    %v740 = vmul.f32 %v503, %v412
    %741 = vmatprep.subr.mxu0 0.0
    %742 = vmatpush1.msra.mxu0 %v110
    %743 = vmatprep.subr.mxu0 0.0
    %744 = vmatpush1.msra.mxu0 %v111
    %745 = vmatprep.subr.mxu0 0.0
    %746 = vmatpush1.msra.mxu0 0.0
    %747 = vmatprep.subr.mxu0 0.0
    %748 = vmatpush1.msra.mxu0 0.0
    %749 = vmatprep.subr.mxu0 0.0
    %750 = vmatpush1.msra.mxu0 0.0
    %751 = vmatprep.subr.mxu0 0.0
    %752 = vmatpush1.msra.mxu0 0.0
    %753 = vmatprep.subr.mxu0 0.0
    %754 = vmatpush1.msra.mxu0 0.0
    %755 = vmatprep.subr.mxu0 0.0
    %756 = vmatpush1.msra.mxu0 0.0
    %757 = vmatprep.subr.mxu0 0.0
    %758 = vmatpush1.msra.mxu0 0.0
    %759 = vmatprep.subr.mxu0 0.0
    %760 = vmatpush1.msra.mxu0 0.0
    %761 = vmatprep.subr.mxu0 0.0
    %762 = vmatpush1.msra.mxu0 0.0
    %763 = vmatprep.subr.mxu0 0.0
    %764 = vmatpush1.msra.mxu0 0.0
    %765 = vmatprep.subr.mxu0 0.0
    %766 = vmatpush1.msra.mxu0 0.0
    %767 = vmatprep.subr.mxu0 0.0
    %768 = vmatpush1.msra.mxu0 0.0
    %769 = vmatprep.subr.mxu0 0.0
    %770 = vmatpush1.msra.mxu0 0.0
    %771 = vmatprep.subr.mxu0 0.0
    %772 = vmatpush1.msra.mxu0 0.0
    %773 = vmatprep.subr.mxu0 0.0
    %774 = vmatpush1.msra.mxu0 0.0
    %775 = vmatprep.subr.mxu0 0.0
    %776 = vmatpush1.msra.mxu0 0.0
    %777 = vmatprep.subr.mxu0 0.0
    %778 = vmatpush1.msra.mxu0 0.0
    %779 = vmatprep.subr.mxu0 0.0
    %780 = vmatpush1.msra.mxu0 0.0
    %781 = vmatprep.subr.mxu0 0.0
    %782 = vmatpush1.msra.mxu0 0.0
    %783 = vmatprep.subr.mxu0 0.0
    %784 = vmatpush1.msra.mxu0 0.0
    %785 = vmatprep.subr.mxu0 0.0
    %786 = vmatpush1.msra.mxu0 0.0
    %787 = vmatprep.subr.mxu0 0.0
    %788 = vmatpush1.msra.mxu0 0.0
    %789 = vmatprep.subr.mxu0 0.0
    %790 = vmatpush1.msra.mxu0 0.0
    %791 = vmatprep.subr.mxu0 0.0
    %792 = vmatpush1.msra.mxu0 0.0
    %793 = vmatprep.subr.mxu0 0.0
    %794 = vmatpush1.msra.mxu0 0.0
    %795 = vmatprep.subr.mxu0 0.0
    %796 = vmatpush1.msra.mxu0 0.0
    %797 = vmatprep.subr.mxu0 0.0
    %798 = vmatpush1.msra.mxu0 0.0
    %799 = vmatprep.subr.mxu0 0.0
    %800 = vmatpush1.msra.mxu0 0.0
    %801 = vmatprep.subr.mxu0 0.0
    %802 = vmatpush1.msra.mxu0 0.0
    %803 = vmatprep.subr.mxu0 0.0
    %804 = vmatpush1.msra.mxu0 0.0
    %805 = vmatprep.mubr.f32.mxu0 0.0
    %806 = vmatmul.mubr.f32.gmra.mrb[0].mxu0 %v507
    %v807 = vpop.f32.mrb[0].mxu0
    %v808 = vadd.f32 0.0, %v807
    %v809 = vpop.f32.mrb[0].mxu0
    %810 = vdwg.mxu0
    %v811 = vadd.f32 %v740, %v808
    %v812 = vadd.f32 %v811, %v488
    %v813 = vsub.f32 0.0, %v812
    %v814 = vmul.f32 %v813, 1.442695
    %v815 = vpow.pop %v814
    %v816 = vadd.f32 %v815, 1.0
    %v817 = vrcp.pop %v816
    %v818 = vmul.f32 1.0, %v817
    %v819 = vmul.f32 %v665, %v498
    %v820 = vmul.f32 %v586, %v739
    %v821 = vadd.f32 %v819, %v820
    %v822 = vtanh.pop %v821
    %v823 = vmul.f32 %v818, %v822
    %824 = vset.pattern.permute.xlu0 2
    %825 = vperm.xlu0 %824, %v95
    %v826 = vpop.permute.xlu0 %825
    %v828 = vmul.f32 %v826, %v152
    %v830 = vsel %vm154, %v823, 0
    %832 = vmatprep.subr.mxu0 0.0
    %833 = vmatpush1.msra.mxu0 %v104
    %834 = vmatprep.subr.mxu0 0.0
    %835 = vmatpush1.msra.mxu0 %v105
    %836 = vmatprep.subr.mxu0 0.0
    %837 = vmatpush1.msra.mxu0 0.0
    %838 = vmatprep.subr.mxu0 0.0
    %839 = vmatpush1.msra.mxu0 0.0
    %840 = vmatprep.subr.mxu0 0.0
    %841 = vmatpush1.msra.mxu0 0.0
    %842 = vmatprep.subr.mxu0 0.0
    %843 = vmatpush1.msra.mxu0 0.0
    %844 = vmatprep.subr.mxu0 0.0
    %845 = vmatpush1.msra.mxu0 0.0
    %846 = vmatprep.subr.mxu0 0.0
    %847 = vmatpush1.msra.mxu0 0.0
    %848 = vmatprep.subr.mxu0 0.0
    %849 = vmatpush1.msra.mxu0 0.0
    %850 = vmatprep.subr.mxu0 0.0
    %851 = vmatpush1.msra.mxu0 0.0
    %852 = vmatprep.subr.mxu0 0.0
    %853 = vmatpush1.msra.mxu0 0.0
    %854 = vmatprep.subr.mxu0 0.0
    %855 = vmatpush1.msra.mxu0 0.0
    %856 = vmatprep.subr.mxu0 0.0
    %857 = vmatpush1.msra.mxu0 0.0
    %858 = vmatprep.subr.mxu0 0.0
    %859 = vmatpush1.msra.mxu0 0.0
    %860 = vmatprep.subr.mxu0 0.0
    %861 = vmatpush1.msra.mxu0 0.0
    %862 = vmatprep.subr.mxu0 0.0
    %863 = vmatpush1.msra.mxu0 0.0
    %864 = vmatprep.subr.mxu0 0.0
    %865 = vmatpush1.msra.mxu0 0.0
    %866 = vmatprep.subr.mxu0 0.0
    %867 = vmatpush1.msra.mxu0 0.0
    %868 = vmatprep.subr.mxu0 0.0
    %869 = vmatpush1.msra.mxu0 0.0
    %870 = vmatprep.subr.mxu0 0.0
    %871 = vmatpush1.msra.mxu0 0.0
    %872 = vmatprep.subr.mxu0 0.0
    %873 = vmatpush1.msra.mxu0 0.0
    %874 = vmatprep.subr.mxu0 0.0
    %875 = vmatpush1.msra.mxu0 0.0
    %876 = vmatprep.subr.mxu0 0.0
    %877 = vmatpush1.msra.mxu0 0.0
    %878 = vmatprep.subr.mxu0 0.0
    %879 = vmatpush1.msra.mxu0 0.0
    %880 = vmatprep.subr.mxu0 0.0
    %881 = vmatpush1.msra.mxu0 0.0
    %882 = vmatprep.subr.mxu0 0.0
    %883 = vmatpush1.msra.mxu0 0.0
    %884 = vmatprep.subr.mxu0 0.0
    %885 = vmatpush1.msra.mxu0 0.0
    %886 = vmatprep.subr.mxu0 0.0
    %887 = vmatpush1.msra.mxu0 0.0
    %888 = vmatprep.subr.mxu0 0.0
    %889 = vmatpush1.msra.mxu0 0.0
    %890 = vmatprep.subr.mxu0 0.0
    %891 = vmatpush1.msra.mxu0 0.0
    %892 = vmatprep.subr.mxu0 0.0
    %893 = vmatpush1.msra.mxu0 0.0
    %894 = vmatprep.subr.mxu0 0.0
    %895 = vmatpush1.msra.mxu0 0.0
    %896 = vmatprep.mubr.f32.mxu0 0.0
    %897 = vmatmul.mubr.f32.gmra.mrb[0].mxu0 %v830
    %v898 = vpop.f32.mrb[0].mxu0
    %v899 = vadd.f32 0.0, %v898
    %v900 = vpop.f32.mrb[0].mxu0
    %901 = vdwg.mxu0
    %v902 = vadd.f32 %v828, %v899
    %v903 = vadd.f32 %v902, %v232
    %v904 = vsub.f32 0.0, %v903
    %v905 = vmul.f32 %v904, 1.442695
    %v906 = vpow.pop %v905
    %v907 = vadd.f32 %v906, 1.0
    %v908 = vrcp.pop %v907
    %v909 = vmul.f32 1.0, %v908
    %v910 = vmul.f32 %v826, %v243
    %911 = vmatprep.subr.mxu0 0.0
    %912 = vmatpush1.msra.mxu0 %v106
    %913 = vmatprep.subr.mxu0 0.0
    %914 = vmatpush1.msra.mxu0 %v107
    %915 = vmatprep.subr.mxu0 0.0
    %916 = vmatpush1.msra.mxu0 0.0
    %917 = vmatprep.subr.mxu0 0.0
    %918 = vmatpush1.msra.mxu0 0.0
    %919 = vmatprep.subr.mxu0 0.0
    %920 = vmatpush1.msra.mxu0 0.0
    %921 = vmatprep.subr.mxu0 0.0
    %922 = vmatpush1.msra.mxu0 0.0
    %923 = vmatprep.subr.mxu0 0.0
    %924 = vmatpush1.msra.mxu0 0.0
    %925 = vmatprep.subr.mxu0 0.0
    %926 = vmatpush1.msra.mxu0 0.0
    %927 = vmatprep.subr.mxu0 0.0
    %928 = vmatpush1.msra.mxu0 0.0
    %929 = vmatprep.subr.mxu0 0.0
    %930 = vmatpush1.msra.mxu0 0.0
    %931 = vmatprep.subr.mxu0 0.0
    %932 = vmatpush1.msra.mxu0 0.0
    %933 = vmatprep.subr.mxu0 0.0
    %934 = vmatpush1.msra.mxu0 0.0
    %935 = vmatprep.subr.mxu0 0.0
    %936 = vmatpush1.msra.mxu0 0.0
    %937 = vmatprep.subr.mxu0 0.0
    %938 = vmatpush1.msra.mxu0 0.0
    %939 = vmatprep.subr.mxu0 0.0
    %940 = vmatpush1.msra.mxu0 0.0
    %941 = vmatprep.subr.mxu0 0.0
    %942 = vmatpush1.msra.mxu0 0.0
    %943 = vmatprep.subr.mxu0 0.0
    %944 = vmatpush1.msra.mxu0 0.0
    %945 = vmatprep.subr.mxu0 0.0
    %946 = vmatpush1.msra.mxu0 0.0
    %947 = vmatprep.subr.mxu0 0.0
    %948 = vmatpush1.msra.mxu0 0.0
    %949 = vmatprep.subr.mxu0 0.0
    %950 = vmatpush1.msra.mxu0 0.0
    %951 = vmatprep.subr.mxu0 0.0
    %952 = vmatpush1.msra.mxu0 0.0
    %953 = vmatprep.subr.mxu0 0.0
    %954 = vmatpush1.msra.mxu0 0.0
    %955 = vmatprep.subr.mxu0 0.0
    %956 = vmatpush1.msra.mxu0 0.0
    %957 = vmatprep.subr.mxu0 0.0
    %958 = vmatpush1.msra.mxu0 0.0
    %959 = vmatprep.subr.mxu0 0.0
    %960 = vmatpush1.msra.mxu0 0.0
    %961 = vmatprep.subr.mxu0 0.0
    %962 = vmatpush1.msra.mxu0 0.0
    %963 = vmatprep.subr.mxu0 0.0
    %964 = vmatpush1.msra.mxu0 0.0
    %965 = vmatprep.subr.mxu0 0.0
    %966 = vmatpush1.msra.mxu0 0.0
    %967 = vmatprep.subr.mxu0 0.0
    %968 = vmatpush1.msra.mxu0 0.0
    %969 = vmatprep.subr.mxu0 0.0
    %970 = vmatpush1.msra.mxu0 0.0
    %971 = vmatprep.subr.mxu0 0.0
    %972 = vmatpush1.msra.mxu0 0.0
    %973 = vmatprep.subr.mxu0 0.0
    %974 = vmatpush1.msra.mxu0 0.0
    %975 = vmatprep.mubr.f32.mxu0 0.0
    %976 = vmatmul.mubr.f32.gmra.mrb[0].mxu0 %v830
    %v977 = vpop.f32.mrb[0].mxu0
    %v978 = vadd.f32 0.0, %v977
    %v979 = vpop.f32.mrb[0].mxu0
    %980 = vdwg.mxu0
    %v981 = vadd.f32 %v910, %v978
    %v982 = vadd.f32 %v981, %v319
    %v983 = vsub.f32 0.0, %v982
    %v984 = vmul.f32 %v983, 1.442695
    %v985 = vpow.pop %v984
    %v986 = vadd.f32 %v985, 1.0
    %v987 = vrcp.pop %v986
    %v988 = vmul.f32 1.0, %v987
    %v989 = vmul.f32 %v826, %v330
    %990 = vmatprep.subr.mxu0 0.0
    %991 = vmatpush1.msra.mxu0 %v108
    %992 = vmatprep.subr.mxu0 0.0
    %993 = vmatpush1.msra.mxu0 %v109
    %994 = vmatprep.subr.mxu0 0.0
    %995 = vmatpush1.msra.mxu0 0.0
    %996 = vmatprep.subr.mxu0 0.0
    %997 = vmatpush1.msra.mxu0 0.0
    %998 = vmatprep.subr.mxu0 0.0
    %999 = vmatpush1.msra.mxu0 0.0
    %1000 = vmatprep.subr.mxu0 0.0
    %1001 = vmatpush1.msra.mxu0 0.0
    %1002 = vmatprep.subr.mxu0 0.0
    %1003 = vmatpush1.msra.mxu0 0.0
    %1004 = vmatprep.subr.mxu0 0.0
    %1005 = vmatpush1.msra.mxu0 0.0
    %1006 = vmatprep.subr.mxu0 0.0
    %1007 = vmatpush1.msra.mxu0 0.0
    %1008 = vmatprep.subr.mxu0 0.0
    %1009 = vmatpush1.msra.mxu0 0.0
    %1010 = vmatprep.subr.mxu0 0.0
    %1011 = vmatpush1.msra.mxu0 0.0
    %1012 = vmatprep.subr.mxu0 0.0
    %1013 = vmatpush1.msra.mxu0 0.0
    %1014 = vmatprep.subr.mxu0 0.0
    %1015 = vmatpush1.msra.mxu0 0.0
    %1016 = vmatprep.subr.mxu0 0.0
    %1017 = vmatpush1.msra.mxu0 0.0
    %1018 = vmatprep.subr.mxu0 0.0
    %1019 = vmatpush1.msra.mxu0 0.0
    %1020 = vmatprep.subr.mxu0 0.0
    %1021 = vmatpush1.msra.mxu0 0.0
    %1022 = vmatprep.subr.mxu0 0.0
    %1023 = vmatpush1.msra.mxu0 0.0
    %1024 = vmatprep.subr.mxu0 0.0
    %1025 = vmatpush1.msra.mxu0 0.0
    %1026 = vmatprep.subr.mxu0 0.0
    %1027 = vmatpush1.msra.mxu0 0.0
    %1028 = vmatprep.subr.mxu0 0.0
    %1029 = vmatpush1.msra.mxu0 0.0
    %1030 = vmatprep.subr.mxu0 0.0
    %1031 = vmatpush1.msra.mxu0 0.0
    %1032 = vmatprep.subr.mxu0 0.0
    %1033 = vmatpush1.msra.mxu0 0.0
    %1034 = vmatprep.subr.mxu0 0.0
    %1035 = vmatpush1.msra.mxu0 0.0
    %1036 = vmatprep.subr.mxu0 0.0
    %1037 = vmatpush1.msra.mxu0 0.0
    %1038 = vmatprep.subr.mxu0 0.0
    %1039 = vmatpush1.msra.mxu0 0.0
    %1040 = vmatprep.subr.mxu0 0.0
    %1041 = vmatpush1.msra.mxu0 0.0
    %1042 = vmatprep.subr.mxu0 0.0
    %1043 = vmatpush1.msra.mxu0 0.0
    %1044 = vmatprep.subr.mxu0 0.0
    %1045 = vmatpush1.msra.mxu0 0.0
    %1046 = vmatprep.subr.mxu0 0.0
    %1047 = vmatpush1.msra.mxu0 0.0
    %1048 = vmatprep.subr.mxu0 0.0
    %1049 = vmatpush1.msra.mxu0 0.0
    %1050 = vmatprep.subr.mxu0 0.0
    %1051 = vmatpush1.msra.mxu0 0.0
    %1052 = vmatprep.subr.mxu0 0.0
    %1053 = vmatpush1.msra.mxu0 0.0
    %1054 = vmatprep.mubr.f32.mxu0 0.0
    %1055 = vmatmul.mubr.f32.gmra.mrb[0].mxu0 %v830
    %v1056 = vpop.f32.mrb[0].mxu0
    %v1057 = vadd.f32 0.0, %v1056
    %v1058 = vpop.f32.mrb[0].mxu0
    %1059 = vdwg.mxu0
    %v1060 = vadd.f32 %v989, %v1057
    %v1061 = vadd.f32 %v1060, %v406
    %v1062 = vtanh.pop %v1061
    %v1063 = vmul.f32 %v826, %v412
    %1064 = vmatprep.subr.mxu0 0.0
    %1065 = vmatpush1.msra.mxu0 %v110
    %1066 = vmatprep.subr.mxu0 0.0
    %1067 = vmatpush1.msra.mxu0 %v111
    %1068 = vmatprep.subr.mxu0 0.0
    %1069 = vmatpush1.msra.mxu0 0.0
    %1070 = vmatprep.subr.mxu0 0.0
    %1071 = vmatpush1.msra.mxu0 0.0
    %1072 = vmatprep.subr.mxu0 0.0
    %1073 = vmatpush1.msra.mxu0 0.0
    %1074 = vmatprep.subr.mxu0 0.0
    %1075 = vmatpush1.msra.mxu0 0.0
    %1076 = vmatprep.subr.mxu0 0.0
    %1077 = vmatpush1.msra.mxu0 0.0
    %1078 = vmatprep.subr.mxu0 0.0
    %1079 = vmatpush1.msra.mxu0 0.0
    %1080 = vmatprep.subr.mxu0 0.0
    %1081 = vmatpush1.msra.mxu0 0.0
    %1082 = vmatprep.subr.mxu0 0.0
    %1083 = vmatpush1.msra.mxu0 0.0
    %1084 = vmatprep.subr.mxu0 0.0
    %1085 = vmatpush1.msra.mxu0 0.0
    %1086 = vmatprep.subr.mxu0 0.0
    %1087 = vmatpush1.msra.mxu0 0.0
    %1088 = vmatprep.subr.mxu0 0.0
    %1089 = vmatpush1.msra.mxu0 0.0
    %1090 = vmatprep.subr.mxu0 0.0
    %1091 = vmatpush1.msra.mxu0 0.0
    %1092 = vmatprep.subr.mxu0 0.0
    %1093 = vmatpush1.msra.mxu0 0.0
    %1094 = vmatprep.subr.mxu0 0.0
    %1095 = vmatpush1.msra.mxu0 0.0
    %1096 = vmatprep.subr.mxu0 0.0
    %1097 = vmatpush1.msra.mxu0 0.0
    %1098 = vmatprep.subr.mxu0 0.0
    %1099 = vmatpush1.msra.mxu0 0.0
    %1100 = vmatprep.subr.mxu0 0.0
    %1101 = vmatpush1.msra.mxu0 0.0
    %1102 = vmatprep.subr.mxu0 0.0
    %1103 = vmatpush1.msra.mxu0 0.0
    %1104 = vmatprep.subr.mxu0 0.0
    %1105 = vmatpush1.msra.mxu0 0.0
    %1106 = vmatprep.subr.mxu0 0.0
    %1107 = vmatpush1.msra.mxu0 0.0
    %1108 = vmatprep.subr.mxu0 0.0
    %1109 = vmatpush1.msra.mxu0 0.0
    %1110 = vmatprep.subr.mxu0 0.0
    %1111 = vmatpush1.msra.mxu0 0.0
    %1112 = vmatprep.subr.mxu0 0.0
    %1113 = vmatpush1.msra.mxu0 0.0
    %1114 = vmatprep.subr.mxu0 0.0
    %1115 = vmatpush1.msra.mxu0 0.0
    %1116 = vmatprep.subr.mxu0 0.0
    %1117 = vmatpush1.msra.mxu0 0.0
    %1118 = vmatprep.subr.mxu0 0.0
    %1119 = vmatpush1.msra.mxu0 0.0
    %1120 = vmatprep.subr.mxu0 0.0
    %1121 = vmatpush1.msra.mxu0 0.0
    %1122 = vmatprep.subr.mxu0 0.0
    %1123 = vmatpush1.msra.mxu0 0.0
    %1124 = vmatprep.subr.mxu0 0.0
    %1125 = vmatpush1.msra.mxu0 0.0
    %1126 = vmatprep.subr.mxu0 0.0
    %1127 = vmatpush1.msra.mxu0 0.0
    %1128 = vmatprep.mubr.f32.mxu0 0.0
    %1129 = vmatmul.mubr.f32.gmra.mrb[0].mxu0 %v830
    %v1130 = vpop.f32.mrb[0].mxu0
    %v1131 = vadd.f32 0.0, %v1130
    %v1132 = vpop.f32.mrb[0].mxu0
    %1133 = vdwg.mxu0
    %v1134 = vadd.f32 %v1063, %v1131
    %v1135 = vadd.f32 %v1134, %v488
    %v1136 = vsub.f32 0.0, %v1135
    %v1137 = vmul.f32 %v1136, 1.442695
    %v1138 = vpow.pop %v1137
    %v1139 = vadd.f32 %v1138, 1.0
    %v1140 = vrcp.pop %v1139
    %v1141 = vmul.f32 1.0, %v1140
    %v1142 = vmul.f32 %v988, %v821
    %v1143 = vmul.f32 %v909, %v1062
    %v1144 = vadd.f32 %v1142, %v1143
    %v1145 = vtanh.pop %v1144
    %v1146 = vmul.f32 %v1141, %v1145
    %1147 = vset.pattern.permute.xlu0 3
    %1148 = vperm.xlu0 %1147, %v95
    %v1149 = vpop.permute.xlu0 %1148
    %v1151 = vmul.f32 %v1149, %v152
    %v1153 = vsel %vm154, %v1146, 0
    %1155 = vmatprep.subr.mxu0 0.0
    %1156 = vmatpush1.msra.mxu0 %v104
    %1157 = vmatprep.subr.mxu0 0.0
    %1158 = vmatpush1.msra.mxu0 %v105
    %1159 = vmatprep.subr.mxu0 0.0
    %1160 = vmatpush1.msra.mxu0 0.0
    %1161 = vmatprep.subr.mxu0 0.0
    %1162 = vmatpush1.msra.mxu0 0.0
    %1163 = vmatprep.subr.mxu0 0.0
    %1164 = vmatpush1.msra.mxu0 0.0
    %1165 = vmatprep.subr.mxu0 0.0
    %1166 = vmatpush1.msra.mxu0 0.0
    %1167 = vmatprep.subr.mxu0 0.0
    %1168 = vmatpush1.msra.mxu0 0.0
    %1169 = vmatprep.subr.mxu0 0.0
    %1170 = vmatpush1.msra.mxu0 0.0
    %1171 = vmatprep.subr.mxu0 0.0
    %1172 = vmatpush1.msra.mxu0 0.0
    %1173 = vmatprep.subr.mxu0 0.0
    %1174 = vmatpush1.msra.mxu0 0.0
    %1175 = vmatprep.subr.mxu0 0.0
    %1176 = vmatpush1.msra.mxu0 0.0
    %1177 = vmatprep.subr.mxu0 0.0
    %1178 = vmatpush1.msra.mxu0 0.0
    %1179 = vmatprep.subr.mxu0 0.0
    %1180 = vmatpush1.msra.mxu0 0.0
    %1181 = vmatprep.subr.mxu0 0.0
    %1182 = vmatpush1.msra.mxu0 0.0
    %1183 = vmatprep.subr.mxu0 0.0
    %1184 = vmatpush1.msra.mxu0 0.0
    %1185 = vmatprep.subr.mxu0 0.0
    %1186 = vmatpush1.msra.mxu0 0.0
    %1187 = vmatprep.subr.mxu0 0.0
    %1188 = vmatpush1.msra.mxu0 0.0
    %1189 = vmatprep.subr.mxu0 0.0
    %1190 = vmatpush1.msra.mxu0 0.0
    %1191 = vmatprep.subr.mxu0 0.0
    %1192 = vmatpush1.msra.mxu0 0.0
    %1193 = vmatprep.subr.mxu0 0.0
    %1194 = vmatpush1.msra.mxu0 0.0
    %1195 = vmatprep.subr.mxu0 0.0
    %1196 = vmatpush1.msra.mxu0 0.0
    %1197 = vmatprep.subr.mxu0 0.0
    %1198 = vmatpush1.msra.mxu0 0.0
    %1199 = vmatprep.subr.mxu0 0.0
    %1200 = vmatpush1.msra.mxu0 0.0
    %1201 = vmatprep.subr.mxu0 0.0
    %1202 = vmatpush1.msra.mxu0 0.0
    %1203 = vmatprep.subr.mxu0 0.0
    %1204 = vmatpush1.msra.mxu0 0.0
    %1205 = vmatprep.subr.mxu0 0.0
    %1206 = vmatpush1.msra.mxu0 0.0
    %1207 = vmatprep.subr.mxu0 0.0
    %1208 = vmatpush1.msra.mxu0 0.0
    %1209 = vmatprep.subr.mxu0 0.0
    %1210 = vmatpush1.msra.mxu0 0.0
    %1211 = vmatprep.subr.mxu0 0.0
    %1212 = vmatpush1.msra.mxu0 0.0
    %1213 = vmatprep.subr.mxu0 0.0
    %1214 = vmatpush1.msra.mxu0 0.0
    %1215 = vmatprep.subr.mxu0 0.0
    %1216 = vmatpush1.msra.mxu0 0.0
    %1217 = vmatprep.subr.mxu0 0.0
    %1218 = vmatpush1.msra.mxu0 0.0
    %1219 = vmatprep.mubr.f32.mxu0 0.0
    %1220 = vmatmul.mubr.f32.gmra.mrb[0].mxu0 %v1153
    %v1221 = vpop.f32.mrb[0].mxu0
    %v1222 = vadd.f32 0.0, %v1221
    %v1223 = vpop.f32.mrb[0].mxu0
    %1224 = vdwg.mxu0
    %v1225 = vadd.f32 %v1151, %v1222
    %v1226 = vadd.f32 %v1225, %v232
    %v1227 = vsub.f32 0.0, %v1226
    %v1228 = vmul.f32 %v1227, 1.442695
    %v1229 = vpow.pop %v1228
    %v1230 = vadd.f32 %v1229, 1.0
    %v1231 = vrcp.pop %v1230
    %v1232 = vmul.f32 1.0, %v1231
    %v1233 = vmul.f32 %v1149, %v243
    %1234 = vmatprep.subr.mxu0 0.0
    %1235 = vmatpush1.msra.mxu0 %v106
    %1236 = vmatprep.subr.mxu0 0.0
    %1237 = vmatpush1.msra.mxu0 %v107
    %1238 = vmatprep.subr.mxu0 0.0
    %1239 = vmatpush1.msra.mxu0 0.0
    %1240 = vmatprep.subr.mxu0 0.0
    %1241 = vmatpush1.msra.mxu0 0.0
    %1242 = vmatprep.subr.mxu0 0.0
    %1243 = vmatpush1.msra.mxu0 0.0
    %1244 = vmatprep.subr.mxu0 0.0
    %1245 = vmatpush1.msra.mxu0 0.0
    %1246 = vmatprep.subr.mxu0 0.0
    %1247 = vmatpush1.msra.mxu0 0.0
    %1248 = vmatprep.subr.mxu0 0.0
    %1249 = vmatpush1.msra.mxu0 0.0
    %1250 = vmatprep.subr.mxu0 0.0
    %1251 = vmatpush1.msra.mxu0 0.0
    %1252 = vmatprep.subr.mxu0 0.0
    %1253 = vmatpush1.msra.mxu0 0.0
    %1254 = vmatprep.subr.mxu0 0.0
    %1255 = vmatpush1.msra.mxu0 0.0
    %1256 = vmatprep.subr.mxu0 0.0
    %1257 = vmatpush1.msra.mxu0 0.0
    %1258 = vmatprep.subr.mxu0 0.0
    %1259 = vmatpush1.msra.mxu0 0.0
    %1260 = vmatprep.subr.mxu0 0.0
    %1261 = vmatpush1.msra.mxu0 0.0
    %1262 = vmatprep.subr.mxu0 0.0
    %1263 = vmatpush1.msra.mxu0 0.0
    %1264 = vmatprep.subr.mxu0 0.0
    %1265 = vmatpush1.msra.mxu0 0.0
    %1266 = vmatprep.subr.mxu0 0.0
    %1267 = vmatpush1.msra.mxu0 0.0
    %1268 = vmatprep.subr.mxu0 0.0
    %1269 = vmatpush1.msra.mxu0 0.0
    %1270 = vmatprep.subr.mxu0 0.0
    %1271 = vmatpush1.msra.mxu0 0.0
    %1272 = vmatprep.subr.mxu0 0.0
    %1273 = vmatpush1.msra.mxu0 0.0
    %1274 = vmatprep.subr.mxu0 0.0
    %1275 = vmatpush1.msra.mxu0 0.0
    %1276 = vmatprep.subr.mxu0 0.0
    %1277 = vmatpush1.msra.mxu0 0.0
    %1278 = vmatprep.subr.mxu0 0.0
    %1279 = vmatpush1.msra.mxu0 0.0
    %1280 = vmatprep.subr.mxu0 0.0
    %1281 = vmatpush1.msra.mxu0 0.0
    %1282 = vmatprep.subr.mxu0 0.0
    %1283 = vmatpush1.msra.mxu0 0.0
    %1284 = vmatprep.subr.mxu0 0.0
    %1285 = vmatpush1.msra.mxu0 0.0
    %1286 = vmatprep.subr.mxu0 0.0
    %1287 = vmatpush1.msra.mxu0 0.0
    %1288 = vmatprep.subr.mxu0 0.0
    %1289 = vmatpush1.msra.mxu0 0.0
    %1290 = vmatprep.subr.mxu0 0.0
    %1291 = vmatpush1.msra.mxu0 0.0
    %1292 = vmatprep.subr.mxu0 0.0
    %1293 = vmatpush1.msra.mxu0 0.0
    %1294 = vmatprep.subr.mxu0 0.0
    %1295 = vmatpush1.msra.mxu0 0.0
    %1296 = vmatprep.subr.mxu0 0.0
    %1297 = vmatpush1.msra.mxu0 0.0
    %1298 = vmatprep.mubr.f32.mxu0 0.0
    %1299 = vmatmul.mubr.f32.gmra.mrb[0].mxu0 %v1153
    %v1300 = vpop.f32.mrb[0].mxu0
    %v1301 = vadd.f32 0.0, %v1300
    %v1302 = vpop.f32.mrb[0].mxu0
    %1303 = vdwg.mxu0
    %v1304 = vadd.f32 %v1233, %v1301
    %v1305 = vadd.f32 %v1304, %v319
    %v1306 = vsub.f32 0.0, %v1305
    %v1307 = vmul.f32 %v1306, 1.442695
    %v1308 = vpow.pop %v1307
    %v1309 = vadd.f32 %v1308, 1.0
    %v1310 = vrcp.pop %v1309
    %v1311 = vmul.f32 1.0, %v1310
    %v1312 = vmul.f32 %v1149, %v330
    %1313 = vmatprep.subr.mxu0 0.0
    %1314 = vmatpush1.msra.mxu0 %v108
    %1315 = vmatprep.subr.mxu0 0.0
    %1316 = vmatpush1.msra.mxu0 %v109
    %1317 = vmatprep.subr.mxu0 0.0
    %1318 = vmatpush1.msra.mxu0 0.0
    %1319 = vmatprep.subr.mxu0 0.0
    %1320 = vmatpush1.msra.mxu0 0.0
    %1321 = vmatprep.subr.mxu0 0.0
    %1322 = vmatpush1.msra.mxu0 0.0
    %1323 = vmatprep.subr.mxu0 0.0
    %1324 = vmatpush1.msra.mxu0 0.0
    %1325 = vmatprep.subr.mxu0 0.0
    %1326 = vmatpush1.msra.mxu0 0.0
    %1327 = vmatprep.subr.mxu0 0.0
    %1328 = vmatpush1.msra.mxu0 0.0
    %1329 = vmatprep.subr.mxu0 0.0
    %1330 = vmatpush1.msra.mxu0 0.0
    %1331 = vmatprep.subr.mxu0 0.0
    %1332 = vmatpush1.msra.mxu0 0.0
    %1333 = vmatprep.subr.mxu0 0.0
    %1334 = vmatpush1.msra.mxu0 0.0
    %1335 = vmatprep.subr.mxu0 0.0
    %1336 = vmatpush1.msra.mxu0 0.0
    %1337 = vmatprep.subr.mxu0 0.0
    %1338 = vmatpush1.msra.mxu0 0.0
    %1339 = vmatprep.subr.mxu0 0.0
    %1340 = vmatpush1.msra.mxu0 0.0
    %1341 = vmatprep.subr.mxu0 0.0
    %1342 = vmatpush1.msra.mxu0 0.0
    %1343 = vmatprep.subr.mxu0 0.0
    %1344 = vmatpush1.msra.mxu0 0.0
    %1345 = vmatprep.subr.mxu0 0.0
    %1346 = vmatpush1.msra.mxu0 0.0
    %1347 = vmatprep.subr.mxu0 0.0
    %1348 = vmatpush1.msra.mxu0 0.0
    %1349 = vmatprep.subr.mxu0 0.0
    %1350 = vmatpush1.msra.mxu0 0.0
    %1351 = vmatprep.subr.mxu0 0.0
    %1352 = vmatpush1.msra.mxu0 0.0
    %1353 = vmatprep.subr.mxu0 0.0
    %1354 = vmatpush1.msra.mxu0 0.0
    %1355 = vmatprep.subr.mxu0 0.0
    %1356 = vmatpush1.msra.mxu0 0.0
    %1357 = vmatprep.subr.mxu0 0.0
    %1358 = vmatpush1.msra.mxu0 0.0
    %1359 = vmatprep.subr.mxu0 0.0
    %1360 = vmatpush1.msra.mxu0 0.0
    %1361 = vmatprep.subr.mxu0 0.0
    %1362 = vmatpush1.msra.mxu0 0.0
    %1363 = vmatprep.subr.mxu0 0.0
    %1364 = vmatpush1.msra.mxu0 0.0
    %1365 = vmatprep.subr.mxu0 0.0
    %1366 = vmatpush1.msra.mxu0 0.0
    %1367 = vmatprep.subr.mxu0 0.0
    %1368 = vmatpush1.msra.mxu0 0.0
    %1369 = vmatprep.subr.mxu0 0.0
    %1370 = vmatpush1.msra.mxu0 0.0
    %1371 = vmatprep.subr.mxu0 0.0
    %1372 = vmatpush1.msra.mxu0 0.0
    %1373 = vmatprep.subr.mxu0 0.0
    %1374 = vmatpush1.msra.mxu0 0.0
    %1375 = vmatprep.subr.mxu0 0.0
    %1376 = vmatpush1.msra.mxu0 0.0
    %1377 = vmatprep.mubr.f32.mxu0 0.0
    %1378 = vmatmul.mubr.f32.gmra.mrb[0].mxu0 %v1153
    %v1379 = vpop.f32.mrb[0].mxu0
    %v1380 = vadd.f32 0.0, %v1379
    %v1381 = vpop.f32.mrb[0].mxu0
    %1382 = vdwg.mxu0
    %v1383 = vadd.f32 %v1312, %v1380
    %v1384 = vadd.f32 %v1383, %v406
    %v1385 = vtanh.pop %v1384
    %v1386 = vmul.f32 %v1149, %v412
    %1387 = vmatprep.subr.mxu0 0.0
    %1388 = vmatpush1.msra.mxu0 %v110
    %1389 = vmatprep.subr.mxu0 0.0
    %1390 = vmatpush1.msra.mxu0 %v111
    %1391 = vmatprep.subr.mxu0 0.0
    %1392 = vmatpush1.msra.mxu0 0.0
    %1393 = vmatprep.subr.mxu0 0.0
    %1394 = vmatpush1.msra.mxu0 0.0
    %1395 = vmatprep.subr.mxu0 0.0
    %1396 = vmatpush1.msra.mxu0 0.0
    %1397 = vmatprep.subr.mxu0 0.0
    %1398 = vmatpush1.msra.mxu0 0.0
    %1399 = vmatprep.subr.mxu0 0.0
    %1400 = vmatpush1.msra.mxu0 0.0
    %1401 = vmatprep.subr.mxu0 0.0
    %1402 = vmatpush1.msra.mxu0 0.0
    %1403 = vmatprep.subr.mxu0 0.0
    %1404 = vmatpush1.msra.mxu0 0.0
    %1405 = vmatprep.subr.mxu0 0.0
    %1406 = vmatpush1.msra.mxu0 0.0
    %1407 = vmatprep.subr.mxu0 0.0
    %1408 = vmatpush1.msra.mxu0 0.0
    %1409 = vmatprep.subr.mxu0 0.0
    %1410 = vmatpush1.msra.mxu0 0.0
    %1411 = vmatprep.subr.mxu0 0.0
    %1412 = vmatpush1.msra.mxu0 0.0
    %1413 = vmatprep.subr.mxu0 0.0
    %1414 = vmatpush1.msra.mxu0 0.0
    %1415 = vmatprep.subr.mxu0 0.0
    %1416 = vmatpush1.msra.mxu0 0.0
    %1417 = vmatprep.subr.mxu0 0.0
    %1418 = vmatpush1.msra.mxu0 0.0
    %1419 = vmatprep.subr.mxu0 0.0
    %1420 = vmatpush1.msra.mxu0 0.0
    %1421 = vmatprep.subr.mxu0 0.0
    %1422 = vmatpush1.msra.mxu0 0.0
    %1423 = vmatprep.subr.mxu0 0.0
    %1424 = vmatpush1.msra.mxu0 0.0
    %1425 = vmatprep.subr.mxu0 0.0
    %1426 = vmatpush1.msra.mxu0 0.0
    %1427 = vmatprep.subr.mxu0 0.0
    %1428 = vmatpush1.msra.mxu0 0.0
    %1429 = vmatprep.subr.mxu0 0.0
    %1430 = vmatpush1.msra.mxu0 0.0
    %1431 = vmatprep.subr.mxu0 0.0
    %1432 = vmatpush1.msra.mxu0 0.0
    %1433 = vmatprep.subr.mxu0 0.0
    %1434 = vmatpush1.msra.mxu0 0.0
    %1435 = vmatprep.subr.mxu0 0.0
    %1436 = vmatpush1.msra.mxu0 0.0
    %1437 = vmatprep.subr.mxu0 0.0
    %1438 = vmatpush1.msra.mxu0 0.0
    %1439 = vmatprep.subr.mxu0 0.0
    %1440 = vmatpush1.msra.mxu0 0.0
    %1441 = vmatprep.subr.mxu0 0.0
    %1442 = vmatpush1.msra.mxu0 0.0
    %1443 = vmatprep.subr.mxu0 0.0
    %1444 = vmatpush1.msra.mxu0 0.0
    %1445 = vmatprep.subr.mxu0 0.0
    %1446 = vmatpush1.msra.mxu0 0.0
    %1447 = vmatprep.subr.mxu0 0.0
    %1448 = vmatpush1.msra.mxu0 0.0
    %1449 = vmatprep.subr.mxu0 0.0
    %1450 = vmatpush1.msra.mxu0 0.0
    %1451 = vmatprep.mubr.f32.mxu0 0.0
    %1452 = vmatmul.mubr.f32.gmra.mrb[0].mxu0 %v1153
    %v1453 = vpop.f32.mrb[0].mxu0
    %v1454 = vadd.f32 0.0, %v1453
    %v1455 = vpop.f32.mrb[0].mxu0
    %1456 = vdwg.mxu0
    %v1457 = vadd.f32 %v1386, %v1454
    %v1458 = vadd.f32 %v1457, %v488
    %v1459 = vsub.f32 0.0, %v1458
    %v1460 = vmul.f32 %v1459, 1.442695
    %v1461 = vpow.pop %v1460
    %v1462 = vadd.f32 %v1461, 1.0
    %v1463 = vrcp.pop %v1462
    %v1464 = vmul.f32 1.0, %v1463
    %v1465 = vmul.f32 %v1311, %v1144
    %v1466 = vmul.f32 %v1232, %v1385
    %v1467 = vadd.f32 %v1465, %v1466
    %v1468 = vtanh.pop %v1467
    %v1469 = vmul.f32 %v1464, %v1468
    %1470 = vset.pattern.permute.xlu0 4
    %1471 = vperm.xlu0 %1470, %v95
    %v1472 = vpop.permute.xlu0 %1471
    %v1474 = vmul.f32 %v1472, %v152
    %v1476 = vsel %vm154, %v1469, 0
    %1478 = vmatprep.subr.mxu0 0.0
    %1479 = vmatpush1.msra.mxu0 %v104
    %1480 = vmatprep.subr.mxu0 0.0
    %1481 = vmatpush1.msra.mxu0 %v105
    %1482 = vmatprep.subr.mxu0 0.0
    %1483 = vmatpush1.msra.mxu0 0.0
    %1484 = vmatprep.subr.mxu0 0.0
    %1485 = vmatpush1.msra.mxu0 0.0
    %1486 = vmatprep.subr.mxu0 0.0
    %1487 = vmatpush1.msra.mxu0 0.0
    %1488 = vmatprep.subr.mxu0 0.0
    %1489 = vmatpush1.msra.mxu0 0.0
    %1490 = vmatprep.subr.mxu0 0.0
    %1491 = vmatpush1.msra.mxu0 0.0
    %1492 = vmatprep.subr.mxu0 0.0
    %1493 = vmatpush1.msra.mxu0 0.0
    %1494 = vmatprep.subr.mxu0 0.0
    %1495 = vmatpush1.msra.mxu0 0.0
    %1496 = vmatprep.subr.mxu0 0.0
    %1497 = vmatpush1.msra.mxu0 0.0
    %1498 = vmatprep.subr.mxu0 0.0
    %1499 = vmatpush1.msra.mxu0 0.0
    %1500 = vmatprep.subr.mxu0 0.0
    %1501 = vmatpush1.msra.mxu0 0.0
    %1502 = vmatprep.subr.mxu0 0.0
    %1503 = vmatpush1.msra.mxu0 0.0
    %1504 = vmatprep.subr.mxu0 0.0
    %1505 = vmatpush1.msra.mxu0 0.0
    %1506 = vmatprep.subr.mxu0 0.0
    %1507 = vmatpush1.msra.mxu0 0.0
    %1508 = vmatprep.subr.mxu0 0.0
    %1509 = vmatpush1.msra.mxu0 0.0
    %1510 = vmatprep.subr.mxu0 0.0
    %1511 = vmatpush1.msra.mxu0 0.0
    %1512 = vmatprep.subr.mxu0 0.0
    %1513 = vmatpush1.msra.mxu0 0.0
    %1514 = vmatprep.subr.mxu0 0.0
    %1515 = vmatpush1.msra.mxu0 0.0
    %1516 = vmatprep.subr.mxu0 0.0
    %1517 = vmatpush1.msra.mxu0 0.0
    %1518 = vmatprep.subr.mxu0 0.0
    %1519 = vmatpush1.msra.mxu0 0.0
    %1520 = vmatprep.subr.mxu0 0.0
    %1521 = vmatpush1.msra.mxu0 0.0
    %1522 = vmatprep.subr.mxu0 0.0
    %1523 = vmatpush1.msra.mxu0 0.0
    %1524 = vmatprep.subr.mxu0 0.0
    %1525 = vmatpush1.msra.mxu0 0.0
    %1526 = vmatprep.subr.mxu0 0.0
    %1527 = vmatpush1.msra.mxu0 0.0
    %1528 = vmatprep.subr.mxu0 0.0
    %1529 = vmatpush1.msra.mxu0 0.0
    %1530 = vmatprep.subr.mxu0 0.0
    %1531 = vmatpush1.msra.mxu0 0.0
    %1532 = vmatprep.subr.mxu0 0.0
    %1533 = vmatpush1.msra.mxu0 0.0
    %1534 = vmatprep.subr.mxu0 0.0
    %1535 = vmatpush1.msra.mxu0 0.0
    %1536 = vmatprep.subr.mxu0 0.0
    %1537 = vmatpush1.msra.mxu0 0.0
    %1538 = vmatprep.subr.mxu0 0.0
    %1539 = vmatpush1.msra.mxu0 0.0
    %1540 = vmatprep.subr.mxu0 0.0
    %1541 = vmatpush1.msra.mxu0 0.0
    %1542 = vmatprep.mubr.f32.mxu0 0.0
    %1543 = vmatmul.mubr.f32.gmra.mrb[0].mxu0 %v1476
    %v1544 = vpop.f32.mrb[0].mxu0
    %v1545 = vadd.f32 0.0, %v1544
    %v1546 = vpop.f32.mrb[0].mxu0
    %1547 = vdwg.mxu0
    %v1548 = vadd.f32 %v1474, %v1545
    %v1549 = vadd.f32 %v1548, %v232
    %v1550 = vsub.f32 0.0, %v1549
    %v1551 = vmul.f32 %v1550, 1.442695
    %v1552 = vpow.pop %v1551
    %v1553 = vadd.f32 %v1552, 1.0
    %v1554 = vrcp.pop %v1553
    %v1555 = vmul.f32 1.0, %v1554
    %v1556 = vmul.f32 %v1472, %v243
    %1557 = vmatprep.subr.mxu0 0.0
    %1558 = vmatpush1.msra.mxu0 %v106
    %1559 = vmatprep.subr.mxu0 0.0
    %1560 = vmatpush1.msra.mxu0 %v107
    %1561 = vmatprep.subr.mxu0 0.0
    %1562 = vmatpush1.msra.mxu0 0.0
    %1563 = vmatprep.subr.mxu0 0.0
    %1564 = vmatpush1.msra.mxu0 0.0
    %1565 = vmatprep.subr.mxu0 0.0
    %1566 = vmatpush1.msra.mxu0 0.0
    %1567 = vmatprep.subr.mxu0 0.0
    %1568 = vmatpush1.msra.mxu0 0.0
    %1569 = vmatprep.subr.mxu0 0.0
    %1570 = vmatpush1.msra.mxu0 0.0
    %1571 = vmatprep.subr.mxu0 0.0
    %1572 = vmatpush1.msra.mxu0 0.0
    %1573 = vmatprep.subr.mxu0 0.0
    %1574 = vmatpush1.msra.mxu0 0.0
    %1575 = vmatprep.subr.mxu0 0.0
    %1576 = vmatpush1.msra.mxu0 0.0
    %1577 = vmatprep.subr.mxu0 0.0
    %1578 = vmatpush1.msra.mxu0 0.0
    %1579 = vmatprep.subr.mxu0 0.0
    %1580 = vmatpush1.msra.mxu0 0.0
    %1581 = vmatprep.subr.mxu0 0.0
    %1582 = vmatpush1.msra.mxu0 0.0
    %1583 = vmatprep.subr.mxu0 0.0
    %1584 = vmatpush1.msra.mxu0 0.0
    %1585 = vmatprep.subr.mxu0 0.0
    %1586 = vmatpush1.msra.mxu0 0.0
    %1587 = vmatprep.subr.mxu0 0.0
    %1588 = vmatpush1.msra.mxu0 0.0
    %1589 = vmatprep.subr.mxu0 0.0
    %1590 = vmatpush1.msra.mxu0 0.0
    %1591 = vmatprep.subr.mxu0 0.0
    %1592 = vmatpush1.msra.mxu0 0.0
    %1593 = vmatprep.subr.mxu0 0.0
    %1594 = vmatpush1.msra.mxu0 0.0
    %1595 = vmatprep.subr.mxu0 0.0
    %1596 = vmatpush1.msra.mxu0 0.0
    %1597 = vmatprep.subr.mxu0 0.0
    %1598 = vmatpush1.msra.mxu0 0.0
    %1599 = vmatprep.subr.mxu0 0.0
    %1600 = vmatpush1.msra.mxu0 0.0
    %1601 = vmatprep.subr.mxu0 0.0
    %1602 = vmatpush1.msra.mxu0 0.0
    %1603 = vmatprep.subr.mxu0 0.0
    %1604 = vmatpush1.msra.mxu0 0.0
    %1605 = vmatprep.subr.mxu0 0.0
    %1606 = vmatpush1.msra.mxu0 0.0
    %1607 = vmatprep.subr.mxu0 0.0
    %1608 = vmatpush1.msra.mxu0 0.0
    %1609 = vmatprep.subr.mxu0 0.0
    %1610 = vmatpush1.msra.mxu0 0.0
    %1611 = vmatprep.subr.mxu0 0.0
    %1612 = vmatpush1.msra.mxu0 0.0
    %1613 = vmatprep.subr.mxu0 0.0
    %1614 = vmatpush1.msra.mxu0 0.0
    %1615 = vmatprep.subr.mxu0 0.0
    %1616 = vmatpush1.msra.mxu0 0.0
    %1617 = vmatprep.subr.mxu0 0.0
    %1618 = vmatpush1.msra.mxu0 0.0
    %1619 = vmatprep.subr.mxu0 0.0
    %1620 = vmatpush1.msra.mxu0 0.0
    %1621 = vmatprep.mubr.f32.mxu0 0.0
    %1622 = vmatmul.mubr.f32.gmra.mrb[0].mxu0 %v1476
    %v1623 = vpop.f32.mrb[0].mxu0
    %v1624 = vadd.f32 0.0, %v1623
    %v1625 = vpop.f32.mrb[0].mxu0
    %1626 = vdwg.mxu0
    %v1627 = vadd.f32 %v1556, %v1624
    %v1628 = vadd.f32 %v1627, %v319
    %v1629 = vsub.f32 0.0, %v1628
    %v1630 = vmul.f32 %v1629, 1.442695
    %v1631 = vpow.pop %v1630
    %v1632 = vadd.f32 %v1631, 1.0
    %v1633 = vrcp.pop %v1632
    %v1634 = vmul.f32 1.0, %v1633
    %v1635 = vmul.f32 %v1472, %v330
    %1636 = vmatprep.subr.mxu0 0.0
    %1637 = vmatpush1.msra.mxu0 %v108
    %1638 = vmatprep.subr.mxu0 0.0
    %1639 = vmatpush1.msra.mxu0 %v109
    %1640 = vmatprep.subr.mxu0 0.0
    %1641 = vmatpush1.msra.mxu0 0.0
    %1642 = vmatprep.subr.mxu0 0.0
    %1643 = vmatpush1.msra.mxu0 0.0
    %1644 = vmatprep.subr.mxu0 0.0
    %1645 = vmatpush1.msra.mxu0 0.0
    %1646 = vmatprep.subr.mxu0 0.0
    %1647 = vmatpush1.msra.mxu0 0.0
    %1648 = vmatprep.subr.mxu0 0.0
    %1649 = vmatpush1.msra.mxu0 0.0
    %1650 = vmatprep.subr.mxu0 0.0
    %1651 = vmatpush1.msra.mxu0 0.0
    %1652 = vmatprep.subr.mxu0 0.0
    %1653 = vmatpush1.msra.mxu0 0.0
    %1654 = vmatprep.subr.mxu0 0.0
    %1655 = vmatpush1.msra.mxu0 0.0
    %1656 = vmatprep.subr.mxu0 0.0
    %1657 = vmatpush1.msra.mxu0 0.0
    %1658 = vmatprep.subr.mxu0 0.0
    %1659 = vmatpush1.msra.mxu0 0.0
    %1660 = vmatprep.subr.mxu0 0.0
    %1661 = vmatpush1.msra.mxu0 0.0
    %1662 = vmatprep.subr.mxu0 0.0
    %1663 = vmatpush1.msra.mxu0 0.0
    %1664 = vmatprep.subr.mxu0 0.0
    %1665 = vmatpush1.msra.mxu0 0.0
    %1666 = vmatprep.subr.mxu0 0.0
    %1667 = vmatpush1.msra.mxu0 0.0
    %1668 = vmatprep.subr.mxu0 0.0
    %1669 = vmatpush1.msra.mxu0 0.0
    %1670 = vmatprep.subr.mxu0 0.0
    %1671 = vmatpush1.msra.mxu0 0.0
    %1672 = vmatprep.subr.mxu0 0.0
    %1673 = vmatpush1.msra.mxu0 0.0
    %1674 = vmatprep.subr.mxu0 0.0
    %1675 = vmatpush1.msra.mxu0 0.0
    %1676 = vmatprep.subr.mxu0 0.0
    %1677 = vmatpush1.msra.mxu0 0.0
    %1678 = vmatprep.subr.mxu0 0.0
    %1679 = vmatpush1.msra.mxu0 0.0
    %1680 = vmatprep.subr.mxu0 0.0
    %1681 = vmatpush1.msra.mxu0 0.0
    %1682 = vmatprep.subr.mxu0 0.0
    %1683 = vmatpush1.msra.mxu0 0.0
    %1684 = vmatprep.subr.mxu0 0.0
    %1685 = vmatpush1.msra.mxu0 0.0
    %1686 = vmatprep.subr.mxu0 0.0
    %1687 = vmatpush1.msra.mxu0 0.0
    %1688 = vmatprep.subr.mxu0 0.0
    %1689 = vmatpush1.msra.mxu0 0.0
    %1690 = vmatprep.subr.mxu0 0.0
    %1691 = vmatpush1.msra.mxu0 0.0
    %1692 = vmatprep.subr.mxu0 0.0
    %1693 = vmatpush1.msra.mxu0 0.0
    %1694 = vmatprep.subr.mxu0 0.0
    %1695 = vmatpush1.msra.mxu0 0.0
    %1696 = vmatprep.subr.mxu0 0.0
    %1697 = vmatpush1.msra.mxu0 0.0
    %1698 = vmatprep.subr.mxu0 0.0
    %1699 = vmatpush1.msra.mxu0 0.0
    %1700 = vmatprep.mubr.f32.mxu0 0.0
    %1701 = vmatmul.mubr.f32.gmra.mrb[0].mxu0 %v1476
    %v1702 = vpop.f32.mrb[0].mxu0
    %v1703 = vadd.f32 0.0, %v1702
    %v1704 = vpop.f32.mrb[0].mxu0
    %1705 = vdwg.mxu0
    %v1706 = vadd.f32 %v1635, %v1703
    %v1707 = vadd.f32 %v1706, %v406
    %v1708 = vtanh.pop %v1707
    %v1709 = vmul.f32 %v1472, %v412
    %1710 = vmatprep.subr.mxu0 0.0
    %1711 = vmatpush1.msra.mxu0 %v110
    %1712 = vmatprep.subr.mxu0 0.0
    %1713 = vmatpush1.msra.mxu0 %v111
    %1714 = vmatprep.subr.mxu0 0.0
    %1715 = vmatpush1.msra.mxu0 0.0
    %1716 = vmatprep.subr.mxu0 0.0
    %1717 = vmatpush1.msra.mxu0 0.0
    %1718 = vmatprep.subr.mxu0 0.0
    %1719 = vmatpush1.msra.mxu0 0.0
    %1720 = vmatprep.subr.mxu0 0.0
    %1721 = vmatpush1.msra.mxu0 0.0
    %1722 = vmatprep.subr.mxu0 0.0
    %1723 = vmatpush1.msra.mxu0 0.0
    %1724 = vmatprep.subr.mxu0 0.0
    %1725 = vmatpush1.msra.mxu0 0.0
    %1726 = vmatprep.subr.mxu0 0.0
    %1727 = vmatpush1.msra.mxu0 0.0
    %1728 = vmatprep.subr.mxu0 0.0
    %1729 = vmatpush1.msra.mxu0 0.0
    %1730 = vmatprep.subr.mxu0 0.0
    %1731 = vmatpush1.msra.mxu0 0.0
    %1732 = vmatprep.subr.mxu0 0.0
    %1733 = vmatpush1.msra.mxu0 0.0
    %1734 = vmatprep.subr.mxu0 0.0
    %1735 = vmatpush1.msra.mxu0 0.0
    %1736 = vmatprep.subr.mxu0 0.0
    %1737 = vmatpush1.msra.mxu0 0.0
    %1738 = vmatprep.subr.mxu0 0.0
    %1739 = vmatpush1.msra.mxu0 0.0
    %1740 = vmatprep.subr.mxu0 0.0
    %1741 = vmatpush1.msra.mxu0 0.0
    %1742 = vmatprep.subr.mxu0 0.0
    %1743 = vmatpush1.msra.mxu0 0.0
    %1744 = vmatprep.subr.mxu0 0.0
    %1745 = vmatpush1.msra.mxu0 0.0
    %1746 = vmatprep.subr.mxu0 0.0
    %1747 = vmatpush1.msra.mxu0 0.0
    %1748 = vmatprep.subr.mxu0 0.0
    %1749 = vmatpush1.msra.mxu0 0.0
    %1750 = vmatprep.subr.mxu0 0.0
    %1751 = vmatpush1.msra.mxu0 0.0
    %1752 = vmatprep.subr.mxu0 0.0
    %1753 = vmatpush1.msra.mxu0 0.0
    %1754 = vmatprep.subr.mxu0 0.0
    %1755 = vmatpush1.msra.mxu0 0.0
    %1756 = vmatprep.subr.mxu0 0.0
    %1757 = vmatpush1.msra.mxu0 0.0
    %1758 = vmatprep.subr.mxu0 0.0
    %1759 = vmatpush1.msra.mxu0 0.0
    %1760 = vmatprep.subr.mxu0 0.0
    %1761 = vmatpush1.msra.mxu0 0.0
    %1762 = vmatprep.subr.mxu0 0.0
    %1763 = vmatpush1.msra.mxu0 0.0
    %1764 = vmatprep.subr.mxu0 0.0
    %1765 = vmatpush1.msra.mxu0 0.0
    %1766 = vmatprep.subr.mxu0 0.0
    %1767 = vmatpush1.msra.mxu0 0.0
    %1768 = vmatprep.subr.mxu0 0.0
    %1769 = vmatpush1.msra.mxu0 0.0
    %1770 = vmatprep.subr.mxu0 0.0
    %1771 = vmatpush1.msra.mxu0 0.0
    %1772 = vmatprep.subr.mxu0 0.0
    %1773 = vmatpush1.msra.mxu0 0.0
    %1774 = vmatprep.mubr.f32.mxu0 0.0
    %1775 = vmatmul.mubr.f32.gmra.mrb[0].mxu0 %v1476
    %v1776 = vpop.f32.mrb[0].mxu0
    %v1777 = vadd.f32 0.0, %v1776
    %v1778 = vpop.f32.mrb[0].mxu0
    %1779 = vdwg.mxu0
    %v1780 = vadd.f32 %v1709, %v1777
    %v1781 = vadd.f32 %v1780, %v488
    %v1782 = vsub.f32 0.0, %v1781
    %v1783 = vmul.f32 %v1782, 1.442695
    %v1784 = vpow.pop %v1783
    %v1785 = vadd.f32 %v1784, 1.0
    %v1786 = vrcp.pop %v1785
    %v1787 = vmul.f32 1.0, %v1786
    %v1788 = vmul.f32 %v1634, %v1467
    %v1789 = vmul.f32 %v1555, %v1708
    %v1790 = vadd.f32 %v1788, %v1789
    %v1791 = vtanh.pop %v1790
    %v1792 = vmul.f32 %v1787, %v1791
    %1793 = vset.pattern.permute.xlu0 5
    %1794 = vperm.xlu0 %1793, %v95
    %v1795 = vpop.permute.xlu0 %1794
    %v1797 = vmul.f32 %v1795, %v152
    %v1799 = vsel %vm154, %v1792, 0
    %1801 = vmatprep.subr.mxu0 0.0
    %1802 = vmatpush1.msra.mxu0 %v104
    %1803 = vmatprep.subr.mxu0 0.0
    %1804 = vmatpush1.msra.mxu0 %v105
    %1805 = vmatprep.subr.mxu0 0.0
    %1806 = vmatpush1.msra.mxu0 0.0
    %1807 = vmatprep.subr.mxu0 0.0
    %1808 = vmatpush1.msra.mxu0 0.0
    %1809 = vmatprep.subr.mxu0 0.0
    %1810 = vmatpush1.msra.mxu0 0.0
    %1811 = vmatprep.subr.mxu0 0.0
    %1812 = vmatpush1.msra.mxu0 0.0
    %1813 = vmatprep.subr.mxu0 0.0
    %1814 = vmatpush1.msra.mxu0 0.0
    %1815 = vmatprep.subr.mxu0 0.0
    %1816 = vmatpush1.msra.mxu0 0.0
    %1817 = vmatprep.subr.mxu0 0.0
    %1818 = vmatpush1.msra.mxu0 0.0
    %1819 = vmatprep.subr.mxu0 0.0
    %1820 = vmatpush1.msra.mxu0 0.0
    %1821 = vmatprep.subr.mxu0 0.0
    %1822 = vmatpush1.msra.mxu0 0.0
    %1823 = vmatprep.subr.mxu0 0.0
    %1824 = vmatpush1.msra.mxu0 0.0
    %1825 = vmatprep.subr.mxu0 0.0
    %1826 = vmatpush1.msra.mxu0 0.0
    %1827 = vmatprep.subr.mxu0 0.0
    %1828 = vmatpush1.msra.mxu0 0.0
    %1829 = vmatprep.subr.mxu0 0.0
    %1830 = vmatpush1.msra.mxu0 0.0
    %1831 = vmatprep.subr.mxu0 0.0
    %1832 = vmatpush1.msra.mxu0 0.0
    %1833 = vmatprep.subr.mxu0 0.0
    %1834 = vmatpush1.msra.mxu0 0.0
    %1835 = vmatprep.subr.mxu0 0.0
    %1836 = vmatpush1.msra.mxu0 0.0
    %1837 = vmatprep.subr.mxu0 0.0
    %1838 = vmatpush1.msra.mxu0 0.0
    %1839 = vmatprep.subr.mxu0 0.0
    %1840 = vmatpush1.msra.mxu0 0.0
    %1841 = vmatprep.subr.mxu0 0.0
    %1842 = vmatpush1.msra.mxu0 0.0
    %1843 = vmatprep.subr.mxu0 0.0
    %1844 = vmatpush1.msra.mxu0 0.0
    %1845 = vmatprep.subr.mxu0 0.0
    %1846 = vmatpush1.msra.mxu0 0.0
    %1847 = vmatprep.subr.mxu0 0.0
    %1848 = vmatpush1.msra.mxu0 0.0
    %1849 = vmatprep.subr.mxu0 0.0
    %1850 = vmatpush1.msra.mxu0 0.0
    %1851 = vmatprep.subr.mxu0 0.0
    %1852 = vmatpush1.msra.mxu0 0.0
    %1853 = vmatprep.subr.mxu0 0.0
    %1854 = vmatpush1.msra.mxu0 0.0
    %1855 = vmatprep.subr.mxu0 0.0
    %1856 = vmatpush1.msra.mxu0 0.0
    %1857 = vmatprep.subr.mxu0 0.0
    %1858 = vmatpush1.msra.mxu0 0.0
    %1859 = vmatprep.subr.mxu0 0.0
    %1860 = vmatpush1.msra.mxu0 0.0
    %1861 = vmatprep.subr.mxu0 0.0
    %1862 = vmatpush1.msra.mxu0 0.0
    %1863 = vmatprep.subr.mxu0 0.0
    %1864 = vmatpush1.msra.mxu0 0.0
    %1865 = vmatprep.mubr.f32.mxu0 0.0
    %1866 = vmatmul.mubr.f32.gmra.mrb[0].mxu0 %v1799
    %v1867 = vpop.f32.mrb[0].mxu0
    %v1868 = vadd.f32 0.0, %v1867
    %v1869 = vpop.f32.mrb[0].mxu0
    %1870 = vdwg.mxu0
    %v1871 = vadd.f32 %v1797, %v1868
    %v1872 = vadd.f32 %v1871, %v232
    %v1873 = vsub.f32 0.0, %v1872
    %v1874 = vmul.f32 %v1873, 1.442695
    %v1875 = vpow.pop %v1874
    %v1876 = vadd.f32 %v1875, 1.0
    %v1877 = vrcp.pop %v1876
    %v1878 = vmul.f32 1.0, %v1877
    %v1879 = vmul.f32 %v1795, %v243
    %1880 = vmatprep.subr.mxu0 0.0
    %1881 = vmatpush1.msra.mxu0 %v106
    %1882 = vmatprep.subr.mxu0 0.0
    %1883 = vmatpush1.msra.mxu0 %v107
    %1884 = vmatprep.subr.mxu0 0.0
    %1885 = vmatpush1.msra.mxu0 0.0
    %1886 = vmatprep.subr.mxu0 0.0
    %1887 = vmatpush1.msra.mxu0 0.0
    %1888 = vmatprep.subr.mxu0 0.0
    %1889 = vmatpush1.msra.mxu0 0.0
    %1890 = vmatprep.subr.mxu0 0.0
    %1891 = vmatpush1.msra.mxu0 0.0
    %1892 = vmatprep.subr.mxu0 0.0
    %1893 = vmatpush1.msra.mxu0 0.0
    %1894 = vmatprep.subr.mxu0 0.0
    %1895 = vmatpush1.msra.mxu0 0.0
    %1896 = vmatprep.subr.mxu0 0.0
    %1897 = vmatpush1.msra.mxu0 0.0
    %1898 = vmatprep.subr.mxu0 0.0
    %1899 = vmatpush1.msra.mxu0 0.0
    %1900 = vmatprep.subr.mxu0 0.0
    %1901 = vmatpush1.msra.mxu0 0.0
    %1902 = vmatprep.subr.mxu0 0.0
    %1903 = vmatpush1.msra.mxu0 0.0
    %1904 = vmatprep.subr.mxu0 0.0
    %1905 = vmatpush1.msra.mxu0 0.0
    %1906 = vmatprep.subr.mxu0 0.0
    %1907 = vmatpush1.msra.mxu0 0.0
    %1908 = vmatprep.subr.mxu0 0.0
    %1909 = vmatpush1.msra.mxu0 0.0
    %1910 = vmatprep.subr.mxu0 0.0
    %1911 = vmatpush1.msra.mxu0 0.0
    %1912 = vmatprep.subr.mxu0 0.0
    %1913 = vmatpush1.msra.mxu0 0.0
    %1914 = vmatprep.subr.mxu0 0.0
    %1915 = vmatpush1.msra.mxu0 0.0
    %1916 = vmatprep.subr.mxu0 0.0
    %1917 = vmatpush1.msra.mxu0 0.0
    %1918 = vmatprep.subr.mxu0 0.0
    %1919 = vmatpush1.msra.mxu0 0.0
    %1920 = vmatprep.subr.mxu0 0.0
    %1921 = vmatpush1.msra.mxu0 0.0
    %1922 = vmatprep.subr.mxu0 0.0
    %1923 = vmatpush1.msra.mxu0 0.0
    %1924 = vmatprep.subr.mxu0 0.0
    %1925 = vmatpush1.msra.mxu0 0.0
    %1926 = vmatprep.subr.mxu0 0.0
    %1927 = vmatpush1.msra.mxu0 0.0
    %1928 = vmatprep.subr.mxu0 0.0
    %1929 = vmatpush1.msra.mxu0 0.0
    %1930 = vmatprep.subr.mxu0 0.0
    %1931 = vmatpush1.msra.mxu0 0.0
    %1932 = vmatprep.subr.mxu0 0.0
    %1933 = vmatpush1.msra.mxu0 0.0
    %1934 = vmatprep.subr.mxu0 0.0
    %1935 = vmatpush1.msra.mxu0 0.0
    %1936 = vmatprep.subr.mxu0 0.0
    %1937 = vmatpush1.msra.mxu0 0.0
    %1938 = vmatprep.subr.mxu0 0.0
    %1939 = vmatpush1.msra.mxu0 0.0
    %1940 = vmatprep.subr.mxu0 0.0
    %1941 = vmatpush1.msra.mxu0 0.0
    %1942 = vmatprep.subr.mxu0 0.0
    %1943 = vmatpush1.msra.mxu0 0.0
    %1944 = vmatprep.mubr.f32.mxu0 0.0
    %1945 = vmatmul.mubr.f32.gmra.mrb[0].mxu0 %v1799
    %v1946 = vpop.f32.mrb[0].mxu0
    %v1947 = vadd.f32 0.0, %v1946
    %v1948 = vpop.f32.mrb[0].mxu0
    %1949 = vdwg.mxu0
    %v1950 = vadd.f32 %v1879, %v1947
    %v1951 = vadd.f32 %v1950, %v319
    %v1952 = vsub.f32 0.0, %v1951
    %v1953 = vmul.f32 %v1952, 1.442695
    %v1954 = vpow.pop %v1953
    %v1955 = vadd.f32 %v1954, 1.0
    %v1956 = vrcp.pop %v1955
    %v1957 = vmul.f32 1.0, %v1956
    %v1958 = vmul.f32 %v1795, %v330
    %1959 = vmatprep.subr.mxu0 0.0
    %1960 = vmatpush1.msra.mxu0 %v108
    %1961 = vmatprep.subr.mxu0 0.0
    %1962 = vmatpush1.msra.mxu0 %v109
    %1963 = vmatprep.subr.mxu0 0.0
    %1964 = vmatpush1.msra.mxu0 0.0
    %1965 = vmatprep.subr.mxu0 0.0
    %1966 = vmatpush1.msra.mxu0 0.0
    %1967 = vmatprep.subr.mxu0 0.0
    %1968 = vmatpush1.msra.mxu0 0.0
    %1969 = vmatprep.subr.mxu0 0.0
    %1970 = vmatpush1.msra.mxu0 0.0
    %1971 = vmatprep.subr.mxu0 0.0
    %1972 = vmatpush1.msra.mxu0 0.0
    %1973 = vmatprep.subr.mxu0 0.0
    %1974 = vmatpush1.msra.mxu0 0.0
    %1975 = vmatprep.subr.mxu0 0.0
    %1976 = vmatpush1.msra.mxu0 0.0
    %1977 = vmatprep.subr.mxu0 0.0
    %1978 = vmatpush1.msra.mxu0 0.0
    %1979 = vmatprep.subr.mxu0 0.0
    %1980 = vmatpush1.msra.mxu0 0.0
    %1981 = vmatprep.subr.mxu0 0.0
    %1982 = vmatpush1.msra.mxu0 0.0
    %1983 = vmatprep.subr.mxu0 0.0
    %1984 = vmatpush1.msra.mxu0 0.0
    %1985 = vmatprep.subr.mxu0 0.0
    %1986 = vmatpush1.msra.mxu0 0.0
    %1987 = vmatprep.subr.mxu0 0.0
    %1988 = vmatpush1.msra.mxu0 0.0
    %1989 = vmatprep.subr.mxu0 0.0
    %1990 = vmatpush1.msra.mxu0 0.0
    %1991 = vmatprep.subr.mxu0 0.0
    %1992 = vmatpush1.msra.mxu0 0.0
    %1993 = vmatprep.subr.mxu0 0.0
    %1994 = vmatpush1.msra.mxu0 0.0
    %1995 = vmatprep.subr.mxu0 0.0
    %1996 = vmatpush1.msra.mxu0 0.0
    %1997 = vmatprep.subr.mxu0 0.0
    %1998 = vmatpush1.msra.mxu0 0.0
    %1999 = vmatprep.subr.mxu0 0.0
    %2000 = vmatpush1.msra.mxu0 0.0
    %2001 = vmatprep.subr.mxu0 0.0
    %2002 = vmatpush1.msra.mxu0 0.0
    %2003 = vmatprep.subr.mxu0 0.0
    %2004 = vmatpush1.msra.mxu0 0.0
    %2005 = vmatprep.subr.mxu0 0.0
    %2006 = vmatpush1.msra.mxu0 0.0
    %2007 = vmatprep.subr.mxu0 0.0
    %2008 = vmatpush1.msra.mxu0 0.0
    %2009 = vmatprep.subr.mxu0 0.0
    %2010 = vmatpush1.msra.mxu0 0.0
    %2011 = vmatprep.subr.mxu0 0.0
    %2012 = vmatpush1.msra.mxu0 0.0
    %2013 = vmatprep.subr.mxu0 0.0
    %2014 = vmatpush1.msra.mxu0 0.0
    %2015 = vmatprep.subr.mxu0 0.0
    %2016 = vmatpush1.msra.mxu0 0.0
    %2017 = vmatprep.subr.mxu0 0.0
    %2018 = vmatpush1.msra.mxu0 0.0
    %2019 = vmatprep.subr.mxu0 0.0
    %2020 = vmatpush1.msra.mxu0 0.0
    %2021 = vmatprep.subr.mxu0 0.0
    %2022 = vmatpush1.msra.mxu0 0.0
    %2023 = vmatprep.mubr.f32.mxu0 0.0
    %2024 = vmatmul.mubr.f32.gmra.mrb[0].mxu0 %v1799
    %v2025 = vpop.f32.mrb[0].mxu0
    %v2026 = vadd.f32 0.0, %v2025
    %v2027 = vpop.f32.mrb[0].mxu0
    %2028 = vdwg.mxu0
    %v2029 = vadd.f32 %v1958, %v2026
    %v2030 = vadd.f32 %v2029, %v406
    %v2031 = vtanh.pop %v2030
    %v2032 = vmul.f32 %v1795, %v412
    %2033 = vmatprep.subr.mxu0 0.0
    %2034 = vmatpush1.msra.mxu0 %v110
    %2035 = vmatprep.subr.mxu0 0.0
    %2036 = vmatpush1.msra.mxu0 %v111
    %2037 = vmatprep.subr.mxu0 0.0
    %2038 = vmatpush1.msra.mxu0 0.0
    %2039 = vmatprep.subr.mxu0 0.0
    %2040 = vmatpush1.msra.mxu0 0.0
    %2041 = vmatprep.subr.mxu0 0.0
    %2042 = vmatpush1.msra.mxu0 0.0
    %2043 = vmatprep.subr.mxu0 0.0
    %2044 = vmatpush1.msra.mxu0 0.0
    %2045 = vmatprep.subr.mxu0 0.0
    %2046 = vmatpush1.msra.mxu0 0.0
    %2047 = vmatprep.subr.mxu0 0.0
    %2048 = vmatpush1.msra.mxu0 0.0
    %2049 = vmatprep.subr.mxu0 0.0
    %2050 = vmatpush1.msra.mxu0 0.0
    %2051 = vmatprep.subr.mxu0 0.0
    %2052 = vmatpush1.msra.mxu0 0.0
    %2053 = vmatprep.subr.mxu0 0.0
    %2054 = vmatpush1.msra.mxu0 0.0
    %2055 = vmatprep.subr.mxu0 0.0
    %2056 = vmatpush1.msra.mxu0 0.0
    %2057 = vmatprep.subr.mxu0 0.0
    %2058 = vmatpush1.msra.mxu0 0.0
    %2059 = vmatprep.subr.mxu0 0.0
    %2060 = vmatpush1.msra.mxu0 0.0
    %2061 = vmatprep.subr.mxu0 0.0
    %2062 = vmatpush1.msra.mxu0 0.0
    %2063 = vmatprep.subr.mxu0 0.0
    %2064 = vmatpush1.msra.mxu0 0.0
    %2065 = vmatprep.subr.mxu0 0.0
    %2066 = vmatpush1.msra.mxu0 0.0
    %2067 = vmatprep.subr.mxu0 0.0
    %2068 = vmatpush1.msra.mxu0 0.0
    %2069 = vmatprep.subr.mxu0 0.0
    %2070 = vmatpush1.msra.mxu0 0.0
    %2071 = vmatprep.subr.mxu0 0.0
    %2072 = vmatpush1.msra.mxu0 0.0
    %2073 = vmatprep.subr.mxu0 0.0
    %2074 = vmatpush1.msra.mxu0 0.0
    %2075 = vmatprep.subr.mxu0 0.0
    %2076 = vmatpush1.msra.mxu0 0.0
    %2077 = vmatprep.subr.mxu0 0.0
    %2078 = vmatpush1.msra.mxu0 0.0
    %2079 = vmatprep.subr.mxu0 0.0
    %2080 = vmatpush1.msra.mxu0 0.0
    %2081 = vmatprep.subr.mxu0 0.0
    %2082 = vmatpush1.msra.mxu0 0.0
    %2083 = vmatprep.subr.mxu0 0.0
    %2084 = vmatpush1.msra.mxu0 0.0
    %2085 = vmatprep.subr.mxu0 0.0
    %2086 = vmatpush1.msra.mxu0 0.0
    %2087 = vmatprep.subr.mxu0 0.0
    %2088 = vmatpush1.msra.mxu0 0.0
    %2089 = vmatprep.subr.mxu0 0.0
    %2090 = vmatpush1.msra.mxu0 0.0
    %2091 = vmatprep.subr.mxu0 0.0
    %2092 = vmatpush1.msra.mxu0 0.0
    %2093 = vmatprep.subr.mxu0 0.0
    %2094 = vmatpush1.msra.mxu0 0.0
    %2095 = vmatprep.subr.mxu0 0.0
    %2096 = vmatpush1.msra.mxu0 0.0
    %2097 = vmatprep.mubr.f32.mxu0 0.0
    %2098 = vmatmul.mubr.f32.gmra.mrb[0].mxu0 %v1799
    %v2099 = vpop.f32.mrb[0].mxu0
    %v2100 = vadd.f32 0.0, %v2099
    %v2101 = vpop.f32.mrb[0].mxu0
    %2102 = vdwg.mxu0
    %v2103 = vadd.f32 %v2032, %v2100
    %v2104 = vadd.f32 %v2103, %v488
    %v2105 = vsub.f32 0.0, %v2104
    %v2106 = vmul.f32 %v2105, 1.442695
    %v2107 = vpow.pop %v2106
    %v2108 = vadd.f32 %v2107, 1.0
    %v2109 = vrcp.pop %v2108
    %v2110 = vmul.f32 1.0, %v2109
    %v2111 = vmul.f32 %v1957, %v1790
    %v2112 = vmul.f32 %v1878, %v2031
    %v2113 = vadd.f32 %v2111, %v2112
    %v2114 = vtanh.pop %v2113
    %v2115 = vmul.f32 %v2110, %v2114
    %2116 = vset.pattern.permute.xlu0 6
    %2117 = vperm.xlu0 %2116, %v95
    %v2118 = vpop.permute.xlu0 %2117
    %v2120 = vmul.f32 %v2118, %v152
    %v2122 = vsel %vm154, %v2115, 0
    %2124 = vmatprep.subr.mxu0 0.0
    %2125 = vmatpush1.msra.mxu0 %v104
    %2126 = vmatprep.subr.mxu0 0.0
    %2127 = vmatpush1.msra.mxu0 %v105
    %2128 = vmatprep.subr.mxu0 0.0
    %2129 = vmatpush1.msra.mxu0 0.0
    %2130 = vmatprep.subr.mxu0 0.0
    %2131 = vmatpush1.msra.mxu0 0.0
    %2132 = vmatprep.subr.mxu0 0.0
    %2133 = vmatpush1.msra.mxu0 0.0
    %2134 = vmatprep.subr.mxu0 0.0
    %2135 = vmatpush1.msra.mxu0 0.0
    %2136 = vmatprep.subr.mxu0 0.0
    %2137 = vmatpush1.msra.mxu0 0.0
    %2138 = vmatprep.subr.mxu0 0.0
    %2139 = vmatpush1.msra.mxu0 0.0
    %2140 = vmatprep.subr.mxu0 0.0
    %2141 = vmatpush1.msra.mxu0 0.0
    %2142 = vmatprep.subr.mxu0 0.0
    %2143 = vmatpush1.msra.mxu0 0.0
    %2144 = vmatprep.subr.mxu0 0.0
    %2145 = vmatpush1.msra.mxu0 0.0
    %2146 = vmatprep.subr.mxu0 0.0
    %2147 = vmatpush1.msra.mxu0 0.0
    %2148 = vmatprep.subr.mxu0 0.0
    %2149 = vmatpush1.msra.mxu0 0.0
    %2150 = vmatprep.subr.mxu0 0.0
    %2151 = vmatpush1.msra.mxu0 0.0
    %2152 = vmatprep.subr.mxu0 0.0
    %2153 = vmatpush1.msra.mxu0 0.0
    %2154 = vmatprep.subr.mxu0 0.0
    %2155 = vmatpush1.msra.mxu0 0.0
    %2156 = vmatprep.subr.mxu0 0.0
    %2157 = vmatpush1.msra.mxu0 0.0
    %2158 = vmatprep.subr.mxu0 0.0
    %2159 = vmatpush1.msra.mxu0 0.0
    %2160 = vmatprep.subr.mxu0 0.0
    %2161 = vmatpush1.msra.mxu0 0.0
    %2162 = vmatprep.subr.mxu0 0.0
    %2163 = vmatpush1.msra.mxu0 0.0
    %2164 = vmatprep.subr.mxu0 0.0
    %2165 = vmatpush1.msra.mxu0 0.0
    %2166 = vmatprep.subr.mxu0 0.0
    %2167 = vmatpush1.msra.mxu0 0.0
    %2168 = vmatprep.subr.mxu0 0.0
    %2169 = vmatpush1.msra.mxu0 0.0
    %2170 = vmatprep.subr.mxu0 0.0
    %2171 = vmatpush1.msra.mxu0 0.0
    %2172 = vmatprep.subr.mxu0 0.0
    %2173 = vmatpush1.msra.mxu0 0.0
    %2174 = vmatprep.subr.mxu0 0.0
    %2175 = vmatpush1.msra.mxu0 0.0
    %2176 = vmatprep.subr.mxu0 0.0
    %2177 = vmatpush1.msra.mxu0 0.0
    %2178 = vmatprep.subr.mxu0 0.0
    %2179 = vmatpush1.msra.mxu0 0.0
    %2180 = vmatprep.subr.mxu0 0.0
    %2181 = vmatpush1.msra.mxu0 0.0
    %2182 = vmatprep.subr.mxu0 0.0
    %2183 = vmatpush1.msra.mxu0 0.0
    %2184 = vmatprep.subr.mxu0 0.0
    %2185 = vmatpush1.msra.mxu0 0.0
    %2186 = vmatprep.subr.mxu0 0.0
    %2187 = vmatpush1.msra.mxu0 0.0
    %2188 = vmatprep.mubr.f32.mxu0 0.0
    %2189 = vmatmul.mubr.f32.gmra.mrb[0].mxu0 %v2122
    %v2190 = vpop.f32.mrb[0].mxu0
    %v2191 = vadd.f32 0.0, %v2190
    %v2192 = vpop.f32.mrb[0].mxu0
    %2193 = vdwg.mxu0
    %v2194 = vadd.f32 %v2120, %v2191
    %v2195 = vadd.f32 %v2194, %v232
    %v2196 = vsub.f32 0.0, %v2195
    %v2197 = vmul.f32 %v2196, 1.442695
    %v2198 = vpow.pop %v2197
    %v2199 = vadd.f32 %v2198, 1.0
    %v2200 = vrcp.pop %v2199
    %v2201 = vmul.f32 1.0, %v2200
    %v2202 = vmul.f32 %v2118, %v243
    %2203 = vmatprep.subr.mxu0 0.0
    %2204 = vmatpush1.msra.mxu0 %v106
    %2205 = vmatprep.subr.mxu0 0.0
    %2206 = vmatpush1.msra.mxu0 %v107
    %2207 = vmatprep.subr.mxu0 0.0
    %2208 = vmatpush1.msra.mxu0 0.0
    %2209 = vmatprep.subr.mxu0 0.0
    %2210 = vmatpush1.msra.mxu0 0.0
    %2211 = vmatprep.subr.mxu0 0.0
    %2212 = vmatpush1.msra.mxu0 0.0
    %2213 = vmatprep.subr.mxu0 0.0
    %2214 = vmatpush1.msra.mxu0 0.0
    %2215 = vmatprep.subr.mxu0 0.0
    %2216 = vmatpush1.msra.mxu0 0.0
    %2217 = vmatprep.subr.mxu0 0.0
    %2218 = vmatpush1.msra.mxu0 0.0
    %2219 = vmatprep.subr.mxu0 0.0
    %2220 = vmatpush1.msra.mxu0 0.0
    %2221 = vmatprep.subr.mxu0 0.0
    %2222 = vmatpush1.msra.mxu0 0.0
    %2223 = vmatprep.subr.mxu0 0.0
    %2224 = vmatpush1.msra.mxu0 0.0
    %2225 = vmatprep.subr.mxu0 0.0
    %2226 = vmatpush1.msra.mxu0 0.0
    %2227 = vmatprep.subr.mxu0 0.0
    %2228 = vmatpush1.msra.mxu0 0.0
    %2229 = vmatprep.subr.mxu0 0.0
    %2230 = vmatpush1.msra.mxu0 0.0
    %2231 = vmatprep.subr.mxu0 0.0
    %2232 = vmatpush1.msra.mxu0 0.0
    %2233 = vmatprep.subr.mxu0 0.0
    %2234 = vmatpush1.msra.mxu0 0.0
    %2235 = vmatprep.subr.mxu0 0.0
    %2236 = vmatpush1.msra.mxu0 0.0
    %2237 = vmatprep.subr.mxu0 0.0
    %2238 = vmatpush1.msra.mxu0 0.0
    %2239 = vmatprep.subr.mxu0 0.0
    %2240 = vmatpush1.msra.mxu0 0.0
    %2241 = vmatprep.subr.mxu0 0.0
    %2242 = vmatpush1.msra.mxu0 0.0
    %2243 = vmatprep.subr.mxu0 0.0
    %2244 = vmatpush1.msra.mxu0 0.0
    %2245 = vmatprep.subr.mxu0 0.0
    %2246 = vmatpush1.msra.mxu0 0.0
    %2247 = vmatprep.subr.mxu0 0.0
    %2248 = vmatpush1.msra.mxu0 0.0
    %2249 = vmatprep.subr.mxu0 0.0
    %2250 = vmatpush1.msra.mxu0 0.0
    %2251 = vmatprep.subr.mxu0 0.0
    %2252 = vmatpush1.msra.mxu0 0.0
    %2253 = vmatprep.subr.mxu0 0.0
    %2254 = vmatpush1.msra.mxu0 0.0
    %2255 = vmatprep.subr.mxu0 0.0
    %2256 = vmatpush1.msra.mxu0 0.0
    %2257 = vmatprep.subr.mxu0 0.0
    %2258 = vmatpush1.msra.mxu0 0.0
    %2259 = vmatprep.subr.mxu0 0.0
    %2260 = vmatpush1.msra.mxu0 0.0
    %2261 = vmatprep.subr.mxu0 0.0
    %2262 = vmatpush1.msra.mxu0 0.0
    %2263 = vmatprep.subr.mxu0 0.0
    %2264 = vmatpush1.msra.mxu0 0.0
    %2265 = vmatprep.subr.mxu0 0.0
    %2266 = vmatpush1.msra.mxu0 0.0
    %2267 = vmatprep.mubr.f32.mxu0 0.0
    %2268 = vmatmul.mubr.f32.gmra.mrb[0].mxu0 %v2122
    %v2269 = vpop.f32.mrb[0].mxu0
    %v2270 = vadd.f32 0.0, %v2269
    %v2271 = vpop.f32.mrb[0].mxu0
    %2272 = vdwg.mxu0
    %v2273 = vadd.f32 %v2202, %v2270
    %v2274 = vadd.f32 %v2273, %v319
    %v2275 = vsub.f32 0.0, %v2274
    %v2276 = vmul.f32 %v2275, 1.442695
    %v2277 = vpow.pop %v2276
    %v2278 = vadd.f32 %v2277, 1.0
    %v2279 = vrcp.pop %v2278
    %v2280 = vmul.f32 1.0, %v2279
    %v2281 = vmul.f32 %v2118, %v330
    %2282 = vmatprep.subr.mxu0 0.0
    %2283 = vmatpush1.msra.mxu0 %v108
    %2284 = vmatprep.subr.mxu0 0.0
    %2285 = vmatpush1.msra.mxu0 %v109
    %2286 = vmatprep.subr.mxu0 0.0
    %2287 = vmatpush1.msra.mxu0 0.0
    %2288 = vmatprep.subr.mxu0 0.0
    %2289 = vmatpush1.msra.mxu0 0.0
    %2290 = vmatprep.subr.mxu0 0.0
    %2291 = vmatpush1.msra.mxu0 0.0
    %2292 = vmatprep.subr.mxu0 0.0
    %2293 = vmatpush1.msra.mxu0 0.0
    %2294 = vmatprep.subr.mxu0 0.0
    %2295 = vmatpush1.msra.mxu0 0.0
    %2296 = vmatprep.subr.mxu0 0.0
    %2297 = vmatpush1.msra.mxu0 0.0
    %2298 = vmatprep.subr.mxu0 0.0
    %2299 = vmatpush1.msra.mxu0 0.0
    %2300 = vmatprep.subr.mxu0 0.0
    %2301 = vmatpush1.msra.mxu0 0.0
    %2302 = vmatprep.subr.mxu0 0.0
    %2303 = vmatpush1.msra.mxu0 0.0
    %2304 = vmatprep.subr.mxu0 0.0
    %2305 = vmatpush1.msra.mxu0 0.0
    %2306 = vmatprep.subr.mxu0 0.0
    %2307 = vmatpush1.msra.mxu0 0.0
    %2308 = vmatprep.subr.mxu0 0.0
    %2309 = vmatpush1.msra.mxu0 0.0
    %2310 = vmatprep.subr.mxu0 0.0
    %2311 = vmatpush1.msra.mxu0 0.0
    %2312 = vmatprep.subr.mxu0 0.0
    %2313 = vmatpush1.msra.mxu0 0.0
    %2314 = vmatprep.subr.mxu0 0.0
    %2315 = vmatpush1.msra.mxu0 0.0
    %2316 = vmatprep.subr.mxu0 0.0
    %2317 = vmatpush1.msra.mxu0 0.0
    %2318 = vmatprep.subr.mxu0 0.0
    %2319 = vmatpush1.msra.mxu0 0.0
    %2320 = vmatprep.subr.mxu0 0.0
    %2321 = vmatpush1.msra.mxu0 0.0
    %2322 = vmatprep.subr.mxu0 0.0
    %2323 = vmatpush1.msra.mxu0 0.0
    %2324 = vmatprep.subr.mxu0 0.0
    %2325 = vmatpush1.msra.mxu0 0.0
    %2326 = vmatprep.subr.mxu0 0.0
    %2327 = vmatpush1.msra.mxu0 0.0
    %2328 = vmatprep.subr.mxu0 0.0
    %2329 = vmatpush1.msra.mxu0 0.0
    %2330 = vmatprep.subr.mxu0 0.0
    %2331 = vmatpush1.msra.mxu0 0.0
    %2332 = vmatprep.subr.mxu0 0.0
    %2333 = vmatpush1.msra.mxu0 0.0
    %2334 = vmatprep.subr.mxu0 0.0
    %2335 = vmatpush1.msra.mxu0 0.0
    %2336 = vmatprep.subr.mxu0 0.0
    %2337 = vmatpush1.msra.mxu0 0.0
    %2338 = vmatprep.subr.mxu0 0.0
    %2339 = vmatpush1.msra.mxu0 0.0
    %2340 = vmatprep.subr.mxu0 0.0
    %2341 = vmatpush1.msra.mxu0 0.0
    %2342 = vmatprep.subr.mxu0 0.0
    %2343 = vmatpush1.msra.mxu0 0.0
    %2344 = vmatprep.subr.mxu0 0.0
    %2345 = vmatpush1.msra.mxu0 0.0
    %2346 = vmatprep.mubr.f32.mxu0 0.0
    %2347 = vmatmul.mubr.f32.gmra.mrb[0].mxu0 %v2122
    %v2348 = vpop.f32.mrb[0].mxu0
    %v2349 = vadd.f32 0.0, %v2348
    %v2350 = vpop.f32.mrb[0].mxu0
    %2351 = vdwg.mxu0
    %v2352 = vadd.f32 %v2281, %v2349
    %v2353 = vadd.f32 %v2352, %v406
    %v2354 = vtanh.pop %v2353
    %v2355 = vmul.f32 %v2118, %v412
    %2356 = vmatprep.subr.mxu0 0.0
    %2357 = vmatpush1.msra.mxu0 %v110
    %2358 = vmatprep.subr.mxu0 0.0
    %2359 = vmatpush1.msra.mxu0 %v111
    %2360 = vmatprep.subr.mxu0 0.0
    %2361 = vmatpush1.msra.mxu0 0.0
    %2362 = vmatprep.subr.mxu0 0.0
    %2363 = vmatpush1.msra.mxu0 0.0
    %2364 = vmatprep.subr.mxu0 0.0
    %2365 = vmatpush1.msra.mxu0 0.0
    %2366 = vmatprep.subr.mxu0 0.0
    %2367 = vmatpush1.msra.mxu0 0.0
    %2368 = vmatprep.subr.mxu0 0.0
    %2369 = vmatpush1.msra.mxu0 0.0
    %2370 = vmatprep.subr.mxu0 0.0
    %2371 = vmatpush1.msra.mxu0 0.0
    %2372 = vmatprep.subr.mxu0 0.0
    %2373 = vmatpush1.msra.mxu0 0.0
    %2374 = vmatprep.subr.mxu0 0.0
    %2375 = vmatpush1.msra.mxu0 0.0
    %2376 = vmatprep.subr.mxu0 0.0
    %2377 = vmatpush1.msra.mxu0 0.0
    %2378 = vmatprep.subr.mxu0 0.0
    %2379 = vmatpush1.msra.mxu0 0.0
    %2380 = vmatprep.subr.mxu0 0.0
    %2381 = vmatpush1.msra.mxu0 0.0
    %2382 = vmatprep.subr.mxu0 0.0
    %2383 = vmatpush1.msra.mxu0 0.0
    %2384 = vmatprep.subr.mxu0 0.0
    %2385 = vmatpush1.msra.mxu0 0.0
    %2386 = vmatprep.subr.mxu0 0.0
    %2387 = vmatpush1.msra.mxu0 0.0
    %2388 = vmatprep.subr.mxu0 0.0
    %2389 = vmatpush1.msra.mxu0 0.0
    %2390 = vmatprep.subr.mxu0 0.0
    %2391 = vmatpush1.msra.mxu0 0.0
    %2392 = vmatprep.subr.mxu0 0.0
    %2393 = vmatpush1.msra.mxu0 0.0
    %2394 = vmatprep.subr.mxu0 0.0
    %2395 = vmatpush1.msra.mxu0 0.0
    %2396 = vmatprep.subr.mxu0 0.0
    %2397 = vmatpush1.msra.mxu0 0.0
    %2398 = vmatprep.subr.mxu0 0.0
    %2399 = vmatpush1.msra.mxu0 0.0
    %2400 = vmatprep.subr.mxu0 0.0
    %2401 = vmatpush1.msra.mxu0 0.0
    %2402 = vmatprep.subr.mxu0 0.0
    %2403 = vmatpush1.msra.mxu0 0.0
    %2404 = vmatprep.subr.mxu0 0.0
    %2405 = vmatpush1.msra.mxu0 0.0
    %2406 = vmatprep.subr.mxu0 0.0
    %2407 = vmatpush1.msra.mxu0 0.0
    %2408 = vmatprep.subr.mxu0 0.0
    %2409 = vmatpush1.msra.mxu0 0.0
    %2410 = vmatprep.subr.mxu0 0.0
    %2411 = vmatpush1.msra.mxu0 0.0
    %2412 = vmatprep.subr.mxu0 0.0
    %2413 = vmatpush1.msra.mxu0 0.0
    %2414 = vmatprep.subr.mxu0 0.0
    %2415 = vmatpush1.msra.mxu0 0.0
    %2416 = vmatprep.subr.mxu0 0.0
    %2417 = vmatpush1.msra.mxu0 0.0
    %2418 = vmatprep.subr.mxu0 0.0
    %2419 = vmatpush1.msra.mxu0 0.0
    %2420 = vmatprep.mubr.f32.mxu0 0.0
    %2421 = vmatmul.mubr.f32.gmra.mrb[0].mxu0 %v2122
    %v2422 = vpop.f32.mrb[0].mxu0
    %v2423 = vadd.f32 0.0, %v2422
    %v2424 = vpop.f32.mrb[0].mxu0
    %2425 = vdwg.mxu0
    %v2426 = vadd.f32 %v2355, %v2423
    %v2427 = vadd.f32 %v2426, %v488
    %v2428 = vsub.f32 0.0, %v2427
    %v2429 = vmul.f32 %v2428, 1.442695
    %v2430 = vpow.pop %v2429
    %v2431 = vadd.f32 %v2430, 1.0
    %v2432 = vrcp.pop %v2431
    %v2433 = vmul.f32 1.0, %v2432
    %v2434 = vmul.f32 %v2280, %v2113
    %v2435 = vmul.f32 %v2201, %v2354
    %v2436 = vadd.f32 %v2434, %v2435
    %v2437 = vtanh.pop %v2436
    %v2438 = vmul.f32 %v2433, %v2437
    %2439 = vset.pattern.permute.xlu0 7
    %2440 = vperm.xlu0 %2439, %v95
    %v2441 = vpop.permute.xlu0 %2440
    %v2443 = vmul.f32 %v2441, %v152
    %v2445 = vsel %vm154, %v2438, 0
    %2447 = vmatprep.subr.mxu0 0.0
    %2448 = vmatpush1.msra.mxu0 %v104
    %2449 = vmatprep.subr.mxu0 0.0
    %2450 = vmatpush1.msra.mxu0 %v105
    %2451 = vmatprep.subr.mxu0 0.0
    %2452 = vmatpush1.msra.mxu0 0.0
    %2453 = vmatprep.subr.mxu0 0.0
    %2454 = vmatpush1.msra.mxu0 0.0
    %2455 = vmatprep.subr.mxu0 0.0
    %2456 = vmatpush1.msra.mxu0 0.0
    %2457 = vmatprep.subr.mxu0 0.0
    %2458 = vmatpush1.msra.mxu0 0.0
    %2459 = vmatprep.subr.mxu0 0.0
    %2460 = vmatpush1.msra.mxu0 0.0
    %2461 = vmatprep.subr.mxu0 0.0
    %2462 = vmatpush1.msra.mxu0 0.0
    %2463 = vmatprep.subr.mxu0 0.0
    %2464 = vmatpush1.msra.mxu0 0.0
    %2465 = vmatprep.subr.mxu0 0.0
    %2466 = vmatpush1.msra.mxu0 0.0
    %2467 = vmatprep.subr.mxu0 0.0
    %2468 = vmatpush1.msra.mxu0 0.0
    %2469 = vmatprep.subr.mxu0 0.0
    %2470 = vmatpush1.msra.mxu0 0.0
    %2471 = vmatprep.subr.mxu0 0.0
    %2472 = vmatpush1.msra.mxu0 0.0
    %2473 = vmatprep.subr.mxu0 0.0
    %2474 = vmatpush1.msra.mxu0 0.0
    %2475 = vmatprep.subr.mxu0 0.0
    %2476 = vmatpush1.msra.mxu0 0.0
    %2477 = vmatprep.subr.mxu0 0.0
    %2478 = vmatpush1.msra.mxu0 0.0
    %2479 = vmatprep.subr.mxu0 0.0
    %2480 = vmatpush1.msra.mxu0 0.0
    %2481 = vmatprep.subr.mxu0 0.0
    %2482 = vmatpush1.msra.mxu0 0.0
    %2483 = vmatprep.subr.mxu0 0.0
    %2484 = vmatpush1.msra.mxu0 0.0
    %2485 = vmatprep.subr.mxu0 0.0
    %2486 = vmatpush1.msra.mxu0 0.0
    %2487 = vmatprep.subr.mxu0 0.0
    %2488 = vmatpush1.msra.mxu0 0.0
    %2489 = vmatprep.subr.mxu0 0.0
    %2490 = vmatpush1.msra.mxu0 0.0
    %2491 = vmatprep.subr.mxu0 0.0
    %2492 = vmatpush1.msra.mxu0 0.0
    %2493 = vmatprep.subr.mxu0 0.0
    %2494 = vmatpush1.msra.mxu0 0.0
    %2495 = vmatprep.subr.mxu0 0.0
    %2496 = vmatpush1.msra.mxu0 0.0
    %2497 = vmatprep.subr.mxu0 0.0
    %2498 = vmatpush1.msra.mxu0 0.0
    %2499 = vmatprep.subr.mxu0 0.0
    %2500 = vmatpush1.msra.mxu0 0.0
    %2501 = vmatprep.subr.mxu0 0.0
    %2502 = vmatpush1.msra.mxu0 0.0
    %2503 = vmatprep.subr.mxu0 0.0
    %2504 = vmatpush1.msra.mxu0 0.0
    %2505 = vmatprep.subr.mxu0 0.0
    %2506 = vmatpush1.msra.mxu0 0.0
    %2507 = vmatprep.subr.mxu0 0.0
    %2508 = vmatpush1.msra.mxu0 0.0
    %2509 = vmatprep.subr.mxu0 0.0
    %2510 = vmatpush1.msra.mxu0 0.0
    %2511 = vmatprep.mubr.f32.mxu0 0.0
    %2512 = vmatmul.mubr.f32.gmra.mrb[0].mxu0 %v2445
    %v2513 = vpop.f32.mrb[0].mxu0
    %v2514 = vadd.f32 0.0, %v2513
    %v2515 = vpop.f32.mrb[0].mxu0
    %2516 = vdwg.mxu0
    %v2517 = vadd.f32 %v2443, %v2514
    %v2518 = vadd.f32 %v2517, %v232
    %v2519 = vsub.f32 0.0, %v2518
    %v2520 = vmul.f32 %v2519, 1.442695
    %v2521 = vpow.pop %v2520
    %v2522 = vadd.f32 %v2521, 1.0
    %v2523 = vrcp.pop %v2522
    %v2524 = vmul.f32 1.0, %v2523
    %v2525 = vmul.f32 %v2441, %v243
    %2526 = vmatprep.subr.mxu0 0.0
    %2527 = vmatpush1.msra.mxu0 %v106
    %2528 = vmatprep.subr.mxu0 0.0
    %2529 = vmatpush1.msra.mxu0 %v107
    %2530 = vmatprep.subr.mxu0 0.0
    %2531 = vmatpush1.msra.mxu0 0.0
    %2532 = vmatprep.subr.mxu0 0.0
    %2533 = vmatpush1.msra.mxu0 0.0
    %2534 = vmatprep.subr.mxu0 0.0
    %2535 = vmatpush1.msra.mxu0 0.0
    %2536 = vmatprep.subr.mxu0 0.0
    %2537 = vmatpush1.msra.mxu0 0.0
    %2538 = vmatprep.subr.mxu0 0.0
    %2539 = vmatpush1.msra.mxu0 0.0
    %2540 = vmatprep.subr.mxu0 0.0
    %2541 = vmatpush1.msra.mxu0 0.0
    %2542 = vmatprep.subr.mxu0 0.0
    %2543 = vmatpush1.msra.mxu0 0.0
    %2544 = vmatprep.subr.mxu0 0.0
    %2545 = vmatpush1.msra.mxu0 0.0
    %2546 = vmatprep.subr.mxu0 0.0
    %2547 = vmatpush1.msra.mxu0 0.0
    %2548 = vmatprep.subr.mxu0 0.0
    %2549 = vmatpush1.msra.mxu0 0.0
    %2550 = vmatprep.subr.mxu0 0.0
    %2551 = vmatpush1.msra.mxu0 0.0
    %2552 = vmatprep.subr.mxu0 0.0
    %2553 = vmatpush1.msra.mxu0 0.0
    %2554 = vmatprep.subr.mxu0 0.0
    %2555 = vmatpush1.msra.mxu0 0.0
    %2556 = vmatprep.subr.mxu0 0.0
    %2557 = vmatpush1.msra.mxu0 0.0
    %2558 = vmatprep.subr.mxu0 0.0
    %2559 = vmatpush1.msra.mxu0 0.0
    %2560 = vmatprep.subr.mxu0 0.0
    %2561 = vmatpush1.msra.mxu0 0.0
    %2562 = vmatprep.subr.mxu0 0.0
    %2563 = vmatpush1.msra.mxu0 0.0
    %2564 = vmatprep.subr.mxu0 0.0
    %2565 = vmatpush1.msra.mxu0 0.0
    %2566 = vmatprep.subr.mxu0 0.0
    %2567 = vmatpush1.msra.mxu0 0.0
    %2568 = vmatprep.subr.mxu0 0.0
    %2569 = vmatpush1.msra.mxu0 0.0
    %2570 = vmatprep.subr.mxu0 0.0
    %2571 = vmatpush1.msra.mxu0 0.0
    %2572 = vmatprep.subr.mxu0 0.0
    %2573 = vmatpush1.msra.mxu0 0.0
    %2574 = vmatprep.subr.mxu0 0.0
    %2575 = vmatpush1.msra.mxu0 0.0
    %2576 = vmatprep.subr.mxu0 0.0
    %2577 = vmatpush1.msra.mxu0 0.0
    %2578 = vmatprep.subr.mxu0 0.0
    %2579 = vmatpush1.msra.mxu0 0.0
    %2580 = vmatprep.subr.mxu0 0.0
    %2581 = vmatpush1.msra.mxu0 0.0
    %2582 = vmatprep.subr.mxu0 0.0
    %2583 = vmatpush1.msra.mxu0 0.0
    %2584 = vmatprep.subr.mxu0 0.0
    %2585 = vmatpush1.msra.mxu0 0.0
    %2586 = vmatprep.subr.mxu0 0.0
    %2587 = vmatpush1.msra.mxu0 0.0
    %2588 = vmatprep.subr.mxu0 0.0
    %2589 = vmatpush1.msra.mxu0 0.0
    %2590 = vmatprep.mubr.f32.mxu0 0.0
    %2591 = vmatmul.mubr.f32.gmra.mrb[0].mxu0 %v2445
    %v2592 = vpop.f32.mrb[0].mxu0
    %v2593 = vadd.f32 0.0, %v2592
    %v2594 = vpop.f32.mrb[0].mxu0
    %2595 = vdwg.mxu0
    %v2596 = vadd.f32 %v2525, %v2593
    %v2597 = vadd.f32 %v2596, %v319
    %v2598 = vsub.f32 0.0, %v2597
    %v2599 = vmul.f32 %v2598, 1.442695
    %v2600 = vpow.pop %v2599
    %v2601 = vadd.f32 %v2600, 1.0
    %v2602 = vrcp.pop %v2601
    %v2603 = vmul.f32 1.0, %v2602
    %v2604 = vmul.f32 %v2441, %v330
    %2605 = vmatprep.subr.mxu0 0.0
    %2606 = vmatpush1.msra.mxu0 %v108
    %2607 = vmatprep.subr.mxu0 0.0
    %2608 = vmatpush1.msra.mxu0 %v109
    %2609 = vmatprep.subr.mxu0 0.0
    %2610 = vmatpush1.msra.mxu0 0.0
    %2611 = vmatprep.subr.mxu0 0.0
    %2612 = vmatpush1.msra.mxu0 0.0
    %2613 = vmatprep.subr.mxu0 0.0
    %2614 = vmatpush1.msra.mxu0 0.0
    %2615 = vmatprep.subr.mxu0 0.0
    %2616 = vmatpush1.msra.mxu0 0.0
    %2617 = vmatprep.subr.mxu0 0.0
    %2618 = vmatpush1.msra.mxu0 0.0
    %2619 = vmatprep.subr.mxu0 0.0
    %2620 = vmatpush1.msra.mxu0 0.0
    %2621 = vmatprep.subr.mxu0 0.0
    %2622 = vmatpush1.msra.mxu0 0.0
    %2623 = vmatprep.subr.mxu0 0.0
    %2624 = vmatpush1.msra.mxu0 0.0
    %2625 = vmatprep.subr.mxu0 0.0
    %2626 = vmatpush1.msra.mxu0 0.0
    %2627 = vmatprep.subr.mxu0 0.0
    %2628 = vmatpush1.msra.mxu0 0.0
    %2629 = vmatprep.subr.mxu0 0.0
    %2630 = vmatpush1.msra.mxu0 0.0
    %2631 = vmatprep.subr.mxu0 0.0
    %2632 = vmatpush1.msra.mxu0 0.0
    %2633 = vmatprep.subr.mxu0 0.0
    %2634 = vmatpush1.msra.mxu0 0.0
    %2635 = vmatprep.subr.mxu0 0.0
    %2636 = vmatpush1.msra.mxu0 0.0
    %2637 = vmatprep.subr.mxu0 0.0
    %2638 = vmatpush1.msra.mxu0 0.0
    %2639 = vmatprep.subr.mxu0 0.0
    %2640 = vmatpush1.msra.mxu0 0.0
    %2641 = vmatprep.subr.mxu0 0.0
    %2642 = vmatpush1.msra.mxu0 0.0
    %2643 = vmatprep.subr.mxu0 0.0
    %2644 = vmatpush1.msra.mxu0 0.0
    %2645 = vmatprep.subr.mxu0 0.0
    %2646 = vmatpush1.msra.mxu0 0.0
    %2647 = vmatprep.subr.mxu0 0.0
    %2648 = vmatpush1.msra.mxu0 0.0
    %2649 = vmatprep.subr.mxu0 0.0
    %2650 = vmatpush1.msra.mxu0 0.0
    %2651 = vmatprep.subr.mxu0 0.0
    %2652 = vmatpush1.msra.mxu0 0.0
    %2653 = vmatprep.subr.mxu0 0.0
    %2654 = vmatpush1.msra.mxu0 0.0
    %2655 = vmatprep.subr.mxu0 0.0
    %2656 = vmatpush1.msra.mxu0 0.0
    %2657 = vmatprep.subr.mxu0 0.0
    %2658 = vmatpush1.msra.mxu0 0.0
    %2659 = vmatprep.subr.mxu0 0.0
    %2660 = vmatpush1.msra.mxu0 0.0
    %2661 = vmatprep.subr.mxu0 0.0
    %2662 = vmatpush1.msra.mxu0 0.0
    %2663 = vmatprep.subr.mxu0 0.0
    %2664 = vmatpush1.msra.mxu0 0.0
    %2665 = vmatprep.subr.mxu0 0.0
    %2666 = vmatpush1.msra.mxu0 0.0
    %2667 = vmatprep.subr.mxu0 0.0
    %2668 = vmatpush1.msra.mxu0 0.0
    %2669 = vmatprep.mubr.f32.mxu0 0.0
    %2670 = vmatmul.mubr.f32.gmra.mrb[0].mxu0 %v2445
    %v2671 = vpop.f32.mrb[0].mxu0
    %v2672 = vadd.f32 0.0, %v2671
    %v2673 = vpop.f32.mrb[0].mxu0
    %2674 = vdwg.mxu0
    %v2675 = vadd.f32 %v2604, %v2672
    %v2676 = vadd.f32 %v2675, %v406
    %v2677 = vtanh.pop %v2676
    %v2678 = vmul.f32 %v2441, %v412
    %2679 = vmatprep.subr.mxu0 0.0
    %2680 = vmatpush1.msra.mxu0 %v110
    %2681 = vmatprep.subr.mxu0 0.0
    %2682 = vmatpush1.msra.mxu0 %v111
    %2683 = vmatprep.subr.mxu0 0.0
    %2684 = vmatpush1.msra.mxu0 0.0
    %2685 = vmatprep.subr.mxu0 0.0
    %2686 = vmatpush1.msra.mxu0 0.0
    %2687 = vmatprep.subr.mxu0 0.0
    %2688 = vmatpush1.msra.mxu0 0.0
    %2689 = vmatprep.subr.mxu0 0.0
    %2690 = vmatpush1.msra.mxu0 0.0
    %2691 = vmatprep.subr.mxu0 0.0
    %2692 = vmatpush1.msra.mxu0 0.0
    %2693 = vmatprep.subr.mxu0 0.0
    %2694 = vmatpush1.msra.mxu0 0.0
    %2695 = vmatprep.subr.mxu0 0.0
    %2696 = vmatpush1.msra.mxu0 0.0
    %2697 = vmatprep.subr.mxu0 0.0
    %2698 = vmatpush1.msra.mxu0 0.0
    %2699 = vmatprep.subr.mxu0 0.0
    %2700 = vmatpush1.msra.mxu0 0.0
    %2701 = vmatprep.subr.mxu0 0.0
    %2702 = vmatpush1.msra.mxu0 0.0
    %2703 = vmatprep.subr.mxu0 0.0
    %2704 = vmatpush1.msra.mxu0 0.0
    %2705 = vmatprep.subr.mxu0 0.0
    %2706 = vmatpush1.msra.mxu0 0.0
    %2707 = vmatprep.subr.mxu0 0.0
    %2708 = vmatpush1.msra.mxu0 0.0
    %2709 = vmatprep.subr.mxu0 0.0
    %2710 = vmatpush1.msra.mxu0 0.0
    %2711 = vmatprep.subr.mxu0 0.0
    %2712 = vmatpush1.msra.mxu0 0.0
    %2713 = vmatprep.subr.mxu0 0.0
    %2714 = vmatpush1.msra.mxu0 0.0
    %2715 = vmatprep.subr.mxu0 0.0
    %2716 = vmatpush1.msra.mxu0 0.0
    %2717 = vmatprep.subr.mxu0 0.0
    %2718 = vmatpush1.msra.mxu0 0.0
    %2719 = vmatprep.subr.mxu0 0.0
    %2720 = vmatpush1.msra.mxu0 0.0
    %2721 = vmatprep.subr.mxu0 0.0
    %2722 = vmatpush1.msra.mxu0 0.0
    %2723 = vmatprep.subr.mxu0 0.0
    %2724 = vmatpush1.msra.mxu0 0.0
    %2725 = vmatprep.subr.mxu0 0.0
    %2726 = vmatpush1.msra.mxu0 0.0
    %2727 = vmatprep.subr.mxu0 0.0
    %2728 = vmatpush1.msra.mxu0 0.0
    %2729 = vmatprep.subr.mxu0 0.0
    %2730 = vmatpush1.msra.mxu0 0.0
    %2731 = vmatprep.subr.mxu0 0.0
    %2732 = vmatpush1.msra.mxu0 0.0
    %2733 = vmatprep.subr.mxu0 0.0
    %2734 = vmatpush1.msra.mxu0 0.0
    %2735 = vmatprep.subr.mxu0 0.0
    %2736 = vmatpush1.msra.mxu0 0.0
    %2737 = vmatprep.subr.mxu0 0.0
    %2738 = vmatpush1.msra.mxu0 0.0
    %2739 = vmatprep.subr.mxu0 0.0
    %2740 = vmatpush1.msra.mxu0 0.0
    %2741 = vmatprep.subr.mxu0 0.0
    %2742 = vmatpush1.msra.mxu0 0.0
    %2743 = vmatprep.mubr.f32.mxu0 0.0
    %2744 = vmatmul.mubr.f32.gmra.mrb[0].mxu0 %v2445
    %v2745 = vpop.f32.mrb[0].mxu0
    %v2746 = vadd.f32 0.0, %v2745
    %v2747 = vpop.f32.mrb[0].mxu0
    %2748 = vdwg.mxu0
    %v2749 = vadd.f32 %v2678, %v2746
    %v2750 = vadd.f32 %v2749, %v488
    %v2751 = vsub.f32 0.0, %v2750
    %v2752 = vmul.f32 %v2751, 1.442695
    %v2753 = vpow.pop %v2752
    %v2754 = vadd.f32 %v2753, 1.0
    %v2755 = vrcp.pop %v2754
    %v2756 = vmul.f32 1.0, %v2755
    %v2757 = vmul.f32 %v2603, %v2436
    %v2758 = vmul.f32 %v2524, %v2677
    %v2759 = vadd.f32 %v2757, %v2758
    %v2760 = vtanh.pop %v2759
    %v2761 = vmul.f32 %v2756, %v2760
    %v2762 = vlaneseq
    %v2763 = vshrl.u32 %v2762, 7
    %v2764 = vsub.s32 0, %v2763
    %v2765 = vrot.slane %v97, %v2764
    %v2766 = vmul.f32 %v2441, %v2765
    %v2768 = vsel %vm154, %v137, 0
    %2770 = vmatprep.subr.mxu0 0.0
    %2771 = vmatpush1.msra.mxu0 %v112
    %2772 = vmatprep.subr.mxu0 0.0
    %2773 = vmatpush1.msra.mxu0 %v113
    %2774 = vmatprep.subr.mxu0 0.0
    %2775 = vmatpush1.msra.mxu0 0.0
    %2776 = vmatprep.subr.mxu0 0.0
    %2777 = vmatpush1.msra.mxu0 0.0
    %2778 = vmatprep.subr.mxu0 0.0
    %2779 = vmatpush1.msra.mxu0 0.0
    %2780 = vmatprep.subr.mxu0 0.0
    %2781 = vmatpush1.msra.mxu0 0.0
    %2782 = vmatprep.subr.mxu0 0.0
    %2783 = vmatpush1.msra.mxu0 0.0
    %2784 = vmatprep.subr.mxu0 0.0
    %2785 = vmatpush1.msra.mxu0 0.0
    %2786 = vmatprep.subr.mxu0 0.0
    %2787 = vmatpush1.msra.mxu0 0.0
    %2788 = vmatprep.subr.mxu0 0.0
    %2789 = vmatpush1.msra.mxu0 0.0
    %2790 = vmatprep.subr.mxu0 0.0
    %2791 = vmatpush1.msra.mxu0 0.0
    %2792 = vmatprep.subr.mxu0 0.0
    %2793 = vmatpush1.msra.mxu0 0.0
    %2794 = vmatprep.subr.mxu0 0.0
    %2795 = vmatpush1.msra.mxu0 0.0
    %2796 = vmatprep.subr.mxu0 0.0
    %2797 = vmatpush1.msra.mxu0 0.0
    %2798 = vmatprep.subr.mxu0 0.0
    %2799 = vmatpush1.msra.mxu0 0.0
    %2800 = vmatprep.subr.mxu0 0.0
    %2801 = vmatpush1.msra.mxu0 0.0
    %2802 = vmatprep.subr.mxu0 0.0
    %2803 = vmatpush1.msra.mxu0 0.0
    %2804 = vmatprep.subr.mxu0 0.0
    %2805 = vmatpush1.msra.mxu0 0.0
    %2806 = vmatprep.subr.mxu0 0.0
    %2807 = vmatpush1.msra.mxu0 0.0
    %2808 = vmatprep.subr.mxu0 0.0
    %2809 = vmatpush1.msra.mxu0 0.0
    %2810 = vmatprep.subr.mxu0 0.0
    %2811 = vmatpush1.msra.mxu0 0.0
    %2812 = vmatprep.subr.mxu0 0.0
    %2813 = vmatpush1.msra.mxu0 0.0
    %2814 = vmatprep.subr.mxu0 0.0
    %2815 = vmatpush1.msra.mxu0 0.0
    %2816 = vmatprep.subr.mxu0 0.0
    %2817 = vmatpush1.msra.mxu0 0.0
    %2818 = vmatprep.subr.mxu0 0.0
    %2819 = vmatpush1.msra.mxu0 0.0
    %2820 = vmatprep.subr.mxu0 0.0
    %2821 = vmatpush1.msra.mxu0 0.0
    %2822 = vmatprep.subr.mxu0 0.0
    %2823 = vmatpush1.msra.mxu0 0.0
    %2824 = vmatprep.subr.mxu0 0.0
    %2825 = vmatpush1.msra.mxu0 0.0
    %2826 = vmatprep.subr.mxu0 0.0
    %2827 = vmatpush1.msra.mxu0 0.0
    %2828 = vmatprep.subr.mxu0 0.0
    %2829 = vmatpush1.msra.mxu0 0.0
    %2830 = vmatprep.subr.mxu0 0.0
    %2831 = vmatpush1.msra.mxu0 0.0
    %2832 = vmatprep.subr.mxu0 0.0
    %2833 = vmatpush1.msra.mxu0 0.0
    %2834 = vmatprep.mubr.f32.mxu0 0.0
    %2835 = vmatmul.mubr.f32.gmra.mrb[0].mxu0 %v2768
    %v2836 = vpop.f32.mrb[0].mxu0
    %v2837 = vadd.f32 0.0, %v2836
    %v2838 = vpop.f32.mrb[0].mxu0
    %2839 = vdwg.mxu0
    %v2840 = vadd.f32 %v2766, %v2837
    %v2841 = vlaneseq
    %v2842 = vshrl.u32 %v2841, 7
    %v2843 = vsub.s32 0, %v2842
    %v2844 = vrot.slane %v101, %v2843
    %v2845 = vadd.f32 %v2840, %v2844
    %v2846 = vsub.f32 0.0, %v2845
    %v2847 = vmul.f32 %v2846, 1.442695
    %v2848 = vpow.pop %v2847
    %v2849 = vadd.f32 %v2848, 1.0
    %v2850 = vrcp.pop %v2849
    %v2851 = vmul.f32 1.0, %v2850
    %v2852 = vlaneseq
    %v2853 = vshrl.u32 %v2852, 7
    %v2854 = vsub.s32 1, %v2853
    %v2855 = vrot.slane %v97, %v2854
    %v2856 = vmul.f32 %v2441, %v2855
    %2857 = vmatprep.subr.mxu0 0.0
    %2858 = vmatpush1.msra.mxu0 %v114
    %2859 = vmatprep.subr.mxu0 0.0
    %2860 = vmatpush1.msra.mxu0 %v115
    %2861 = vmatprep.subr.mxu0 0.0
    %2862 = vmatpush1.msra.mxu0 0.0
    %2863 = vmatprep.subr.mxu0 0.0
    %2864 = vmatpush1.msra.mxu0 0.0
    %2865 = vmatprep.subr.mxu0 0.0
    %2866 = vmatpush1.msra.mxu0 0.0
    %2867 = vmatprep.subr.mxu0 0.0
    %2868 = vmatpush1.msra.mxu0 0.0
    %2869 = vmatprep.subr.mxu0 0.0
    %2870 = vmatpush1.msra.mxu0 0.0
    %2871 = vmatprep.subr.mxu0 0.0
    %2872 = vmatpush1.msra.mxu0 0.0
    %2873 = vmatprep.subr.mxu0 0.0
    %2874 = vmatpush1.msra.mxu0 0.0
    %2875 = vmatprep.subr.mxu0 0.0
    %2876 = vmatpush1.msra.mxu0 0.0
    %2877 = vmatprep.subr.mxu0 0.0
    %2878 = vmatpush1.msra.mxu0 0.0
    %2879 = vmatprep.subr.mxu0 0.0
    %2880 = vmatpush1.msra.mxu0 0.0
    %2881 = vmatprep.subr.mxu0 0.0
    %2882 = vmatpush1.msra.mxu0 0.0
    %2883 = vmatprep.subr.mxu0 0.0
    %2884 = vmatpush1.msra.mxu0 0.0
    %2885 = vmatprep.subr.mxu0 0.0
    %2886 = vmatpush1.msra.mxu0 0.0
    %2887 = vmatprep.subr.mxu0 0.0
    %2888 = vmatpush1.msra.mxu0 0.0
    %2889 = vmatprep.subr.mxu0 0.0
    %2890 = vmatpush1.msra.mxu0 0.0
    %2891 = vmatprep.subr.mxu0 0.0
    %2892 = vmatpush1.msra.mxu0 0.0
    %2893 = vmatprep.subr.mxu0 0.0
    %2894 = vmatpush1.msra.mxu0 0.0
    %2895 = vmatprep.subr.mxu0 0.0
    %2896 = vmatpush1.msra.mxu0 0.0
    %2897 = vmatprep.subr.mxu0 0.0
    %2898 = vmatpush1.msra.mxu0 0.0
    %2899 = vmatprep.subr.mxu0 0.0
    %2900 = vmatpush1.msra.mxu0 0.0
    %2901 = vmatprep.subr.mxu0 0.0
    %2902 = vmatpush1.msra.mxu0 0.0
    %2903 = vmatprep.subr.mxu0 0.0
    %2904 = vmatpush1.msra.mxu0 0.0
    %2905 = vmatprep.subr.mxu0 0.0
    %2906 = vmatpush1.msra.mxu0 0.0
    %2907 = vmatprep.subr.mxu0 0.0
    %2908 = vmatpush1.msra.mxu0 0.0
    %2909 = vmatprep.subr.mxu0 0.0
    %2910 = vmatpush1.msra.mxu0 0.0
    %2911 = vmatprep.subr.mxu0 0.0
    %2912 = vmatpush1.msra.mxu0 0.0
    %2913 = vmatprep.subr.mxu0 0.0
    %2914 = vmatpush1.msra.mxu0 0.0
    %2915 = vmatprep.subr.mxu0 0.0
    %2916 = vmatpush1.msra.mxu0 0.0
    %2917 = vmatprep.subr.mxu0 0.0
    %2918 = vmatpush1.msra.mxu0 0.0
    %2919 = vmatprep.subr.mxu0 0.0
    %2920 = vmatpush1.msra.mxu0 0.0
    %2921 = vmatprep.mubr.f32.mxu0 0.0
    %2922 = vmatmul.mubr.f32.gmra.mrb[0].mxu0 %v2768
    %v2923 = vpop.f32.mrb[0].mxu0
    %v2924 = vadd.f32 0.0, %v2923
    %v2925 = vpop.f32.mrb[0].mxu0
    %2926 = vdwg.mxu0
    %v2927 = vadd.f32 %v2856, %v2924
    %v2928 = vlaneseq
    %v2929 = vshrl.u32 %v2928, 7
    %v2930 = vsub.s32 1, %v2929
    %v2931 = vrot.slane %v101, %v2930
    %v2932 = vadd.f32 %v2927, %v2931
    %v2933 = vsub.f32 0.0, %v2932
    %v2934 = vmul.f32 %v2933, 1.442695
    %v2935 = vpow.pop %v2934
    %v2936 = vadd.f32 %v2935, 1.0
    %v2937 = vrcp.pop %v2936
    %v2938 = vmul.f32 1.0, %v2937
    %v2939 = vlaneseq
    %v2940 = vshrl.u32 %v2939, 7
    %v2941 = vsub.s32 2, %v2940
    %v2942 = vrot.slane %v97, %v2941
    %v2943 = vmul.f32 %v2441, %v2942
    %2944 = vmatprep.subr.mxu0 0.0
    %2945 = vmatpush1.msra.mxu0 %v116
    %2946 = vmatprep.subr.mxu0 0.0
    %2947 = vmatpush1.msra.mxu0 %v117
    %2948 = vmatprep.subr.mxu0 0.0
    %2949 = vmatpush1.msra.mxu0 0.0
    %2950 = vmatprep.subr.mxu0 0.0
    %2951 = vmatpush1.msra.mxu0 0.0
    %2952 = vmatprep.subr.mxu0 0.0
    %2953 = vmatpush1.msra.mxu0 0.0
    %2954 = vmatprep.subr.mxu0 0.0
    %2955 = vmatpush1.msra.mxu0 0.0
    %2956 = vmatprep.subr.mxu0 0.0
    %2957 = vmatpush1.msra.mxu0 0.0
    %2958 = vmatprep.subr.mxu0 0.0
    %2959 = vmatpush1.msra.mxu0 0.0
    %2960 = vmatprep.subr.mxu0 0.0
    %2961 = vmatpush1.msra.mxu0 0.0
    %2962 = vmatprep.subr.mxu0 0.0
    %2963 = vmatpush1.msra.mxu0 0.0
    %2964 = vmatprep.subr.mxu0 0.0
    %2965 = vmatpush1.msra.mxu0 0.0
    %2966 = vmatprep.subr.mxu0 0.0
    %2967 = vmatpush1.msra.mxu0 0.0
    %2968 = vmatprep.subr.mxu0 0.0
    %2969 = vmatpush1.msra.mxu0 0.0
    %2970 = vmatprep.subr.mxu0 0.0
    %2971 = vmatpush1.msra.mxu0 0.0
    %2972 = vmatprep.subr.mxu0 0.0
    %2973 = vmatpush1.msra.mxu0 0.0
    %2974 = vmatprep.subr.mxu0 0.0
    %2975 = vmatpush1.msra.mxu0 0.0
    %2976 = vmatprep.subr.mxu0 0.0
    %2977 = vmatpush1.msra.mxu0 0.0
    %2978 = vmatprep.subr.mxu0 0.0
    %2979 = vmatpush1.msra.mxu0 0.0
    %2980 = vmatprep.subr.mxu0 0.0
    %2981 = vmatpush1.msra.mxu0 0.0
    %2982 = vmatprep.subr.mxu0 0.0
    %2983 = vmatpush1.msra.mxu0 0.0
    %2984 = vmatprep.subr.mxu0 0.0
    %2985 = vmatpush1.msra.mxu0 0.0
    %2986 = vmatprep.subr.mxu0 0.0
    %2987 = vmatpush1.msra.mxu0 0.0
    %2988 = vmatprep.subr.mxu0 0.0
    %2989 = vmatpush1.msra.mxu0 0.0
    %2990 = vmatprep.subr.mxu0 0.0
    %2991 = vmatpush1.msra.mxu0 0.0
    %2992 = vmatprep.subr.mxu0 0.0
    %2993 = vmatpush1.msra.mxu0 0.0
    %2994 = vmatprep.subr.mxu0 0.0
    %2995 = vmatpush1.msra.mxu0 0.0
    %2996 = vmatprep.subr.mxu0 0.0
    %2997 = vmatpush1.msra.mxu0 0.0
    %2998 = vmatprep.subr.mxu0 0.0
    %2999 = vmatpush1.msra.mxu0 0.0
    %3000 = vmatprep.subr.mxu0 0.0
    %3001 = vmatpush1.msra.mxu0 0.0
    %3002 = vmatprep.subr.mxu0 0.0
    %3003 = vmatpush1.msra.mxu0 0.0
    %3004 = vmatprep.subr.mxu0 0.0
    %3005 = vmatpush1.msra.mxu0 0.0
    %3006 = vmatprep.subr.mxu0 0.0
    %3007 = vmatpush1.msra.mxu0 0.0
    %3008 = vmatprep.mubr.f32.mxu0 0.0
    %3009 = vmatmul.mubr.f32.gmra.mrb[0].mxu0 %v2768
    %v3010 = vpop.f32.mrb[0].mxu0
    %v3011 = vadd.f32 0.0, %v3010
    %v3012 = vpop.f32.mrb[0].mxu0
    %3013 = vdwg.mxu0
    %v3014 = vadd.f32 %v2943, %v3011
    %v3015 = vlaneseq
    %v3016 = vshrl.u32 %v3015, 7
    %v3017 = vsub.s32 2, %v3016
    %v3018 = vrot.slane %v101, %v3017
    %v3019 = vadd.f32 %v3014, %v3018
    %v3020 = vtanh.pop %v3019
    %v3021 = vlaneseq
    %v3022 = vshrl.u32 %v3021, 7
    %v3023 = vsub.s32 3, %v3022
    %v3024 = vrot.slane %v97, %v3023
    %v3025 = vmul.f32 %v2441, %v3024
    %3026 = vmatprep.subr.mxu0 0.0
    %3027 = vmatpush1.msra.mxu0 %v118
    %3028 = vmatprep.subr.mxu0 0.0
    %3029 = vmatpush1.msra.mxu0 %v119
    %3030 = vmatprep.subr.mxu0 0.0
    %3031 = vmatpush1.msra.mxu0 0.0
    %3032 = vmatprep.subr.mxu0 0.0
    %3033 = vmatpush1.msra.mxu0 0.0
    %3034 = vmatprep.subr.mxu0 0.0
    %3035 = vmatpush1.msra.mxu0 0.0
    %3036 = vmatprep.subr.mxu0 0.0
    %3037 = vmatpush1.msra.mxu0 0.0
    %3038 = vmatprep.subr.mxu0 0.0
    %3039 = vmatpush1.msra.mxu0 0.0
    %3040 = vmatprep.subr.mxu0 0.0
    %3041 = vmatpush1.msra.mxu0 0.0
    %3042 = vmatprep.subr.mxu0 0.0
    %3043 = vmatpush1.msra.mxu0 0.0
    %3044 = vmatprep.subr.mxu0 0.0
    %3045 = vmatpush1.msra.mxu0 0.0
    %3046 = vmatprep.subr.mxu0 0.0
    %3047 = vmatpush1.msra.mxu0 0.0
    %3048 = vmatprep.subr.mxu0 0.0
    %3049 = vmatpush1.msra.mxu0 0.0
    %3050 = vmatprep.subr.mxu0 0.0
    %3051 = vmatpush1.msra.mxu0 0.0
    %3052 = vmatprep.subr.mxu0 0.0
    %3053 = vmatpush1.msra.mxu0 0.0
    %3054 = vmatprep.subr.mxu0 0.0
    %3055 = vmatpush1.msra.mxu0 0.0
    %3056 = vmatprep.subr.mxu0 0.0
    %3057 = vmatpush1.msra.mxu0 0.0
    %3058 = vmatprep.subr.mxu0 0.0
    %3059 = vmatpush1.msra.mxu0 0.0
    %3060 = vmatprep.subr.mxu0 0.0
    %3061 = vmatpush1.msra.mxu0 0.0
    %3062 = vmatprep.subr.mxu0 0.0
    %3063 = vmatpush1.msra.mxu0 0.0
    %3064 = vmatprep.subr.mxu0 0.0
    %3065 = vmatpush1.msra.mxu0 0.0
    %3066 = vmatprep.subr.mxu0 0.0
    %3067 = vmatpush1.msra.mxu0 0.0
    %3068 = vmatprep.subr.mxu0 0.0
    %3069 = vmatpush1.msra.mxu0 0.0
    %3070 = vmatprep.subr.mxu0 0.0
    %3071 = vmatpush1.msra.mxu0 0.0
    %3072 = vmatprep.subr.mxu0 0.0
    %3073 = vmatpush1.msra.mxu0 0.0
    %3074 = vmatprep.subr.mxu0 0.0
    %3075 = vmatpush1.msra.mxu0 0.0
    %3076 = vmatprep.subr.mxu0 0.0
    %3077 = vmatpush1.msra.mxu0 0.0
    %3078 = vmatprep.subr.mxu0 0.0
    %3079 = vmatpush1.msra.mxu0 0.0
    %3080 = vmatprep.subr.mxu0 0.0
    %3081 = vmatpush1.msra.mxu0 0.0
    %3082 = vmatprep.subr.mxu0 0.0
    %3083 = vmatpush1.msra.mxu0 0.0
    %3084 = vmatprep.subr.mxu0 0.0
    %3085 = vmatpush1.msra.mxu0 0.0
    %3086 = vmatprep.subr.mxu0 0.0
    %3087 = vmatpush1.msra.mxu0 0.0
    %3088 = vmatprep.subr.mxu0 0.0
    %3089 = vmatpush1.msra.mxu0 0.0
    %3090 = vmatprep.mubr.f32.mxu0 0.0
    %3091 = vmatmul.mubr.f32.gmra.mrb[0].mxu0 %v2768
    %v3092 = vpop.f32.mrb[0].mxu0
    %v3093 = vadd.f32 0.0, %v3092
    %v3094 = vpop.f32.mrb[0].mxu0
    %3095 = vdwg.mxu0
    %v3096 = vadd.f32 %v3025, %v3093
    %v3097 = vlaneseq
    %v3098 = vshrl.u32 %v3097, 7
    %v3099 = vsub.s32 3, %v3098
    %v3100 = vrot.slane %v101, %v3099
    %v3101 = vadd.f32 %v3096, %v3100
    %v3102 = vsub.f32 0.0, %v3101
    %v3103 = vmul.f32 %v3102, 1.442695
    %v3104 = vpow.pop %v3103
    %v3105 = vadd.f32 %v3104, 1.0
    %v3106 = vrcp.pop %v3105
    %v3107 = vmul.f32 1.0, %v3106
    %v3108 = vmul.f32 %v2938, %v141
    %v3109 = vmul.f32 %v2851, %v3020
    %v3110 = vadd.f32 %v3108, %v3109
    %v3111 = vtanh.pop %v3110
    %v3112 = vmul.f32 %v3107, %v3111
    %3113 = vset.pattern.permute.xlu0 8
    %3114 = vperm.xlu0 %3113, %v95
    %v3115 = vpop.permute.xlu0 %3114
    %v3117 = vlaneseq
    %v3118 = vshrl.u32 %v3117, 7
    %v3119 = vsub.s32 0, %v3118
    %v3120 = vrot.slane %v98, %v3119
    %v3121 = vmul.f32 %v3115, %v3120
    %v3123 = vsel %vm154, %v138, 0
    %3125 = vmatprep.subr.mxu0 0.0
    %3126 = vmatpush1.msra.mxu0 %v120
    %3127 = vmatprep.subr.mxu0 0.0
    %3128 = vmatpush1.msra.mxu0 %v121
    %3129 = vmatprep.subr.mxu0 0.0
    %3130 = vmatpush1.msra.mxu0 0.0
    %3131 = vmatprep.subr.mxu0 0.0
    %3132 = vmatpush1.msra.mxu0 0.0
    %3133 = vmatprep.subr.mxu0 0.0
    %3134 = vmatpush1.msra.mxu0 0.0
    %3135 = vmatprep.subr.mxu0 0.0
    %3136 = vmatpush1.msra.mxu0 0.0
    %3137 = vmatprep.subr.mxu0 0.0
    %3138 = vmatpush1.msra.mxu0 0.0
    %3139 = vmatprep.subr.mxu0 0.0
    %3140 = vmatpush1.msra.mxu0 0.0
    %3141 = vmatprep.subr.mxu0 0.0
    %3142 = vmatpush1.msra.mxu0 0.0
    %3143 = vmatprep.subr.mxu0 0.0
    %3144 = vmatpush1.msra.mxu0 0.0
    %3145 = vmatprep.subr.mxu0 0.0
    %3146 = vmatpush1.msra.mxu0 0.0
    %3147 = vmatprep.subr.mxu0 0.0
    %3148 = vmatpush1.msra.mxu0 0.0
    %3149 = vmatprep.subr.mxu0 0.0
    %3150 = vmatpush1.msra.mxu0 0.0
    %3151 = vmatprep.subr.mxu0 0.0
    %3152 = vmatpush1.msra.mxu0 0.0
    %3153 = vmatprep.subr.mxu0 0.0
    %3154 = vmatpush1.msra.mxu0 0.0
    %3155 = vmatprep.subr.mxu0 0.0
    %3156 = vmatpush1.msra.mxu0 0.0
    %3157 = vmatprep.subr.mxu0 0.0
    %3158 = vmatpush1.msra.mxu0 0.0
    %3159 = vmatprep.subr.mxu0 0.0
    %3160 = vmatpush1.msra.mxu0 0.0
    %3161 = vmatprep.subr.mxu0 0.0
    %3162 = vmatpush1.msra.mxu0 0.0
    %3163 = vmatprep.subr.mxu0 0.0
    %3164 = vmatpush1.msra.mxu0 0.0
    %3165 = vmatprep.subr.mxu0 0.0
    %3166 = vmatpush1.msra.mxu0 0.0
    %3167 = vmatprep.subr.mxu0 0.0
    %3168 = vmatpush1.msra.mxu0 0.0
    %3169 = vmatprep.subr.mxu0 0.0
    %3170 = vmatpush1.msra.mxu0 0.0
    %3171 = vmatprep.subr.mxu0 0.0
    %3172 = vmatpush1.msra.mxu0 0.0
    %3173 = vmatprep.subr.mxu0 0.0
    %3174 = vmatpush1.msra.mxu0 0.0
    %3175 = vmatprep.subr.mxu0 0.0
    %3176 = vmatpush1.msra.mxu0 0.0
    %3177 = vmatprep.subr.mxu0 0.0
    %3178 = vmatpush1.msra.mxu0 0.0
    %3179 = vmatprep.subr.mxu0 0.0
    %3180 = vmatpush1.msra.mxu0 0.0
    %3181 = vmatprep.subr.mxu0 0.0
    %3182 = vmatpush1.msra.mxu0 0.0
    %3183 = vmatprep.subr.mxu0 0.0
    %3184 = vmatpush1.msra.mxu0 0.0
    %3185 = vmatprep.subr.mxu0 0.0
    %3186 = vmatpush1.msra.mxu0 0.0
    %3187 = vmatprep.subr.mxu0 0.0
    %3188 = vmatpush1.msra.mxu0 0.0
    %3189 = vmatprep.mubr.f32.mxu0 0.0
    %3190 = vmatmul.mubr.f32.gmra.mrb[0].mxu0 %v3123
    %v3191 = vpop.f32.mrb[0].mxu0
    %v3192 = vadd.f32 0.0, %v3191
    %v3193 = vpop.f32.mrb[0].mxu0
    %3194 = vdwg.mxu0
    %v3195 = vadd.f32 %v3121, %v3192
    %v3196 = vlaneseq
    %v3197 = vshrl.u32 %v3196, 7
    %v3198 = vsub.s32 0, %v3197
    %v3199 = vrot.slane %v102, %v3198
    %v3200 = vadd.f32 %v3195, %v3199
    %v3201 = vsub.f32 0.0, %v3200
    %v3202 = vmul.f32 %v3201, 1.442695
    %v3203 = vpow.pop %v3202
    %v3204 = vadd.f32 %v3203, 1.0
    %v3205 = vrcp.pop %v3204
    %v3206 = vmul.f32 1.0, %v3205
    %v3207 = vlaneseq
    %v3208 = vshrl.u32 %v3207, 7
    %v3209 = vsub.s32 1, %v3208
    %v3210 = vrot.slane %v98, %v3209
    %v3211 = vmul.f32 %v3115, %v3210
    %3212 = vmatprep.subr.mxu0 0.0
    %3213 = vmatpush1.msra.mxu0 %v122
    %3214 = vmatprep.subr.mxu0 0.0
    %3215 = vmatpush1.msra.mxu0 %v123
    %3216 = vmatprep.subr.mxu0 0.0
    %3217 = vmatpush1.msra.mxu0 0.0
    %3218 = vmatprep.subr.mxu0 0.0
    %3219 = vmatpush1.msra.mxu0 0.0
    %3220 = vmatprep.subr.mxu0 0.0
    %3221 = vmatpush1.msra.mxu0 0.0
    %3222 = vmatprep.subr.mxu0 0.0
    %3223 = vmatpush1.msra.mxu0 0.0
    %3224 = vmatprep.subr.mxu0 0.0
    %3225 = vmatpush1.msra.mxu0 0.0
    %3226 = vmatprep.subr.mxu0 0.0
    %3227 = vmatpush1.msra.mxu0 0.0
    %3228 = vmatprep.subr.mxu0 0.0
    %3229 = vmatpush1.msra.mxu0 0.0
    %3230 = vmatprep.subr.mxu0 0.0
    %3231 = vmatpush1.msra.mxu0 0.0
    %3232 = vmatprep.subr.mxu0 0.0
    %3233 = vmatpush1.msra.mxu0 0.0
    %3234 = vmatprep.subr.mxu0 0.0
    %3235 = vmatpush1.msra.mxu0 0.0
    %3236 = vmatprep.subr.mxu0 0.0
    %3237 = vmatpush1.msra.mxu0 0.0
    %3238 = vmatprep.subr.mxu0 0.0
    %3239 = vmatpush1.msra.mxu0 0.0
    %3240 = vmatprep.subr.mxu0 0.0
    %3241 = vmatpush1.msra.mxu0 0.0
    %3242 = vmatprep.subr.mxu0 0.0
    %3243 = vmatpush1.msra.mxu0 0.0
    %3244 = vmatprep.subr.mxu0 0.0
    %3245 = vmatpush1.msra.mxu0 0.0
    %3246 = vmatprep.subr.mxu0 0.0
    %3247 = vmatpush1.msra.mxu0 0.0
    %3248 = vmatprep.subr.mxu0 0.0
    %3249 = vmatpush1.msra.mxu0 0.0
    %3250 = vmatprep.subr.mxu0 0.0
    %3251 = vmatpush1.msra.mxu0 0.0
    %3252 = vmatprep.subr.mxu0 0.0
    %3253 = vmatpush1.msra.mxu0 0.0
    %3254 = vmatprep.subr.mxu0 0.0
    %3255 = vmatpush1.msra.mxu0 0.0
    %3256 = vmatprep.subr.mxu0 0.0
    %3257 = vmatpush1.msra.mxu0 0.0
    %3258 = vmatprep.subr.mxu0 0.0
    %3259 = vmatpush1.msra.mxu0 0.0
    %3260 = vmatprep.subr.mxu0 0.0
    %3261 = vmatpush1.msra.mxu0 0.0
    %3262 = vmatprep.subr.mxu0 0.0
    %3263 = vmatpush1.msra.mxu0 0.0
    %3264 = vmatprep.subr.mxu0 0.0
    %3265 = vmatpush1.msra.mxu0 0.0
    %3266 = vmatprep.subr.mxu0 0.0
    %3267 = vmatpush1.msra.mxu0 0.0
    %3268 = vmatprep.subr.mxu0 0.0
    %3269 = vmatpush1.msra.mxu0 0.0
    %3270 = vmatprep.subr.mxu0 0.0
    %3271 = vmatpush1.msra.mxu0 0.0
    %3272 = vmatprep.subr.mxu0 0.0
    %3273 = vmatpush1.msra.mxu0 0.0
    %3274 = vmatprep.subr.mxu0 0.0
    %3275 = vmatpush1.msra.mxu0 0.0
    %3276 = vmatprep.mubr.f32.mxu0 0.0
    %3277 = vmatmul.mubr.f32.gmra.mrb[0].mxu0 %v3123
    %v3278 = vpop.f32.mrb[0].mxu0
    %v3279 = vadd.f32 0.0, %v3278
    %v3280 = vpop.f32.mrb[0].mxu0
    %3281 = vdwg.mxu0
    %v3282 = vadd.f32 %v3211, %v3279
    %v3283 = vlaneseq
    %v3284 = vshrl.u32 %v3283, 7
    %v3285 = vsub.s32 1, %v3284
    %v3286 = vrot.slane %v102, %v3285
    %v3287 = vadd.f32 %v3282, %v3286
    %v3288 = vsub.f32 0.0, %v3287
    %v3289 = vmul.f32 %v3288, 1.442695
    %v3290 = vpow.pop %v3289
    %v3291 = vadd.f32 %v3290, 1.0
    %v3292 = vrcp.pop %v3291
    %v3293 = vmul.f32 1.0, %v3292
    %v3294 = vlaneseq
    %v3295 = vshrl.u32 %v3294, 7
    %v3296 = vsub.s32 2, %v3295
    %v3297 = vrot.slane %v98, %v3296
    %v3298 = vmul.f32 %v3115, %v3297
    %3299 = vmatprep.subr.mxu0 0.0
    %3300 = vmatpush1.msra.mxu0 %v124
    %3301 = vmatprep.subr.mxu0 0.0
    %3302 = vmatpush1.msra.mxu0 %v125
    %3303 = vmatprep.subr.mxu0 0.0
    %3304 = vmatpush1.msra.mxu0 0.0
    %3305 = vmatprep.subr.mxu0 0.0
    %3306 = vmatpush1.msra.mxu0 0.0
    %3307 = vmatprep.subr.mxu0 0.0
    %3308 = vmatpush1.msra.mxu0 0.0
    %3309 = vmatprep.subr.mxu0 0.0
    %3310 = vmatpush1.msra.mxu0 0.0
    %3311 = vmatprep.subr.mxu0 0.0
    %3312 = vmatpush1.msra.mxu0 0.0
    %3313 = vmatprep.subr.mxu0 0.0
    %3314 = vmatpush1.msra.mxu0 0.0
    %3315 = vmatprep.subr.mxu0 0.0
    %3316 = vmatpush1.msra.mxu0 0.0
    %3317 = vmatprep.subr.mxu0 0.0
    %3318 = vmatpush1.msra.mxu0 0.0
    %3319 = vmatprep.subr.mxu0 0.0
    %3320 = vmatpush1.msra.mxu0 0.0
    %3321 = vmatprep.subr.mxu0 0.0
    %3322 = vmatpush1.msra.mxu0 0.0
    %3323 = vmatprep.subr.mxu0 0.0
    %3324 = vmatpush1.msra.mxu0 0.0
    %3325 = vmatprep.subr.mxu0 0.0
    %3326 = vmatpush1.msra.mxu0 0.0
    %3327 = vmatprep.subr.mxu0 0.0
    %3328 = vmatpush1.msra.mxu0 0.0
    %3329 = vmatprep.subr.mxu0 0.0
    %3330 = vmatpush1.msra.mxu0 0.0
    %3331 = vmatprep.subr.mxu0 0.0
    %3332 = vmatpush1.msra.mxu0 0.0
    %3333 = vmatprep.subr.mxu0 0.0
    %3334 = vmatpush1.msra.mxu0 0.0
    %3335 = vmatprep.subr.mxu0 0.0
    %3336 = vmatpush1.msra.mxu0 0.0
    %3337 = vmatprep.subr.mxu0 0.0
    %3338 = vmatpush1.msra.mxu0 0.0
    %3339 = vmatprep.subr.mxu0 0.0
    %3340 = vmatpush1.msra.mxu0 0.0
    %3341 = vmatprep.subr.mxu0 0.0
    %3342 = vmatpush1.msra.mxu0 0.0
    %3343 = vmatprep.subr.mxu0 0.0
    %3344 = vmatpush1.msra.mxu0 0.0
    %3345 = vmatprep.subr.mxu0 0.0
    %3346 = vmatpush1.msra.mxu0 0.0
    %3347 = vmatprep.subr.mxu0 0.0
    %3348 = vmatpush1.msra.mxu0 0.0
    %3349 = vmatprep.subr.mxu0 0.0
    %3350 = vmatpush1.msra.mxu0 0.0
    %3351 = vmatprep.subr.mxu0 0.0
    %3352 = vmatpush1.msra.mxu0 0.0
    %3353 = vmatprep.subr.mxu0 0.0
    %3354 = vmatpush1.msra.mxu0 0.0
    %3355 = vmatprep.subr.mxu0 0.0
    %3356 = vmatpush1.msra.mxu0 0.0
    %3357 = vmatprep.subr.mxu0 0.0
    %3358 = vmatpush1.msra.mxu0 0.0
    %3359 = vmatprep.subr.mxu0 0.0
    %3360 = vmatpush1.msra.mxu0 0.0
    %3361 = vmatprep.subr.mxu0 0.0
    %3362 = vmatpush1.msra.mxu0 0.0
    %3363 = vmatprep.mubr.f32.mxu0 0.0
    %3364 = vmatmul.mubr.f32.gmra.mrb[0].mxu0 %v3123
    %v3365 = vpop.f32.mrb[0].mxu0
    %v3366 = vadd.f32 0.0, %v3365
    %v3367 = vpop.f32.mrb[0].mxu0
    %3368 = vdwg.mxu0
    %v3369 = vadd.f32 %v3298, %v3366
    %v3370 = vlaneseq
    %v3371 = vshrl.u32 %v3370, 7
    %v3372 = vsub.s32 2, %v3371
    %v3373 = vrot.slane %v102, %v3372
    %v3374 = vadd.f32 %v3369, %v3373
    %v3375 = vtanh.pop %v3374
    %v3376 = vlaneseq
    %v3377 = vshrl.u32 %v3376, 7
    %v3378 = vsub.s32 3, %v3377
    %v3379 = vrot.slane %v98, %v3378
    %v3380 = vmul.f32 %v3115, %v3379
    %3381 = vmatprep.subr.mxu0 0.0
    %3382 = vmatpush1.msra.mxu0 %v126
    %3383 = vmatprep.subr.mxu0 0.0
    %3384 = vmatpush1.msra.mxu0 %v127
    %3385 = vmatprep.subr.mxu0 0.0
    %3386 = vmatpush1.msra.mxu0 0.0
    %3387 = vmatprep.subr.mxu0 0.0
    %3388 = vmatpush1.msra.mxu0 0.0
    %3389 = vmatprep.subr.mxu0 0.0
    %3390 = vmatpush1.msra.mxu0 0.0
    %3391 = vmatprep.subr.mxu0 0.0
    %3392 = vmatpush1.msra.mxu0 0.0
    %3393 = vmatprep.subr.mxu0 0.0
    %3394 = vmatpush1.msra.mxu0 0.0
    %3395 = vmatprep.subr.mxu0 0.0
    %3396 = vmatpush1.msra.mxu0 0.0
    %3397 = vmatprep.subr.mxu0 0.0
    %3398 = vmatpush1.msra.mxu0 0.0
    %3399 = vmatprep.subr.mxu0 0.0
    %3400 = vmatpush1.msra.mxu0 0.0
    %3401 = vmatprep.subr.mxu0 0.0
    %3402 = vmatpush1.msra.mxu0 0.0
    %3403 = vmatprep.subr.mxu0 0.0
    %3404 = vmatpush1.msra.mxu0 0.0
    %3405 = vmatprep.subr.mxu0 0.0
    %3406 = vmatpush1.msra.mxu0 0.0
    %3407 = vmatprep.subr.mxu0 0.0
    %3408 = vmatpush1.msra.mxu0 0.0
    %3409 = vmatprep.subr.mxu0 0.0
    %3410 = vmatpush1.msra.mxu0 0.0
    %3411 = vmatprep.subr.mxu0 0.0
    %3412 = vmatpush1.msra.mxu0 0.0
    %3413 = vmatprep.subr.mxu0 0.0
    %3414 = vmatpush1.msra.mxu0 0.0
    %3415 = vmatprep.subr.mxu0 0.0
    %3416 = vmatpush1.msra.mxu0 0.0
    %3417 = vmatprep.subr.mxu0 0.0
    %3418 = vmatpush1.msra.mxu0 0.0
    %3419 = vmatprep.subr.mxu0 0.0
    %3420 = vmatpush1.msra.mxu0 0.0
    %3421 = vmatprep.subr.mxu0 0.0
    %3422 = vmatpush1.msra.mxu0 0.0
    %3423 = vmatprep.subr.mxu0 0.0
    %3424 = vmatpush1.msra.mxu0 0.0
    %3425 = vmatprep.subr.mxu0 0.0
    %3426 = vmatpush1.msra.mxu0 0.0
    %3427 = vmatprep.subr.mxu0 0.0
    %3428 = vmatpush1.msra.mxu0 0.0
    %3429 = vmatprep.subr.mxu0 0.0
    %3430 = vmatpush1.msra.mxu0 0.0
    %3431 = vmatprep.subr.mxu0 0.0
    %3432 = vmatpush1.msra.mxu0 0.0
    %3433 = vmatprep.subr.mxu0 0.0
    %3434 = vmatpush1.msra.mxu0 0.0
    %3435 = vmatprep.subr.mxu0 0.0
    %3436 = vmatpush1.msra.mxu0 0.0
    %3437 = vmatprep.subr.mxu0 0.0
    %3438 = vmatpush1.msra.mxu0 0.0
    %3439 = vmatprep.subr.mxu0 0.0
    %3440 = vmatpush1.msra.mxu0 0.0
    %3441 = vmatprep.subr.mxu0 0.0
    %3442 = vmatpush1.msra.mxu0 0.0
    %3443 = vmatprep.subr.mxu0 0.0
    %3444 = vmatpush1.msra.mxu0 0.0
    %3445 = vmatprep.mubr.f32.mxu0 0.0
    %3446 = vmatmul.mubr.f32.gmra.mrb[0].mxu0 %v3123
    %v3447 = vpop.f32.mrb[0].mxu0
    %v3448 = vadd.f32 0.0, %v3447
    %v3449 = vpop.f32.mrb[0].mxu0
    %3450 = vdwg.mxu0
    %v3451 = vadd.f32 %v3380, %v3448
    %v3452 = vlaneseq
    %v3453 = vshrl.u32 %v3452, 7
    %v3454 = vsub.s32 3, %v3453
    %v3455 = vrot.slane %v102, %v3454
    %v3456 = vadd.f32 %v3451, %v3455
    %v3457 = vsub.f32 0.0, %v3456
    %v3458 = vmul.f32 %v3457, 1.442695
    %v3459 = vpow.pop %v3458
    %v3460 = vadd.f32 %v3459, 1.0
    %v3461 = vrcp.pop %v3460
    %v3462 = vmul.f32 1.0, %v3461
    %v3463 = vmul.f32 %v3293, %v142
    %v3464 = vmul.f32 %v3206, %v3375
    %v3465 = vadd.f32 %v3463, %v3464
    %v3466 = vtanh.pop %v3465
    %v3467 = vmul.f32 %v3462, %v3466
    %3468 = vset.pattern.permute.xlu0 9
    %3469 = vperm.xlu0 %3468, %v95
    %v3470 = vpop.permute.xlu0 %3469
    %v3472 = vmul.f32 %v3470, %v3120
    %v3474 = vsel %vm154, %v3467, 0
    %3476 = vmatprep.subr.mxu0 0.0
    %3477 = vmatpush1.msra.mxu0 %v120
    %3478 = vmatprep.subr.mxu0 0.0
    %3479 = vmatpush1.msra.mxu0 %v121
    %3480 = vmatprep.subr.mxu0 0.0
    %3481 = vmatpush1.msra.mxu0 0.0
    %3482 = vmatprep.subr.mxu0 0.0
    %3483 = vmatpush1.msra.mxu0 0.0
    %3484 = vmatprep.subr.mxu0 0.0
    %3485 = vmatpush1.msra.mxu0 0.0
    %3486 = vmatprep.subr.mxu0 0.0
    %3487 = vmatpush1.msra.mxu0 0.0
    %3488 = vmatprep.subr.mxu0 0.0
    %3489 = vmatpush1.msra.mxu0 0.0
    %3490 = vmatprep.subr.mxu0 0.0
    %3491 = vmatpush1.msra.mxu0 0.0
    %3492 = vmatprep.subr.mxu0 0.0
    %3493 = vmatpush1.msra.mxu0 0.0
    %3494 = vmatprep.subr.mxu0 0.0
    %3495 = vmatpush1.msra.mxu0 0.0
    %3496 = vmatprep.subr.mxu0 0.0
    %3497 = vmatpush1.msra.mxu0 0.0
    %3498 = vmatprep.subr.mxu0 0.0
    %3499 = vmatpush1.msra.mxu0 0.0
    %3500 = vmatprep.subr.mxu0 0.0
    %3501 = vmatpush1.msra.mxu0 0.0
    %3502 = vmatprep.subr.mxu0 0.0
    %3503 = vmatpush1.msra.mxu0 0.0
    %3504 = vmatprep.subr.mxu0 0.0
    %3505 = vmatpush1.msra.mxu0 0.0
    %3506 = vmatprep.subr.mxu0 0.0
    %3507 = vmatpush1.msra.mxu0 0.0
    %3508 = vmatprep.subr.mxu0 0.0
    %3509 = vmatpush1.msra.mxu0 0.0
    %3510 = vmatprep.subr.mxu0 0.0
    %3511 = vmatpush1.msra.mxu0 0.0
    %3512 = vmatprep.subr.mxu0 0.0
    %3513 = vmatpush1.msra.mxu0 0.0
    %3514 = vmatprep.subr.mxu0 0.0
    %3515 = vmatpush1.msra.mxu0 0.0
    %3516 = vmatprep.subr.mxu0 0.0
    %3517 = vmatpush1.msra.mxu0 0.0
    %3518 = vmatprep.subr.mxu0 0.0
    %3519 = vmatpush1.msra.mxu0 0.0
    %3520 = vmatprep.subr.mxu0 0.0
    %3521 = vmatpush1.msra.mxu0 0.0
    %3522 = vmatprep.subr.mxu0 0.0
    %3523 = vmatpush1.msra.mxu0 0.0
    %3524 = vmatprep.subr.mxu0 0.0
    %3525 = vmatpush1.msra.mxu0 0.0
    %3526 = vmatprep.subr.mxu0 0.0
    %3527 = vmatpush1.msra.mxu0 0.0
    %3528 = vmatprep.subr.mxu0 0.0
    %3529 = vmatpush1.msra.mxu0 0.0
    %3530 = vmatprep.subr.mxu0 0.0
    %3531 = vmatpush1.msra.mxu0 0.0
    %3532 = vmatprep.subr.mxu0 0.0
    %3533 = vmatpush1.msra.mxu0 0.0
    %3534 = vmatprep.subr.mxu0 0.0
    %3535 = vmatpush1.msra.mxu0 0.0
    %3536 = vmatprep.subr.mxu0 0.0
    %3537 = vmatpush1.msra.mxu0 0.0
    %3538 = vmatprep.subr.mxu0 0.0
    %3539 = vmatpush1.msra.mxu0 0.0
    %3540 = vmatprep.mubr.f32.mxu0 0.0
    %3541 = vmatmul.mubr.f32.gmra.mrb[0].mxu0 %v3474
    %v3542 = vpop.f32.mrb[0].mxu0
    %v3543 = vadd.f32 0.0, %v3542
    %v3544 = vpop.f32.mrb[0].mxu0
    %3545 = vdwg.mxu0
    %v3546 = vadd.f32 %v3472, %v3543
    %v3547 = vadd.f32 %v3546, %v3199
    %v3548 = vsub.f32 0.0, %v3547
    %v3549 = vmul.f32 %v3548, 1.442695
    %v3550 = vpow.pop %v3549
    %v3551 = vadd.f32 %v3550, 1.0
    %v3552 = vrcp.pop %v3551
    %v3553 = vmul.f32 1.0, %v3552
    %v3554 = vmul.f32 %v3470, %v3210
    %3555 = vmatprep.subr.mxu0 0.0
    %3556 = vmatpush1.msra.mxu0 %v122
    %3557 = vmatprep.subr.mxu0 0.0
    %3558 = vmatpush1.msra.mxu0 %v123
    %3559 = vmatprep.subr.mxu0 0.0
    %3560 = vmatpush1.msra.mxu0 0.0
    %3561 = vmatprep.subr.mxu0 0.0
    %3562 = vmatpush1.msra.mxu0 0.0
    %3563 = vmatprep.subr.mxu0 0.0
    %3564 = vmatpush1.msra.mxu0 0.0
    %3565 = vmatprep.subr.mxu0 0.0
    %3566 = vmatpush1.msra.mxu0 0.0
    %3567 = vmatprep.subr.mxu0 0.0
    %3568 = vmatpush1.msra.mxu0 0.0
    %3569 = vmatprep.subr.mxu0 0.0
    %3570 = vmatpush1.msra.mxu0 0.0
    %3571 = vmatprep.subr.mxu0 0.0
    %3572 = vmatpush1.msra.mxu0 0.0
    %3573 = vmatprep.subr.mxu0 0.0
    %3574 = vmatpush1.msra.mxu0 0.0
    %3575 = vmatprep.subr.mxu0 0.0
    %3576 = vmatpush1.msra.mxu0 0.0
    %3577 = vmatprep.subr.mxu0 0.0
    %3578 = vmatpush1.msra.mxu0 0.0
    %3579 = vmatprep.subr.mxu0 0.0
    %3580 = vmatpush1.msra.mxu0 0.0
    %3581 = vmatprep.subr.mxu0 0.0
    %3582 = vmatpush1.msra.mxu0 0.0
    %3583 = vmatprep.subr.mxu0 0.0
    %3584 = vmatpush1.msra.mxu0 0.0
    %3585 = vmatprep.subr.mxu0 0.0
    %3586 = vmatpush1.msra.mxu0 0.0
    %3587 = vmatprep.subr.mxu0 0.0
    %3588 = vmatpush1.msra.mxu0 0.0
    %3589 = vmatprep.subr.mxu0 0.0
    %3590 = vmatpush1.msra.mxu0 0.0
    %3591 = vmatprep.subr.mxu0 0.0
    %3592 = vmatpush1.msra.mxu0 0.0
    %3593 = vmatprep.subr.mxu0 0.0
    %3594 = vmatpush1.msra.mxu0 0.0
    %3595 = vmatprep.subr.mxu0 0.0
    %3596 = vmatpush1.msra.mxu0 0.0
    %3597 = vmatprep.subr.mxu0 0.0
    %3598 = vmatpush1.msra.mxu0 0.0
    %3599 = vmatprep.subr.mxu0 0.0
    %3600 = vmatpush1.msra.mxu0 0.0
    %3601 = vmatprep.subr.mxu0 0.0
    %3602 = vmatpush1.msra.mxu0 0.0
    %3603 = vmatprep.subr.mxu0 0.0
    %3604 = vmatpush1.msra.mxu0 0.0
    %3605 = vmatprep.subr.mxu0 0.0
    %3606 = vmatpush1.msra.mxu0 0.0
    %3607 = vmatprep.subr.mxu0 0.0
    %3608 = vmatpush1.msra.mxu0 0.0
    %3609 = vmatprep.subr.mxu0 0.0
    %3610 = vmatpush1.msra.mxu0 0.0
    %3611 = vmatprep.subr.mxu0 0.0
    %3612 = vmatpush1.msra.mxu0 0.0
    %3613 = vmatprep.subr.mxu0 0.0
    %3614 = vmatpush1.msra.mxu0 0.0
    %3615 = vmatprep.subr.mxu0 0.0
    %3616 = vmatpush1.msra.mxu0 0.0
    %3617 = vmatprep.subr.mxu0 0.0
    %3618 = vmatpush1.msra.mxu0 0.0
    %3619 = vmatprep.mubr.f32.mxu0 0.0
    %3620 = vmatmul.mubr.f32.gmra.mrb[0].mxu0 %v3474
    %v3621 = vpop.f32.mrb[0].mxu0
    %v3622 = vadd.f32 0.0, %v3621
    %v3623 = vpop.f32.mrb[0].mxu0
    %3624 = vdwg.mxu0
    %v3625 = vadd.f32 %v3554, %v3622
    %v3626 = vadd.f32 %v3625, %v3286
    %v3627 = vsub.f32 0.0, %v3626
    %v3628 = vmul.f32 %v3627, 1.442695
    %v3629 = vpow.pop %v3628
    %v3630 = vadd.f32 %v3629, 1.0
    %v3631 = vrcp.pop %v3630
    %v3632 = vmul.f32 1.0, %v3631
    %v3633 = vmul.f32 %v3470, %v3297
    %3634 = vmatprep.subr.mxu0 0.0
    %3635 = vmatpush1.msra.mxu0 %v124
    %3636 = vmatprep.subr.mxu0 0.0
    %3637 = vmatpush1.msra.mxu0 %v125
    %3638 = vmatprep.subr.mxu0 0.0
    %3639 = vmatpush1.msra.mxu0 0.0
    %3640 = vmatprep.subr.mxu0 0.0
    %3641 = vmatpush1.msra.mxu0 0.0
    %3642 = vmatprep.subr.mxu0 0.0
    %3643 = vmatpush1.msra.mxu0 0.0
    %3644 = vmatprep.subr.mxu0 0.0
    %3645 = vmatpush1.msra.mxu0 0.0
    %3646 = vmatprep.subr.mxu0 0.0
    %3647 = vmatpush1.msra.mxu0 0.0
    %3648 = vmatprep.subr.mxu0 0.0
    %3649 = vmatpush1.msra.mxu0 0.0
    %3650 = vmatprep.subr.mxu0 0.0
    %3651 = vmatpush1.msra.mxu0 0.0
    %3652 = vmatprep.subr.mxu0 0.0
    %3653 = vmatpush1.msra.mxu0 0.0
    %3654 = vmatprep.subr.mxu0 0.0
    %3655 = vmatpush1.msra.mxu0 0.0
    %3656 = vmatprep.subr.mxu0 0.0
    %3657 = vmatpush1.msra.mxu0 0.0
    %3658 = vmatprep.subr.mxu0 0.0
    %3659 = vmatpush1.msra.mxu0 0.0
    %3660 = vmatprep.subr.mxu0 0.0
    %3661 = vmatpush1.msra.mxu0 0.0
    %3662 = vmatprep.subr.mxu0 0.0
    %3663 = vmatpush1.msra.mxu0 0.0
    %3664 = vmatprep.subr.mxu0 0.0
    %3665 = vmatpush1.msra.mxu0 0.0
    %3666 = vmatprep.subr.mxu0 0.0
    %3667 = vmatpush1.msra.mxu0 0.0
    %3668 = vmatprep.subr.mxu0 0.0
    %3669 = vmatpush1.msra.mxu0 0.0
    %3670 = vmatprep.subr.mxu0 0.0
    %3671 = vmatpush1.msra.mxu0 0.0
    %3672 = vmatprep.subr.mxu0 0.0
    %3673 = vmatpush1.msra.mxu0 0.0
    %3674 = vmatprep.subr.mxu0 0.0
    %3675 = vmatpush1.msra.mxu0 0.0
    %3676 = vmatprep.subr.mxu0 0.0
    %3677 = vmatpush1.msra.mxu0 0.0
    %3678 = vmatprep.subr.mxu0 0.0
    %3679 = vmatpush1.msra.mxu0 0.0
    %3680 = vmatprep.subr.mxu0 0.0
    %3681 = vmatpush1.msra.mxu0 0.0
    %3682 = vmatprep.subr.mxu0 0.0
    %3683 = vmatpush1.msra.mxu0 0.0
    %3684 = vmatprep.subr.mxu0 0.0
    %3685 = vmatpush1.msra.mxu0 0.0
    %3686 = vmatprep.subr.mxu0 0.0
    %3687 = vmatpush1.msra.mxu0 0.0
    %3688 = vmatprep.subr.mxu0 0.0
    %3689 = vmatpush1.msra.mxu0 0.0
    %3690 = vmatprep.subr.mxu0 0.0
    %3691 = vmatpush1.msra.mxu0 0.0
    %3692 = vmatprep.subr.mxu0 0.0
    %3693 = vmatpush1.msra.mxu0 0.0
    %3694 = vmatprep.subr.mxu0 0.0
    %3695 = vmatpush1.msra.mxu0 0.0
    %3696 = vmatprep.subr.mxu0 0.0
    %3697 = vmatpush1.msra.mxu0 0.0
    %3698 = vmatprep.mubr.f32.mxu0 0.0
    %3699 = vmatmul.mubr.f32.gmra.mrb[0].mxu0 %v3474
    %v3700 = vpop.f32.mrb[0].mxu0
    %v3701 = vadd.f32 0.0, %v3700
    %v3702 = vpop.f32.mrb[0].mxu0
    %3703 = vdwg.mxu0
    %v3704 = vadd.f32 %v3633, %v3701
    %v3705 = vadd.f32 %v3704, %v3373
    %v3706 = vtanh.pop %v3705
    %v3707 = vmul.f32 %v3470, %v3379
    %3708 = vmatprep.subr.mxu0 0.0
    %3709 = vmatpush1.msra.mxu0 %v126
    %3710 = vmatprep.subr.mxu0 0.0
    %3711 = vmatpush1.msra.mxu0 %v127
    %3712 = vmatprep.subr.mxu0 0.0
    %3713 = vmatpush1.msra.mxu0 0.0
    %3714 = vmatprep.subr.mxu0 0.0
    %3715 = vmatpush1.msra.mxu0 0.0
    %3716 = vmatprep.subr.mxu0 0.0
    %3717 = vmatpush1.msra.mxu0 0.0
    %3718 = vmatprep.subr.mxu0 0.0
    %3719 = vmatpush1.msra.mxu0 0.0
    %3720 = vmatprep.subr.mxu0 0.0
    %3721 = vmatpush1.msra.mxu0 0.0
    %3722 = vmatprep.subr.mxu0 0.0
    %3723 = vmatpush1.msra.mxu0 0.0
    %3724 = vmatprep.subr.mxu0 0.0
    %3725 = vmatpush1.msra.mxu0 0.0
    %3726 = vmatprep.subr.mxu0 0.0
    %3727 = vmatpush1.msra.mxu0 0.0
    %3728 = vmatprep.subr.mxu0 0.0
    %3729 = vmatpush1.msra.mxu0 0.0
    %3730 = vmatprep.subr.mxu0 0.0
    %3731 = vmatpush1.msra.mxu0 0.0
    %3732 = vmatprep.subr.mxu0 0.0
    %3733 = vmatpush1.msra.mxu0 0.0
    %3734 = vmatprep.subr.mxu0 0.0
    %3735 = vmatpush1.msra.mxu0 0.0
    %3736 = vmatprep.subr.mxu0 0.0
    %3737 = vmatpush1.msra.mxu0 0.0
    %3738 = vmatprep.subr.mxu0 0.0
    %3739 = vmatpush1.msra.mxu0 0.0
    %3740 = vmatprep.subr.mxu0 0.0
    %3741 = vmatpush1.msra.mxu0 0.0
    %3742 = vmatprep.subr.mxu0 0.0
    %3743 = vmatpush1.msra.mxu0 0.0
    %3744 = vmatprep.subr.mxu0 0.0
    %3745 = vmatpush1.msra.mxu0 0.0
    %3746 = vmatprep.subr.mxu0 0.0
    %3747 = vmatpush1.msra.mxu0 0.0
    %3748 = vmatprep.subr.mxu0 0.0
    %3749 = vmatpush1.msra.mxu0 0.0
    %3750 = vmatprep.subr.mxu0 0.0
    %3751 = vmatpush1.msra.mxu0 0.0
    %3752 = vmatprep.subr.mxu0 0.0
    %3753 = vmatpush1.msra.mxu0 0.0
    %3754 = vmatprep.subr.mxu0 0.0
    %3755 = vmatpush1.msra.mxu0 0.0
    %3756 = vmatprep.subr.mxu0 0.0
    %3757 = vmatpush1.msra.mxu0 0.0
    %3758 = vmatprep.subr.mxu0 0.0
    %3759 = vmatpush1.msra.mxu0 0.0
    %3760 = vmatprep.subr.mxu0 0.0
    %3761 = vmatpush1.msra.mxu0 0.0
    %3762 = vmatprep.subr.mxu0 0.0
    %3763 = vmatpush1.msra.mxu0 0.0
    %3764 = vmatprep.subr.mxu0 0.0
    %3765 = vmatpush1.msra.mxu0 0.0
    %3766 = vmatprep.subr.mxu0 0.0
    %3767 = vmatpush1.msra.mxu0 0.0
    %3768 = vmatprep.subr.mxu0 0.0
    %3769 = vmatpush1.msra.mxu0 0.0
    %3770 = vmatprep.subr.mxu0 0.0
    %3771 = vmatpush1.msra.mxu0 0.0
    %3772 = vmatprep.mubr.f32.mxu0 0.0
    %3773 = vmatmul.mubr.f32.gmra.mrb[0].mxu0 %v3474
    %v3774 = vpop.f32.mrb[0].mxu0
    %v3775 = vadd.f32 0.0, %v3774
    %v3776 = vpop.f32.mrb[0].mxu0
    %3777 = vdwg.mxu0
    %v3778 = vadd.f32 %v3707, %v3775
    %v3779 = vadd.f32 %v3778, %v3455
    %v3780 = vsub.f32 0.0, %v3779
    %v3781 = vmul.f32 %v3780, 1.442695
    %v3782 = vpow.pop %v3781
    %v3783 = vadd.f32 %v3782, 1.0
    %v3784 = vrcp.pop %v3783
    %v3785 = vmul.f32 1.0, %v3784
    %v3786 = vmul.f32 %v3632, %v3465
    %v3787 = vmul.f32 %v3553, %v3706
    %v3788 = vadd.f32 %v3786, %v3787
    %v3789 = vtanh.pop %v3788
    %v3790 = vmul.f32 %v3785, %v3789
    %3791 = vset.pattern.permute.xlu0 10
    %3792 = vperm.xlu0 %3791, %v95
    %v3793 = vpop.permute.xlu0 %3792
    %v3795 = vmul.f32 %v3793, %v3120
    %v3797 = vsel %vm154, %v3790, 0
    %3799 = vmatprep.subr.mxu0 0.0
    %3800 = vmatpush1.msra.mxu0 %v120
    %3801 = vmatprep.subr.mxu0 0.0
    %3802 = vmatpush1.msra.mxu0 %v121
    %3803 = vmatprep.subr.mxu0 0.0
    %3804 = vmatpush1.msra.mxu0 0.0
    %3805 = vmatprep.subr.mxu0 0.0
    %3806 = vmatpush1.msra.mxu0 0.0
    %3807 = vmatprep.subr.mxu0 0.0
    %3808 = vmatpush1.msra.mxu0 0.0
    %3809 = vmatprep.subr.mxu0 0.0
    %3810 = vmatpush1.msra.mxu0 0.0
    %3811 = vmatprep.subr.mxu0 0.0
    %3812 = vmatpush1.msra.mxu0 0.0
    %3813 = vmatprep.subr.mxu0 0.0
    %3814 = vmatpush1.msra.mxu0 0.0
    %3815 = vmatprep.subr.mxu0 0.0
    %3816 = vmatpush1.msra.mxu0 0.0
    %3817 = vmatprep.subr.mxu0 0.0
    %3818 = vmatpush1.msra.mxu0 0.0
    %3819 = vmatprep.subr.mxu0 0.0
    %3820 = vmatpush1.msra.mxu0 0.0
    %3821 = vmatprep.subr.mxu0 0.0
    %3822 = vmatpush1.msra.mxu0 0.0
    %3823 = vmatprep.subr.mxu0 0.0
    %3824 = vmatpush1.msra.mxu0 0.0
    %3825 = vmatprep.subr.mxu0 0.0
    %3826 = vmatpush1.msra.mxu0 0.0
    %3827 = vmatprep.subr.mxu0 0.0
    %3828 = vmatpush1.msra.mxu0 0.0
    %3829 = vmatprep.subr.mxu0 0.0
    %3830 = vmatpush1.msra.mxu0 0.0
    %3831 = vmatprep.subr.mxu0 0.0
    %3832 = vmatpush1.msra.mxu0 0.0
    %3833 = vmatprep.subr.mxu0 0.0
    %3834 = vmatpush1.msra.mxu0 0.0
    %3835 = vmatprep.subr.mxu0 0.0
    %3836 = vmatpush1.msra.mxu0 0.0
    %3837 = vmatprep.subr.mxu0 0.0
    %3838 = vmatpush1.msra.mxu0 0.0
    %3839 = vmatprep.subr.mxu0 0.0
    %3840 = vmatpush1.msra.mxu0 0.0
    %3841 = vmatprep.subr.mxu0 0.0
    %3842 = vmatpush1.msra.mxu0 0.0
    %3843 = vmatprep.subr.mxu0 0.0
    %3844 = vmatpush1.msra.mxu0 0.0
    %3845 = vmatprep.subr.mxu0 0.0
    %3846 = vmatpush1.msra.mxu0 0.0
    %3847 = vmatprep.subr.mxu0 0.0
    %3848 = vmatpush1.msra.mxu0 0.0
    %3849 = vmatprep.subr.mxu0 0.0
    %3850 = vmatpush1.msra.mxu0 0.0
    %3851 = vmatprep.subr.mxu0 0.0
    %3852 = vmatpush1.msra.mxu0 0.0
    %3853 = vmatprep.subr.mxu0 0.0
    %3854 = vmatpush1.msra.mxu0 0.0
    %3855 = vmatprep.subr.mxu0 0.0
    %3856 = vmatpush1.msra.mxu0 0.0
    %3857 = vmatprep.subr.mxu0 0.0
    %3858 = vmatpush1.msra.mxu0 0.0
    %3859 = vmatprep.subr.mxu0 0.0
    %3860 = vmatpush1.msra.mxu0 0.0
    %3861 = vmatprep.subr.mxu0 0.0
    %3862 = vmatpush1.msra.mxu0 0.0
    %3863 = vmatprep.mubr.f32.mxu0 0.0
    %3864 = vmatmul.mubr.f32.gmra.mrb[0].mxu0 %v3797
    %v3865 = vpop.f32.mrb[0].mxu0
    %v3866 = vadd.f32 0.0, %v3865
    %v3867 = vpop.f32.mrb[0].mxu0
    %3868 = vdwg.mxu0
    %v3869 = vadd.f32 %v3795, %v3866
    %v3870 = vadd.f32 %v3869, %v3199
    %v3871 = vsub.f32 0.0, %v3870
    %v3872 = vmul.f32 %v3871, 1.442695
    %v3873 = vpow.pop %v3872
    %v3874 = vadd.f32 %v3873, 1.0
    %v3875 = vrcp.pop %v3874
    %v3876 = vmul.f32 1.0, %v3875
    %v3877 = vmul.f32 %v3793, %v3210
    %3878 = vmatprep.subr.mxu0 0.0
    %3879 = vmatpush1.msra.mxu0 %v122
    %3880 = vmatprep.subr.mxu0 0.0
    %3881 = vmatpush1.msra.mxu0 %v123
    %3882 = vmatprep.subr.mxu0 0.0
    %3883 = vmatpush1.msra.mxu0 0.0
    %3884 = vmatprep.subr.mxu0 0.0
    %3885 = vmatpush1.msra.mxu0 0.0
    %3886 = vmatprep.subr.mxu0 0.0
    %3887 = vmatpush1.msra.mxu0 0.0
    %3888 = vmatprep.subr.mxu0 0.0
    %3889 = vmatpush1.msra.mxu0 0.0
    %3890 = vmatprep.subr.mxu0 0.0
    %3891 = vmatpush1.msra.mxu0 0.0
    %3892 = vmatprep.subr.mxu0 0.0
    %3893 = vmatpush1.msra.mxu0 0.0
    %3894 = vmatprep.subr.mxu0 0.0
    %3895 = vmatpush1.msra.mxu0 0.0
    %3896 = vmatprep.subr.mxu0 0.0
    %3897 = vmatpush1.msra.mxu0 0.0
    %3898 = vmatprep.subr.mxu0 0.0
    %3899 = vmatpush1.msra.mxu0 0.0
    %3900 = vmatprep.subr.mxu0 0.0
    %3901 = vmatpush1.msra.mxu0 0.0
    %3902 = vmatprep.subr.mxu0 0.0
    %3903 = vmatpush1.msra.mxu0 0.0
    %3904 = vmatprep.subr.mxu0 0.0
    %3905 = vmatpush1.msra.mxu0 0.0
    %3906 = vmatprep.subr.mxu0 0.0
    %3907 = vmatpush1.msra.mxu0 0.0
    %3908 = vmatprep.subr.mxu0 0.0
    %3909 = vmatpush1.msra.mxu0 0.0
    %3910 = vmatprep.subr.mxu0 0.0
    %3911 = vmatpush1.msra.mxu0 0.0
    %3912 = vmatprep.subr.mxu0 0.0
    %3913 = vmatpush1.msra.mxu0 0.0
    %3914 = vmatprep.subr.mxu0 0.0
    %3915 = vmatpush1.msra.mxu0 0.0
    %3916 = vmatprep.subr.mxu0 0.0
    %3917 = vmatpush1.msra.mxu0 0.0
    %3918 = vmatprep.subr.mxu0 0.0
    %3919 = vmatpush1.msra.mxu0 0.0
    %3920 = vmatprep.subr.mxu0 0.0
    %3921 = vmatpush1.msra.mxu0 0.0
    %3922 = vmatprep.subr.mxu0 0.0
    %3923 = vmatpush1.msra.mxu0 0.0
    %3924 = vmatprep.subr.mxu0 0.0
    %3925 = vmatpush1.msra.mxu0 0.0
    %3926 = vmatprep.subr.mxu0 0.0
    %3927 = vmatpush1.msra.mxu0 0.0
    %3928 = vmatprep.subr.mxu0 0.0
    %3929 = vmatpush1.msra.mxu0 0.0
    %3930 = vmatprep.subr.mxu0 0.0
    %3931 = vmatpush1.msra.mxu0 0.0
    %3932 = vmatprep.subr.mxu0 0.0
    %3933 = vmatpush1.msra.mxu0 0.0
    %3934 = vmatprep.subr.mxu0 0.0
    %3935 = vmatpush1.msra.mxu0 0.0
    %3936 = vmatprep.subr.mxu0 0.0
    %3937 = vmatpush1.msra.mxu0 0.0
    %3938 = vmatprep.subr.mxu0 0.0
    %3939 = vmatpush1.msra.mxu0 0.0
    %3940 = vmatprep.subr.mxu0 0.0
    %3941 = vmatpush1.msra.mxu0 0.0
    %3942 = vmatprep.mubr.f32.mxu0 0.0
    %3943 = vmatmul.mubr.f32.gmra.mrb[0].mxu0 %v3797
    %v3944 = vpop.f32.mrb[0].mxu0
    %v3945 = vadd.f32 0.0, %v3944
    %v3946 = vpop.f32.mrb[0].mxu0
    %3947 = vdwg.mxu0
    %v3948 = vadd.f32 %v3877, %v3945
    %v3949 = vadd.f32 %v3948, %v3286
    %v3950 = vsub.f32 0.0, %v3949
    %v3951 = vmul.f32 %v3950, 1.442695
    %v3952 = vpow.pop %v3951
    %v3953 = vadd.f32 %v3952, 1.0
    %v3954 = vrcp.pop %v3953
    %v3955 = vmul.f32 1.0, %v3954
    %v3956 = vmul.f32 %v3793, %v3297
    %3957 = vmatprep.subr.mxu0 0.0
    %3958 = vmatpush1.msra.mxu0 %v124
    %3959 = vmatprep.subr.mxu0 0.0
    %3960 = vmatpush1.msra.mxu0 %v125
    %3961 = vmatprep.subr.mxu0 0.0
    %3962 = vmatpush1.msra.mxu0 0.0
    %3963 = vmatprep.subr.mxu0 0.0
    %3964 = vmatpush1.msra.mxu0 0.0
    %3965 = vmatprep.subr.mxu0 0.0
    %3966 = vmatpush1.msra.mxu0 0.0
    %3967 = vmatprep.subr.mxu0 0.0
    %3968 = vmatpush1.msra.mxu0 0.0
    %3969 = vmatprep.subr.mxu0 0.0
    %3970 = vmatpush1.msra.mxu0 0.0
    %3971 = vmatprep.subr.mxu0 0.0
    %3972 = vmatpush1.msra.mxu0 0.0
    %3973 = vmatprep.subr.mxu0 0.0
    %3974 = vmatpush1.msra.mxu0 0.0
    %3975 = vmatprep.subr.mxu0 0.0
    %3976 = vmatpush1.msra.mxu0 0.0
    %3977 = vmatprep.subr.mxu0 0.0
    %3978 = vmatpush1.msra.mxu0 0.0
    %3979 = vmatprep.subr.mxu0 0.0
    %3980 = vmatpush1.msra.mxu0 0.0
    %3981 = vmatprep.subr.mxu0 0.0
    %3982 = vmatpush1.msra.mxu0 0.0
    %3983 = vmatprep.subr.mxu0 0.0
    %3984 = vmatpush1.msra.mxu0 0.0
    %3985 = vmatprep.subr.mxu0 0.0
    %3986 = vmatpush1.msra.mxu0 0.0
    %3987 = vmatprep.subr.mxu0 0.0
    %3988 = vmatpush1.msra.mxu0 0.0
    %3989 = vmatprep.subr.mxu0 0.0
    %3990 = vmatpush1.msra.mxu0 0.0
    %3991 = vmatprep.subr.mxu0 0.0
    %3992 = vmatpush1.msra.mxu0 0.0
    %3993 = vmatprep.subr.mxu0 0.0
    %3994 = vmatpush1.msra.mxu0 0.0
    %3995 = vmatprep.subr.mxu0 0.0
    %3996 = vmatpush1.msra.mxu0 0.0
    %3997 = vmatprep.subr.mxu0 0.0
    %3998 = vmatpush1.msra.mxu0 0.0
    %3999 = vmatprep.subr.mxu0 0.0
    %4000 = vmatpush1.msra.mxu0 0.0
    %4001 = vmatprep.subr.mxu0 0.0
    %4002 = vmatpush1.msra.mxu0 0.0
    %4003 = vmatprep.subr.mxu0 0.0
    %4004 = vmatpush1.msra.mxu0 0.0
    %4005 = vmatprep.subr.mxu0 0.0
    %4006 = vmatpush1.msra.mxu0 0.0
    %4007 = vmatprep.subr.mxu0 0.0
    %4008 = vmatpush1.msra.mxu0 0.0
    %4009 = vmatprep.subr.mxu0 0.0
    %4010 = vmatpush1.msra.mxu0 0.0
    %4011 = vmatprep.subr.mxu0 0.0
    %4012 = vmatpush1.msra.mxu0 0.0
    %4013 = vmatprep.subr.mxu0 0.0
    %4014 = vmatpush1.msra.mxu0 0.0
    %4015 = vmatprep.subr.mxu0 0.0
    %4016 = vmatpush1.msra.mxu0 0.0
    %4017 = vmatprep.subr.mxu0 0.0
    %4018 = vmatpush1.msra.mxu0 0.0
    %4019 = vmatprep.subr.mxu0 0.0
    %4020 = vmatpush1.msra.mxu0 0.0
    %4021 = vmatprep.mubr.f32.mxu0 0.0
    %4022 = vmatmul.mubr.f32.gmra.mrb[0].mxu0 %v3797
    %v4023 = vpop.f32.mrb[0].mxu0
    %v4024 = vadd.f32 0.0, %v4023
    %v4025 = vpop.f32.mrb[0].mxu0
    %4026 = vdwg.mxu0
    %v4027 = vadd.f32 %v3956, %v4024
    %v4028 = vadd.f32 %v4027, %v3373
    %v4029 = vtanh.pop %v4028
    %v4030 = vmul.f32 %v3793, %v3379
    %4031 = vmatprep.subr.mxu0 0.0
    %4032 = vmatpush1.msra.mxu0 %v126
    %4033 = vmatprep.subr.mxu0 0.0
    %4034 = vmatpush1.msra.mxu0 %v127
    %4035 = vmatprep.subr.mxu0 0.0
    %4036 = vmatpush1.msra.mxu0 0.0
    %4037 = vmatprep.subr.mxu0 0.0
    %4038 = vmatpush1.msra.mxu0 0.0
    %4039 = vmatprep.subr.mxu0 0.0
    %4040 = vmatpush1.msra.mxu0 0.0
    %4041 = vmatprep.subr.mxu0 0.0
    %4042 = vmatpush1.msra.mxu0 0.0
    %4043 = vmatprep.subr.mxu0 0.0
    %4044 = vmatpush1.msra.mxu0 0.0
    %4045 = vmatprep.subr.mxu0 0.0
    %4046 = vmatpush1.msra.mxu0 0.0
    %4047 = vmatprep.subr.mxu0 0.0
    %4048 = vmatpush1.msra.mxu0 0.0
    %4049 = vmatprep.subr.mxu0 0.0
    %4050 = vmatpush1.msra.mxu0 0.0
    %4051 = vmatprep.subr.mxu0 0.0
    %4052 = vmatpush1.msra.mxu0 0.0
    %4053 = vmatprep.subr.mxu0 0.0
    %4054 = vmatpush1.msra.mxu0 0.0
    %4055 = vmatprep.subr.mxu0 0.0
    %4056 = vmatpush1.msra.mxu0 0.0
    %4057 = vmatprep.subr.mxu0 0.0
    %4058 = vmatpush1.msra.mxu0 0.0
    %4059 = vmatprep.subr.mxu0 0.0
    %4060 = vmatpush1.msra.mxu0 0.0
    %4061 = vmatprep.subr.mxu0 0.0
    %4062 = vmatpush1.msra.mxu0 0.0
    %4063 = vmatprep.subr.mxu0 0.0
    %4064 = vmatpush1.msra.mxu0 0.0
    %4065 = vmatprep.subr.mxu0 0.0
    %4066 = vmatpush1.msra.mxu0 0.0
    %4067 = vmatprep.subr.mxu0 0.0
    %4068 = vmatpush1.msra.mxu0 0.0
    %4069 = vmatprep.subr.mxu0 0.0
    %4070 = vmatpush1.msra.mxu0 0.0
    %4071 = vmatprep.subr.mxu0 0.0
    %4072 = vmatpush1.msra.mxu0 0.0
    %4073 = vmatprep.subr.mxu0 0.0
    %4074 = vmatpush1.msra.mxu0 0.0
    %4075 = vmatprep.subr.mxu0 0.0
    %4076 = vmatpush1.msra.mxu0 0.0
    %4077 = vmatprep.subr.mxu0 0.0
    %4078 = vmatpush1.msra.mxu0 0.0
    %4079 = vmatprep.subr.mxu0 0.0
    %4080 = vmatpush1.msra.mxu0 0.0
    %4081 = vmatprep.subr.mxu0 0.0
    %4082 = vmatpush1.msra.mxu0 0.0
    %4083 = vmatprep.subr.mxu0 0.0
    %4084 = vmatpush1.msra.mxu0 0.0
    %4085 = vmatprep.subr.mxu0 0.0
    %4086 = vmatpush1.msra.mxu0 0.0
    %4087 = vmatprep.subr.mxu0 0.0
    %4088 = vmatpush1.msra.mxu0 0.0
    %4089 = vmatprep.subr.mxu0 0.0
    %4090 = vmatpush1.msra.mxu0 0.0
    %4091 = vmatprep.subr.mxu0 0.0
    %4092 = vmatpush1.msra.mxu0 0.0
    %4093 = vmatprep.subr.mxu0 0.0
    %4094 = vmatpush1.msra.mxu0 0.0
    %4095 = vmatprep.mubr.f32.mxu0 0.0
    %4096 = vmatmul.mubr.f32.gmra.mrb[0].mxu0 %v3797
    %v4097 = vpop.f32.mrb[0].mxu0
    %v4098 = vadd.f32 0.0, %v4097
    %v4099 = vpop.f32.mrb[0].mxu0
    %4100 = vdwg.mxu0
    %v4101 = vadd.f32 %v4030, %v4098
    %v4102 = vadd.f32 %v4101, %v3455
    %v4103 = vsub.f32 0.0, %v4102
    %v4104 = vmul.f32 %v4103, 1.442695
    %v4105 = vpow.pop %v4104
    %v4106 = vadd.f32 %v4105, 1.0
    %v4107 = vrcp.pop %v4106
    %v4108 = vmul.f32 1.0, %v4107
    %v4109 = vmul.f32 %v3955, %v3788
    %v4110 = vmul.f32 %v3876, %v4029
    %v4111 = vadd.f32 %v4109, %v4110
    %v4112 = vtanh.pop %v4111
    %v4113 = vmul.f32 %v4108, %v4112
    %4114 = vset.pattern.permute.xlu0 11
    %4115 = vperm.xlu0 %4114, %v95
    %v4116 = vpop.permute.xlu0 %4115
    %v4118 = vmul.f32 %v4116, %v3120
    %v4120 = vsel %vm154, %v4113, 0
    %4122 = vmatprep.subr.mxu0 0.0
    %4123 = vmatpush1.msra.mxu0 %v120
    %4124 = vmatprep.subr.mxu0 0.0
    %4125 = vmatpush1.msra.mxu0 %v121
    %4126 = vmatprep.subr.mxu0 0.0
    %4127 = vmatpush1.msra.mxu0 0.0
    %4128 = vmatprep.subr.mxu0 0.0
    %4129 = vmatpush1.msra.mxu0 0.0
    %4130 = vmatprep.subr.mxu0 0.0
    %4131 = vmatpush1.msra.mxu0 0.0
    %4132 = vmatprep.subr.mxu0 0.0
    %4133 = vmatpush1.msra.mxu0 0.0
    %4134 = vmatprep.subr.mxu0 0.0
    %4135 = vmatpush1.msra.mxu0 0.0
    %4136 = vmatprep.subr.mxu0 0.0
    %4137 = vmatpush1.msra.mxu0 0.0
    %4138 = vmatprep.subr.mxu0 0.0
    %4139 = vmatpush1.msra.mxu0 0.0
    %4140 = vmatprep.subr.mxu0 0.0
    %4141 = vmatpush1.msra.mxu0 0.0
    %4142 = vmatprep.subr.mxu0 0.0
    %4143 = vmatpush1.msra.mxu0 0.0
    %4144 = vmatprep.subr.mxu0 0.0
    %4145 = vmatpush1.msra.mxu0 0.0
    %4146 = vmatprep.subr.mxu0 0.0
    %4147 = vmatpush1.msra.mxu0 0.0
    %4148 = vmatprep.subr.mxu0 0.0
    %4149 = vmatpush1.msra.mxu0 0.0
    %4150 = vmatprep.subr.mxu0 0.0
    %4151 = vmatpush1.msra.mxu0 0.0
    %4152 = vmatprep.subr.mxu0 0.0
    %4153 = vmatpush1.msra.mxu0 0.0
    %4154 = vmatprep.subr.mxu0 0.0
    %4155 = vmatpush1.msra.mxu0 0.0
    %4156 = vmatprep.subr.mxu0 0.0
    %4157 = vmatpush1.msra.mxu0 0.0
    %4158 = vmatprep.subr.mxu0 0.0
    %4159 = vmatpush1.msra.mxu0 0.0
    %4160 = vmatprep.subr.mxu0 0.0
    %4161 = vmatpush1.msra.mxu0 0.0
    %4162 = vmatprep.subr.mxu0 0.0
    %4163 = vmatpush1.msra.mxu0 0.0
    %4164 = vmatprep.subr.mxu0 0.0
    %4165 = vmatpush1.msra.mxu0 0.0
    %4166 = vmatprep.subr.mxu0 0.0
    %4167 = vmatpush1.msra.mxu0 0.0
    %4168 = vmatprep.subr.mxu0 0.0
    %4169 = vmatpush1.msra.mxu0 0.0
    %4170 = vmatprep.subr.mxu0 0.0
    %4171 = vmatpush1.msra.mxu0 0.0
    %4172 = vmatprep.subr.mxu0 0.0
    %4173 = vmatpush1.msra.mxu0 0.0
    %4174 = vmatprep.subr.mxu0 0.0
    %4175 = vmatpush1.msra.mxu0 0.0
    %4176 = vmatprep.subr.mxu0 0.0
    %4177 = vmatpush1.msra.mxu0 0.0
    %4178 = vmatprep.subr.mxu0 0.0
    %4179 = vmatpush1.msra.mxu0 0.0
    %4180 = vmatprep.subr.mxu0 0.0
    %4181 = vmatpush1.msra.mxu0 0.0
    %4182 = vmatprep.subr.mxu0 0.0
    %4183 = vmatpush1.msra.mxu0 0.0
    %4184 = vmatprep.subr.mxu0 0.0
    %4185 = vmatpush1.msra.mxu0 0.0
    %4186 = vmatprep.mubr.f32.mxu0 0.0
    %4187 = vmatmul.mubr.f32.gmra.mrb[0].mxu0 %v4120
    %v4188 = vpop.f32.mrb[0].mxu0
    %v4189 = vadd.f32 0.0, %v4188
    %v4190 = vpop.f32.mrb[0].mxu0
    %4191 = vdwg.mxu0
    %v4192 = vadd.f32 %v4118, %v4189
    %v4193 = vadd.f32 %v4192, %v3199
    %v4194 = vsub.f32 0.0, %v4193
    %v4195 = vmul.f32 %v4194, 1.442695
    %v4196 = vpow.pop %v4195
    %v4197 = vadd.f32 %v4196, 1.0
    %v4198 = vrcp.pop %v4197
    %v4199 = vmul.f32 1.0, %v4198
    %v4200 = vmul.f32 %v4116, %v3210
    %4201 = vmatprep.subr.mxu0 0.0
    %4202 = vmatpush1.msra.mxu0 %v122
    %4203 = vmatprep.subr.mxu0 0.0
    %4204 = vmatpush1.msra.mxu0 %v123
    %4205 = vmatprep.subr.mxu0 0.0
    %4206 = vmatpush1.msra.mxu0 0.0
    %4207 = vmatprep.subr.mxu0 0.0
    %4208 = vmatpush1.msra.mxu0 0.0
    %4209 = vmatprep.subr.mxu0 0.0
    %4210 = vmatpush1.msra.mxu0 0.0
    %4211 = vmatprep.subr.mxu0 0.0
    %4212 = vmatpush1.msra.mxu0 0.0
    %4213 = vmatprep.subr.mxu0 0.0
    %4214 = vmatpush1.msra.mxu0 0.0
    %4215 = vmatprep.subr.mxu0 0.0
    %4216 = vmatpush1.msra.mxu0 0.0
    %4217 = vmatprep.subr.mxu0 0.0
    %4218 = vmatpush1.msra.mxu0 0.0
    %4219 = vmatprep.subr.mxu0 0.0
    %4220 = vmatpush1.msra.mxu0 0.0
    %4221 = vmatprep.subr.mxu0 0.0
    %4222 = vmatpush1.msra.mxu0 0.0
    %4223 = vmatprep.subr.mxu0 0.0
    %4224 = vmatpush1.msra.mxu0 0.0
    %4225 = vmatprep.subr.mxu0 0.0
    %4226 = vmatpush1.msra.mxu0 0.0
    %4227 = vmatprep.subr.mxu0 0.0
    %4228 = vmatpush1.msra.mxu0 0.0
    %4229 = vmatprep.subr.mxu0 0.0
    %4230 = vmatpush1.msra.mxu0 0.0
    %4231 = vmatprep.subr.mxu0 0.0
    %4232 = vmatpush1.msra.mxu0 0.0
    %4233 = vmatprep.subr.mxu0 0.0
    %4234 = vmatpush1.msra.mxu0 0.0
    %4235 = vmatprep.subr.mxu0 0.0
    %4236 = vmatpush1.msra.mxu0 0.0
    %4237 = vmatprep.subr.mxu0 0.0
    %4238 = vmatpush1.msra.mxu0 0.0
    %4239 = vmatprep.subr.mxu0 0.0
    %4240 = vmatpush1.msra.mxu0 0.0
    %4241 = vmatprep.subr.mxu0 0.0
    %4242 = vmatpush1.msra.mxu0 0.0
    %4243 = vmatprep.subr.mxu0 0.0
    %4244 = vmatpush1.msra.mxu0 0.0
    %4245 = vmatprep.subr.mxu0 0.0
    %4246 = vmatpush1.msra.mxu0 0.0
    %4247 = vmatprep.subr.mxu0 0.0
    %4248 = vmatpush1.msra.mxu0 0.0
    %4249 = vmatprep.subr.mxu0 0.0
    %4250 = vmatpush1.msra.mxu0 0.0
    %4251 = vmatprep.subr.mxu0 0.0
    %4252 = vmatpush1.msra.mxu0 0.0
    %4253 = vmatprep.subr.mxu0 0.0
    %4254 = vmatpush1.msra.mxu0 0.0
    %4255 = vmatprep.subr.mxu0 0.0
    %4256 = vmatpush1.msra.mxu0 0.0
    %4257 = vmatprep.subr.mxu0 0.0
    %4258 = vmatpush1.msra.mxu0 0.0
    %4259 = vmatprep.subr.mxu0 0.0
    %4260 = vmatpush1.msra.mxu0 0.0
    %4261 = vmatprep.subr.mxu0 0.0
    %4262 = vmatpush1.msra.mxu0 0.0
    %4263 = vmatprep.subr.mxu0 0.0
    %4264 = vmatpush1.msra.mxu0 0.0
    %4265 = vmatprep.mubr.f32.mxu0 0.0
    %4266 = vmatmul.mubr.f32.gmra.mrb[0].mxu0 %v4120
    %v4267 = vpop.f32.mrb[0].mxu0
    %v4268 = vadd.f32 0.0, %v4267
    %v4269 = vpop.f32.mrb[0].mxu0
    %4270 = vdwg.mxu0
    %v4271 = vadd.f32 %v4200, %v4268
    %v4272 = vadd.f32 %v4271, %v3286
    %v4273 = vsub.f32 0.0, %v4272
    %v4274 = vmul.f32 %v4273, 1.442695
    %v4275 = vpow.pop %v4274
    %v4276 = vadd.f32 %v4275, 1.0
    %v4277 = vrcp.pop %v4276
    %v4278 = vmul.f32 1.0, %v4277
    %v4279 = vmul.f32 %v4116, %v3297
    %4280 = vmatprep.subr.mxu0 0.0
    %4281 = vmatpush1.msra.mxu0 %v124
    %4282 = vmatprep.subr.mxu0 0.0
    %4283 = vmatpush1.msra.mxu0 %v125
    %4284 = vmatprep.subr.mxu0 0.0
    %4285 = vmatpush1.msra.mxu0 0.0
    %4286 = vmatprep.subr.mxu0 0.0
    %4287 = vmatpush1.msra.mxu0 0.0
    %4288 = vmatprep.subr.mxu0 0.0
    %4289 = vmatpush1.msra.mxu0 0.0
    %4290 = vmatprep.subr.mxu0 0.0
    %4291 = vmatpush1.msra.mxu0 0.0
    %4292 = vmatprep.subr.mxu0 0.0
    %4293 = vmatpush1.msra.mxu0 0.0
    %4294 = vmatprep.subr.mxu0 0.0
    %4295 = vmatpush1.msra.mxu0 0.0
    %4296 = vmatprep.subr.mxu0 0.0
    %4297 = vmatpush1.msra.mxu0 0.0
    %4298 = vmatprep.subr.mxu0 0.0
    %4299 = vmatpush1.msra.mxu0 0.0
    %4300 = vmatprep.subr.mxu0 0.0
    %4301 = vmatpush1.msra.mxu0 0.0
    %4302 = vmatprep.subr.mxu0 0.0
    %4303 = vmatpush1.msra.mxu0 0.0
    %4304 = vmatprep.subr.mxu0 0.0
    %4305 = vmatpush1.msra.mxu0 0.0
    %4306 = vmatprep.subr.mxu0 0.0
    %4307 = vmatpush1.msra.mxu0 0.0
    %4308 = vmatprep.subr.mxu0 0.0
    %4309 = vmatpush1.msra.mxu0 0.0
    %4310 = vmatprep.subr.mxu0 0.0
    %4311 = vmatpush1.msra.mxu0 0.0
    %4312 = vmatprep.subr.mxu0 0.0
    %4313 = vmatpush1.msra.mxu0 0.0
    %4314 = vmatprep.subr.mxu0 0.0
    %4315 = vmatpush1.msra.mxu0 0.0
    %4316 = vmatprep.subr.mxu0 0.0
    %4317 = vmatpush1.msra.mxu0 0.0
    %4318 = vmatprep.subr.mxu0 0.0
    %4319 = vmatpush1.msra.mxu0 0.0
    %4320 = vmatprep.subr.mxu0 0.0
    %4321 = vmatpush1.msra.mxu0 0.0
    %4322 = vmatprep.subr.mxu0 0.0
    %4323 = vmatpush1.msra.mxu0 0.0
    %4324 = vmatprep.subr.mxu0 0.0
    %4325 = vmatpush1.msra.mxu0 0.0
    %4326 = vmatprep.subr.mxu0 0.0
    %4327 = vmatpush1.msra.mxu0 0.0
    %4328 = vmatprep.subr.mxu0 0.0
    %4329 = vmatpush1.msra.mxu0 0.0
    %4330 = vmatprep.subr.mxu0 0.0
    %4331 = vmatpush1.msra.mxu0 0.0
    %4332 = vmatprep.subr.mxu0 0.0
    %4333 = vmatpush1.msra.mxu0 0.0
    %4334 = vmatprep.subr.mxu0 0.0
    %4335 = vmatpush1.msra.mxu0 0.0
    %4336 = vmatprep.subr.mxu0 0.0
    %4337 = vmatpush1.msra.mxu0 0.0
    %4338 = vmatprep.subr.mxu0 0.0
    %4339 = vmatpush1.msra.mxu0 0.0
    %4340 = vmatprep.subr.mxu0 0.0
    %4341 = vmatpush1.msra.mxu0 0.0
    %4342 = vmatprep.subr.mxu0 0.0
    %4343 = vmatpush1.msra.mxu0 0.0
    %4344 = vmatprep.mubr.f32.mxu0 0.0
    %4345 = vmatmul.mubr.f32.gmra.mrb[0].mxu0 %v4120
    %v4346 = vpop.f32.mrb[0].mxu0
    %v4347 = vadd.f32 0.0, %v4346
    %v4348 = vpop.f32.mrb[0].mxu0
    %4349 = vdwg.mxu0
    %v4350 = vadd.f32 %v4279, %v4347
    %v4351 = vadd.f32 %v4350, %v3373
    %v4352 = vtanh.pop %v4351
    %v4353 = vmul.f32 %v4116, %v3379
    %4354 = vmatprep.subr.mxu0 0.0
    %4355 = vmatpush1.msra.mxu0 %v126
    %4356 = vmatprep.subr.mxu0 0.0
    %4357 = vmatpush1.msra.mxu0 %v127
    %4358 = vmatprep.subr.mxu0 0.0
    %4359 = vmatpush1.msra.mxu0 0.0
    %4360 = vmatprep.subr.mxu0 0.0
    %4361 = vmatpush1.msra.mxu0 0.0
    %4362 = vmatprep.subr.mxu0 0.0
    %4363 = vmatpush1.msra.mxu0 0.0
    %4364 = vmatprep.subr.mxu0 0.0
    %4365 = vmatpush1.msra.mxu0 0.0
    %4366 = vmatprep.subr.mxu0 0.0
    %4367 = vmatpush1.msra.mxu0 0.0
    %4368 = vmatprep.subr.mxu0 0.0
    %4369 = vmatpush1.msra.mxu0 0.0
    %4370 = vmatprep.subr.mxu0 0.0
    %4371 = vmatpush1.msra.mxu0 0.0
    %4372 = vmatprep.subr.mxu0 0.0
    %4373 = vmatpush1.msra.mxu0 0.0
    %4374 = vmatprep.subr.mxu0 0.0
    %4375 = vmatpush1.msra.mxu0 0.0
    %4376 = vmatprep.subr.mxu0 0.0
    %4377 = vmatpush1.msra.mxu0 0.0
    %4378 = vmatprep.subr.mxu0 0.0
    %4379 = vmatpush1.msra.mxu0 0.0
    %4380 = vmatprep.subr.mxu0 0.0
    %4381 = vmatpush1.msra.mxu0 0.0
    %4382 = vmatprep.subr.mxu0 0.0
    %4383 = vmatpush1.msra.mxu0 0.0
    %4384 = vmatprep.subr.mxu0 0.0
    %4385 = vmatpush1.msra.mxu0 0.0
    %4386 = vmatprep.subr.mxu0 0.0
    %4387 = vmatpush1.msra.mxu0 0.0
    %4388 = vmatprep.subr.mxu0 0.0
    %4389 = vmatpush1.msra.mxu0 0.0
    %4390 = vmatprep.subr.mxu0 0.0
    %4391 = vmatpush1.msra.mxu0 0.0
    %4392 = vmatprep.subr.mxu0 0.0
    %4393 = vmatpush1.msra.mxu0 0.0
    %4394 = vmatprep.subr.mxu0 0.0
    %4395 = vmatpush1.msra.mxu0 0.0
    %4396 = vmatprep.subr.mxu0 0.0
    %4397 = vmatpush1.msra.mxu0 0.0
    %4398 = vmatprep.subr.mxu0 0.0
    %4399 = vmatpush1.msra.mxu0 0.0
    %4400 = vmatprep.subr.mxu0 0.0
    %4401 = vmatpush1.msra.mxu0 0.0
    %4402 = vmatprep.subr.mxu0 0.0
    %4403 = vmatpush1.msra.mxu0 0.0
    %4404 = vmatprep.subr.mxu0 0.0
    %4405 = vmatpush1.msra.mxu0 0.0
    %4406 = vmatprep.subr.mxu0 0.0
    %4407 = vmatpush1.msra.mxu0 0.0
    %4408 = vmatprep.subr.mxu0 0.0
    %4409 = vmatpush1.msra.mxu0 0.0
    %4410 = vmatprep.subr.mxu0 0.0
    %4411 = vmatpush1.msra.mxu0 0.0
    %4412 = vmatprep.subr.mxu0 0.0
    %4413 = vmatpush1.msra.mxu0 0.0
    %4414 = vmatprep.subr.mxu0 0.0
    %4415 = vmatpush1.msra.mxu0 0.0
    %4416 = vmatprep.subr.mxu0 0.0
    %4417 = vmatpush1.msra.mxu0 0.0
    %4418 = vmatprep.mubr.f32.mxu0 0.0
    %4419 = vmatmul.mubr.f32.gmra.mrb[0].mxu0 %v4120
    %v4420 = vpop.f32.mrb[0].mxu0
    %v4421 = vadd.f32 0.0, %v4420
    %v4422 = vpop.f32.mrb[0].mxu0
    %4423 = vdwg.mxu0
    %v4424 = vadd.f32 %v4353, %v4421
    %v4425 = vadd.f32 %v4424, %v3455
    %v4426 = vsub.f32 0.0, %v4425
    %v4427 = vmul.f32 %v4426, 1.442695
    %v4428 = vpow.pop %v4427
    %v4429 = vadd.f32 %v4428, 1.0
    %v4430 = vrcp.pop %v4429
    %v4431 = vmul.f32 1.0, %v4430
    %v4432 = vmul.f32 %v4278, %v4111
    %v4433 = vmul.f32 %v4199, %v4352
    %v4434 = vadd.f32 %v4432, %v4433
    %v4435 = vtanh.pop %v4434
    %v4436 = vmul.f32 %v4431, %v4435
    %4437 = vset.pattern.permute.xlu0 12
    %4438 = vperm.xlu0 %4437, %v95
    %v4439 = vpop.permute.xlu0 %4438
    %v4441 = vmul.f32 %v4439, %v3120
    %v4443 = vsel %vm154, %v4436, 0
    %4445 = vmatprep.subr.mxu0 0.0
    %4446 = vmatpush1.msra.mxu0 %v120
    %4447 = vmatprep.subr.mxu0 0.0
    %4448 = vmatpush1.msra.mxu0 %v121
    %4449 = vmatprep.subr.mxu0 0.0
    %4450 = vmatpush1.msra.mxu0 0.0
    %4451 = vmatprep.subr.mxu0 0.0
    %4452 = vmatpush1.msra.mxu0 0.0
    %4453 = vmatprep.subr.mxu0 0.0
    %4454 = vmatpush1.msra.mxu0 0.0
    %4455 = vmatprep.subr.mxu0 0.0
    %4456 = vmatpush1.msra.mxu0 0.0
    %4457 = vmatprep.subr.mxu0 0.0
    %4458 = vmatpush1.msra.mxu0 0.0
    %4459 = vmatprep.subr.mxu0 0.0
    %4460 = vmatpush1.msra.mxu0 0.0
    %4461 = vmatprep.subr.mxu0 0.0
    %4462 = vmatpush1.msra.mxu0 0.0
    %4463 = vmatprep.subr.mxu0 0.0
    %4464 = vmatpush1.msra.mxu0 0.0
    %4465 = vmatprep.subr.mxu0 0.0
    %4466 = vmatpush1.msra.mxu0 0.0
    %4467 = vmatprep.subr.mxu0 0.0
    %4468 = vmatpush1.msra.mxu0 0.0
    %4469 = vmatprep.subr.mxu0 0.0
    %4470 = vmatpush1.msra.mxu0 0.0
    %4471 = vmatprep.subr.mxu0 0.0
    %4472 = vmatpush1.msra.mxu0 0.0
    %4473 = vmatprep.subr.mxu0 0.0
    %4474 = vmatpush1.msra.mxu0 0.0
    %4475 = vmatprep.subr.mxu0 0.0
    %4476 = vmatpush1.msra.mxu0 0.0
    %4477 = vmatprep.subr.mxu0 0.0
    %4478 = vmatpush1.msra.mxu0 0.0
    %4479 = vmatprep.subr.mxu0 0.0
    %4480 = vmatpush1.msra.mxu0 0.0
    %4481 = vmatprep.subr.mxu0 0.0
    %4482 = vmatpush1.msra.mxu0 0.0
    %4483 = vmatprep.subr.mxu0 0.0
    %4484 = vmatpush1.msra.mxu0 0.0
    %4485 = vmatprep.subr.mxu0 0.0
    %4486 = vmatpush1.msra.mxu0 0.0
    %4487 = vmatprep.subr.mxu0 0.0
    %4488 = vmatpush1.msra.mxu0 0.0
    %4489 = vmatprep.subr.mxu0 0.0
    %4490 = vmatpush1.msra.mxu0 0.0
    %4491 = vmatprep.subr.mxu0 0.0
    %4492 = vmatpush1.msra.mxu0 0.0
    %4493 = vmatprep.subr.mxu0 0.0
    %4494 = vmatpush1.msra.mxu0 0.0
    %4495 = vmatprep.subr.mxu0 0.0
    %4496 = vmatpush1.msra.mxu0 0.0
    %4497 = vmatprep.subr.mxu0 0.0
    %4498 = vmatpush1.msra.mxu0 0.0
    %4499 = vmatprep.subr.mxu0 0.0
    %4500 = vmatpush1.msra.mxu0 0.0
    %4501 = vmatprep.subr.mxu0 0.0
    %4502 = vmatpush1.msra.mxu0 0.0
    %4503 = vmatprep.subr.mxu0 0.0
    %4504 = vmatpush1.msra.mxu0 0.0
    %4505 = vmatprep.subr.mxu0 0.0
    %4506 = vmatpush1.msra.mxu0 0.0
    %4507 = vmatprep.subr.mxu0 0.0
    %4508 = vmatpush1.msra.mxu0 0.0
    %4509 = vmatprep.mubr.f32.mxu0 0.0
    %4510 = vmatmul.mubr.f32.gmra.mrb[0].mxu0 %v4443
    %v4511 = vpop.f32.mrb[0].mxu0
    %v4512 = vadd.f32 0.0, %v4511
    %v4513 = vpop.f32.mrb[0].mxu0
    %4514 = vdwg.mxu0
    %v4515 = vadd.f32 %v4441, %v4512
    %v4516 = vadd.f32 %v4515, %v3199
    %v4517 = vsub.f32 0.0, %v4516
    %v4518 = vmul.f32 %v4517, 1.442695
    %v4519 = vpow.pop %v4518
    %v4520 = vadd.f32 %v4519, 1.0
    %v4521 = vrcp.pop %v4520
    %v4522 = vmul.f32 1.0, %v4521
    %v4523 = vmul.f32 %v4439, %v3210
    %4524 = vmatprep.subr.mxu0 0.0
    %4525 = vmatpush1.msra.mxu0 %v122
    %4526 = vmatprep.subr.mxu0 0.0
    %4527 = vmatpush1.msra.mxu0 %v123
    %4528 = vmatprep.subr.mxu0 0.0
    %4529 = vmatpush1.msra.mxu0 0.0
    %4530 = vmatprep.subr.mxu0 0.0
    %4531 = vmatpush1.msra.mxu0 0.0
    %4532 = vmatprep.subr.mxu0 0.0
    %4533 = vmatpush1.msra.mxu0 0.0
    %4534 = vmatprep.subr.mxu0 0.0
    %4535 = vmatpush1.msra.mxu0 0.0
    %4536 = vmatprep.subr.mxu0 0.0
    %4537 = vmatpush1.msra.mxu0 0.0
    %4538 = vmatprep.subr.mxu0 0.0
    %4539 = vmatpush1.msra.mxu0 0.0
    %4540 = vmatprep.subr.mxu0 0.0
    %4541 = vmatpush1.msra.mxu0 0.0
    %4542 = vmatprep.subr.mxu0 0.0
    %4543 = vmatpush1.msra.mxu0 0.0
    %4544 = vmatprep.subr.mxu0 0.0
    %4545 = vmatpush1.msra.mxu0 0.0
    %4546 = vmatprep.subr.mxu0 0.0
    %4547 = vmatpush1.msra.mxu0 0.0
    %4548 = vmatprep.subr.mxu0 0.0
    %4549 = vmatpush1.msra.mxu0 0.0
    %4550 = vmatprep.subr.mxu0 0.0
    %4551 = vmatpush1.msra.mxu0 0.0
    %4552 = vmatprep.subr.mxu0 0.0
    %4553 = vmatpush1.msra.mxu0 0.0
    %4554 = vmatprep.subr.mxu0 0.0
    %4555 = vmatpush1.msra.mxu0 0.0
    %4556 = vmatprep.subr.mxu0 0.0
    %4557 = vmatpush1.msra.mxu0 0.0
    %4558 = vmatprep.subr.mxu0 0.0
    %4559 = vmatpush1.msra.mxu0 0.0
    %4560 = vmatprep.subr.mxu0 0.0
    %4561 = vmatpush1.msra.mxu0 0.0
    %4562 = vmatprep.subr.mxu0 0.0
    %4563 = vmatpush1.msra.mxu0 0.0
    %4564 = vmatprep.subr.mxu0 0.0
    %4565 = vmatpush1.msra.mxu0 0.0
    %4566 = vmatprep.subr.mxu0 0.0
    %4567 = vmatpush1.msra.mxu0 0.0
    %4568 = vmatprep.subr.mxu0 0.0
    %4569 = vmatpush1.msra.mxu0 0.0
    %4570 = vmatprep.subr.mxu0 0.0
    %4571 = vmatpush1.msra.mxu0 0.0
    %4572 = vmatprep.subr.mxu0 0.0
    %4573 = vmatpush1.msra.mxu0 0.0
    %4574 = vmatprep.subr.mxu0 0.0
    %4575 = vmatpush1.msra.mxu0 0.0
    %4576 = vmatprep.subr.mxu0 0.0
    %4577 = vmatpush1.msra.mxu0 0.0
    %4578 = vmatprep.subr.mxu0 0.0
    %4579 = vmatpush1.msra.mxu0 0.0
    %4580 = vmatprep.subr.mxu0 0.0
    %4581 = vmatpush1.msra.mxu0 0.0
    %4582 = vmatprep.subr.mxu0 0.0
    %4583 = vmatpush1.msra.mxu0 0.0
    %4584 = vmatprep.subr.mxu0 0.0
    %4585 = vmatpush1.msra.mxu0 0.0
    %4586 = vmatprep.subr.mxu0 0.0
    %4587 = vmatpush1.msra.mxu0 0.0
    %4588 = vmatprep.mubr.f32.mxu0 0.0
    %4589 = vmatmul.mubr.f32.gmra.mrb[0].mxu0 %v4443
    %v4590 = vpop.f32.mrb[0].mxu0
    %v4591 = vadd.f32 0.0, %v4590
    %v4592 = vpop.f32.mrb[0].mxu0
    %4593 = vdwg.mxu0
    %v4594 = vadd.f32 %v4523, %v4591
    %v4595 = vadd.f32 %v4594, %v3286
    %v4596 = vsub.f32 0.0, %v4595
    %v4597 = vmul.f32 %v4596, 1.442695
    %v4598 = vpow.pop %v4597
    %v4599 = vadd.f32 %v4598, 1.0
    %v4600 = vrcp.pop %v4599
    %v4601 = vmul.f32 1.0, %v4600
    %v4602 = vmul.f32 %v4439, %v3297
    %4603 = vmatprep.subr.mxu0 0.0
    %4604 = vmatpush1.msra.mxu0 %v124
    %4605 = vmatprep.subr.mxu0 0.0
    %4606 = vmatpush1.msra.mxu0 %v125
    %4607 = vmatprep.subr.mxu0 0.0
    %4608 = vmatpush1.msra.mxu0 0.0
    %4609 = vmatprep.subr.mxu0 0.0
    %4610 = vmatpush1.msra.mxu0 0.0
    %4611 = vmatprep.subr.mxu0 0.0
    %4612 = vmatpush1.msra.mxu0 0.0
    %4613 = vmatprep.subr.mxu0 0.0
    %4614 = vmatpush1.msra.mxu0 0.0
    %4615 = vmatprep.subr.mxu0 0.0
    %4616 = vmatpush1.msra.mxu0 0.0
    %4617 = vmatprep.subr.mxu0 0.0
    %4618 = vmatpush1.msra.mxu0 0.0
    %4619 = vmatprep.subr.mxu0 0.0
    %4620 = vmatpush1.msra.mxu0 0.0
    %4621 = vmatprep.subr.mxu0 0.0
    %4622 = vmatpush1.msra.mxu0 0.0
    %4623 = vmatprep.subr.mxu0 0.0
    %4624 = vmatpush1.msra.mxu0 0.0
    %4625 = vmatprep.subr.mxu0 0.0
    %4626 = vmatpush1.msra.mxu0 0.0
    %4627 = vmatprep.subr.mxu0 0.0
    %4628 = vmatpush1.msra.mxu0 0.0
    %4629 = vmatprep.subr.mxu0 0.0
    %4630 = vmatpush1.msra.mxu0 0.0
    %4631 = vmatprep.subr.mxu0 0.0
    %4632 = vmatpush1.msra.mxu0 0.0
    %4633 = vmatprep.subr.mxu0 0.0
    %4634 = vmatpush1.msra.mxu0 0.0
    %4635 = vmatprep.subr.mxu0 0.0
    %4636 = vmatpush1.msra.mxu0 0.0
    %4637 = vmatprep.subr.mxu0 0.0
    %4638 = vmatpush1.msra.mxu0 0.0
    %4639 = vmatprep.subr.mxu0 0.0
    %4640 = vmatpush1.msra.mxu0 0.0
    %4641 = vmatprep.subr.mxu0 0.0
    %4642 = vmatpush1.msra.mxu0 0.0
    %4643 = vmatprep.subr.mxu0 0.0
    %4644 = vmatpush1.msra.mxu0 0.0
    %4645 = vmatprep.subr.mxu0 0.0
    %4646 = vmatpush1.msra.mxu0 0.0
    %4647 = vmatprep.subr.mxu0 0.0
    %4648 = vmatpush1.msra.mxu0 0.0
    %4649 = vmatprep.subr.mxu0 0.0
    %4650 = vmatpush1.msra.mxu0 0.0
    %4651 = vmatprep.subr.mxu0 0.0
    %4652 = vmatpush1.msra.mxu0 0.0
    %4653 = vmatprep.subr.mxu0 0.0
    %4654 = vmatpush1.msra.mxu0 0.0
    %4655 = vmatprep.subr.mxu0 0.0
    %4656 = vmatpush1.msra.mxu0 0.0
    %4657 = vmatprep.subr.mxu0 0.0
    %4658 = vmatpush1.msra.mxu0 0.0
    %4659 = vmatprep.subr.mxu0 0.0
    %4660 = vmatpush1.msra.mxu0 0.0
    %4661 = vmatprep.subr.mxu0 0.0
    %4662 = vmatpush1.msra.mxu0 0.0
    %4663 = vmatprep.subr.mxu0 0.0
    %4664 = vmatpush1.msra.mxu0 0.0
    %4665 = vmatprep.subr.mxu0 0.0
    %4666 = vmatpush1.msra.mxu0 0.0
    %4667 = vmatprep.mubr.f32.mxu0 0.0
    %4668 = vmatmul.mubr.f32.gmra.mrb[0].mxu0 %v4443
    %v4669 = vpop.f32.mrb[0].mxu0
    %v4670 = vadd.f32 0.0, %v4669
    %v4671 = vpop.f32.mrb[0].mxu0
    %4672 = vdwg.mxu0
    %v4673 = vadd.f32 %v4602, %v4670
    %v4674 = vadd.f32 %v4673, %v3373
    %v4675 = vtanh.pop %v4674
    %v4676 = vmul.f32 %v4439, %v3379
    %4677 = vmatprep.subr.mxu0 0.0
    %4678 = vmatpush1.msra.mxu0 %v126
    %4679 = vmatprep.subr.mxu0 0.0
    %4680 = vmatpush1.msra.mxu0 %v127
    %4681 = vmatprep.subr.mxu0 0.0
    %4682 = vmatpush1.msra.mxu0 0.0
    %4683 = vmatprep.subr.mxu0 0.0
    %4684 = vmatpush1.msra.mxu0 0.0
    %4685 = vmatprep.subr.mxu0 0.0
    %4686 = vmatpush1.msra.mxu0 0.0
    %4687 = vmatprep.subr.mxu0 0.0
    %4688 = vmatpush1.msra.mxu0 0.0
    %4689 = vmatprep.subr.mxu0 0.0
    %4690 = vmatpush1.msra.mxu0 0.0
    %4691 = vmatprep.subr.mxu0 0.0
    %4692 = vmatpush1.msra.mxu0 0.0
    %4693 = vmatprep.subr.mxu0 0.0
    %4694 = vmatpush1.msra.mxu0 0.0
    %4695 = vmatprep.subr.mxu0 0.0
    %4696 = vmatpush1.msra.mxu0 0.0
    %4697 = vmatprep.subr.mxu0 0.0
    %4698 = vmatpush1.msra.mxu0 0.0
    %4699 = vmatprep.subr.mxu0 0.0
    %4700 = vmatpush1.msra.mxu0 0.0
    %4701 = vmatprep.subr.mxu0 0.0
    %4702 = vmatpush1.msra.mxu0 0.0
    %4703 = vmatprep.subr.mxu0 0.0
    %4704 = vmatpush1.msra.mxu0 0.0
    %4705 = vmatprep.subr.mxu0 0.0
    %4706 = vmatpush1.msra.mxu0 0.0
    %4707 = vmatprep.subr.mxu0 0.0
    %4708 = vmatpush1.msra.mxu0 0.0
    %4709 = vmatprep.subr.mxu0 0.0
    %4710 = vmatpush1.msra.mxu0 0.0
    %4711 = vmatprep.subr.mxu0 0.0
    %4712 = vmatpush1.msra.mxu0 0.0
    %4713 = vmatprep.subr.mxu0 0.0
    %4714 = vmatpush1.msra.mxu0 0.0
    %4715 = vmatprep.subr.mxu0 0.0
    %4716 = vmatpush1.msra.mxu0 0.0
    %4717 = vmatprep.subr.mxu0 0.0
    %4718 = vmatpush1.msra.mxu0 0.0
    %4719 = vmatprep.subr.mxu0 0.0
    %4720 = vmatpush1.msra.mxu0 0.0
    %4721 = vmatprep.subr.mxu0 0.0
    %4722 = vmatpush1.msra.mxu0 0.0
    %4723 = vmatprep.subr.mxu0 0.0
    %4724 = vmatpush1.msra.mxu0 0.0
    %4725 = vmatprep.subr.mxu0 0.0
    %4726 = vmatpush1.msra.mxu0 0.0
    %4727 = vmatprep.subr.mxu0 0.0
    %4728 = vmatpush1.msra.mxu0 0.0
    %4729 = vmatprep.subr.mxu0 0.0
    %4730 = vmatpush1.msra.mxu0 0.0
    %4731 = vmatprep.subr.mxu0 0.0
    %4732 = vmatpush1.msra.mxu0 0.0
    %4733 = vmatprep.subr.mxu0 0.0
    %4734 = vmatpush1.msra.mxu0 0.0
    %4735 = vmatprep.subr.mxu0 0.0
    %4736 = vmatpush1.msra.mxu0 0.0
    %4737 = vmatprep.subr.mxu0 0.0
    %4738 = vmatpush1.msra.mxu0 0.0
    %4739 = vmatprep.subr.mxu0 0.0
    %4740 = vmatpush1.msra.mxu0 0.0
    %4741 = vmatprep.mubr.f32.mxu0 0.0
    %4742 = vmatmul.mubr.f32.gmra.mrb[0].mxu0 %v4443
    %v4743 = vpop.f32.mrb[0].mxu0
    %v4744 = vadd.f32 0.0, %v4743
    %v4745 = vpop.f32.mrb[0].mxu0
    %4746 = vdwg.mxu0
    %v4747 = vadd.f32 %v4676, %v4744
    %v4748 = vadd.f32 %v4747, %v3455
    %v4749 = vsub.f32 0.0, %v4748
    %v4750 = vmul.f32 %v4749, 1.442695
    %v4751 = vpow.pop %v4750
    %v4752 = vadd.f32 %v4751, 1.0
    %v4753 = vrcp.pop %v4752
    %v4754 = vmul.f32 1.0, %v4753
    %v4755 = vmul.f32 %v4601, %v4434
    %v4756 = vmul.f32 %v4522, %v4675
    %v4757 = vadd.f32 %v4755, %v4756
    %v4758 = vtanh.pop %v4757
    %v4759 = vmul.f32 %v4754, %v4758
    %4760 = vset.pattern.permute.xlu0 13
    %4761 = vperm.xlu0 %4760, %v95
    %v4762 = vpop.permute.xlu0 %4761
    %v4764 = vmul.f32 %v4762, %v3120
    %v4766 = vsel %vm154, %v4759, 0
    %4768 = vmatprep.subr.mxu0 0.0
    %4769 = vmatpush1.msra.mxu0 %v120
    %4770 = vmatprep.subr.mxu0 0.0
    %4771 = vmatpush1.msra.mxu0 %v121
    %4772 = vmatprep.subr.mxu0 0.0
    %4773 = vmatpush1.msra.mxu0 0.0
    %4774 = vmatprep.subr.mxu0 0.0
    %4775 = vmatpush1.msra.mxu0 0.0
    %4776 = vmatprep.subr.mxu0 0.0
    %4777 = vmatpush1.msra.mxu0 0.0
    %4778 = vmatprep.subr.mxu0 0.0
    %4779 = vmatpush1.msra.mxu0 0.0
    %4780 = vmatprep.subr.mxu0 0.0
    %4781 = vmatpush1.msra.mxu0 0.0
    %4782 = vmatprep.subr.mxu0 0.0
    %4783 = vmatpush1.msra.mxu0 0.0
    %4784 = vmatprep.subr.mxu0 0.0
    %4785 = vmatpush1.msra.mxu0 0.0
    %4786 = vmatprep.subr.mxu0 0.0
    %4787 = vmatpush1.msra.mxu0 0.0
    %4788 = vmatprep.subr.mxu0 0.0
    %4789 = vmatpush1.msra.mxu0 0.0
    %4790 = vmatprep.subr.mxu0 0.0
    %4791 = vmatpush1.msra.mxu0 0.0
    %4792 = vmatprep.subr.mxu0 0.0
    %4793 = vmatpush1.msra.mxu0 0.0
    %4794 = vmatprep.subr.mxu0 0.0
    %4795 = vmatpush1.msra.mxu0 0.0
    %4796 = vmatprep.subr.mxu0 0.0
    %4797 = vmatpush1.msra.mxu0 0.0
    %4798 = vmatprep.subr.mxu0 0.0
    %4799 = vmatpush1.msra.mxu0 0.0
    %4800 = vmatprep.subr.mxu0 0.0
    %4801 = vmatpush1.msra.mxu0 0.0
    %4802 = vmatprep.subr.mxu0 0.0
    %4803 = vmatpush1.msra.mxu0 0.0
    %4804 = vmatprep.subr.mxu0 0.0
    %4805 = vmatpush1.msra.mxu0 0.0
    %4806 = vmatprep.subr.mxu0 0.0
    %4807 = vmatpush1.msra.mxu0 0.0
    %4808 = vmatprep.subr.mxu0 0.0
    %4809 = vmatpush1.msra.mxu0 0.0
    %4810 = vmatprep.subr.mxu0 0.0
    %4811 = vmatpush1.msra.mxu0 0.0
    %4812 = vmatprep.subr.mxu0 0.0
    %4813 = vmatpush1.msra.mxu0 0.0
    %4814 = vmatprep.subr.mxu0 0.0
    %4815 = vmatpush1.msra.mxu0 0.0
    %4816 = vmatprep.subr.mxu0 0.0
    %4817 = vmatpush1.msra.mxu0 0.0
    %4818 = vmatprep.subr.mxu0 0.0
    %4819 = vmatpush1.msra.mxu0 0.0
    %4820 = vmatprep.subr.mxu0 0.0
    %4821 = vmatpush1.msra.mxu0 0.0
    %4822 = vmatprep.subr.mxu0 0.0
    %4823 = vmatpush1.msra.mxu0 0.0
    %4824 = vmatprep.subr.mxu0 0.0
    %4825 = vmatpush1.msra.mxu0 0.0
    %4826 = vmatprep.subr.mxu0 0.0
    %4827 = vmatpush1.msra.mxu0 0.0
    %4828 = vmatprep.subr.mxu0 0.0
    %4829 = vmatpush1.msra.mxu0 0.0
    %4830 = vmatprep.subr.mxu0 0.0
    %4831 = vmatpush1.msra.mxu0 0.0
    %4832 = vmatprep.mubr.f32.mxu0 0.0
    %4833 = vmatmul.mubr.f32.gmra.mrb[0].mxu0 %v4766
    %v4834 = vpop.f32.mrb[0].mxu0
    %v4835 = vadd.f32 0.0, %v4834
    %v4836 = vpop.f32.mrb[0].mxu0
    %4837 = vdwg.mxu0
    %v4838 = vadd.f32 %v4764, %v4835
    %v4839 = vadd.f32 %v4838, %v3199
    %v4840 = vsub.f32 0.0, %v4839
    %v4841 = vmul.f32 %v4840, 1.442695
    %v4842 = vpow.pop %v4841
    %v4843 = vadd.f32 %v4842, 1.0
    %v4844 = vrcp.pop %v4843
    %v4845 = vmul.f32 1.0, %v4844
    %v4846 = vmul.f32 %v4762, %v3210
    %4847 = vmatprep.subr.mxu0 0.0
    %4848 = vmatpush1.msra.mxu0 %v122
    %4849 = vmatprep.subr.mxu0 0.0
    %4850 = vmatpush1.msra.mxu0 %v123
    %4851 = vmatprep.subr.mxu0 0.0
    %4852 = vmatpush1.msra.mxu0 0.0
    %4853 = vmatprep.subr.mxu0 0.0
    %4854 = vmatpush1.msra.mxu0 0.0
    %4855 = vmatprep.subr.mxu0 0.0
    %4856 = vmatpush1.msra.mxu0 0.0
    %4857 = vmatprep.subr.mxu0 0.0
    %4858 = vmatpush1.msra.mxu0 0.0
    %4859 = vmatprep.subr.mxu0 0.0
    %4860 = vmatpush1.msra.mxu0 0.0
    %4861 = vmatprep.subr.mxu0 0.0
    %4862 = vmatpush1.msra.mxu0 0.0
    %4863 = vmatprep.subr.mxu0 0.0
    %4864 = vmatpush1.msra.mxu0 0.0
    %4865 = vmatprep.subr.mxu0 0.0
    %4866 = vmatpush1.msra.mxu0 0.0
    %4867 = vmatprep.subr.mxu0 0.0
    %4868 = vmatpush1.msra.mxu0 0.0
    %4869 = vmatprep.subr.mxu0 0.0
    %4870 = vmatpush1.msra.mxu0 0.0
    %4871 = vmatprep.subr.mxu0 0.0
    %4872 = vmatpush1.msra.mxu0 0.0
    %4873 = vmatprep.subr.mxu0 0.0
    %4874 = vmatpush1.msra.mxu0 0.0
    %4875 = vmatprep.subr.mxu0 0.0
    %4876 = vmatpush1.msra.mxu0 0.0
    %4877 = vmatprep.subr.mxu0 0.0
    %4878 = vmatpush1.msra.mxu0 0.0
    %4879 = vmatprep.subr.mxu0 0.0
    %4880 = vmatpush1.msra.mxu0 0.0
    %4881 = vmatprep.subr.mxu0 0.0
    %4882 = vmatpush1.msra.mxu0 0.0
    %4883 = vmatprep.subr.mxu0 0.0
    %4884 = vmatpush1.msra.mxu0 0.0
    %4885 = vmatprep.subr.mxu0 0.0
    %4886 = vmatpush1.msra.mxu0 0.0
    %4887 = vmatprep.subr.mxu0 0.0
    %4888 = vmatpush1.msra.mxu0 0.0
    %4889 = vmatprep.subr.mxu0 0.0
    %4890 = vmatpush1.msra.mxu0 0.0
    %4891 = vmatprep.subr.mxu0 0.0
    %4892 = vmatpush1.msra.mxu0 0.0
    %4893 = vmatprep.subr.mxu0 0.0
    %4894 = vmatpush1.msra.mxu0 0.0
    %4895 = vmatprep.subr.mxu0 0.0
    %4896 = vmatpush1.msra.mxu0 0.0
    %4897 = vmatprep.subr.mxu0 0.0
    %4898 = vmatpush1.msra.mxu0 0.0
    %4899 = vmatprep.subr.mxu0 0.0
    %4900 = vmatpush1.msra.mxu0 0.0
    %4901 = vmatprep.subr.mxu0 0.0
    %4902 = vmatpush1.msra.mxu0 0.0
    %4903 = vmatprep.subr.mxu0 0.0
    %4904 = vmatpush1.msra.mxu0 0.0
    %4905 = vmatprep.subr.mxu0 0.0
    %4906 = vmatpush1.msra.mxu0 0.0
    %4907 = vmatprep.subr.mxu0 0.0
    %4908 = vmatpush1.msra.mxu0 0.0
    %4909 = vmatprep.subr.mxu0 0.0
    %4910 = vmatpush1.msra.mxu0 0.0
    %4911 = vmatprep.mubr.f32.mxu0 0.0
    %4912 = vmatmul.mubr.f32.gmra.mrb[0].mxu0 %v4766
    %v4913 = vpop.f32.mrb[0].mxu0
    %v4914 = vadd.f32 0.0, %v4913
    %v4915 = vpop.f32.mrb[0].mxu0
    %4916 = vdwg.mxu0
    %v4917 = vadd.f32 %v4846, %v4914
    %v4918 = vadd.f32 %v4917, %v3286
    %v4919 = vsub.f32 0.0, %v4918
    %v4920 = vmul.f32 %v4919, 1.442695
    %v4921 = vpow.pop %v4920
    %v4922 = vadd.f32 %v4921, 1.0
    %v4923 = vrcp.pop %v4922
    %v4924 = vmul.f32 1.0, %v4923
    %v4925 = vmul.f32 %v4762, %v3297
    %4926 = vmatprep.subr.mxu0 0.0
    %4927 = vmatpush1.msra.mxu0 %v124
    %4928 = vmatprep.subr.mxu0 0.0
    %4929 = vmatpush1.msra.mxu0 %v125
    %4930 = vmatprep.subr.mxu0 0.0
    %4931 = vmatpush1.msra.mxu0 0.0
    %4932 = vmatprep.subr.mxu0 0.0
    %4933 = vmatpush1.msra.mxu0 0.0
    %4934 = vmatprep.subr.mxu0 0.0
    %4935 = vmatpush1.msra.mxu0 0.0
    %4936 = vmatprep.subr.mxu0 0.0
    %4937 = vmatpush1.msra.mxu0 0.0
    %4938 = vmatprep.subr.mxu0 0.0
    %4939 = vmatpush1.msra.mxu0 0.0
    %4940 = vmatprep.subr.mxu0 0.0
    %4941 = vmatpush1.msra.mxu0 0.0
    %4942 = vmatprep.subr.mxu0 0.0
    %4943 = vmatpush1.msra.mxu0 0.0
    %4944 = vmatprep.subr.mxu0 0.0
    %4945 = vmatpush1.msra.mxu0 0.0
    %4946 = vmatprep.subr.mxu0 0.0
    %4947 = vmatpush1.msra.mxu0 0.0
    %4948 = vmatprep.subr.mxu0 0.0
    %4949 = vmatpush1.msra.mxu0 0.0
    %4950 = vmatprep.subr.mxu0 0.0
    %4951 = vmatpush1.msra.mxu0 0.0
    %4952 = vmatprep.subr.mxu0 0.0
    %4953 = vmatpush1.msra.mxu0 0.0
    %4954 = vmatprep.subr.mxu0 0.0
    %4955 = vmatpush1.msra.mxu0 0.0
    %4956 = vmatprep.subr.mxu0 0.0
    %4957 = vmatpush1.msra.mxu0 0.0
    %4958 = vmatprep.subr.mxu0 0.0
    %4959 = vmatpush1.msra.mxu0 0.0
    %4960 = vmatprep.subr.mxu0 0.0
    %4961 = vmatpush1.msra.mxu0 0.0
    %4962 = vmatprep.subr.mxu0 0.0
    %4963 = vmatpush1.msra.mxu0 0.0
    %4964 = vmatprep.subr.mxu0 0.0
    %4965 = vmatpush1.msra.mxu0 0.0
    %4966 = vmatprep.subr.mxu0 0.0
    %4967 = vmatpush1.msra.mxu0 0.0
    %4968 = vmatprep.subr.mxu0 0.0
    %4969 = vmatpush1.msra.mxu0 0.0
    %4970 = vmatprep.subr.mxu0 0.0
    %4971 = vmatpush1.msra.mxu0 0.0
    %4972 = vmatprep.subr.mxu0 0.0
    %4973 = vmatpush1.msra.mxu0 0.0
    %4974 = vmatprep.subr.mxu0 0.0
    %4975 = vmatpush1.msra.mxu0 0.0
    %4976 = vmatprep.subr.mxu0 0.0
    %4977 = vmatpush1.msra.mxu0 0.0
    %4978 = vmatprep.subr.mxu0 0.0
    %4979 = vmatpush1.msra.mxu0 0.0
    %4980 = vmatprep.subr.mxu0 0.0
    %4981 = vmatpush1.msra.mxu0 0.0
    %4982 = vmatprep.subr.mxu0 0.0
    %4983 = vmatpush1.msra.mxu0 0.0
    %4984 = vmatprep.subr.mxu0 0.0
    %4985 = vmatpush1.msra.mxu0 0.0
    %4986 = vmatprep.subr.mxu0 0.0
    %4987 = vmatpush1.msra.mxu0 0.0
    %4988 = vmatprep.subr.mxu0 0.0
    %4989 = vmatpush1.msra.mxu0 0.0
    %4990 = vmatprep.mubr.f32.mxu0 0.0
    %4991 = vmatmul.mubr.f32.gmra.mrb[0].mxu0 %v4766
    %v4992 = vpop.f32.mrb[0].mxu0
    %v4993 = vadd.f32 0.0, %v4992
    %v4994 = vpop.f32.mrb[0].mxu0
    %4995 = vdwg.mxu0
    %v4996 = vadd.f32 %v4925, %v4993
    %v4997 = vadd.f32 %v4996, %v3373
    %v4998 = vtanh.pop %v4997
    %v4999 = vmul.f32 %v4762, %v3379
    %5000 = vmatprep.subr.mxu0 0.0
    %5001 = vmatpush1.msra.mxu0 %v126
    %5002 = vmatprep.subr.mxu0 0.0
    %5003 = vmatpush1.msra.mxu0 %v127
    %5004 = vmatprep.subr.mxu0 0.0
    %5005 = vmatpush1.msra.mxu0 0.0
    %5006 = vmatprep.subr.mxu0 0.0
    %5007 = vmatpush1.msra.mxu0 0.0
    %5008 = vmatprep.subr.mxu0 0.0
    %5009 = vmatpush1.msra.mxu0 0.0
    %5010 = vmatprep.subr.mxu0 0.0
    %5011 = vmatpush1.msra.mxu0 0.0
    %5012 = vmatprep.subr.mxu0 0.0
    %5013 = vmatpush1.msra.mxu0 0.0
    %5014 = vmatprep.subr.mxu0 0.0
    %5015 = vmatpush1.msra.mxu0 0.0
    %5016 = vmatprep.subr.mxu0 0.0
    %5017 = vmatpush1.msra.mxu0 0.0
    %5018 = vmatprep.subr.mxu0 0.0
    %5019 = vmatpush1.msra.mxu0 0.0
    %5020 = vmatprep.subr.mxu0 0.0
    %5021 = vmatpush1.msra.mxu0 0.0
    %5022 = vmatprep.subr.mxu0 0.0
    %5023 = vmatpush1.msra.mxu0 0.0
    %5024 = vmatprep.subr.mxu0 0.0
    %5025 = vmatpush1.msra.mxu0 0.0
    %5026 = vmatprep.subr.mxu0 0.0
    %5027 = vmatpush1.msra.mxu0 0.0
    %5028 = vmatprep.subr.mxu0 0.0
    %5029 = vmatpush1.msra.mxu0 0.0
    %5030 = vmatprep.subr.mxu0 0.0
    %5031 = vmatpush1.msra.mxu0 0.0
    %5032 = vmatprep.subr.mxu0 0.0
    %5033 = vmatpush1.msra.mxu0 0.0
    %5034 = vmatprep.subr.mxu0 0.0
    %5035 = vmatpush1.msra.mxu0 0.0
    %5036 = vmatprep.subr.mxu0 0.0
    %5037 = vmatpush1.msra.mxu0 0.0
    %5038 = vmatprep.subr.mxu0 0.0
    %5039 = vmatpush1.msra.mxu0 0.0
    %5040 = vmatprep.subr.mxu0 0.0
    %5041 = vmatpush1.msra.mxu0 0.0
    %5042 = vmatprep.subr.mxu0 0.0
    %5043 = vmatpush1.msra.mxu0 0.0
    %5044 = vmatprep.subr.mxu0 0.0
    %5045 = vmatpush1.msra.mxu0 0.0
    %5046 = vmatprep.subr.mxu0 0.0
    %5047 = vmatpush1.msra.mxu0 0.0
    %5048 = vmatprep.subr.mxu0 0.0
    %5049 = vmatpush1.msra.mxu0 0.0
    %5050 = vmatprep.subr.mxu0 0.0
    %5051 = vmatpush1.msra.mxu0 0.0
    %5052 = vmatprep.subr.mxu0 0.0
    %5053 = vmatpush1.msra.mxu0 0.0
    %5054 = vmatprep.subr.mxu0 0.0
    %5055 = vmatpush1.msra.mxu0 0.0
    %5056 = vmatprep.subr.mxu0 0.0
    %5057 = vmatpush1.msra.mxu0 0.0
    %5058 = vmatprep.subr.mxu0 0.0
    %5059 = vmatpush1.msra.mxu0 0.0
    %5060 = vmatprep.subr.mxu0 0.0
    %5061 = vmatpush1.msra.mxu0 0.0
    %5062 = vmatprep.subr.mxu0 0.0
    %5063 = vmatpush1.msra.mxu0 0.0
    %5064 = vmatprep.mubr.f32.mxu0 0.0
    %5065 = vmatmul.mubr.f32.gmra.mrb[0].mxu0 %v4766
    %v5066 = vpop.f32.mrb[0].mxu0
    %v5067 = vadd.f32 0.0, %v5066
    %v5068 = vpop.f32.mrb[0].mxu0
    %5069 = vdwg.mxu0
    %v5070 = vadd.f32 %v4999, %v5067
    %v5071 = vadd.f32 %v5070, %v3455
    %v5072 = vsub.f32 0.0, %v5071
    %v5073 = vmul.f32 %v5072, 1.442695
    %v5074 = vpow.pop %v5073
    %v5075 = vadd.f32 %v5074, 1.0
    %v5076 = vrcp.pop %v5075
    %v5077 = vmul.f32 1.0, %v5076
    %v5078 = vmul.f32 %v4924, %v4757
    %v5079 = vmul.f32 %v4845, %v4998
    %v5080 = vadd.f32 %v5078, %v5079
    %v5081 = vtanh.pop %v5080
    %v5082 = vmul.f32 %v5077, %v5081
    %5083 = vset.pattern.permute.xlu0 14
    %5084 = vperm.xlu0 %5083, %v95
    %v5085 = vpop.permute.xlu0 %5084
    %v5087 = vmul.f32 %v5085, %v3120
    %v5089 = vsel %vm154, %v5082, 0
    %5091 = vmatprep.subr.mxu0 0.0
    %5092 = vmatpush1.msra.mxu0 %v120
    %5093 = vmatprep.subr.mxu0 0.0
    %5094 = vmatpush1.msra.mxu0 %v121
    %5095 = vmatprep.subr.mxu0 0.0
    %5096 = vmatpush1.msra.mxu0 0.0
    %5097 = vmatprep.subr.mxu0 0.0
    %5098 = vmatpush1.msra.mxu0 0.0
    %5099 = vmatprep.subr.mxu0 0.0
    %5100 = vmatpush1.msra.mxu0 0.0
    %5101 = vmatprep.subr.mxu0 0.0
    %5102 = vmatpush1.msra.mxu0 0.0
    %5103 = vmatprep.subr.mxu0 0.0
    %5104 = vmatpush1.msra.mxu0 0.0
    %5105 = vmatprep.subr.mxu0 0.0
    %5106 = vmatpush1.msra.mxu0 0.0
    %5107 = vmatprep.subr.mxu0 0.0
    %5108 = vmatpush1.msra.mxu0 0.0
    %5109 = vmatprep.subr.mxu0 0.0
    %5110 = vmatpush1.msra.mxu0 0.0
    %5111 = vmatprep.subr.mxu0 0.0
    %5112 = vmatpush1.msra.mxu0 0.0
    %5113 = vmatprep.subr.mxu0 0.0
    %5114 = vmatpush1.msra.mxu0 0.0
    %5115 = vmatprep.subr.mxu0 0.0
    %5116 = vmatpush1.msra.mxu0 0.0
    %5117 = vmatprep.subr.mxu0 0.0
    %5118 = vmatpush1.msra.mxu0 0.0
    %5119 = vmatprep.subr.mxu0 0.0
    %5120 = vmatpush1.msra.mxu0 0.0
    %5121 = vmatprep.subr.mxu0 0.0
    %5122 = vmatpush1.msra.mxu0 0.0
    %5123 = vmatprep.subr.mxu0 0.0
    %5124 = vmatpush1.msra.mxu0 0.0
    %5125 = vmatprep.subr.mxu0 0.0
    %5126 = vmatpush1.msra.mxu0 0.0
    %5127 = vmatprep.subr.mxu0 0.0
    %5128 = vmatpush1.msra.mxu0 0.0
    %5129 = vmatprep.subr.mxu0 0.0
    %5130 = vmatpush1.msra.mxu0 0.0
    %5131 = vmatprep.subr.mxu0 0.0
    %5132 = vmatpush1.msra.mxu0 0.0
    %5133 = vmatprep.subr.mxu0 0.0
    %5134 = vmatpush1.msra.mxu0 0.0
    %5135 = vmatprep.subr.mxu0 0.0
    %5136 = vmatpush1.msra.mxu0 0.0
    %5137 = vmatprep.subr.mxu0 0.0
    %5138 = vmatpush1.msra.mxu0 0.0
    %5139 = vmatprep.subr.mxu0 0.0
    %5140 = vmatpush1.msra.mxu0 0.0
    %5141 = vmatprep.subr.mxu0 0.0
    %5142 = vmatpush1.msra.mxu0 0.0
    %5143 = vmatprep.subr.mxu0 0.0
    %5144 = vmatpush1.msra.mxu0 0.0
    %5145 = vmatprep.subr.mxu0 0.0
    %5146 = vmatpush1.msra.mxu0 0.0
    %5147 = vmatprep.subr.mxu0 0.0
    %5148 = vmatpush1.msra.mxu0 0.0
    %5149 = vmatprep.subr.mxu0 0.0
    %5150 = vmatpush1.msra.mxu0 0.0
    %5151 = vmatprep.subr.mxu0 0.0
    %5152 = vmatpush1.msra.mxu0 0.0
    %5153 = vmatprep.subr.mxu0 0.0
    %5154 = vmatpush1.msra.mxu0 0.0
    %5155 = vmatprep.mubr.f32.mxu0 0.0
    %5156 = vmatmul.mubr.f32.gmra.mrb[0].mxu0 %v5089
    %v5157 = vpop.f32.mrb[0].mxu0
    %v5158 = vadd.f32 0.0, %v5157
    %v5159 = vpop.f32.mrb[0].mxu0
    %5160 = vdwg.mxu0
    %v5161 = vadd.f32 %v5087, %v5158
    %v5162 = vadd.f32 %v5161, %v3199
    %v5163 = vsub.f32 0.0, %v5162
    %v5164 = vmul.f32 %v5163, 1.442695
    %v5165 = vpow.pop %v5164
    %v5166 = vadd.f32 %v5165, 1.0
    %v5167 = vrcp.pop %v5166
    %v5168 = vmul.f32 1.0, %v5167
    %v5169 = vmul.f32 %v5085, %v3210
    %5170 = vmatprep.subr.mxu0 0.0
    %5171 = vmatpush1.msra.mxu0 %v122
    %5172 = vmatprep.subr.mxu0 0.0
    %5173 = vmatpush1.msra.mxu0 %v123
    %5174 = vmatprep.subr.mxu0 0.0
    %5175 = vmatpush1.msra.mxu0 0.0
    %5176 = vmatprep.subr.mxu0 0.0
    %5177 = vmatpush1.msra.mxu0 0.0
    %5178 = vmatprep.subr.mxu0 0.0
    %5179 = vmatpush1.msra.mxu0 0.0
    %5180 = vmatprep.subr.mxu0 0.0
    %5181 = vmatpush1.msra.mxu0 0.0
    %5182 = vmatprep.subr.mxu0 0.0
    %5183 = vmatpush1.msra.mxu0 0.0
    %5184 = vmatprep.subr.mxu0 0.0
    %5185 = vmatpush1.msra.mxu0 0.0
    %5186 = vmatprep.subr.mxu0 0.0
    %5187 = vmatpush1.msra.mxu0 0.0
    %5188 = vmatprep.subr.mxu0 0.0
    %5189 = vmatpush1.msra.mxu0 0.0
    %5190 = vmatprep.subr.mxu0 0.0
    %5191 = vmatpush1.msra.mxu0 0.0
    %5192 = vmatprep.subr.mxu0 0.0
    %5193 = vmatpush1.msra.mxu0 0.0
    %5194 = vmatprep.subr.mxu0 0.0
    %5195 = vmatpush1.msra.mxu0 0.0
    %5196 = vmatprep.subr.mxu0 0.0
    %5197 = vmatpush1.msra.mxu0 0.0
    %5198 = vmatprep.subr.mxu0 0.0
    %5199 = vmatpush1.msra.mxu0 0.0
    %5200 = vmatprep.subr.mxu0 0.0
    %5201 = vmatpush1.msra.mxu0 0.0
    %5202 = vmatprep.subr.mxu0 0.0
    %5203 = vmatpush1.msra.mxu0 0.0
    %5204 = vmatprep.subr.mxu0 0.0
    %5205 = vmatpush1.msra.mxu0 0.0
    %5206 = vmatprep.subr.mxu0 0.0
    %5207 = vmatpush1.msra.mxu0 0.0
    %5208 = vmatprep.subr.mxu0 0.0
    %5209 = vmatpush1.msra.mxu0 0.0
    %5210 = vmatprep.subr.mxu0 0.0
    %5211 = vmatpush1.msra.mxu0 0.0
    %5212 = vmatprep.subr.mxu0 0.0
    %5213 = vmatpush1.msra.mxu0 0.0
    %5214 = vmatprep.subr.mxu0 0.0
    %5215 = vmatpush1.msra.mxu0 0.0
    %5216 = vmatprep.subr.mxu0 0.0
    %5217 = vmatpush1.msra.mxu0 0.0
    %5218 = vmatprep.subr.mxu0 0.0
    %5219 = vmatpush1.msra.mxu0 0.0
    %5220 = vmatprep.subr.mxu0 0.0
    %5221 = vmatpush1.msra.mxu0 0.0
    %5222 = vmatprep.subr.mxu0 0.0
    %5223 = vmatpush1.msra.mxu0 0.0
    %5224 = vmatprep.subr.mxu0 0.0
    %5225 = vmatpush1.msra.mxu0 0.0
    %5226 = vmatprep.subr.mxu0 0.0
    %5227 = vmatpush1.msra.mxu0 0.0
    %5228 = vmatprep.subr.mxu0 0.0
    %5229 = vmatpush1.msra.mxu0 0.0
    %5230 = vmatprep.subr.mxu0 0.0
    %5231 = vmatpush1.msra.mxu0 0.0
    %5232 = vmatprep.subr.mxu0 0.0
    %5233 = vmatpush1.msra.mxu0 0.0
    %5234 = vmatprep.mubr.f32.mxu0 0.0
    %5235 = vmatmul.mubr.f32.gmra.mrb[0].mxu0 %v5089
    %v5236 = vpop.f32.mrb[0].mxu0
    %v5237 = vadd.f32 0.0, %v5236
    %v5238 = vpop.f32.mrb[0].mxu0
    %5239 = vdwg.mxu0
    %v5240 = vadd.f32 %v5169, %v5237
    %v5241 = vadd.f32 %v5240, %v3286
    %v5242 = vsub.f32 0.0, %v5241
    %v5243 = vmul.f32 %v5242, 1.442695
    %v5244 = vpow.pop %v5243
    %v5245 = vadd.f32 %v5244, 1.0
    %v5246 = vrcp.pop %v5245
    %v5247 = vmul.f32 1.0, %v5246
    %v5248 = vmul.f32 %v5085, %v3297
    %5249 = vmatprep.subr.mxu0 0.0
    %5250 = vmatpush1.msra.mxu0 %v124
    %5251 = vmatprep.subr.mxu0 0.0
    %5252 = vmatpush1.msra.mxu0 %v125
    %5253 = vmatprep.subr.mxu0 0.0
    %5254 = vmatpush1.msra.mxu0 0.0
    %5255 = vmatprep.subr.mxu0 0.0
    %5256 = vmatpush1.msra.mxu0 0.0
    %5257 = vmatprep.subr.mxu0 0.0
    %5258 = vmatpush1.msra.mxu0 0.0
    %5259 = vmatprep.subr.mxu0 0.0
    %5260 = vmatpush1.msra.mxu0 0.0
    %5261 = vmatprep.subr.mxu0 0.0
    %5262 = vmatpush1.msra.mxu0 0.0
    %5263 = vmatprep.subr.mxu0 0.0
    %5264 = vmatpush1.msra.mxu0 0.0
    %5265 = vmatprep.subr.mxu0 0.0
    %5266 = vmatpush1.msra.mxu0 0.0
    %5267 = vmatprep.subr.mxu0 0.0
    %5268 = vmatpush1.msra.mxu0 0.0
    %5269 = vmatprep.subr.mxu0 0.0
    %5270 = vmatpush1.msra.mxu0 0.0
    %5271 = vmatprep.subr.mxu0 0.0
    %5272 = vmatpush1.msra.mxu0 0.0
    %5273 = vmatprep.subr.mxu0 0.0
    %5274 = vmatpush1.msra.mxu0 0.0
    %5275 = vmatprep.subr.mxu0 0.0
    %5276 = vmatpush1.msra.mxu0 0.0
    %5277 = vmatprep.subr.mxu0 0.0
    %5278 = vmatpush1.msra.mxu0 0.0
    %5279 = vmatprep.subr.mxu0 0.0
    %5280 = vmatpush1.msra.mxu0 0.0
    %5281 = vmatprep.subr.mxu0 0.0
    %5282 = vmatpush1.msra.mxu0 0.0
    %5283 = vmatprep.subr.mxu0 0.0
    %5284 = vmatpush1.msra.mxu0 0.0
    %5285 = vmatprep.subr.mxu0 0.0
    %5286 = vmatpush1.msra.mxu0 0.0
    %5287 = vmatprep.subr.mxu0 0.0
    %5288 = vmatpush1.msra.mxu0 0.0
    %5289 = vmatprep.subr.mxu0 0.0
    %5290 = vmatpush1.msra.mxu0 0.0
    %5291 = vmatprep.subr.mxu0 0.0
    %5292 = vmatpush1.msra.mxu0 0.0
    %5293 = vmatprep.subr.mxu0 0.0
    %5294 = vmatpush1.msra.mxu0 0.0
    %5295 = vmatprep.subr.mxu0 0.0
    %5296 = vmatpush1.msra.mxu0 0.0
    %5297 = vmatprep.subr.mxu0 0.0
    %5298 = vmatpush1.msra.mxu0 0.0
    %5299 = vmatprep.subr.mxu0 0.0
    %5300 = vmatpush1.msra.mxu0 0.0
    %5301 = vmatprep.subr.mxu0 0.0
    %5302 = vmatpush1.msra.mxu0 0.0
    %5303 = vmatprep.subr.mxu0 0.0
    %5304 = vmatpush1.msra.mxu0 0.0
    %5305 = vmatprep.subr.mxu0 0.0
    %5306 = vmatpush1.msra.mxu0 0.0
    %5307 = vmatprep.subr.mxu0 0.0
    %5308 = vmatpush1.msra.mxu0 0.0
    %5309 = vmatprep.subr.mxu0 0.0
    %5310 = vmatpush1.msra.mxu0 0.0
    %5311 = vmatprep.subr.mxu0 0.0
    %5312 = vmatpush1.msra.mxu0 0.0
    %5313 = vmatprep.mubr.f32.mxu0 0.0
    %5314 = vmatmul.mubr.f32.gmra.mrb[0].mxu0 %v5089
    %v5315 = vpop.f32.mrb[0].mxu0
    %v5316 = vadd.f32 0.0, %v5315
    %v5317 = vpop.f32.mrb[0].mxu0
    %5318 = vdwg.mxu0
    %v5319 = vadd.f32 %v5248, %v5316
    %v5320 = vadd.f32 %v5319, %v3373
    %v5321 = vtanh.pop %v5320
    %v5322 = vmul.f32 %v5085, %v3379
    %5323 = vmatprep.subr.mxu0 0.0
    %5324 = vmatpush1.msra.mxu0 %v126
    %5325 = vmatprep.subr.mxu0 0.0
    %5326 = vmatpush1.msra.mxu0 %v127
    %5327 = vmatprep.subr.mxu0 0.0
    %5328 = vmatpush1.msra.mxu0 0.0
    %5329 = vmatprep.subr.mxu0 0.0
    %5330 = vmatpush1.msra.mxu0 0.0
    %5331 = vmatprep.subr.mxu0 0.0
    %5332 = vmatpush1.msra.mxu0 0.0
    %5333 = vmatprep.subr.mxu0 0.0
    %5334 = vmatpush1.msra.mxu0 0.0
    %5335 = vmatprep.subr.mxu0 0.0
    %5336 = vmatpush1.msra.mxu0 0.0
    %5337 = vmatprep.subr.mxu0 0.0
    %5338 = vmatpush1.msra.mxu0 0.0
    %5339 = vmatprep.subr.mxu0 0.0
    %5340 = vmatpush1.msra.mxu0 0.0
    %5341 = vmatprep.subr.mxu0 0.0
    %5342 = vmatpush1.msra.mxu0 0.0
    %5343 = vmatprep.subr.mxu0 0.0
    %5344 = vmatpush1.msra.mxu0 0.0
    %5345 = vmatprep.subr.mxu0 0.0
    %5346 = vmatpush1.msra.mxu0 0.0
    %5347 = vmatprep.subr.mxu0 0.0
    %5348 = vmatpush1.msra.mxu0 0.0
    %5349 = vmatprep.subr.mxu0 0.0
    %5350 = vmatpush1.msra.mxu0 0.0
    %5351 = vmatprep.subr.mxu0 0.0
    %5352 = vmatpush1.msra.mxu0 0.0
    %5353 = vmatprep.subr.mxu0 0.0
    %5354 = vmatpush1.msra.mxu0 0.0
    %5355 = vmatprep.subr.mxu0 0.0
    %5356 = vmatpush1.msra.mxu0 0.0
    %5357 = vmatprep.subr.mxu0 0.0
    %5358 = vmatpush1.msra.mxu0 0.0
    %5359 = vmatprep.subr.mxu0 0.0
    %5360 = vmatpush1.msra.mxu0 0.0
    %5361 = vmatprep.subr.mxu0 0.0
    %5362 = vmatpush1.msra.mxu0 0.0
    %5363 = vmatprep.subr.mxu0 0.0
    %5364 = vmatpush1.msra.mxu0 0.0
    %5365 = vmatprep.subr.mxu0 0.0
    %5366 = vmatpush1.msra.mxu0 0.0
    %5367 = vmatprep.subr.mxu0 0.0
    %5368 = vmatpush1.msra.mxu0 0.0
    %5369 = vmatprep.subr.mxu0 0.0
    %5370 = vmatpush1.msra.mxu0 0.0
    %5371 = vmatprep.subr.mxu0 0.0
    %5372 = vmatpush1.msra.mxu0 0.0
    %5373 = vmatprep.subr.mxu0 0.0
    %5374 = vmatpush1.msra.mxu0 0.0
    %5375 = vmatprep.subr.mxu0 0.0
    %5376 = vmatpush1.msra.mxu0 0.0
    %5377 = vmatprep.subr.mxu0 0.0
    %5378 = vmatpush1.msra.mxu0 0.0
    %5379 = vmatprep.subr.mxu0 0.0
    %5380 = vmatpush1.msra.mxu0 0.0
    %5381 = vmatprep.subr.mxu0 0.0
    %5382 = vmatpush1.msra.mxu0 0.0
    %5383 = vmatprep.subr.mxu0 0.0
    %5384 = vmatpush1.msra.mxu0 0.0
    %5385 = vmatprep.subr.mxu0 0.0
    %5386 = vmatpush1.msra.mxu0 0.0
    %5387 = vmatprep.mubr.f32.mxu0 0.0
    %5388 = vmatmul.mubr.f32.gmra.mrb[0].mxu0 %v5089
    %v5389 = vpop.f32.mrb[0].mxu0
    %v5390 = vadd.f32 0.0, %v5389
    %v5391 = vpop.f32.mrb[0].mxu0
    %5392 = vdwg.mxu0
    %v5393 = vadd.f32 %v5322, %v5390
    %v5394 = vadd.f32 %v5393, %v3455
    %v5395 = vsub.f32 0.0, %v5394
    %v5396 = vmul.f32 %v5395, 1.442695
    %v5397 = vpow.pop %v5396
    %v5398 = vadd.f32 %v5397, 1.0
    %v5399 = vrcp.pop %v5398
    %v5400 = vmul.f32 1.0, %v5399
    %v5401 = vmul.f32 %v5247, %v5080
    %v5402 = vmul.f32 %v5168, %v5321
    %v5403 = vadd.f32 %v5401, %v5402
    %v5404 = vtanh.pop %v5403
    %v5405 = vmul.f32 %v5400, %v5404
    %5406 = vset.pattern.permute.xlu0 15
    %5407 = vperm.xlu0 %5406, %v95
    %v5408 = vpop.permute.xlu0 %5407
    %v5410 = vmul.f32 %v5408, %v3120
    %v5412 = vsel %vm154, %v5405, 0
    %5414 = vmatprep.subr.mxu0 0.0
    %5415 = vmatpush1.msra.mxu0 %v120
    %5416 = vmatprep.subr.mxu0 0.0
    %5417 = vmatpush1.msra.mxu0 %v121
    %5418 = vmatprep.subr.mxu0 0.0
    %5419 = vmatpush1.msra.mxu0 0.0
    %5420 = vmatprep.subr.mxu0 0.0
    %5421 = vmatpush1.msra.mxu0 0.0
    %5422 = vmatprep.subr.mxu0 0.0
    %5423 = vmatpush1.msra.mxu0 0.0
    %5424 = vmatprep.subr.mxu0 0.0
    %5425 = vmatpush1.msra.mxu0 0.0
    %5426 = vmatprep.subr.mxu0 0.0
    %5427 = vmatpush1.msra.mxu0 0.0
    %5428 = vmatprep.subr.mxu0 0.0
    %5429 = vmatpush1.msra.mxu0 0.0
    %5430 = vmatprep.subr.mxu0 0.0
    %5431 = vmatpush1.msra.mxu0 0.0
    %5432 = vmatprep.subr.mxu0 0.0
    %5433 = vmatpush1.msra.mxu0 0.0
    %5434 = vmatprep.subr.mxu0 0.0
    %5435 = vmatpush1.msra.mxu0 0.0
    %5436 = vmatprep.subr.mxu0 0.0
    %5437 = vmatpush1.msra.mxu0 0.0
    %5438 = vmatprep.subr.mxu0 0.0
    %5439 = vmatpush1.msra.mxu0 0.0
    %5440 = vmatprep.subr.mxu0 0.0
    %5441 = vmatpush1.msra.mxu0 0.0
    %5442 = vmatprep.subr.mxu0 0.0
    %5443 = vmatpush1.msra.mxu0 0.0
    %5444 = vmatprep.subr.mxu0 0.0
    %5445 = vmatpush1.msra.mxu0 0.0
    %5446 = vmatprep.subr.mxu0 0.0
    %5447 = vmatpush1.msra.mxu0 0.0
    %5448 = vmatprep.subr.mxu0 0.0
    %5449 = vmatpush1.msra.mxu0 0.0
    %5450 = vmatprep.subr.mxu0 0.0
    %5451 = vmatpush1.msra.mxu0 0.0
    %5452 = vmatprep.subr.mxu0 0.0
    %5453 = vmatpush1.msra.mxu0 0.0
    %5454 = vmatprep.subr.mxu0 0.0
    %5455 = vmatpush1.msra.mxu0 0.0
    %5456 = vmatprep.subr.mxu0 0.0
    %5457 = vmatpush1.msra.mxu0 0.0
    %5458 = vmatprep.subr.mxu0 0.0
    %5459 = vmatpush1.msra.mxu0 0.0
    %5460 = vmatprep.subr.mxu0 0.0
    %5461 = vmatpush1.msra.mxu0 0.0
    %5462 = vmatprep.subr.mxu0 0.0
    %5463 = vmatpush1.msra.mxu0 0.0
    %5464 = vmatprep.subr.mxu0 0.0
    %5465 = vmatpush1.msra.mxu0 0.0
    %5466 = vmatprep.subr.mxu0 0.0
    %5467 = vmatpush1.msra.mxu0 0.0
    %5468 = vmatprep.subr.mxu0 0.0
    %5469 = vmatpush1.msra.mxu0 0.0
    %5470 = vmatprep.subr.mxu0 0.0
    %5471 = vmatpush1.msra.mxu0 0.0
    %5472 = vmatprep.subr.mxu0 0.0
    %5473 = vmatpush1.msra.mxu0 0.0
    %5474 = vmatprep.subr.mxu0 0.0
    %5475 = vmatpush1.msra.mxu0 0.0
    %5476 = vmatprep.subr.mxu0 0.0
    %5477 = vmatpush1.msra.mxu0 0.0
    %5478 = vmatprep.mubr.f32.mxu0 0.0
    %5479 = vmatmul.mubr.f32.gmra.mrb[0].mxu0 %v5412
    %v5480 = vpop.f32.mrb[0].mxu0
    %v5481 = vadd.f32 0.0, %v5480
    %v5482 = vpop.f32.mrb[0].mxu0
    %5483 = vdwg.mxu0
    %v5484 = vadd.f32 %v5410, %v5481
    %v5485 = vadd.f32 %v5484, %v3199
    %v5486 = vsub.f32 0.0, %v5485
    %v5487 = vmul.f32 %v5486, 1.442695
    %v5488 = vpow.pop %v5487
    %v5489 = vadd.f32 %v5488, 1.0
    %v5490 = vrcp.pop %v5489
    %v5491 = vmul.f32 1.0, %v5490
    %v5492 = vmul.f32 %v5408, %v3210
    %5493 = vmatprep.subr.mxu0 0.0
    %5494 = vmatpush1.msra.mxu0 %v122
    %5495 = vmatprep.subr.mxu0 0.0
    %5496 = vmatpush1.msra.mxu0 %v123
    %5497 = vmatprep.subr.mxu0 0.0
    %5498 = vmatpush1.msra.mxu0 0.0
    %5499 = vmatprep.subr.mxu0 0.0
    %5500 = vmatpush1.msra.mxu0 0.0
    %5501 = vmatprep.subr.mxu0 0.0
    %5502 = vmatpush1.msra.mxu0 0.0
    %5503 = vmatprep.subr.mxu0 0.0
    %5504 = vmatpush1.msra.mxu0 0.0
    %5505 = vmatprep.subr.mxu0 0.0
    %5506 = vmatpush1.msra.mxu0 0.0
    %5507 = vmatprep.subr.mxu0 0.0
    %5508 = vmatpush1.msra.mxu0 0.0
    %5509 = vmatprep.subr.mxu0 0.0
    %5510 = vmatpush1.msra.mxu0 0.0
    %5511 = vmatprep.subr.mxu0 0.0
    %5512 = vmatpush1.msra.mxu0 0.0
    %5513 = vmatprep.subr.mxu0 0.0
    %5514 = vmatpush1.msra.mxu0 0.0
    %5515 = vmatprep.subr.mxu0 0.0
    %5516 = vmatpush1.msra.mxu0 0.0
    %5517 = vmatprep.subr.mxu0 0.0
    %5518 = vmatpush1.msra.mxu0 0.0
    %5519 = vmatprep.subr.mxu0 0.0
    %5520 = vmatpush1.msra.mxu0 0.0
    %5521 = vmatprep.subr.mxu0 0.0
    %5522 = vmatpush1.msra.mxu0 0.0
    %5523 = vmatprep.subr.mxu0 0.0
    %5524 = vmatpush1.msra.mxu0 0.0
    %5525 = vmatprep.subr.mxu0 0.0
    %5526 = vmatpush1.msra.mxu0 0.0
    %5527 = vmatprep.subr.mxu0 0.0
    %5528 = vmatpush1.msra.mxu0 0.0
    %5529 = vmatprep.subr.mxu0 0.0
    %5530 = vmatpush1.msra.mxu0 0.0
    %5531 = vmatprep.subr.mxu0 0.0
    %5532 = vmatpush1.msra.mxu0 0.0
    %5533 = vmatprep.subr.mxu0 0.0
    %5534 = vmatpush1.msra.mxu0 0.0
    %5535 = vmatprep.subr.mxu0 0.0
    %5536 = vmatpush1.msra.mxu0 0.0
    %5537 = vmatprep.subr.mxu0 0.0
    %5538 = vmatpush1.msra.mxu0 0.0
    %5539 = vmatprep.subr.mxu0 0.0
    %5540 = vmatpush1.msra.mxu0 0.0
    %5541 = vmatprep.subr.mxu0 0.0
    %5542 = vmatpush1.msra.mxu0 0.0
    %5543 = vmatprep.subr.mxu0 0.0
    %5544 = vmatpush1.msra.mxu0 0.0
    %5545 = vmatprep.subr.mxu0 0.0
    %5546 = vmatpush1.msra.mxu0 0.0
    %5547 = vmatprep.subr.mxu0 0.0
    %5548 = vmatpush1.msra.mxu0 0.0
    %5549 = vmatprep.subr.mxu0 0.0
    %5550 = vmatpush1.msra.mxu0 0.0
    %5551 = vmatprep.subr.mxu0 0.0
    %5552 = vmatpush1.msra.mxu0 0.0
    %5553 = vmatprep.subr.mxu0 0.0
    %5554 = vmatpush1.msra.mxu0 0.0
    %5555 = vmatprep.subr.mxu0 0.0
    %5556 = vmatpush1.msra.mxu0 0.0
    %5557 = vmatprep.mubr.f32.mxu0 0.0
    %5558 = vmatmul.mubr.f32.gmra.mrb[0].mxu0 %v5412
    %v5559 = vpop.f32.mrb[0].mxu0
    %v5560 = vadd.f32 0.0, %v5559
    %v5561 = vpop.f32.mrb[0].mxu0
    %5562 = vdwg.mxu0
    %v5563 = vadd.f32 %v5492, %v5560
    %v5564 = vadd.f32 %v5563, %v3286
    %v5565 = vsub.f32 0.0, %v5564
    %v5566 = vmul.f32 %v5565, 1.442695
    %v5567 = vpow.pop %v5566
    %v5568 = vadd.f32 %v5567, 1.0
    %v5569 = vrcp.pop %v5568
    %v5570 = vmul.f32 1.0, %v5569
    %v5571 = vmul.f32 %v5408, %v3297
    %5572 = vmatprep.subr.mxu0 0.0
    %5573 = vmatpush1.msra.mxu0 %v124
    %5574 = vmatprep.subr.mxu0 0.0
    %5575 = vmatpush1.msra.mxu0 %v125
    %5576 = vmatprep.subr.mxu0 0.0
    %5577 = vmatpush1.msra.mxu0 0.0
    %5578 = vmatprep.subr.mxu0 0.0
    %5579 = vmatpush1.msra.mxu0 0.0
    %5580 = vmatprep.subr.mxu0 0.0
    %5581 = vmatpush1.msra.mxu0 0.0
    %5582 = vmatprep.subr.mxu0 0.0
    %5583 = vmatpush1.msra.mxu0 0.0
    %5584 = vmatprep.subr.mxu0 0.0
    %5585 = vmatpush1.msra.mxu0 0.0
    %5586 = vmatprep.subr.mxu0 0.0
    %5587 = vmatpush1.msra.mxu0 0.0
    %5588 = vmatprep.subr.mxu0 0.0
    %5589 = vmatpush1.msra.mxu0 0.0
    %5590 = vmatprep.subr.mxu0 0.0
    %5591 = vmatpush1.msra.mxu0 0.0
    %5592 = vmatprep.subr.mxu0 0.0
    %5593 = vmatpush1.msra.mxu0 0.0
    %5594 = vmatprep.subr.mxu0 0.0
    %5595 = vmatpush1.msra.mxu0 0.0
    %5596 = vmatprep.subr.mxu0 0.0
    %5597 = vmatpush1.msra.mxu0 0.0
    %5598 = vmatprep.subr.mxu0 0.0
    %5599 = vmatpush1.msra.mxu0 0.0
    %5600 = vmatprep.subr.mxu0 0.0
    %5601 = vmatpush1.msra.mxu0 0.0
    %5602 = vmatprep.subr.mxu0 0.0
    %5603 = vmatpush1.msra.mxu0 0.0
    %5604 = vmatprep.subr.mxu0 0.0
    %5605 = vmatpush1.msra.mxu0 0.0
    %5606 = vmatprep.subr.mxu0 0.0
    %5607 = vmatpush1.msra.mxu0 0.0
    %5608 = vmatprep.subr.mxu0 0.0
    %5609 = vmatpush1.msra.mxu0 0.0
    %5610 = vmatprep.subr.mxu0 0.0
    %5611 = vmatpush1.msra.mxu0 0.0
    %5612 = vmatprep.subr.mxu0 0.0
    %5613 = vmatpush1.msra.mxu0 0.0
    %5614 = vmatprep.subr.mxu0 0.0
    %5615 = vmatpush1.msra.mxu0 0.0
    %5616 = vmatprep.subr.mxu0 0.0
    %5617 = vmatpush1.msra.mxu0 0.0
    %5618 = vmatprep.subr.mxu0 0.0
    %5619 = vmatpush1.msra.mxu0 0.0
    %5620 = vmatprep.subr.mxu0 0.0
    %5621 = vmatpush1.msra.mxu0 0.0
    %5622 = vmatprep.subr.mxu0 0.0
    %5623 = vmatpush1.msra.mxu0 0.0
    %5624 = vmatprep.subr.mxu0 0.0
    %5625 = vmatpush1.msra.mxu0 0.0
    %5626 = vmatprep.subr.mxu0 0.0
    %5627 = vmatpush1.msra.mxu0 0.0
    %5628 = vmatprep.subr.mxu0 0.0
    %5629 = vmatpush1.msra.mxu0 0.0
    %5630 = vmatprep.subr.mxu0 0.0
    %5631 = vmatpush1.msra.mxu0 0.0
    %5632 = vmatprep.subr.mxu0 0.0
    %5633 = vmatpush1.msra.mxu0 0.0
    %5634 = vmatprep.subr.mxu0 0.0
    %5635 = vmatpush1.msra.mxu0 0.0
    %5636 = vmatprep.mubr.f32.mxu0 0.0
    %5637 = vmatmul.mubr.f32.gmra.mrb[0].mxu0 %v5412
    %v5638 = vpop.f32.mrb[0].mxu0
    %v5639 = vadd.f32 0.0, %v5638
    %v5640 = vpop.f32.mrb[0].mxu0
    %5641 = vdwg.mxu0
    %v5642 = vadd.f32 %v5571, %v5639
    %v5643 = vadd.f32 %v5642, %v3373
    %v5644 = vtanh.pop %v5643
    %v5645 = vmul.f32 %v5408, %v3379
    %5646 = vmatprep.subr.mxu0 0.0
    %5647 = vmatpush1.msra.mxu0 %v126
    %5648 = vmatprep.subr.mxu0 0.0
    %5649 = vmatpush1.msra.mxu0 %v127
    %5650 = vmatprep.subr.mxu0 0.0
    %5651 = vmatpush1.msra.mxu0 0.0
    %5652 = vmatprep.subr.mxu0 0.0
    %5653 = vmatpush1.msra.mxu0 0.0
    %5654 = vmatprep.subr.mxu0 0.0
    %5655 = vmatpush1.msra.mxu0 0.0
    %5656 = vmatprep.subr.mxu0 0.0
    %5657 = vmatpush1.msra.mxu0 0.0
    %5658 = vmatprep.subr.mxu0 0.0
    %5659 = vmatpush1.msra.mxu0 0.0
    %5660 = vmatprep.subr.mxu0 0.0
    %5661 = vmatpush1.msra.mxu0 0.0
    %5662 = vmatprep.subr.mxu0 0.0
    %5663 = vmatpush1.msra.mxu0 0.0
    %5664 = vmatprep.subr.mxu0 0.0
    %5665 = vmatpush1.msra.mxu0 0.0
    %5666 = vmatprep.subr.mxu0 0.0
    %5667 = vmatpush1.msra.mxu0 0.0
    %5668 = vmatprep.subr.mxu0 0.0
    %5669 = vmatpush1.msra.mxu0 0.0
    %5670 = vmatprep.subr.mxu0 0.0
    %5671 = vmatpush1.msra.mxu0 0.0
    %5672 = vmatprep.subr.mxu0 0.0
    %5673 = vmatpush1.msra.mxu0 0.0
    %5674 = vmatprep.subr.mxu0 0.0
    %5675 = vmatpush1.msra.mxu0 0.0
    %5676 = vmatprep.subr.mxu0 0.0
    %5677 = vmatpush1.msra.mxu0 0.0
    %5678 = vmatprep.subr.mxu0 0.0
    %5679 = vmatpush1.msra.mxu0 0.0
    %5680 = vmatprep.subr.mxu0 0.0
    %5681 = vmatpush1.msra.mxu0 0.0
    %5682 = vmatprep.subr.mxu0 0.0
    %5683 = vmatpush1.msra.mxu0 0.0
    %5684 = vmatprep.subr.mxu0 0.0
    %5685 = vmatpush1.msra.mxu0 0.0
    %5686 = vmatprep.subr.mxu0 0.0
    %5687 = vmatpush1.msra.mxu0 0.0
    %5688 = vmatprep.subr.mxu0 0.0
    %5689 = vmatpush1.msra.mxu0 0.0
    %5690 = vmatprep.subr.mxu0 0.0
    %5691 = vmatpush1.msra.mxu0 0.0
    %5692 = vmatprep.subr.mxu0 0.0
    %5693 = vmatpush1.msra.mxu0 0.0
    %5694 = vmatprep.subr.mxu0 0.0
    %5695 = vmatpush1.msra.mxu0 0.0
    %5696 = vmatprep.subr.mxu0 0.0
    %5697 = vmatpush1.msra.mxu0 0.0
    %5698 = vmatprep.subr.mxu0 0.0
    %5699 = vmatpush1.msra.mxu0 0.0
    %5700 = vmatprep.subr.mxu0 0.0
    %5701 = vmatpush1.msra.mxu0 0.0
    %5702 = vmatprep.subr.mxu0 0.0
    %5703 = vmatpush1.msra.mxu0 0.0
    %5704 = vmatprep.subr.mxu0 0.0
    %5705 = vmatpush1.msra.mxu0 0.0
    %5706 = vmatprep.subr.mxu0 0.0
    %5707 = vmatpush1.msra.mxu0 0.0
    %5708 = vmatprep.subr.mxu0 0.0
    %5709 = vmatpush1.msra.mxu0 0.0
    %5710 = vmatprep.mubr.f32.mxu0 0.0
    %5711 = vmatmul.mubr.f32.gmra.mrb[0].mxu0 %v5412
    %v5712 = vpop.f32.mrb[0].mxu0
    %v5713 = vadd.f32 0.0, %v5712
    %v5714 = vpop.f32.mrb[0].mxu0
    %5715 = vdwg.mxu0
    %v5716 = vadd.f32 %v5645, %v5713
    %v5717 = vadd.f32 %v5716, %v3455
    %v5718 = vsub.f32 0.0, %v5717
    %v5719 = vmul.f32 %v5718, 1.442695
    %v5720 = vpow.pop %v5719
    %v5721 = vadd.f32 %v5720, 1.0
    %v5722 = vrcp.pop %v5721
    %v5723 = vmul.f32 1.0, %v5722
    %v5724 = vmul.f32 %v5570, %v5403
    %v5725 = vmul.f32 %v5491, %v5644
    %v5726 = vadd.f32 %v5724, %v5725
    %v5727 = vtanh.pop %v5726
    %v5728 = vmul.f32 %v5723, %v5727
    %v5729 = vlaneseq
    %v5730 = vshrl.u32 %v5729, 7
    %v5731 = vsub.s32 0, %v5730
    %v5732 = vrot.slane %v99, %v5731
    %v5733 = vmul.f32 %v5408, %v5732
    %v5735 = vsel %vm154, %v139, 0
    %5737 = vmatprep.subr.mxu0 0.0
    %5738 = vmatpush1.msra.mxu0 %v128
    %5739 = vmatprep.subr.mxu0 0.0
    %5740 = vmatpush1.msra.mxu0 %v129
    %5741 = vmatprep.subr.mxu0 0.0
    %5742 = vmatpush1.msra.mxu0 0.0
    %5743 = vmatprep.subr.mxu0 0.0
    %5744 = vmatpush1.msra.mxu0 0.0
    %5745 = vmatprep.subr.mxu0 0.0
    %5746 = vmatpush1.msra.mxu0 0.0
    %5747 = vmatprep.subr.mxu0 0.0
    %5748 = vmatpush1.msra.mxu0 0.0
    %5749 = vmatprep.subr.mxu0 0.0
    %5750 = vmatpush1.msra.mxu0 0.0
    %5751 = vmatprep.subr.mxu0 0.0
    %5752 = vmatpush1.msra.mxu0 0.0
    %5753 = vmatprep.subr.mxu0 0.0
    %5754 = vmatpush1.msra.mxu0 0.0
    %5755 = vmatprep.subr.mxu0 0.0
    %5756 = vmatpush1.msra.mxu0 0.0
    %5757 = vmatprep.subr.mxu0 0.0
    %5758 = vmatpush1.msra.mxu0 0.0
    %5759 = vmatprep.subr.mxu0 0.0
    %5760 = vmatpush1.msra.mxu0 0.0
    %5761 = vmatprep.subr.mxu0 0.0
    %5762 = vmatpush1.msra.mxu0 0.0
    %5763 = vmatprep.subr.mxu0 0.0
    %5764 = vmatpush1.msra.mxu0 0.0
    %5765 = vmatprep.subr.mxu0 0.0
    %5766 = vmatpush1.msra.mxu0 0.0
    %5767 = vmatprep.subr.mxu0 0.0
    %5768 = vmatpush1.msra.mxu0 0.0
    %5769 = vmatprep.subr.mxu0 0.0
    %5770 = vmatpush1.msra.mxu0 0.0
    %5771 = vmatprep.subr.mxu0 0.0
    %5772 = vmatpush1.msra.mxu0 0.0
    %5773 = vmatprep.subr.mxu0 0.0
    %5774 = vmatpush1.msra.mxu0 0.0
    %5775 = vmatprep.subr.mxu0 0.0
    %5776 = vmatpush1.msra.mxu0 0.0
    %5777 = vmatprep.subr.mxu0 0.0
    %5778 = vmatpush1.msra.mxu0 0.0
    %5779 = vmatprep.subr.mxu0 0.0
    %5780 = vmatpush1.msra.mxu0 0.0
    %5781 = vmatprep.subr.mxu0 0.0
    %5782 = vmatpush1.msra.mxu0 0.0
    %5783 = vmatprep.subr.mxu0 0.0
    %5784 = vmatpush1.msra.mxu0 0.0
    %5785 = vmatprep.subr.mxu0 0.0
    %5786 = vmatpush1.msra.mxu0 0.0
    %5787 = vmatprep.subr.mxu0 0.0
    %5788 = vmatpush1.msra.mxu0 0.0
    %5789 = vmatprep.subr.mxu0 0.0
    %5790 = vmatpush1.msra.mxu0 0.0
    %5791 = vmatprep.subr.mxu0 0.0
    %5792 = vmatpush1.msra.mxu0 0.0
    %5793 = vmatprep.subr.mxu0 0.0
    %5794 = vmatpush1.msra.mxu0 0.0
    %5795 = vmatprep.subr.mxu0 0.0
    %5796 = vmatpush1.msra.mxu0 0.0
    %5797 = vmatprep.subr.mxu0 0.0
    %5798 = vmatpush1.msra.mxu0 0.0
    %5799 = vmatprep.subr.mxu0 0.0
    %5800 = vmatpush1.msra.mxu0 0.0
    %5801 = vmatprep.mubr.f32.mxu0 0.0
    %5802 = vmatmul.mubr.f32.gmra.mrb[0].mxu0 %v5735
    %v5803 = vpop.f32.mrb[0].mxu0
    %v5804 = vadd.f32 0.0, %v5803
    %v5805 = vpop.f32.mrb[0].mxu0
    %5806 = vdwg.mxu0
    %v5807 = vadd.f32 %v5733, %v5804
    %v5808 = vlaneseq
    %v5809 = vshrl.u32 %v5808, 7
    %v5810 = vsub.s32 0, %v5809
    %v5811 = vrot.slane %v103, %v5810
    %v5812 = vadd.f32 %v5807, %v5811
    %v5813 = vsub.f32 0.0, %v5812
    %v5814 = vmul.f32 %v5813, 1.442695
    %v5815 = vpow.pop %v5814
    %v5816 = vadd.f32 %v5815, 1.0
    %v5817 = vrcp.pop %v5816
    %v5818 = vmul.f32 1.0, %v5817
    %v5819 = vlaneseq
    %v5820 = vshrl.u32 %v5819, 7
    %v5821 = vsub.s32 1, %v5820
    %v5822 = vrot.slane %v99, %v5821
    %v5823 = vmul.f32 %v5408, %v5822
    %5824 = vmatprep.subr.mxu0 0.0
    %5825 = vmatpush1.msra.mxu0 %v130
    %5826 = vmatprep.subr.mxu0 0.0
    %5827 = vmatpush1.msra.mxu0 %v131
    %5828 = vmatprep.subr.mxu0 0.0
    %5829 = vmatpush1.msra.mxu0 0.0
    %5830 = vmatprep.subr.mxu0 0.0
    %5831 = vmatpush1.msra.mxu0 0.0
    %5832 = vmatprep.subr.mxu0 0.0
    %5833 = vmatpush1.msra.mxu0 0.0
    %5834 = vmatprep.subr.mxu0 0.0
    %5835 = vmatpush1.msra.mxu0 0.0
    %5836 = vmatprep.subr.mxu0 0.0
    %5837 = vmatpush1.msra.mxu0 0.0
    %5838 = vmatprep.subr.mxu0 0.0
    %5839 = vmatpush1.msra.mxu0 0.0
    %5840 = vmatprep.subr.mxu0 0.0
    %5841 = vmatpush1.msra.mxu0 0.0
    %5842 = vmatprep.subr.mxu0 0.0
    %5843 = vmatpush1.msra.mxu0 0.0
    %5844 = vmatprep.subr.mxu0 0.0
    %5845 = vmatpush1.msra.mxu0 0.0
    %5846 = vmatprep.subr.mxu0 0.0
    %5847 = vmatpush1.msra.mxu0 0.0
    %5848 = vmatprep.subr.mxu0 0.0
    %5849 = vmatpush1.msra.mxu0 0.0
    %5850 = vmatprep.subr.mxu0 0.0
    %5851 = vmatpush1.msra.mxu0 0.0
    %5852 = vmatprep.subr.mxu0 0.0
    %5853 = vmatpush1.msra.mxu0 0.0
    %5854 = vmatprep.subr.mxu0 0.0
    %5855 = vmatpush1.msra.mxu0 0.0
    %5856 = vmatprep.subr.mxu0 0.0
    %5857 = vmatpush1.msra.mxu0 0.0
    %5858 = vmatprep.subr.mxu0 0.0
    %5859 = vmatpush1.msra.mxu0 0.0
    %5860 = vmatprep.subr.mxu0 0.0
    %5861 = vmatpush1.msra.mxu0 0.0
    %5862 = vmatprep.subr.mxu0 0.0
    %5863 = vmatpush1.msra.mxu0 0.0
    %5864 = vmatprep.subr.mxu0 0.0
    %5865 = vmatpush1.msra.mxu0 0.0
    %5866 = vmatprep.subr.mxu0 0.0
    %5867 = vmatpush1.msra.mxu0 0.0
    %5868 = vmatprep.subr.mxu0 0.0
    %5869 = vmatpush1.msra.mxu0 0.0
    %5870 = vmatprep.subr.mxu0 0.0
    %5871 = vmatpush1.msra.mxu0 0.0
    %5872 = vmatprep.subr.mxu0 0.0
    %5873 = vmatpush1.msra.mxu0 0.0
    %5874 = vmatprep.subr.mxu0 0.0
    %5875 = vmatpush1.msra.mxu0 0.0
    %5876 = vmatprep.subr.mxu0 0.0
    %5877 = vmatpush1.msra.mxu0 0.0
    %5878 = vmatprep.subr.mxu0 0.0
    %5879 = vmatpush1.msra.mxu0 0.0
    %5880 = vmatprep.subr.mxu0 0.0
    %5881 = vmatpush1.msra.mxu0 0.0
    %5882 = vmatprep.subr.mxu0 0.0
    %5883 = vmatpush1.msra.mxu0 0.0
    %5884 = vmatprep.subr.mxu0 0.0
    %5885 = vmatpush1.msra.mxu0 0.0
    %5886 = vmatprep.subr.mxu0 0.0
    %5887 = vmatpush1.msra.mxu0 0.0
    %5888 = vmatprep.mubr.f32.mxu0 0.0
    %5889 = vmatmul.mubr.f32.gmra.mrb[0].mxu0 %v5735
    %v5890 = vpop.f32.mrb[0].mxu0
    %v5891 = vadd.f32 0.0, %v5890
    %v5892 = vpop.f32.mrb[0].mxu0
    %5893 = vdwg.mxu0
    %v5894 = vadd.f32 %v5823, %v5891
    %v5895 = vlaneseq
    %v5896 = vshrl.u32 %v5895, 7
    %v5897 = vsub.s32 1, %v5896
    %v5898 = vrot.slane %v103, %v5897
    %v5899 = vadd.f32 %v5894, %v5898
    %v5900 = vsub.f32 0.0, %v5899
    %v5901 = vmul.f32 %v5900, 1.442695
    %v5902 = vpow.pop %v5901
    %v5903 = vadd.f32 %v5902, 1.0
    %v5904 = vrcp.pop %v5903
    %v5905 = vmul.f32 1.0, %v5904
    %v5906 = vlaneseq
    %v5907 = vshrl.u32 %v5906, 7
    %v5908 = vsub.s32 2, %v5907
    %v5909 = vrot.slane %v99, %v5908
    %v5910 = vmul.f32 %v5408, %v5909
    %5911 = vmatprep.subr.mxu0 0.0
    %5912 = vmatpush1.msra.mxu0 %v132
    %5913 = vmatprep.subr.mxu0 0.0
    %5914 = vmatpush1.msra.mxu0 %v133
    %5915 = vmatprep.subr.mxu0 0.0
    %5916 = vmatpush1.msra.mxu0 0.0
    %5917 = vmatprep.subr.mxu0 0.0
    %5918 = vmatpush1.msra.mxu0 0.0
    %5919 = vmatprep.subr.mxu0 0.0
    %5920 = vmatpush1.msra.mxu0 0.0
    %5921 = vmatprep.subr.mxu0 0.0
    %5922 = vmatpush1.msra.mxu0 0.0
    %5923 = vmatprep.subr.mxu0 0.0
    %5924 = vmatpush1.msra.mxu0 0.0
    %5925 = vmatprep.subr.mxu0 0.0
    %5926 = vmatpush1.msra.mxu0 0.0
    %5927 = vmatprep.subr.mxu0 0.0
    %5928 = vmatpush1.msra.mxu0 0.0
    %5929 = vmatprep.subr.mxu0 0.0
    %5930 = vmatpush1.msra.mxu0 0.0
    %5931 = vmatprep.subr.mxu0 0.0
    %5932 = vmatpush1.msra.mxu0 0.0
    %5933 = vmatprep.subr.mxu0 0.0
    %5934 = vmatpush1.msra.mxu0 0.0
    %5935 = vmatprep.subr.mxu0 0.0
    %5936 = vmatpush1.msra.mxu0 0.0
    %5937 = vmatprep.subr.mxu0 0.0
    %5938 = vmatpush1.msra.mxu0 0.0
    %5939 = vmatprep.subr.mxu0 0.0
    %5940 = vmatpush1.msra.mxu0 0.0
    %5941 = vmatprep.subr.mxu0 0.0
    %5942 = vmatpush1.msra.mxu0 0.0
    %5943 = vmatprep.subr.mxu0 0.0
    %5944 = vmatpush1.msra.mxu0 0.0
    %5945 = vmatprep.subr.mxu0 0.0
    %5946 = vmatpush1.msra.mxu0 0.0
    %5947 = vmatprep.subr.mxu0 0.0
    %5948 = vmatpush1.msra.mxu0 0.0
    %5949 = vmatprep.subr.mxu0 0.0
    %5950 = vmatpush1.msra.mxu0 0.0
    %5951 = vmatprep.subr.mxu0 0.0
    %5952 = vmatpush1.msra.mxu0 0.0
    %5953 = vmatprep.subr.mxu0 0.0
    %5954 = vmatpush1.msra.mxu0 0.0
    %5955 = vmatprep.subr.mxu0 0.0
    %5956 = vmatpush1.msra.mxu0 0.0
    %5957 = vmatprep.subr.mxu0 0.0
    %5958 = vmatpush1.msra.mxu0 0.0
    %5959 = vmatprep.subr.mxu0 0.0
    %5960 = vmatpush1.msra.mxu0 0.0
    %5961 = vmatprep.subr.mxu0 0.0
    %5962 = vmatpush1.msra.mxu0 0.0
    %5963 = vmatprep.subr.mxu0 0.0
    %5964 = vmatpush1.msra.mxu0 0.0
    %5965 = vmatprep.subr.mxu0 0.0
    %5966 = vmatpush1.msra.mxu0 0.0
    %5967 = vmatprep.subr.mxu0 0.0
    %5968 = vmatpush1.msra.mxu0 0.0
    %5969 = vmatprep.subr.mxu0 0.0
    %5970 = vmatpush1.msra.mxu0 0.0
    %5971 = vmatprep.subr.mxu0 0.0
    %5972 = vmatpush1.msra.mxu0 0.0
    %5973 = vmatprep.subr.mxu0 0.0
    %5974 = vmatpush1.msra.mxu0 0.0
    %5975 = vmatprep.mubr.f32.mxu0 0.0
    %5976 = vmatmul.mubr.f32.gmra.mrb[0].mxu0 %v5735
    %v5977 = vpop.f32.mrb[0].mxu0
    %v5978 = vadd.f32 0.0, %v5977
    %v5979 = vpop.f32.mrb[0].mxu0
    %5980 = vdwg.mxu0
    %v5981 = vadd.f32 %v5910, %v5978
    %v5982 = vlaneseq
    %v5983 = vshrl.u32 %v5982, 7
    %v5984 = vsub.s32 2, %v5983
    %v5985 = vrot.slane %v103, %v5984
    %v5986 = vadd.f32 %v5981, %v5985
    %v5987 = vtanh.pop %v5986
    %v5988 = vlaneseq
    %v5989 = vshrl.u32 %v5988, 7
    %v5990 = vsub.s32 3, %v5989
    %v5991 = vrot.slane %v99, %v5990
    %v5992 = vmul.f32 %v5408, %v5991
    %5993 = vmatprep.subr.mxu0 0.0
    %5994 = vmatpush1.msra.mxu0 %v134
    %5995 = vmatprep.subr.mxu0 0.0
    %5996 = vmatpush1.msra.mxu0 %v135
    %5997 = vmatprep.subr.mxu0 0.0
    %5998 = vmatpush1.msra.mxu0 0.0
    %5999 = vmatprep.subr.mxu0 0.0
    %6000 = vmatpush1.msra.mxu0 0.0
    %6001 = vmatprep.subr.mxu0 0.0
    %6002 = vmatpush1.msra.mxu0 0.0
    %6003 = vmatprep.subr.mxu0 0.0
    %6004 = vmatpush1.msra.mxu0 0.0
    %6005 = vmatprep.subr.mxu0 0.0
    %6006 = vmatpush1.msra.mxu0 0.0
    %6007 = vmatprep.subr.mxu0 0.0
    %6008 = vmatpush1.msra.mxu0 0.0
    %6009 = vmatprep.subr.mxu0 0.0
    %6010 = vmatpush1.msra.mxu0 0.0
    %6011 = vmatprep.subr.mxu0 0.0
    %6012 = vmatpush1.msra.mxu0 0.0
    %6013 = vmatprep.subr.mxu0 0.0
    %6014 = vmatpush1.msra.mxu0 0.0
    %6015 = vmatprep.subr.mxu0 0.0
    %6016 = vmatpush1.msra.mxu0 0.0
    %6017 = vmatprep.subr.mxu0 0.0
    %6018 = vmatpush1.msra.mxu0 0.0
    %6019 = vmatprep.subr.mxu0 0.0
    %6020 = vmatpush1.msra.mxu0 0.0
    %6021 = vmatprep.subr.mxu0 0.0
    %6022 = vmatpush1.msra.mxu0 0.0
    %6023 = vmatprep.subr.mxu0 0.0
    %6024 = vmatpush1.msra.mxu0 0.0
    %6025 = vmatprep.subr.mxu0 0.0
    %6026 = vmatpush1.msra.mxu0 0.0
    %6027 = vmatprep.subr.mxu0 0.0
    %6028 = vmatpush1.msra.mxu0 0.0
    %6029 = vmatprep.subr.mxu0 0.0
    %6030 = vmatpush1.msra.mxu0 0.0
    %6031 = vmatprep.subr.mxu0 0.0
    %6032 = vmatpush1.msra.mxu0 0.0
    %6033 = vmatprep.subr.mxu0 0.0
    %6034 = vmatpush1.msra.mxu0 0.0
    %6035 = vmatprep.subr.mxu0 0.0
    %6036 = vmatpush1.msra.mxu0 0.0
    %6037 = vmatprep.subr.mxu0 0.0
    %6038 = vmatpush1.msra.mxu0 0.0
    %6039 = vmatprep.subr.mxu0 0.0
    %6040 = vmatpush1.msra.mxu0 0.0
    %6041 = vmatprep.subr.mxu0 0.0
    %6042 = vmatpush1.msra.mxu0 0.0
    %6043 = vmatprep.subr.mxu0 0.0
    %6044 = vmatpush1.msra.mxu0 0.0
    %6045 = vmatprep.subr.mxu0 0.0
    %6046 = vmatpush1.msra.mxu0 0.0
    %6047 = vmatprep.subr.mxu0 0.0
    %6048 = vmatpush1.msra.mxu0 0.0
    %6049 = vmatprep.subr.mxu0 0.0
    %6050 = vmatpush1.msra.mxu0 0.0
    %6051 = vmatprep.subr.mxu0 0.0
    %6052 = vmatpush1.msra.mxu0 0.0
    %6053 = vmatprep.subr.mxu0 0.0
    %6054 = vmatpush1.msra.mxu0 0.0
    %6055 = vmatprep.subr.mxu0 0.0
    %6056 = vmatpush1.msra.mxu0 0.0
    %6057 = vmatprep.mubr.f32.mxu0 0.0
    %6058 = vmatmul.mubr.f32.gmra.mrb[0].mxu0 %v5735
    %v6059 = vpop.f32.mrb[0].mxu0
    %v6060 = vadd.f32 0.0, %v6059
    %v6061 = vpop.f32.mrb[0].mxu0
    %6062 = vdwg.mxu0
    %v6063 = vadd.f32 %v5992, %v6060
    %v6064 = vlaneseq
    %v6065 = vshrl.u32 %v6064, 7
    %v6066 = vsub.s32 3, %v6065
    %v6067 = vrot.slane %v103, %v6066
    %v6068 = vadd.f32 %v6063, %v6067
    %v6069 = vsub.f32 0.0, %v6068
    %v6070 = vmul.f32 %v6069, 1.442695
    %v6071 = vpow.pop %v6070
    %v6072 = vadd.f32 %v6071, 1.0
    %v6073 = vrcp.pop %v6072
    %v6074 = vmul.f32 1.0, %v6073
    %v6075 = vmul.f32 %v5905, %v143
    %v6076 = vmul.f32 %v5818, %v5987
    %v6077 = vadd.f32 %v6075, %v6076
    %v6078 = vtanh.pop %v6077
    %v6079 = vmul.f32 %v6074, %v6078
    %v6080 = vld [vmem:[%s6] sm:$0xff]
    %v6081 = vld [vmem:[%s6 + $0x8] sm:$0xff]
    %v6082 = vld [vmem:[%s6 + $0x10] sm:$0xff]
    %v6083 = vld [vmem:[%s6 + $0x18] sm:$0xff]
    %v6084 = vld [vmem:[%s6 + $0x20] sm:$0xff]
    %v6085 = vld [vmem:[%s6 + $0x28] sm:$0xff]
    %v6086 = vld [vmem:[%s6 + $0x30] sm:$0xff]
    %v6087 = vld [vmem:[%s6 + $0x38] sm:$0xff]
    %v6088 = vld [vmem:[%s6 + $0x40] sm:$0xf]
    %v6089 = vld [vmem:[%s7] sm:$0x1]
    %v6091 = vlaneseq
    %v6092 = vshrl.u32 %v6091, 7
    %v6093 = vsub.s32 0, %v6092
    %v6094 = vrot.slane %v6089, %v6093
    %v6096 = vadd.f32 %v6094, 0.0
    %v6098 = vsel %vm154, %v2761, 0
    %6100 = vmatprep.subr.mxu0 0.0
    %6101 = vmatpush1.msra.mxu0 %v6080
    %6102 = vmatprep.subr.mxu0 0.0
    %6103 = vmatpush1.msra.mxu0 %v6081
    %6104 = vmatprep.subr.mxu0 0.0
    %6105 = vmatpush1.msra.mxu0 0.0
    %6106 = vmatprep.subr.mxu0 0.0
    %6107 = vmatpush1.msra.mxu0 0.0
    %6108 = vmatprep.subr.mxu0 0.0
    %6109 = vmatpush1.msra.mxu0 0.0
    %6110 = vmatprep.subr.mxu0 0.0
    %6111 = vmatpush1.msra.mxu0 0.0
    %6112 = vmatprep.subr.mxu0 0.0
    %6113 = vmatpush1.msra.mxu0 0.0
    %6114 = vmatprep.subr.mxu0 0.0
    %6115 = vmatpush1.msra.mxu0 0.0
    %6116 = vmatprep.subr.mxu0 0.0
    %6117 = vmatpush1.msra.mxu0 0.0
    %6118 = vmatprep.subr.mxu0 0.0
    %6119 = vmatpush1.msra.mxu0 0.0
    %6120 = vmatprep.subr.mxu0 0.0
    %6121 = vmatpush1.msra.mxu0 0.0
    %6122 = vmatprep.subr.mxu0 0.0
    %6123 = vmatpush1.msra.mxu0 0.0
    %6124 = vmatprep.subr.mxu0 0.0
    %6125 = vmatpush1.msra.mxu0 0.0
    %6126 = vmatprep.subr.mxu0 0.0
    %6127 = vmatpush1.msra.mxu0 0.0
    %6128 = vmatprep.subr.mxu0 0.0
    %6129 = vmatpush1.msra.mxu0 0.0
    %6130 = vmatprep.subr.mxu0 0.0
    %6131 = vmatpush1.msra.mxu0 0.0
    %6132 = vmatprep.subr.mxu0 0.0
    %6133 = vmatpush1.msra.mxu0 0.0
    %6134 = vmatprep.subr.mxu0 0.0
    %6135 = vmatpush1.msra.mxu0 0.0
    %6136 = vmatprep.subr.mxu0 0.0
    %6137 = vmatpush1.msra.mxu0 0.0
    %6138 = vmatprep.subr.mxu0 0.0
    %6139 = vmatpush1.msra.mxu0 0.0
    %6140 = vmatprep.subr.mxu0 0.0
    %6141 = vmatpush1.msra.mxu0 0.0
    %6142 = vmatprep.subr.mxu0 0.0
    %6143 = vmatpush1.msra.mxu0 0.0
    %6144 = vmatprep.subr.mxu0 0.0
    %6145 = vmatpush1.msra.mxu0 0.0
    %6146 = vmatprep.subr.mxu0 0.0
    %6147 = vmatpush1.msra.mxu0 0.0
    %6148 = vmatprep.subr.mxu0 0.0
    %6149 = vmatpush1.msra.mxu0 0.0
    %6150 = vmatprep.subr.mxu0 0.0
    %6151 = vmatpush1.msra.mxu0 0.0
    %6152 = vmatprep.subr.mxu0 0.0
    %6153 = vmatpush1.msra.mxu0 0.0
    %6154 = vmatprep.subr.mxu0 0.0
    %6155 = vmatpush1.msra.mxu0 0.0
    %6156 = vmatprep.subr.mxu0 0.0
    %6157 = vmatpush1.msra.mxu0 0.0
    %6158 = vmatprep.subr.mxu0 0.0
    %6159 = vmatpush1.msra.mxu0 0.0
    %6160 = vmatprep.subr.mxu0 0.0
    %6161 = vmatpush1.msra.mxu0 0.0
    %6162 = vmatprep.subr.mxu0 0.0
    %6163 = vmatpush1.msra.mxu0 0.0
    %6164 = vmatprep.mubr.f32.mxu0 0.0
    %6165 = vmatmul.mubr.f32.gmra.mrb[0].mxu0 %v6098
    %v6166 = vpop.f32.mrb[0].mxu0
    %v6167 = vadd.f32 0.0, %v6166
    %v6168 = vpop.f32.mrb[0].mxu0
    %6169 = vdwg.mxu0
    %v6170 = vadd.f32 %v6096, %v6167
    %v6172 = vsel %vm154, %v3112, 0
    %6174 = vmatprep.subr.mxu0 0.0
    %6175 = vmatpush1.msra.mxu0 %v6082
    %6176 = vmatprep.subr.mxu0 0.0
    %6177 = vmatpush1.msra.mxu0 %v6083
    %6178 = vmatprep.subr.mxu0 0.0
    %6179 = vmatpush1.msra.mxu0 0.0
    %6180 = vmatprep.subr.mxu0 0.0
    %6181 = vmatpush1.msra.mxu0 0.0
    %6182 = vmatprep.subr.mxu0 0.0
    %6183 = vmatpush1.msra.mxu0 0.0
    %6184 = vmatprep.subr.mxu0 0.0
    %6185 = vmatpush1.msra.mxu0 0.0
    %6186 = vmatprep.subr.mxu0 0.0
    %6187 = vmatpush1.msra.mxu0 0.0
    %6188 = vmatprep.subr.mxu0 0.0
    %6189 = vmatpush1.msra.mxu0 0.0
    %6190 = vmatprep.subr.mxu0 0.0
    %6191 = vmatpush1.msra.mxu0 0.0
    %6192 = vmatprep.subr.mxu0 0.0
    %6193 = vmatpush1.msra.mxu0 0.0
    %6194 = vmatprep.subr.mxu0 0.0
    %6195 = vmatpush1.msra.mxu0 0.0
    %6196 = vmatprep.subr.mxu0 0.0
    %6197 = vmatpush1.msra.mxu0 0.0
    %6198 = vmatprep.subr.mxu0 0.0
    %6199 = vmatpush1.msra.mxu0 0.0
    %6200 = vmatprep.subr.mxu0 0.0
    %6201 = vmatpush1.msra.mxu0 0.0
    %6202 = vmatprep.subr.mxu0 0.0
    %6203 = vmatpush1.msra.mxu0 0.0
    %6204 = vmatprep.subr.mxu0 0.0
    %6205 = vmatpush1.msra.mxu0 0.0
    %6206 = vmatprep.subr.mxu0 0.0
    %6207 = vmatpush1.msra.mxu0 0.0
    %6208 = vmatprep.subr.mxu0 0.0
    %6209 = vmatpush1.msra.mxu0 0.0
    %6210 = vmatprep.subr.mxu0 0.0
    %6211 = vmatpush1.msra.mxu0 0.0
    %6212 = vmatprep.subr.mxu0 0.0
    %6213 = vmatpush1.msra.mxu0 0.0
    %6214 = vmatprep.subr.mxu0 0.0
    %6215 = vmatpush1.msra.mxu0 0.0
    %6216 = vmatprep.subr.mxu0 0.0
    %6217 = vmatpush1.msra.mxu0 0.0
    %6218 = vmatprep.subr.mxu0 0.0
    %6219 = vmatpush1.msra.mxu0 0.0
    %6220 = vmatprep.subr.mxu0 0.0
    %6221 = vmatpush1.msra.mxu0 0.0
    %6222 = vmatprep.subr.mxu0 0.0
    %6223 = vmatpush1.msra.mxu0 0.0
    %6224 = vmatprep.subr.mxu0 0.0
    %6225 = vmatpush1.msra.mxu0 0.0
    %6226 = vmatprep.subr.mxu0 0.0
    %6227 = vmatpush1.msra.mxu0 0.0
    %6228 = vmatprep.subr.mxu0 0.0
    %6229 = vmatpush1.msra.mxu0 0.0
    %6230 = vmatprep.subr.mxu0 0.0
    %6231 = vmatpush1.msra.mxu0 0.0
    %6232 = vmatprep.subr.mxu0 0.0
    %6233 = vmatpush1.msra.mxu0 0.0
    %6234 = vmatprep.subr.mxu0 0.0
    %6235 = vmatpush1.msra.mxu0 0.0
    %6236 = vmatprep.subr.mxu0 0.0
    %6237 = vmatpush1.msra.mxu0 0.0
    %6238 = vmatprep.mubr.f32.mxu0 0.0
    %6239 = vmatmul.mubr.f32.gmra.mrb[0].mxu0 %v6172
    %v6240 = vpop.f32.mrb[0].mxu0
    %v6241 = vadd.f32 0.0, %v6240
    %v6242 = vpop.f32.mrb[0].mxu0
    %6243 = vdwg.mxu0
    %v6244 = vadd.f32 %v6170, %v6241
    %v6246 = vsel %vm154, %v5728, 0
    %6248 = vmatprep.subr.mxu0 0.0
    %6249 = vmatpush1.msra.mxu0 %v6084
    %6250 = vmatprep.subr.mxu0 0.0
    %6251 = vmatpush1.msra.mxu0 %v6085
    %6252 = vmatprep.subr.mxu0 0.0
    %6253 = vmatpush1.msra.mxu0 0.0
    %6254 = vmatprep.subr.mxu0 0.0
    %6255 = vmatpush1.msra.mxu0 0.0
    %6256 = vmatprep.subr.mxu0 0.0
    %6257 = vmatpush1.msra.mxu0 0.0
    %6258 = vmatprep.subr.mxu0 0.0
    %6259 = vmatpush1.msra.mxu0 0.0
    %6260 = vmatprep.subr.mxu0 0.0
    %6261 = vmatpush1.msra.mxu0 0.0
    %6262 = vmatprep.subr.mxu0 0.0
    %6263 = vmatpush1.msra.mxu0 0.0
    %6264 = vmatprep.subr.mxu0 0.0
    %6265 = vmatpush1.msra.mxu0 0.0
    %6266 = vmatprep.subr.mxu0 0.0
    %6267 = vmatpush1.msra.mxu0 0.0
    %6268 = vmatprep.subr.mxu0 0.0
    %6269 = vmatpush1.msra.mxu0 0.0
    %6270 = vmatprep.subr.mxu0 0.0
    %6271 = vmatpush1.msra.mxu0 0.0
    %6272 = vmatprep.subr.mxu0 0.0
    %6273 = vmatpush1.msra.mxu0 0.0
    %6274 = vmatprep.subr.mxu0 0.0
    %6275 = vmatpush1.msra.mxu0 0.0
    %6276 = vmatprep.subr.mxu0 0.0
    %6277 = vmatpush1.msra.mxu0 0.0
    %6278 = vmatprep.subr.mxu0 0.0
    %6279 = vmatpush1.msra.mxu0 0.0
    %6280 = vmatprep.subr.mxu0 0.0
    %6281 = vmatpush1.msra.mxu0 0.0
    %6282 = vmatprep.subr.mxu0 0.0
    %6283 = vmatpush1.msra.mxu0 0.0
    %6284 = vmatprep.subr.mxu0 0.0
    %6285 = vmatpush1.msra.mxu0 0.0
    %6286 = vmatprep.subr.mxu0 0.0
    %6287 = vmatpush1.msra.mxu0 0.0
    %6288 = vmatprep.subr.mxu0 0.0
    %6289 = vmatpush1.msra.mxu0 0.0
    %6290 = vmatprep.subr.mxu0 0.0
    %6291 = vmatpush1.msra.mxu0 0.0
    %6292 = vmatprep.subr.mxu0 0.0
    %6293 = vmatpush1.msra.mxu0 0.0
    %6294 = vmatprep.subr.mxu0 0.0
    %6295 = vmatpush1.msra.mxu0 0.0
    %6296 = vmatprep.subr.mxu0 0.0
    %6297 = vmatpush1.msra.mxu0 0.0
    %6298 = vmatprep.subr.mxu0 0.0
    %6299 = vmatpush1.msra.mxu0 0.0
    %6300 = vmatprep.subr.mxu0 0.0
    %6301 = vmatpush1.msra.mxu0 0.0
    %6302 = vmatprep.subr.mxu0 0.0
    %6303 = vmatpush1.msra.mxu0 0.0
    %6304 = vmatprep.subr.mxu0 0.0
    %6305 = vmatpush1.msra.mxu0 0.0
    %6306 = vmatprep.subr.mxu0 0.0
    %6307 = vmatpush1.msra.mxu0 0.0
    %6308 = vmatprep.subr.mxu0 0.0
    %6309 = vmatpush1.msra.mxu0 0.0
    %6310 = vmatprep.subr.mxu0 0.0
    %6311 = vmatpush1.msra.mxu0 0.0
    %6312 = vmatprep.mubr.f32.mxu0 0.0
    %6313 = vmatmul.mubr.f32.gmra.mrb[0].mxu0 %v6246
    %v6314 = vpop.f32.mrb[0].mxu0
    %v6315 = vadd.f32 0.0, %v6314
    %v6316 = vpop.f32.mrb[0].mxu0
    %6317 = vdwg.mxu0
    %v6318 = vadd.f32 %v6244, %v6315
    %v6320 = vsel %vm154, %v6079, 0
    %6322 = vmatprep.subr.mxu0 0.0
    %6323 = vmatpush1.msra.mxu0 %v6086
    %6324 = vmatprep.subr.mxu0 0.0
    %6325 = vmatpush1.msra.mxu0 %v6087
    %6326 = vmatprep.subr.mxu0 0.0
    %6327 = vmatpush1.msra.mxu0 0.0
    %6328 = vmatprep.subr.mxu0 0.0
    %6329 = vmatpush1.msra.mxu0 0.0
    %6330 = vmatprep.subr.mxu0 0.0
    %6331 = vmatpush1.msra.mxu0 0.0
    %6332 = vmatprep.subr.mxu0 0.0
    %6333 = vmatpush1.msra.mxu0 0.0
    %6334 = vmatprep.subr.mxu0 0.0
    %6335 = vmatpush1.msra.mxu0 0.0
    %6336 = vmatprep.subr.mxu0 0.0
    %6337 = vmatpush1.msra.mxu0 0.0
    %6338 = vmatprep.subr.mxu0 0.0
    %6339 = vmatpush1.msra.mxu0 0.0
    %6340 = vmatprep.subr.mxu0 0.0
    %6341 = vmatpush1.msra.mxu0 0.0
    %6342 = vmatprep.subr.mxu0 0.0
    %6343 = vmatpush1.msra.mxu0 0.0
    %6344 = vmatprep.subr.mxu0 0.0
    %6345 = vmatpush1.msra.mxu0 0.0
    %6346 = vmatprep.subr.mxu0 0.0
    %6347 = vmatpush1.msra.mxu0 0.0
    %6348 = vmatprep.subr.mxu0 0.0
    %6349 = vmatpush1.msra.mxu0 0.0
    %6350 = vmatprep.subr.mxu0 0.0
    %6351 = vmatpush1.msra.mxu0 0.0
    %6352 = vmatprep.subr.mxu0 0.0
    %6353 = vmatpush1.msra.mxu0 0.0
    %6354 = vmatprep.subr.mxu0 0.0
    %6355 = vmatpush1.msra.mxu0 0.0
    %6356 = vmatprep.subr.mxu0 0.0
    %6357 = vmatpush1.msra.mxu0 0.0
    %6358 = vmatprep.subr.mxu0 0.0
    %6359 = vmatpush1.msra.mxu0 0.0
    %6360 = vmatprep.subr.mxu0 0.0
    %6361 = vmatpush1.msra.mxu0 0.0
    %6362 = vmatprep.subr.mxu0 0.0
    %6363 = vmatpush1.msra.mxu0 0.0
    %6364 = vmatprep.subr.mxu0 0.0
    %6365 = vmatpush1.msra.mxu0 0.0
    %6366 = vmatprep.subr.mxu0 0.0
    %6367 = vmatpush1.msra.mxu0 0.0
    %6368 = vmatprep.subr.mxu0 0.0
    %6369 = vmatpush1.msra.mxu0 0.0
    %6370 = vmatprep.subr.mxu0 0.0
    %6371 = vmatpush1.msra.mxu0 0.0
    %6372 = vmatprep.subr.mxu0 0.0
    %6373 = vmatpush1.msra.mxu0 0.0
    %6374 = vmatprep.subr.mxu0 0.0
    %6375 = vmatpush1.msra.mxu0 0.0
    %6376 = vmatprep.subr.mxu0 0.0
    %6377 = vmatpush1.msra.mxu0 0.0
    %6378 = vmatprep.subr.mxu0 0.0
    %6379 = vmatpush1.msra.mxu0 0.0
    %6380 = vmatprep.subr.mxu0 0.0
    %6381 = vmatpush1.msra.mxu0 0.0
    %6382 = vmatprep.subr.mxu0 0.0
    %6383 = vmatpush1.msra.mxu0 0.0
    %6384 = vmatprep.subr.mxu0 0.0
    %6385 = vmatpush1.msra.mxu0 0.0
    %6386 = vmatprep.mubr.f32.mxu0 0.0
    %6387 = vmatmul.mubr.f32.gmra.mrb[0].mxu0 %v6320
    %v6388 = vpop.f32.mrb[0].mxu0
    %v6389 = vadd.f32 0.0, %v6388
    %v6390 = vpop.f32.mrb[0].mxu0
    %6391 = vdwg.mxu0
    %v6392 = vadd.f32 %v6318, %v6389
    %6393 = vrot.lane.b32.xlu0 %v95, 112
    %v6394 = vpop.permute.xlu0 %6393
    %vm6395 = vcmask 31744
    %v6396 = vsel %vm6395, %v6394, 0
    %vm6398 = vcmask 1043456
    %v6400 = vsel %vm6398, %v6088, 0
    %6402 = vmatprep.subr.mxu0 0.0
    %6403 = vmatpush1.msra.mxu0 %v6400
    %6404 = vmatprep.subr.mxu0 0.0
    %6405 = vmatpush1.msra.mxu0 0.0
    %6406 = vmatprep.subr.mxu0 0.0
    %6407 = vmatpush1.msra.mxu0 0.0
    %6408 = vmatprep.subr.mxu0 0.0
    %6409 = vmatpush1.msra.mxu0 0.0
    %6410 = vmatprep.subr.mxu0 0.0
    %6411 = vmatpush1.msra.mxu0 0.0
    %6412 = vmatprep.subr.mxu0 0.0
    %6413 = vmatpush1.msra.mxu0 0.0
    %6414 = vmatprep.subr.mxu0 0.0
    %6415 = vmatpush1.msra.mxu0 0.0
    %6416 = vmatprep.subr.mxu0 0.0
    %6417 = vmatpush1.msra.mxu0 0.0
    %6418 = vmatprep.subr.mxu0 0.0
    %6419 = vmatpush1.msra.mxu0 0.0
    %6420 = vmatprep.subr.mxu0 0.0
    %6421 = vmatpush1.msra.mxu0 0.0
    %6422 = vmatprep.subr.mxu0 0.0
    %6423 = vmatpush1.msra.mxu0 0.0
    %6424 = vmatprep.subr.mxu0 0.0
    %6425 = vmatpush1.msra.mxu0 0.0
    %6426 = vmatprep.subr.mxu0 0.0
    %6427 = vmatpush1.msra.mxu0 0.0
    %6428 = vmatprep.subr.mxu0 0.0
    %6429 = vmatpush1.msra.mxu0 0.0
    %6430 = vmatprep.subr.mxu0 0.0
    %6431 = vmatpush1.msra.mxu0 0.0
    %6432 = vmatprep.subr.mxu0 0.0
    %6433 = vmatpush1.msra.mxu0 0.0
    %6434 = vmatprep.subr.mxu0 0.0
    %6435 = vmatpush1.msra.mxu0 0.0
    %6436 = vmatprep.subr.mxu0 0.0
    %6437 = vmatpush1.msra.mxu0 0.0
    %6438 = vmatprep.subr.mxu0 0.0
    %6439 = vmatpush1.msra.mxu0 0.0
    %6440 = vmatprep.subr.mxu0 0.0
    %6441 = vmatpush1.msra.mxu0 0.0
    %6442 = vmatprep.subr.mxu0 0.0
    %6443 = vmatpush1.msra.mxu0 0.0
    %6444 = vmatprep.subr.mxu0 0.0
    %6445 = vmatpush1.msra.mxu0 0.0
    %6446 = vmatprep.subr.mxu0 0.0
    %6447 = vmatpush1.msra.mxu0 0.0
    %6448 = vmatprep.subr.mxu0 0.0
    %6449 = vmatpush1.msra.mxu0 0.0
    %6450 = vmatprep.subr.mxu0 0.0
    %6451 = vmatpush1.msra.mxu0 0.0
    %6452 = vmatprep.subr.mxu0 0.0
    %6453 = vmatpush1.msra.mxu0 0.0
    %6454 = vmatprep.subr.mxu0 0.0
    %6455 = vmatpush1.msra.mxu0 0.0
    %6456 = vmatprep.subr.mxu0 0.0
    %6457 = vmatpush1.msra.mxu0 0.0
    %6458 = vmatprep.subr.mxu0 0.0
    %6459 = vmatpush1.msra.mxu0 0.0
    %6460 = vmatprep.subr.mxu0 0.0
    %6461 = vmatpush1.msra.mxu0 0.0
    %6462 = vmatprep.subr.mxu0 0.0
    %6463 = vmatpush1.msra.mxu0 0.0
    %6464 = vmatprep.subr.mxu0 0.0
    %6465 = vmatpush1.msra.mxu0 0.0
    %6466 = vmatprep.mubr.f32.mxu0 0.0
    %6467 = vmatmul.mubr.f32.gmra.mrb[0].mxu0 %v6396
    %v6468 = vpop.f32.mrb[0].mxu0
    %v6469 = vadd.f32 0.0, %v6468
    %v6470 = vpop.f32.mrb[0].mxu0
    %6471 = vdwg.mxu0
    %v6472 = vadd.f32 %v6392, %v6469
    %v6473 = vmax.f32 %v6472, 0.0
    %v6474 = vld [vmem:[%s8] sm:$0xff]
    %v6475 = vld [vmem:[%s8 + $0x8] sm:$0xff]
    %v6476 = vld [vmem:[%s8 + $0x10] sm:$0xff]
    %v6477 = vld [vmem:[%s9] sm:$0x1]
    %v6479 = vlaneseq
    %v6480 = vshrl.u32 %v6479, 7
    %v6481 = vsub.s32 0, %v6480
    %v6482 = vrot.slane %v6477, %v6481
    %vm6484 = vcmask 195584
    %v6486 = vsel %vm6484, %v6473, 0
    %6488 = vmatprep.subr.mxu0 0.0
    %6489 = vmatpush1.msra.mxu0 %v6474
    %6490 = vmatprep.subr.mxu0 0.0
    %6491 = vmatpush1.msra.mxu0 %v6475
    %6492 = vmatprep.subr.mxu0 0.0
    %6493 = vmatpush1.msra.mxu0 %v6476
    %6494 = vmatprep.subr.mxu0 0.0
    %6495 = vmatpush1.msra.mxu0 0.0
    %6496 = vmatprep.subr.mxu0 0.0
    %6497 = vmatpush1.msra.mxu0 0.0
    %6498 = vmatprep.subr.mxu0 0.0
    %6499 = vmatpush1.msra.mxu0 0.0
    %6500 = vmatprep.subr.mxu0 0.0
    %6501 = vmatpush1.msra.mxu0 0.0
    %6502 = vmatprep.subr.mxu0 0.0
    %6503 = vmatpush1.msra.mxu0 0.0
    %6504 = vmatprep.subr.mxu0 0.0
    %6505 = vmatpush1.msra.mxu0 0.0
    %6506 = vmatprep.subr.mxu0 0.0
    %6507 = vmatpush1.msra.mxu0 0.0
    %6508 = vmatprep.subr.mxu0 0.0
    %6509 = vmatpush1.msra.mxu0 0.0
    %6510 = vmatprep.subr.mxu0 0.0
    %6511 = vmatpush1.msra.mxu0 0.0
    %6512 = vmatprep.subr.mxu0 0.0
    %6513 = vmatpush1.msra.mxu0 0.0
    %6514 = vmatprep.subr.mxu0 0.0
    %6515 = vmatpush1.msra.mxu0 0.0
    %6516 = vmatprep.subr.mxu0 0.0
    %6517 = vmatpush1.msra.mxu0 0.0
    %6518 = vmatprep.subr.mxu0 0.0
    %6519 = vmatpush1.msra.mxu0 0.0
    %6520 = vmatprep.subr.mxu0 0.0
    %6521 = vmatpush1.msra.mxu0 0.0
    %6522 = vmatprep.subr.mxu0 0.0
    %6523 = vmatpush1.msra.mxu0 0.0
    %6524 = vmatprep.subr.mxu0 0.0
    %6525 = vmatpush1.msra.mxu0 0.0
    %6526 = vmatprep.subr.mxu0 0.0
    %6527 = vmatpush1.msra.mxu0 0.0
    %6528 = vmatprep.subr.mxu0 0.0
    %6529 = vmatpush1.msra.mxu0 0.0
    %6530 = vmatprep.subr.mxu0 0.0
    %6531 = vmatpush1.msra.mxu0 0.0
    %6532 = vmatprep.subr.mxu0 0.0
    %6533 = vmatpush1.msra.mxu0 0.0
    %6534 = vmatprep.subr.mxu0 0.0
    %6535 = vmatpush1.msra.mxu0 0.0
    %6536 = vmatprep.subr.mxu0 0.0
    %6537 = vmatpush1.msra.mxu0 0.0
    %6538 = vmatprep.subr.mxu0 0.0
    %6539 = vmatpush1.msra.mxu0 0.0
    %6540 = vmatprep.subr.mxu0 0.0
    %6541 = vmatpush1.msra.mxu0 0.0
    %6542 = vmatprep.subr.mxu0 0.0
    %6543 = vmatpush1.msra.mxu0 0.0
    %6544 = vmatprep.subr.mxu0 0.0
    %6545 = vmatpush1.msra.mxu0 0.0
    %6546 = vmatprep.subr.mxu0 0.0
    %6547 = vmatpush1.msra.mxu0 0.0
    %6548 = vmatprep.subr.mxu0 0.0
    %6549 = vmatpush1.msra.mxu0 0.0
    %6550 = vmatprep.subr.mxu0 0.0
    %6551 = vmatpush1.msra.mxu0 0.0
    %6552 = vmatprep.mubr.f32.mxu0 0.0
    %6553 = vmatmul.mubr.f32.gmra.mrb[0].mxu0 %v6486
    %v6554 = vpop.f32.mrb[0].mxu0
    %v6555 = vadd.f32 %v6482, %v6554
    %v6556 = vpop.f32.mrb[0].mxu0
    %6557 = vdwg.mxu0
    %v6558 = vmax.f32 %v6555, 0.0
    %v6559 = vld [vmem:[%s10] sm:$0xff]
    %v6560 = vld [vmem:[%s10 + $0x8] sm:$0xff]
    %v6561 = vld [vmem:[%s10 + $0x10] sm:$0xff]
    %v6562 = vld [vmem:[%s11] sm:$0x1]
    %v6564 = vlaneseq
    %v6565 = vshrl.u32 %v6564, 7
    %v6566 = vsub.s32 0, %v6565
    %v6567 = vrot.slane %v6562, %v6566
    %v6570 = vsel %vm6484, %v6558, 0
    %6572 = vmatprep.subr.mxu0 0.0
    %6573 = vmatpush1.msra.mxu0 %v6559
    %6574 = vmatprep.subr.mxu0 0.0
    %6575 = vmatpush1.msra.mxu0 %v6560
    %6576 = vmatprep.subr.mxu0 0.0
    %6577 = vmatpush1.msra.mxu0 %v6561
    %6578 = vmatprep.subr.mxu0 0.0
    %6579 = vmatpush1.msra.mxu0 0.0
    %6580 = vmatprep.subr.mxu0 0.0
    %6581 = vmatpush1.msra.mxu0 0.0
    %6582 = vmatprep.subr.mxu0 0.0
    %6583 = vmatpush1.msra.mxu0 0.0
    %6584 = vmatprep.subr.mxu0 0.0
    %6585 = vmatpush1.msra.mxu0 0.0
    %6586 = vmatprep.subr.mxu0 0.0
    %6587 = vmatpush1.msra.mxu0 0.0
    %6588 = vmatprep.subr.mxu0 0.0
    %6589 = vmatpush1.msra.mxu0 0.0
    %6590 = vmatprep.subr.mxu0 0.0
    %6591 = vmatpush1.msra.mxu0 0.0
    %6592 = vmatprep.subr.mxu0 0.0
    %6593 = vmatpush1.msra.mxu0 0.0
    %6594 = vmatprep.subr.mxu0 0.0
    %6595 = vmatpush1.msra.mxu0 0.0
    %6596 = vmatprep.subr.mxu0 0.0
    %6597 = vmatpush1.msra.mxu0 0.0
    %6598 = vmatprep.subr.mxu0 0.0
    %6599 = vmatpush1.msra.mxu0 0.0
    %6600 = vmatprep.subr.mxu0 0.0
    %6601 = vmatpush1.msra.mxu0 0.0
    %6602 = vmatprep.subr.mxu0 0.0
    %6603 = vmatpush1.msra.mxu0 0.0
    %6604 = vmatprep.subr.mxu0 0.0
    %6605 = vmatpush1.msra.mxu0 0.0
    %6606 = vmatprep.subr.mxu0 0.0
    %6607 = vmatpush1.msra.mxu0 0.0
    %6608 = vmatprep.subr.mxu0 0.0
    %6609 = vmatpush1.msra.mxu0 0.0
    %6610 = vmatprep.subr.mxu0 0.0
    %6611 = vmatpush1.msra.mxu0 0.0
    %6612 = vmatprep.subr.mxu0 0.0
    %6613 = vmatpush1.msra.mxu0 0.0
    %6614 = vmatprep.subr.mxu0 0.0
    %6615 = vmatpush1.msra.mxu0 0.0
    %6616 = vmatprep.subr.mxu0 0.0
    %6617 = vmatpush1.msra.mxu0 0.0
    %6618 = vmatprep.subr.mxu0 0.0
    %6619 = vmatpush1.msra.mxu0 0.0
    %6620 = vmatprep.subr.mxu0 0.0
    %6621 = vmatpush1.msra.mxu0 0.0
    %6622 = vmatprep.subr.mxu0 0.0
    %6623 = vmatpush1.msra.mxu0 0.0
    %6624 = vmatprep.subr.mxu0 0.0
    %6625 = vmatpush1.msra.mxu0 0.0
    %6626 = vmatprep.subr.mxu0 0.0
    %6627 = vmatpush1.msra.mxu0 0.0
    %6628 = vmatprep.subr.mxu0 0.0
    %6629 = vmatpush1.msra.mxu0 0.0
    %6630 = vmatprep.subr.mxu0 0.0
    %6631 = vmatpush1.msra.mxu0 0.0
    %6632 = vmatprep.subr.mxu0 0.0
    %6633 = vmatpush1.msra.mxu0 0.0
    %6634 = vmatprep.subr.mxu0 0.0
    %6635 = vmatpush1.msra.mxu0 0.0
    %6636 = vmatprep.mubr.f32.mxu0 0.0
    %6637 = vmatmul.mubr.f32.gmra.mrb[0].mxu0 %v6570
    %v6638 = vpop.f32.mrb[0].mxu0
    %v6639 = vadd.f32 %v6567, %v6638
    %v6640 = vpop.f32.mrb[0].mxu0
    %6641 = vdwg.mxu0
    %6642 = vst [vmem:[#allocation10] sm:$0xff] %v6639
    // Predicated region
    $region66: #{tpu_custom_call.1} parent=1 // pred_check
      _
    $region67: #{tpu_custom_call.1} parent=1 // pred_check_branch
      %6644 = sbr.rel (0) target = $region69
    $region68: #{tpu_custom_call.1} parent=1 // pred_region
      %s6646 = ssub.s32 128, 128
      %6647 = vsyncadd [#allocation4], %s6646
      %s6649 = sshll.u32 [#allocation10], 4
      %s6650 = int_to_ptr.vmem [resolvable:$true] %s6649
      %6652 = dma.vmem_to_hbm [thread:$0]  %s6650, 128, %s12, [#allocation4]
    $region69: #{tpu_custom_call.1} parent=1 // pred_fallthru
      _
    // Predicated region
    $region70: #{tpu_custom_call.1} parent=1 // pred_check
      _
    $region71: #{tpu_custom_call.1} parent=1 // pred_check_branch
      %6654 = sbr.rel (0) target = $region73
    $region72: #{tpu_custom_call.1} parent=1 // pred_region
      %6655 = dma.done [#allocation4], 128
    $region73: #{tpu_custom_call.1} parent=1 // pred_fallthru
      _
    %6656 = vsyncpa [#allocation3], 1
    %6657 = vsyncpa [#allocation6], 1
    %6658 = vsyncpa [#allocation9], 1
    %6659 = vsyncpa [#allocation4], 1

</llo_original>
